<compile_context>
chip_gen: v7x
topology: tpu7x:2x2x1
jax: 0.10.0
libtpu: 0.0.40
codegen_flags: <defaults>
</compile_context>

<pallas_src>
import jax
import jax.numpy as jnp
from jax import lax
from jax.experimental import pallas as pl
from jax.experimental.pallas import tpu as pltpu

# -------------------- model hyper-parameters (from __init__) --------------------
D_IN = 6
D_MODEL = 64
N_HEAD = 4
HEAD_DIM = D_MODEL // N_HEAD      # 16
D_FF = 256
N_LAYERS = 4
NUM_CLASS = 2
LN_EPS = 1e-5                     # layer_norm_eps
STOP_TOKEN = -1.0                 # self.config['stop_token']
PADDING_VALUE = -99.0             # self.config['padding_value']
NEG_BIG = -1e30                   # finite "-inf" mask bias (robust to all-masked rows)


def _layer_norm(x, w, b):
    mu = jnp.mean(x, axis=-1, keepdims=True)
    xc = x - mu
    var = jnp.mean(xc * xc, axis=-1, keepdims=True)
    return xc * lax.rsqrt(var + LN_EPS) * w + b


def _softmax_last(x):
    m = jnp.max(x, axis=-1, keepdims=True)
    e = jnp.exp(x - m)
    return e / jnp.sum(e, axis=-1, keepdims=True)


def transformer_cls_kernel(
    x_ref,
    w_emb_ref, b_emb_ref,
    wqkv_ref, bqkv_ref, wo_ref, bo_ref,
    ln1w_ref, ln1b_ref, ln2w_ref, ln2b_ref,
    w1_ref, b1_ref, w2_ref, b2_ref,
    probs_ref,
):
    x = x_ref[...]                                   # (BB, S, 6) f32
    BB, S, _ = x.shape
    R = BB * S

    # ---- get_mask(): src_key_padding_mask, True = masked key position ----
    feat0 = x[:, :, 0]                               # mask[:, :, 0] in PyTorch
    pos = lax.broadcasted_iota(jnp.int32, (BB, S), 1)
    key_mask = (feat0 == STOP_TOKEN) | (feat0 == PADDING_VALUE) | (pos == 0)
    # finite large-negative bias; broadcast hoisted once and reused by every head/layer
    mask_b = jnp.where(key_mask, NEG_BIG, 0.0).astype(jnp.float32)[:, None, :]   # (BB,1,S)

    # ---- self.embading: Linear(6 -> 64) on flattened rows ----
    h = jnp.dot(x.reshape(R, D_IN), w_emb_ref[...],
                preferred_element_type=jnp.float32) + b_emb_ref[...]             # (R, 64)

    scale = 1.0 / (HEAD_DIM ** 0.5)

    # ---- 4 post-norm TransformerEncoderLayers ----
    for l in range(N_LAYERS):
        # fused QKV projection: one (R,64)x(64,192) matmul
        qkv = jnp.dot(h, wqkv_ref[l],
                      preferred_element_type=jnp.float32) + bqkv_ref[l]          # (R, 192)

        heads = []
        for hd in range(N_HEAD):
            lo = hd * HEAD_DIM
            q = qkv[:, lo:lo + HEAD_DIM].reshape(BB, S, HEAD_DIM)
            k = qkv[:, D_MODEL + lo:D_MODEL + lo + HEAD_DIM].reshape(BB, S, HEAD_DIM)
            v = qkv[:, 2 * D_MODEL + lo:2 * D_MODEL + lo + HEAD_DIM].reshape(BB, S, HEAD_DIM)
            s = jnp.einsum('bqd,bkd->bqk', q, k,
                           preferred_element_type=jnp.float32) * scale
            p = _softmax_last(s + mask_b)            # mask keys for every query
            heads.append(jnp.einsum('bqk,bkd->bqd', p, v,
                                    preferred_element_type=jnp.float32).reshape(R, HEAD_DIM))

        # concat heads once, single out-projection matmul (no per-head Wo folding)
        attn = jnp.concatenate(heads, axis=-1)                                   # (R, 64)
        attn = jnp.dot(attn, wo_ref[l],
                       preferred_element_type=jnp.float32) + bo_ref[l]

        h = _layer_norm(h + attn, ln1w_ref[l], ln1b_ref[l])

        ff = jnp.dot(h, w1_ref[l], preferred_element_type=jnp.float32) + b1_ref[l]
        ff = jnp.maximum(ff, 0.0)                    # relu activation
        ff = jnp.dot(ff, w2_ref[l], preferred_element_type=jnp.float32) + b2_ref[l]

        h = _layer_norm(h + ff, ln2w_ref[l], ln2b_ref[l])

    # ---- mean over sequence, then softmax over the 64 pooled features ----
    # (matches the reference forward: softmax(dim=1) of the pooled 64-dim vector;
    #  the fc1/LeakyReLU/fc2 "z" branch is dead code and has been removed.)
    pooled = jnp.mean(h.reshape(BB, S, D_MODEL), axis=1)                         # (BB, 64)
    probs_ref[...] = _softmax_last(pooled)


# -------------------- parameters (PyTorch (out, in) convention) --------------------
def init_params(key):
    ks = jax.random.split(key, 10)
    n = lambda k, shape, s=0.1: (s * jax.random.normal(k, shape)).astype(jnp.float32)
    # NOTE: fc1/fc2 (z branch) are omitted: forward() computes z and discards it.
    return dict(
        w_emb=n(ks[0], (D_MODEL, D_IN)),
        b_emb=n(ks[1], (1, D_MODEL)),
        wqkv=n(ks[2], (N_LAYERS, 3 * D_MODEL, D_MODEL)),
        bqkv=n(ks[3], (N_LAYERS, 1, 3 * D_MODEL)),
        wo=n(ks[4], (N_LAYERS, D_MODEL, D_MODEL)),
        bo=n(ks[5], (N_LAYERS, 1, D_MODEL)),
        ln1w=jnp.ones((N_LAYERS, 1, D_MODEL), jnp.float32),
        ln1b=jnp.zeros((N_LAYERS, 1, D_MODEL), jnp.float32),
        ln2w=jnp.ones((N_LAYERS, 1, D_MODEL), jnp.float32),
        ln2b=jnp.zeros((N_LAYERS, 1, D_MODEL), jnp.float32),
        w1=n(ks[6], (N_LAYERS, D_FF, D_MODEL)),
        b1=n(ks[7], (N_LAYERS, 1, D_FF)),
        w2=n(ks[8], (N_LAYERS, D_MODEL, D_FF)),
        b2=n(ks[9], (N_LAYERS, 1, D_MODEL)),
    )


PARAM_ORDER = ("w_emb", "b_emb", "wqkv", "bqkv", "wo", "bo",
               "ln1w", "ln1b", "ln2w", "ln2b",
               "w1", "b1", "w2", "b2")


def _kernel_weights(params):
    """Pre-transpose PyTorch (out, in) weights to (in, out) once, outside the kernel."""
    p = dict(params)
    for name in ("w_emb", "wqkv", "wo", "w1", "w2"):
        p[name] = jnp.swapaxes(params[name], -1, -2)
    return tuple(p[k] for k in PARAM_ORDER)


def _batch_block(B):
    # second-to-last dim of the (bb, 64) output block must be divisible by 8 or equal B
    if B % 8 != 0:
        return B
    bb = 8
    while bb * 2 <= min(B, 256) and B % (bb * 2) == 0:
        bb *= 2
    return bb


@jax.jit
def transformer_cls_forward(x, params):
    B, S, _ = x.shape
    weights = _kernel_weights(params)
    bb = _batch_block(B)
    grid = (B // bb,)

    x_spec = pl.BlockSpec((bb, S, D_IN), lambda b: (b, 0, 0))
    # weights: full-array blocks with a constant index map -> stay resident in VMEM
    w_specs = [pl.BlockSpec(w.shape, lambda b, _nd=w.ndim: (0,) * _nd) for w in weights]
    out_spec = pl.BlockSpec((bb, D_MODEL), lambda b: (b, 0))

    probs = pl.pallas_call(
        transformer_cls_kernel,
        out_shape=jax.ShapeDtypeStruct((B, D_MODEL), jnp.float32),
        grid=grid,
        in_specs=[x_spec] + w_specs,
        out_specs=out_spec,
        compiler_params=pltpu.CompilerParams(
            dimension_semantics=("parallel",)),
    )(x, *weights)
    # PyTorch forward returns softmax(mean(encoder(...))); z is discarded there.
    return probs


if __name__ == "__main__":
    B, S = 2, 8
    key = jax.random.PRNGKey(0)
    k_x, k_p = jax.random.split(key)

    x = jax.random.normal(k_x, (B, S, D_IN), dtype=jnp.float32)
    # make some positions exact stop / padding tokens so get_mask() is nontrivial
    x = x.at[:, -2:, :].set(PADDING_VALUE)
    x = x.at[0, 3, :].set(STOP_TOKEN)

    params = init_params(k_p)

    probs = transformer_cls_forward(x, params)
    probs = jax.block_until_ready(probs)

    assert probs.shape == (B, D_MODEL)
    assert bool(jnp.all(jnp.isfinite(probs)))
    assert bool(jnp.allclose(jnp.sum(probs, axis=1), 1.0, atol=1e-5))
    print("KERNEL_OK")
</pallas_src>

<mosaic_0001>
module attributes {stable_mosaic.version = 11 : i64} {
  func.func @transformer_cls_kernel(%arg0: i32, %arg1: memref<2x8x6xf32, #tpu.memory_space<vmem>>, %arg2: memref<6x64xf32, #tpu.memory_space<vmem>>, %arg3: memref<1x64xf32, #tpu.memory_space<vmem>>, %arg4: memref<4x64x192xf32, #tpu.memory_space<vmem>>, %arg5: memref<4x1x192xf32, #tpu.memory_space<vmem>>, %arg6: memref<4x64x64xf32, #tpu.memory_space<vmem>>, %arg7: memref<4x1x64xf32, #tpu.memory_space<vmem>>, %arg8: memref<4x1x64xf32, #tpu.memory_space<vmem>>, %arg9: memref<4x1x64xf32, #tpu.memory_space<vmem>>, %arg10: memref<4x1x64xf32, #tpu.memory_space<vmem>>, %arg11: memref<4x1x64xf32, #tpu.memory_space<vmem>>, %arg12: memref<4x64x256xf32, #tpu.memory_space<vmem>>, %arg13: memref<4x1x256xf32, #tpu.memory_space<vmem>>, %arg14: memref<4x256x64xf32, #tpu.memory_space<vmem>>, %arg15: memref<4x1x64xf32, #tpu.memory_space<vmem>>, %arg16: memref<2x64xf32, #tpu.memory_space<vmem>>) attributes {dimension_semantics = [#tpu.dimension_semantics<parallel>], iteration_bounds = array<i64: 1>, scalar_prefetch = 0 : i64, scratch_operands = 0 : i64, tpu.core_type = #tpu.core_type<tc>, window_params = [{transform_indices = @transform_0, window_bounds = array<i64: 2, 8, 6>}, {pipeline_mode = #tpu.pipeline_mode<synchronous>, transform_indices = @transform_1, window_bounds = array<i64: 6, 64>}, {pipeline_mode = #tpu.pipeline_mode<synchronous>, transform_indices = @transform_2, window_bounds = array<i64: 1, 64>}, {pipeline_mode = #tpu.pipeline_mode<synchronous>, transform_indices = @transform_3, window_bounds = array<i64: 4, 64, 192>}, {pipeline_mode = #tpu.pipeline_mode<synchronous>, transform_indices = @transform_4, window_bounds = array<i64: 4, 1, 192>}, {pipeline_mode = #tpu.pipeline_mode<synchronous>, transform_indices = @transform_5, window_bounds = array<i64: 4, 64, 64>}, {pipeline_mode = #tpu.pipeline_mode<synchronous>, transform_indices = @transform_6, window_bounds = array<i64: 4, 1, 64>}, {pipeline_mode = #tpu.pipeline_mode<synchronous>, transform_indices = @transform_7, window_bounds = array<i64: 4, 1, 64>}, {pipeline_mode = #tpu.pipeline_mode<synchronous>, transform_indices = @transform_8, window_bounds = array<i64: 4, 1, 64>}, {pipeline_mode = #tpu.pipeline_mode<synchronous>, transform_indices = @transform_9, window_bounds = array<i64: 4, 1, 64>}, {pipeline_mode = #tpu.pipeline_mode<synchronous>, transform_indices = @transform_10, window_bounds = array<i64: 4, 1, 64>}, {pipeline_mode = #tpu.pipeline_mode<synchronous>, transform_indices = @transform_11, window_bounds = array<i64: 4, 64, 256>}, {pipeline_mode = #tpu.pipeline_mode<synchronous>, transform_indices = @transform_12, window_bounds = array<i64: 4, 1, 256>}, {pipeline_mode = #tpu.pipeline_mode<synchronous>, transform_indices = @transform_13, window_bounds = array<i64: 4, 256, 64>}, {pipeline_mode = #tpu.pipeline_mode<synchronous>, transform_indices = @transform_14, window_bounds = array<i64: 4, 1, 64>}, {transform_indices = @transform_15, window_bounds = array<i64: 2, 64>}]} {
    %c0 = arith.constant 0 : index
    %c0_0 = arith.constant 0 : index
    %c0_1 = arith.constant 0 : index
    %0 = vector.load %arg1[%c0, %c0_0, %c0_1] : memref<2x8x6xf32, #tpu.memory_space<vmem>>, vector<2x8x6xf32>
    %1 = vector.extract_strided_slice %0 {offsets = [0, 0, 0], sizes = [2, 8, 1], strides = [1, 1, 1]} : vector<2x8x6xf32> to vector<2x8x1xf32>
    %2 = vector.shape_cast %1 : vector<2x8x1xf32> to vector<2x8xf32>
    %3 = tpu.iota {dimensions = array<i32: 1>} : vector<2x8xi32>
    %cst = arith.constant -1.000000e+00 : f32
    %4 = vector.broadcast %cst : f32 to vector<2x8xf32>
    %5 = arith.cmpf oeq, %2, %4 : vector<2x8xf32>
    %cst_2 = arith.constant -9.900000e+01 : f32
    %6 = vector.broadcast %cst_2 : f32 to vector<2x8xf32>
    %7 = arith.cmpf oeq, %2, %6 : vector<2x8xf32>
    %8 = arith.ori %5, %7 : vector<2x8xi1>
    %c0_i32 = arith.constant 0 : i32
    %9 = vector.broadcast %c0_i32 : i32 to vector<2x8xi32>
    %10 = arith.cmpi eq, %3, %9 : vector<2x8xi32>
    %11 = arith.ori %8, %10 : vector<2x8xi1>
    %cst_3 = arith.constant -1.000000e+30 : f32
    %cst_4 = arith.constant 0.000000e+00 : f32
    %12 = vector.broadcast %cst_3 : f32 to vector<2x8xf32>
    %13 = vector.broadcast %cst_4 : f32 to vector<2x8xf32>
    %14 = arith.select %11, %12, %13 : vector<2x8xi1>, vector<2x8xf32>
    %15 = vector.shape_cast %14 : vector<2x8xf32> to vector<2x1x8xf32>
    %16 = vector.shape_cast %0 : vector<2x8x6xf32> to vector<16x6xf32>
    %c0_5 = arith.constant 0 : index
    %c0_6 = arith.constant 0 : index
    %17 = vector.load %arg2[%c0_5, %c0_6] : memref<6x64xf32, #tpu.memory_space<vmem>>, vector<6x64xf32>
    %cst_7 = arith.constant dense<0.000000e+00> : vector<16x64xf32>
    %18 = tpu.matmul %16, %17, %cst_7 {dimension_numbers = #tpu.dot_dimension_numbers<[1], [0], [0], [1], [0, 0, 1, 1], [], []>} : vector<16x6xf32>, vector<6x64xf32>, vector<16x64xf32> -> vector<16x64xf32>
    %c0_8 = arith.constant 0 : index
    %c0_9 = arith.constant 0 : index
    %19 = vector.load %arg3[%c0_8, %c0_9] : memref<1x64xf32, #tpu.memory_space<vmem>>, vector<1x64xf32>
    %20 = vector.broadcast %19 : vector<1x64xf32> to vector<16x64xf32>
    %21 = arith.addf %18, %20 : vector<16x64xf32>
    %c0_10 = arith.constant 0 : index
    %c0_11 = arith.constant 0 : index
    %c0_12 = arith.constant 0 : index
    %22 = vector.load %arg4[%c0_10, %c0_11, %c0_12] : memref<4x64x192xf32, #tpu.memory_space<vmem>>, vector<1x64x192xf32>
    %23 = vector.shape_cast %22 : vector<1x64x192xf32> to vector<64x192xf32>
    %cst_13 = arith.constant dense<0.000000e+00> : vector<16x192xf32>
    %24 = tpu.matmul %21, %23, %cst_13 {dimension_numbers = #tpu.dot_dimension_numbers<[1], [0], [0], [1], [0, 0, 1, 1], [], []>} : vector<16x64xf32>, vector<64x192xf32>, vector<16x192xf32> -> vector<16x192xf32>
    %c0_14 = arith.constant 0 : index
    %c0_15 = arith.constant 0 : index
    %c0_16 = arith.constant 0 : index
    %25 = vector.load %arg5[%c0_14, %c0_15, %c0_16] : memref<4x1x192xf32, #tpu.memory_space<vmem>>, vector<1x1x192xf32>
    %26 = vector.shape_cast %25 : vector<1x1x192xf32> to vector<1x192xf32>
    %27 = vector.broadcast %26 : vector<1x192xf32> to vector<16x192xf32>
    %28 = arith.addf %24, %27 : vector<16x192xf32>
    %29 = vector.extract_strided_slice %28 {offsets = [0, 0], sizes = [16, 16], strides = [1, 1]} : vector<16x192xf32> to vector<16x16xf32>
    %30 = vector.shape_cast %29 : vector<16x16xf32> to vector<2x8x16xf32>
    %31 = vector.extract_strided_slice %28 {offsets = [0, 64], sizes = [16, 16], strides = [1, 1]} : vector<16x192xf32> to vector<16x16xf32>
    %32 = vector.shape_cast %31 : vector<16x16xf32> to vector<2x8x16xf32>
    %33 = vector.extract_strided_slice %28 {offsets = [0, 128], sizes = [16, 16], strides = [1, 1]} : vector<16x192xf32> to vector<16x16xf32>
    %34 = vector.shape_cast %33 : vector<16x16xf32> to vector<2x8x16xf32>
    "tpu.trace_start"() <{level = 10 : i32, message = "bqd,bkd->bqk"}> : () -> ()
    %cst_17 = arith.constant dense<0.000000e+00> : vector<2x8x8xf32>
    %35 = tpu.matmul %30, %32, %cst_17 {dimension_numbers = #tpu.dot_dimension_numbers<[2], [2], [1], [1], [0, 0, 0, 1, 1, 1], [0], [0]>} : vector<2x8x16xf32>, vector<2x8x16xf32>, vector<2x8x8xf32> -> vector<2x8x8xf32>
    "tpu.trace_stop"() : () -> ()
    %cst_18 = arith.constant 2.500000e-01 : f32
    %36 = vector.broadcast %cst_18 : f32 to vector<2x8x8xf32>
    %37 = arith.mulf %35, %36 : vector<2x8x8xf32>
    %38 = vector.broadcast %15 : vector<2x1x8xf32> to vector<2x8x8xf32>
    %39 = arith.addf %37, %38 : vector<2x8x8xf32>
    %cst_19 = arith.constant dense<0xFF800000> : vector<2x8xf32>
    %40 = vector.multi_reduction <maximumf>, %39, %cst_19 [2] : vector<2x8x8xf32> to vector<2x8xf32>
    %41 = vector.shape_cast %40 : vector<2x8xf32> to vector<2x8x1xf32>
    %42 = vector.broadcast %41 : vector<2x8x1xf32> to vector<2x8x8xf32>
    %43 = arith.subf %39, %42 : vector<2x8x8xf32>
    %44 = math.exp %43 : vector<2x8x8xf32>
    %cst_20 = arith.constant dense<0.000000e+00> : vector<2x8xf32>
    %45 = vector.multi_reduction <add>, %44, %cst_20 [2] : vector<2x8x8xf32> to vector<2x8xf32>
    %46 = vector.shape_cast %45 : vector<2x8xf32> to vector<2x8x1xf32>
    %47 = vector.broadcast %46 : vector<2x8x1xf32> to vector<2x8x8xf32>
    %48 = arith.divf %44, %47 : vector<2x8x8xf32>
    "tpu.trace_start"() <{level = 10 : i32, message = "bqk,bkd->bqd"}> : () -> ()
    %cst_21 = arith.constant dense<0.000000e+00> : vector<2x8x16xf32>
    %49 = tpu.matmul %48, %34, %cst_21 {dimension_numbers = #tpu.dot_dimension_numbers<[2], [1], [1], [2], [0, 0, 0, 1, 1, 2], [0], [0]>} : vector<2x8x8xf32>, vector<2x8x16xf32>, vector<2x8x16xf32> -> vector<2x8x16xf32>
    "tpu.trace_stop"() : () -> ()
    %50 = vector.shape_cast %49 : vector<2x8x16xf32> to vector<16x16xf32>
    %51 = vector.extract_strided_slice %28 {offsets = [0, 16], sizes = [16, 16], strides = [1, 1]} : vector<16x192xf32> to vector<16x16xf32>
    %52 = vector.shape_cast %51 : vector<16x16xf32> to vector<2x8x16xf32>
    %53 = vector.extract_strided_slice %28 {offsets = [0, 80], sizes = [16, 16], strides = [1, 1]} : vector<16x192xf32> to vector<16x16xf32>
    %54 = vector.shape_cast %53 : vector<16x16xf32> to vector<2x8x16xf32>
    %55 = vector.extract_strided_slice %28 {offsets = [0, 144], sizes = [16, 16], strides = [1, 1]} : vector<16x192xf32> to vector<16x16xf32>
    %56 = vector.shape_cast %55 : vector<16x16xf32> to vector<2x8x16xf32>
    "tpu.trace_start"() <{level = 10 : i32, message = "bqd,bkd->bqk"}> : () -> ()
    %cst_22 = arith.constant dense<0.000000e+00> : vector<2x8x8xf32>
    %57 = tpu.matmul %52, %54, %cst_22 {dimension_numbers = #tpu.dot_dimension_numbers<[2], [2], [1], [1], [0, 0, 0, 1, 1, 1], [0], [0]>} : vector<2x8x16xf32>, vector<2x8x16xf32>, vector<2x8x8xf32> -> vector<2x8x8xf32>
    "tpu.trace_stop"() : () -> ()
    %cst_23 = arith.constant 2.500000e-01 : f32
    %58 = vector.broadcast %cst_23 : f32 to vector<2x8x8xf32>
    %59 = arith.mulf %57, %58 : vector<2x8x8xf32>
    %60 = vector.broadcast %15 : vector<2x1x8xf32> to vector<2x8x8xf32>
    %61 = arith.addf %59, %60 : vector<2x8x8xf32>
    %cst_24 = arith.constant dense<0xFF800000> : vector<2x8xf32>
    %62 = vector.multi_reduction <maximumf>, %61, %cst_24 [2] : vector<2x8x8xf32> to vector<2x8xf32>
    %63 = vector.shape_cast %62 : vector<2x8xf32> to vector<2x8x1xf32>
    %64 = vector.broadcast %63 : vector<2x8x1xf32> to vector<2x8x8xf32>
    %65 = arith.subf %61, %64 : vector<2x8x8xf32>
    %66 = math.exp %65 : vector<2x8x8xf32>
    %cst_25 = arith.constant dense<0.000000e+00> : vector<2x8xf32>
    %67 = vector.multi_reduction <add>, %66, %cst_25 [2] : vector<2x8x8xf32> to vector<2x8xf32>
    %68 = vector.shape_cast %67 : vector<2x8xf32> to vector<2x8x1xf32>
    %69 = vector.broadcast %68 : vector<2x8x1xf32> to vector<2x8x8xf32>
    %70 = arith.divf %66, %69 : vector<2x8x8xf32>
    "tpu.trace_start"() <{level = 10 : i32, message = "bqk,bkd->bqd"}> : () -> ()
    %cst_26 = arith.constant dense<0.000000e+00> : vector<2x8x16xf32>
    %71 = tpu.matmul %70, %56, %cst_26 {dimension_numbers = #tpu.dot_dimension_numbers<[2], [1], [1], [2], [0, 0, 0, 1, 1, 2], [0], [0]>} : vector<2x8x8xf32>, vector<2x8x16xf32>, vector<2x8x16xf32> -> vector<2x8x16xf32>
    "tpu.trace_stop"() : () -> ()
    %72 = vector.shape_cast %71 : vector<2x8x16xf32> to vector<16x16xf32>
    %73 = vector.extract_strided_slice %28 {offsets = [0, 32], sizes = [16, 16], strides = [1, 1]} : vector<16x192xf32> to vector<16x16xf32>
    %74 = vector.shape_cast %73 : vector<16x16xf32> to vector<2x8x16xf32>
    %75 = vector.extract_strided_slice %28 {offsets = [0, 96], sizes = [16, 16], strides = [1, 1]} : vector<16x192xf32> to vector<16x16xf32>
    %76 = vector.shape_cast %75 : vector<16x16xf32> to vector<2x8x16xf32>
    %77 = vector.extract_strided_slice %28 {offsets = [0, 160], sizes = [16, 16], strides = [1, 1]} : vector<16x192xf32> to vector<16x16xf32>
    %78 = vector.shape_cast %77 : vector<16x16xf32> to vector<2x8x16xf32>
    "tpu.trace_start"() <{level = 10 : i32, message = "bqd,bkd->bqk"}> : () -> ()
    %cst_27 = arith.constant dense<0.000000e+00> : vector<2x8x8xf32>
    %79 = tpu.matmul %74, %76, %cst_27 {dimension_numbers = #tpu.dot_dimension_numbers<[2], [2], [1], [1], [0, 0, 0, 1, 1, 1], [0], [0]>} : vector<2x8x16xf32>, vector<2x8x16xf32>, vector<2x8x8xf32> -> vector<2x8x8xf32>
    "tpu.trace_stop"() : () -> ()
    %cst_28 = arith.constant 2.500000e-01 : f32
    %80 = vector.broadcast %cst_28 : f32 to vector<2x8x8xf32>
    %81 = arith.mulf %79, %80 : vector<2x8x8xf32>
    %82 = vector.broadcast %15 : vector<2x1x8xf32> to vector<2x8x8xf32>
    %83 = arith.addf %81, %82 : vector<2x8x8xf32>
    %cst_29 = arith.constant dense<0xFF800000> : vector<2x8xf32>
    %84 = vector.multi_reduction <maximumf>, %83, %cst_29 [2] : vector<2x8x8xf32> to vector<2x8xf32>
    %85 = vector.shape_cast %84 : vector<2x8xf32> to vector<2x8x1xf32>
    %86 = vector.broadcast %85 : vector<2x8x1xf32> to vector<2x8x8xf32>
    %87 = arith.subf %83, %86 : vector<2x8x8xf32>
    %88 = math.exp %87 : vector<2x8x8xf32>
    %cst_30 = arith.constant dense<0.000000e+00> : vector<2x8xf32>
    %89 = vector.multi_reduction <add>, %88, %cst_30 [2] : vector<2x8x8xf32> to vector<2x8xf32>
    %90 = vector.shape_cast %89 : vector<2x8xf32> to vector<2x8x1xf32>
    %91 = vector.broadcast %90 : vector<2x8x1xf32> to vector<2x8x8xf32>
    %92 = arith.divf %88, %91 : vector<2x8x8xf32>
    "tpu.trace_start"() <{level = 10 : i32, message = "bqk,bkd->bqd"}> : () -> ()
    %cst_31 = arith.constant dense<0.000000e+00> : vector<2x8x16xf32>
    %93 = tpu.matmul %92, %78, %cst_31 {dimension_numbers = #tpu.dot_dimension_numbers<[2], [1], [1], [2], [0, 0, 0, 1, 1, 2], [0], [0]>} : vector<2x8x8xf32>, vector<2x8x16xf32>, vector<2x8x16xf32> -> vector<2x8x16xf32>
    "tpu.trace_stop"() : () -> ()
    %94 = vector.shape_cast %93 : vector<2x8x16xf32> to vector<16x16xf32>
    %95 = vector.extract_strided_slice %28 {offsets = [0, 48], sizes = [16, 16], strides = [1, 1]} : vector<16x192xf32> to vector<16x16xf32>
    %96 = vector.shape_cast %95 : vector<16x16xf32> to vector<2x8x16xf32>
    %97 = vector.extract_strided_slice %28 {offsets = [0, 112], sizes = [16, 16], strides = [1, 1]} : vector<16x192xf32> to vector<16x16xf32>
    %98 = vector.shape_cast %97 : vector<16x16xf32> to vector<2x8x16xf32>
    %99 = vector.extract_strided_slice %28 {offsets = [0, 176], sizes = [16, 16], strides = [1, 1]} : vector<16x192xf32> to vector<16x16xf32>
    %100 = vector.shape_cast %99 : vector<16x16xf32> to vector<2x8x16xf32>
    "tpu.trace_start"() <{level = 10 : i32, message = "bqd,bkd->bqk"}> : () -> ()
    %cst_32 = arith.constant dense<0.000000e+00> : vector<2x8x8xf32>
    %101 = tpu.matmul %96, %98, %cst_32 {dimension_numbers = #tpu.dot_dimension_numbers<[2], [2], [1], [1], [0, 0, 0, 1, 1, 1], [0], [0]>} : vector<2x8x16xf32>, vector<2x8x16xf32>, vector<2x8x8xf32> -> vector<2x8x8xf32>
    "tpu.trace_stop"() : () -> ()
    %cst_33 = arith.constant 2.500000e-01 : f32
    %102 = vector.broadcast %cst_33 : f32 to vector<2x8x8xf32>
    %103 = arith.mulf %101, %102 : vector<2x8x8xf32>
    %104 = vector.broadcast %15 : vector<2x1x8xf32> to vector<2x8x8xf32>
    %105 = arith.addf %103, %104 : vector<2x8x8xf32>
    %cst_34 = arith.constant dense<0xFF800000> : vector<2x8xf32>
    %106 = vector.multi_reduction <maximumf>, %105, %cst_34 [2] : vector<2x8x8xf32> to vector<2x8xf32>
    %107 = vector.shape_cast %106 : vector<2x8xf32> to vector<2x8x1xf32>
    %108 = vector.broadcast %107 : vector<2x8x1xf32> to vector<2x8x8xf32>
    %109 = arith.subf %105, %108 : vector<2x8x8xf32>
    %110 = math.exp %109 : vector<2x8x8xf32>
    %cst_35 = arith.constant dense<0.000000e+00> : vector<2x8xf32>
    %111 = vector.multi_reduction <add>, %110, %cst_35 [2] : vector<2x8x8xf32> to vector<2x8xf32>
    %112 = vector.shape_cast %111 : vector<2x8xf32> to vector<2x8x1xf32>
    %113 = vector.broadcast %112 : vector<2x8x1xf32> to vector<2x8x8xf32>
    %114 = arith.divf %110, %113 : vector<2x8x8xf32>
    "tpu.trace_start"() <{level = 10 : i32, message = "bqk,bkd->bqd"}> : () -> ()
    %cst_36 = arith.constant dense<0.000000e+00> : vector<2x8x16xf32>
    %115 = tpu.matmul %114, %100, %cst_36 {dimension_numbers = #tpu.dot_dimension_numbers<[2], [1], [1], [2], [0, 0, 0, 1, 1, 2], [0], [0]>} : vector<2x8x8xf32>, vector<2x8x16xf32>, vector<2x8x16xf32> -> vector<2x8x16xf32>
    "tpu.trace_stop"() : () -> ()
    %116 = vector.shape_cast %115 : vector<2x8x16xf32> to vector<16x16xf32>
    %117 = tpu.concatenate %50, %72, %94, %116 in 1 : vector<16x16xf32>, vector<16x16xf32>, vector<16x16xf32>, vector<16x16xf32> -> vector<16x64xf32>
    %c0_37 = arith.constant 0 : index
    %c0_38 = arith.constant 0 : index
    %c0_39 = arith.constant 0 : index
    %118 = vector.load %arg6[%c0_37, %c0_38, %c0_39] : memref<4x64x64xf32, #tpu.memory_space<vmem>>, vector<1x64x64xf32>
    %119 = vector.shape_cast %118 : vector<1x64x64xf32> to vector<64x64xf32>
    %cst_40 = arith.constant dense<0.000000e+00> : vector<16x64xf32>
    %120 = tpu.matmul %117, %119, %cst_40 {dimension_numbers = #tpu.dot_dimension_numbers<[1], [0], [0], [1], [0, 0, 1, 1], [], []>} : vector<16x64xf32>, vector<64x64xf32>, vector<16x64xf32> -> vector<16x64xf32>
    %c0_41 = arith.constant 0 : index
    %c0_42 = arith.constant 0 : index
    %c0_43 = arith.constant 0 : index
    %121 = vector.load %arg7[%c0_41, %c0_42, %c0_43] : memref<4x1x64xf32, #tpu.memory_space<vmem>>, vector<1x1x64xf32>
    %122 = vector.shape_cast %121 : vector<1x1x64xf32> to vector<1x64xf32>
    %123 = vector.broadcast %122 : vector<1x64xf32> to vector<16x64xf32>
    %124 = arith.addf %120, %123 : vector<16x64xf32>
    %125 = arith.addf %21, %124 : vector<16x64xf32>
    %c0_44 = arith.constant 0 : index
    %c0_45 = arith.constant 0 : index
    %c0_46 = arith.constant 0 : index
    %126 = vector.load %arg8[%c0_44, %c0_45, %c0_46] : memref<4x1x64xf32, #tpu.memory_space<vmem>>, vector<1x1x64xf32>
    %127 = vector.shape_cast %126 : vector<1x1x64xf32> to vector<1x64xf32>
    %c0_47 = arith.constant 0 : index
    %c0_48 = arith.constant 0 : index
    %c0_49 = arith.constant 0 : index
    %128 = vector.load %arg9[%c0_47, %c0_48, %c0_49] : memref<4x1x64xf32, #tpu.memory_space<vmem>>, vector<1x1x64xf32>
    %129 = vector.shape_cast %128 : vector<1x1x64xf32> to vector<1x64xf32>
    %cst_50 = arith.constant dense<0.000000e+00> : vector<16xf32>
    %130 = vector.multi_reduction <add>, %125, %cst_50 [1] : vector<16x64xf32> to vector<16xf32>
    %131 = vector.shape_cast %130 : vector<16xf32> to vector<16x1xf32>
    %cst_51 = arith.constant 6.400000e+01 : f32
    %132 = vector.broadcast %cst_51 : f32 to vector<16x1xf32>
    %133 = arith.divf %131, %132 : vector<16x1xf32>
    %134 = vector.broadcast %133 : vector<16x1xf32> to vector<16x64xf32>
    %135 = arith.subf %125, %134 : vector<16x64xf32>
    %136 = arith.mulf %135, %135 : vector<16x64xf32>
    %cst_52 = arith.constant dense<0.000000e+00> : vector<16xf32>
    %137 = vector.multi_reduction <add>, %136, %cst_52 [1] : vector<16x64xf32> to vector<16xf32>
    %138 = vector.shape_cast %137 : vector<16xf32> to vector<16x1xf32>
    %cst_53 = arith.constant 6.400000e+01 : f32
    %139 = vector.broadcast %cst_53 : f32 to vector<16x1xf32>
    %140 = arith.divf %138, %139 : vector<16x1xf32>
    %cst_54 = arith.constant 9.99999974E-6 : f32
    %141 = vector.broadcast %cst_54 : f32 to vector<16x1xf32>
    %142 = arith.addf %140, %141 : vector<16x1xf32>
    %143 = math.rsqrt %142 : vector<16x1xf32>
    %144 = vector.broadcast %143 : vector<16x1xf32> to vector<16x64xf32>
    %145 = arith.mulf %135, %144 : vector<16x64xf32>
    %146 = vector.broadcast %127 : vector<1x64xf32> to vector<16x64xf32>
    %147 = arith.mulf %145, %146 : vector<16x64xf32>
    %148 = vector.broadcast %129 : vector<1x64xf32> to vector<16x64xf32>
    %149 = arith.addf %147, %148 : vector<16x64xf32>
    %c0_55 = arith.constant 0 : index
    %c0_56 = arith.constant 0 : index
    %c0_57 = arith.constant 0 : index
    %150 = vector.load %arg12[%c0_55, %c0_56, %c0_57] : memref<4x64x256xf32, #tpu.memory_space<vmem>>, vector<1x64x256xf32>
    %151 = vector.shape_cast %150 : vector<1x64x256xf32> to vector<64x256xf32>
    %cst_58 = arith.constant dense<0.000000e+00> : vector<16x256xf32>
    %152 = tpu.matmul %149, %151, %cst_58 {dimension_numbers = #tpu.dot_dimension_numbers<[1], [0], [0], [1], [0, 0, 1, 1], [], []>} : vector<16x64xf32>, vector<64x256xf32>, vector<16x256xf32> -> vector<16x256xf32>
    %c0_59 = arith.constant 0 : index
    %c0_60 = arith.constant 0 : index
    %c0_61 = arith.constant 0 : index
    %153 = vector.load %arg13[%c0_59, %c0_60, %c0_61] : memref<4x1x256xf32, #tpu.memory_space<vmem>>, vector<1x1x256xf32>
    %154 = vector.shape_cast %153 : vector<1x1x256xf32> to vector<1x256xf32>
    %155 = vector.broadcast %154 : vector<1x256xf32> to vector<16x256xf32>
    %156 = arith.addf %152, %155 : vector<16x256xf32>
    %cst_62 = arith.constant 0.000000e+00 : f32
    %157 = vector.broadcast %cst_62 : f32 to vector<16x256xf32>
    %158 = arith.maximumf %156, %157 : vector<16x256xf32>
    %c0_63 = arith.constant 0 : index
    %c0_64 = arith.constant 0 : index
    %c0_65 = arith.constant 0 : index
    %159 = vector.load %arg14[%c0_63, %c0_64, %c0_65] : memref<4x256x64xf32, #tpu.memory_space<vmem>>, vector<1x256x64xf32>
    %160 = vector.shape_cast %159 : vector<1x256x64xf32> to vector<256x64xf32>
    %cst_66 = arith.constant dense<0.000000e+00> : vector<16x64xf32>
    %161 = tpu.matmul %158, %160, %cst_66 {dimension_numbers = #tpu.dot_dimension_numbers<[1], [0], [0], [1], [0, 0, 1, 1], [], []>} : vector<16x256xf32>, vector<256x64xf32>, vector<16x64xf32> -> vector<16x64xf32>
    %c0_67 = arith.constant 0 : index
    %c0_68 = arith.constant 0 : index
    %c0_69 = arith.constant 0 : index
    %162 = vector.load %arg15[%c0_67, %c0_68, %c0_69] : memref<4x1x64xf32, #tpu.memory_space<vmem>>, vector<1x1x64xf32>
    %163 = vector.shape_cast %162 : vector<1x1x64xf32> to vector<1x64xf32>
    %164 = vector.broadcast %163 : vector<1x64xf32> to vector<16x64xf32>
    %165 = arith.addf %161, %164 : vector<16x64xf32>
    %166 = arith.addf %149, %165 : vector<16x64xf32>
    %c0_70 = arith.constant 0 : index
    %c0_71 = arith.constant 0 : index
    %c0_72 = arith.constant 0 : index
    %167 = vector.load %arg10[%c0_70, %c0_71, %c0_72] : memref<4x1x64xf32, #tpu.memory_space<vmem>>, vector<1x1x64xf32>
    %168 = vector.shape_cast %167 : vector<1x1x64xf32> to vector<1x64xf32>
    %c0_73 = arith.constant 0 : index
    %c0_74 = arith.constant 0 : index
    %c0_75 = arith.constant 0 : index
    %169 = vector.load %arg11[%c0_73, %c0_74, %c0_75] : memref<4x1x64xf32, #tpu.memory_space<vmem>>, vector<1x1x64xf32>
    %170 = vector.shape_cast %169 : vector<1x1x64xf32> to vector<1x64xf32>
    %cst_76 = arith.constant dense<0.000000e+00> : vector<16xf32>
    %171 = vector.multi_reduction <add>, %166, %cst_76 [1] : vector<16x64xf32> to vector<16xf32>
    %172 = vector.shape_cast %171 : vector<16xf32> to vector<16x1xf32>
    %cst_77 = arith.constant 6.400000e+01 : f32
    %173 = vector.broadcast %cst_77 : f32 to vector<16x1xf32>
    %174 = arith.divf %172, %173 : vector<16x1xf32>
    %175 = vector.broadcast %174 : vector<16x1xf32> to vector<16x64xf32>
    %176 = arith.subf %166, %175 : vector<16x64xf32>
    %177 = arith.mulf %176, %176 : vector<16x64xf32>
    %cst_78 = arith.constant dense<0.000000e+00> : vector<16xf32>
    %178 = vector.multi_reduction <add>, %177, %cst_78 [1] : vector<16x64xf32> to vector<16xf32>
    %179 = vector.shape_cast %178 : vector<16xf32> to vector<16x1xf32>
    %cst_79 = arith.constant 6.400000e+01 : f32
    %180 = vector.broadcast %cst_79 : f32 to vector<16x1xf32>
    %181 = arith.divf %179, %180 : vector<16x1xf32>
    %cst_80 = arith.constant 9.99999974E-6 : f32
    %182 = vector.broadcast %cst_80 : f32 to vector<16x1xf32>
    %183 = arith.addf %181, %182 : vector<16x1xf32>
    %184 = math.rsqrt %183 : vector<16x1xf32>
    %185 = vector.broadcast %184 : vector<16x1xf32> to vector<16x64xf32>
    %186 = arith.mulf %176, %185 : vector<16x64xf32>
    %187 = vector.broadcast %168 : vector<1x64xf32> to vector<16x64xf32>
    %188 = arith.mulf %186, %187 : vector<16x64xf32>
    %189 = vector.broadcast %170 : vector<1x64xf32> to vector<16x64xf32>
    %190 = arith.addf %188, %189 : vector<16x64xf32>
    %c1 = arith.constant 1 : index
    %c0_81 = arith.constant 0 : index
    %c0_82 = arith.constant 0 : index
    %191 = vector.load %arg4[%c1, %c0_81, %c0_82] : memref<4x64x192xf32, #tpu.memory_space<vmem>>, vector<1x64x192xf32>
    %192 = vector.shape_cast %191 : vector<1x64x192xf32> to vector<64x192xf32>
    %cst_83 = arith.constant dense<0.000000e+00> : vector<16x192xf32>
    %193 = tpu.matmul %190, %192, %cst_83 {dimension_numbers = #tpu.dot_dimension_numbers<[1], [0], [0], [1], [0, 0, 1, 1], [], []>} : vector<16x64xf32>, vector<64x192xf32>, vector<16x192xf32> -> vector<16x192xf32>
    %c1_84 = arith.constant 1 : index
    %c0_85 = arith.constant 0 : index
    %c0_86 = arith.constant 0 : index
    %194 = vector.load %arg5[%c1_84, %c0_85, %c0_86] : memref<4x1x192xf32, #tpu.memory_space<vmem>>, vector<1x1x192xf32>
    %195 = vector.shape_cast %194 : vector<1x1x192xf32> to vector<1x192xf32>
    %196 = vector.broadcast %195 : vector<1x192xf32> to vector<16x192xf32>
    %197 = arith.addf %193, %196 : vector<16x192xf32>
    %198 = vector.extract_strided_slice %197 {offsets = [0, 0], sizes = [16, 16], strides = [1, 1]} : vector<16x192xf32> to vector<16x16xf32>
    %199 = vector.shape_cast %198 : vector<16x16xf32> to vector<2x8x16xf32>
    %200 = vector.extract_strided_slice %197 {offsets = [0, 64], sizes = [16, 16], strides = [1, 1]} : vector<16x192xf32> to vector<16x16xf32>
    %201 = vector.shape_cast %200 : vector<16x16xf32> to vector<2x8x16xf32>
    %202 = vector.extract_strided_slice %197 {offsets = [0, 128], sizes = [16, 16], strides = [1, 1]} : vector<16x192xf32> to vector<16x16xf32>
    %203 = vector.shape_cast %202 : vector<16x16xf32> to vector<2x8x16xf32>
    "tpu.trace_start"() <{level = 10 : i32, message = "bqd,bkd->bqk"}> : () -> ()
    %cst_87 = arith.constant dense<0.000000e+00> : vector<2x8x8xf32>
    %204 = tpu.matmul %199, %201, %cst_87 {dimension_numbers = #tpu.dot_dimension_numbers<[2], [2], [1], [1], [0, 0, 0, 1, 1, 1], [0], [0]>} : vector<2x8x16xf32>, vector<2x8x16xf32>, vector<2x8x8xf32> -> vector<2x8x8xf32>
    "tpu.trace_stop"() : () -> ()
    %cst_88 = arith.constant 2.500000e-01 : f32
    %205 = vector.broadcast %cst_88 : f32 to vector<2x8x8xf32>
    %206 = arith.mulf %204, %205 : vector<2x8x8xf32>
    %207 = vector.broadcast %15 : vector<2x1x8xf32> to vector<2x8x8xf32>
    %208 = arith.addf %206, %207 : vector<2x8x8xf32>
    %cst_89 = arith.constant dense<0xFF800000> : vector<2x8xf32>
    %209 = vector.multi_reduction <maximumf>, %208, %cst_89 [2] : vector<2x8x8xf32> to vector<2x8xf32>
    %210 = vector.shape_cast %209 : vector<2x8xf32> to vector<2x8x1xf32>
    %211 = vector.broadcast %210 : vector<2x8x1xf32> to vector<2x8x8xf32>
    %212 = arith.subf %208, %211 : vector<2x8x8xf32>
    %213 = math.exp %212 : vector<2x8x8xf32>
    %cst_90 = arith.constant dense<0.000000e+00> : vector<2x8xf32>
    %214 = vector.multi_reduction <add>, %213, %cst_90 [2] : vector<2x8x8xf32> to vector<2x8xf32>
    %215 = vector.shape_cast %214 : vector<2x8xf32> to vector<2x8x1xf32>
    %216 = vector.broadcast %215 : vector<2x8x1xf32> to vector<2x8x8xf32>
    %217 = arith.divf %213, %216 : vector<2x8x8xf32>
    "tpu.trace_start"() <{level = 10 : i32, message = "bqk,bkd->bqd"}> : () -> ()
    %cst_91 = arith.constant dense<0.000000e+00> : vector<2x8x16xf32>
    %218 = tpu.matmul %217, %203, %cst_91 {dimension_numbers = #tpu.dot_dimension_numbers<[2], [1], [1], [2], [0, 0, 0, 1, 1, 2], [0], [0]>} : vector<2x8x8xf32>, vector<2x8x16xf32>, vector<2x8x16xf32> -> vector<2x8x16xf32>
    "tpu.trace_stop"() : () -> ()
    %219 = vector.shape_cast %218 : vector<2x8x16xf32> to vector<16x16xf32>
    %220 = vector.extract_strided_slice %197 {offsets = [0, 16], sizes = [16, 16], strides = [1, 1]} : vector<16x192xf32> to vector<16x16xf32>
    %221 = vector.shape_cast %220 : vector<16x16xf32> to vector<2x8x16xf32>
    %222 = vector.extract_strided_slice %197 {offsets = [0, 80], sizes = [16, 16], strides = [1, 1]} : vector<16x192xf32> to vector<16x16xf32>
    %223 = vector.shape_cast %222 : vector<16x16xf32> to vector<2x8x16xf32>
    %224 = vector.extract_strided_slice %197 {offsets = [0, 144], sizes = [16, 16], strides = [1, 1]} : vector<16x192xf32> to vector<16x16xf32>
    %225 = vector.shape_cast %224 : vector<16x16xf32> to vector<2x8x16xf32>
    "tpu.trace_start"() <{level = 10 : i32, message = "bqd,bkd->bqk"}> : () -> ()
    %cst_92 = arith.constant dense<0.000000e+00> : vector<2x8x8xf32>
    %226 = tpu.matmul %221, %223, %cst_92 {dimension_numbers = #tpu.dot_dimension_numbers<[2], [2], [1], [1], [0, 0, 0, 1, 1, 1], [0], [0]>} : vector<2x8x16xf32>, vector<2x8x16xf32>, vector<2x8x8xf32> -> vector<2x8x8xf32>
    "tpu.trace_stop"() : () -> ()
    %cst_93 = arith.constant 2.500000e-01 : f32
    %227 = vector.broadcast %cst_93 : f32 to vector<2x8x8xf32>
    %228 = arith.mulf %226, %227 : vector<2x8x8xf32>
    %229 = vector.broadcast %15 : vector<2x1x8xf32> to vector<2x8x8xf32>
    %230 = arith.addf %228, %229 : vector<2x8x8xf32>
    %cst_94 = arith.constant dense<0xFF800000> : vector<2x8xf32>
    %231 = vector.multi_reduction <maximumf>, %230, %cst_94 [2] : vector<2x8x8xf32> to vector<2x8xf32>
    %232 = vector.shape_cast %231 : vector<2x8xf32> to vector<2x8x1xf32>
    %233 = vector.broadcast %232 : vector<2x8x1xf32> to vector<2x8x8xf32>
    %234 = arith.subf %230, %233 : vector<2x8x8xf32>
    %235 = math.exp %234 : vector<2x8x8xf32>
    %cst_95 = arith.constant dense<0.000000e+00> : vector<2x8xf32>
    %236 = vector.multi_reduction <add>, %235, %cst_95 [2] : vector<2x8x8xf32> to vector<2x8xf32>
    %237 = vector.shape_cast %236 : vector<2x8xf32> to vector<2x8x1xf32>
    %238 = vector.broadcast %237 : vector<2x8x1xf32> to vector<2x8x8xf32>
    %239 = arith.divf %235, %238 : vector<2x8x8xf32>
    "tpu.trace_start"() <{level = 10 : i32, message = "bqk,bkd->bqd"}> : () -> ()
    %cst_96 = arith.constant dense<0.000000e+00> : vector<2x8x16xf32>
    %240 = tpu.matmul %239, %225, %cst_96 {dimension_numbers = #tpu.dot_dimension_numbers<[2], [1], [1], [2], [0, 0, 0, 1, 1, 2], [0], [0]>} : vector<2x8x8xf32>, vector<2x8x16xf32>, vector<2x8x16xf32> -> vector<2x8x16xf32>
    "tpu.trace_stop"() : () -> ()
    %241 = vector.shape_cast %240 : vector<2x8x16xf32> to vector<16x16xf32>
    %242 = vector.extract_strided_slice %197 {offsets = [0, 32], sizes = [16, 16], strides = [1, 1]} : vector<16x192xf32> to vector<16x16xf32>
    %243 = vector.shape_cast %242 : vector<16x16xf32> to vector<2x8x16xf32>
    %244 = vector.extract_strided_slice %197 {offsets = [0, 96], sizes = [16, 16], strides = [1, 1]} : vector<16x192xf32> to vector<16x16xf32>
    %245 = vector.shape_cast %244 : vector<16x16xf32> to vector<2x8x16xf32>
    %246 = vector.extract_strided_slice %197 {offsets = [0, 160], sizes = [16, 16], strides = [1, 1]} : vector<16x192xf32> to vector<16x16xf32>
    %247 = vector.shape_cast %246 : vector<16x16xf32> to vector<2x8x16xf32>
    "tpu.trace_start"() <{level = 10 : i32, message = "bqd,bkd->bqk"}> : () -> ()
    %cst_97 = arith.constant dense<0.000000e+00> : vector<2x8x8xf32>
    %248 = tpu.matmul %243, %245, %cst_97 {dimension_numbers = #tpu.dot_dimension_numbers<[2], [2], [1], [1], [0, 0, 0, 1, 1, 1], [0], [0]>} : vector<2x8x16xf32>, vector<2x8x16xf32>, vector<2x8x8xf32> -> vector<2x8x8xf32>
    "tpu.trace_stop"() : () -> ()
    %cst_98 = arith.constant 2.500000e-01 : f32
    %249 = vector.broadcast %cst_98 : f32 to vector<2x8x8xf32>
    %250 = arith.mulf %248, %249 : vector<2x8x8xf32>
    %251 = vector.broadcast %15 : vector<2x1x8xf32> to vector<2x8x8xf32>
    %252 = arith.addf %250, %251 : vector<2x8x8xf32>
    %cst_99 = arith.constant dense<0xFF800000> : vector<2x8xf32>
    %253 = vector.multi_reduction <maximumf>, %252, %cst_99 [2] : vector<2x8x8xf32> to vector<2x8xf32>
    %254 = vector.shape_cast %253 : vector<2x8xf32> to vector<2x8x1xf32>
    %255 = vector.broadcast %254 : vector<2x8x1xf32> to vector<2x8x8xf32>
    %256 = arith.subf %252, %255 : vector<2x8x8xf32>
    %257 = math.exp %256 : vector<2x8x8xf32>
    %cst_100 = arith.constant dense<0.000000e+00> : vector<2x8xf32>
    %258 = vector.multi_reduction <add>, %257, %cst_100 [2] : vector<2x8x8xf32> to vector<2x8xf32>
    %259 = vector.shape_cast %258 : vector<2x8xf32> to vector<2x8x1xf32>
    %260 = vector.broadcast %259 : vector<2x8x1xf32> to vector<2x8x8xf32>
    %261 = arith.divf %257, %260 : vector<2x8x8xf32>
    "tpu.trace_start"() <{level = 10 : i32, message = "bqk,bkd->bqd"}> : () -> ()
    %cst_101 = arith.constant dense<0.000000e+00> : vector<2x8x16xf32>
    %262 = tpu.matmul %261, %247, %cst_101 {dimension_numbers = #tpu.dot_dimension_numbers<[2], [1], [1], [2], [0, 0, 0, 1, 1, 2], [0], [0]>} : vector<2x8x8xf32>, vector<2x8x16xf32>, vector<2x8x16xf32> -> vector<2x8x16xf32>
    "tpu.trace_stop"() : () -> ()
    %263 = vector.shape_cast %262 : vector<2x8x16xf32> to vector<16x16xf32>
    %264 = vector.extract_strided_slice %197 {offsets = [0, 48], sizes = [16, 16], strides = [1, 1]} : vector<16x192xf32> to vector<16x16xf32>
    %265 = vector.shape_cast %264 : vector<16x16xf32> to vector<2x8x16xf32>
    %266 = vector.extract_strided_slice %197 {offsets = [0, 112], sizes = [16, 16], strides = [1, 1]} : vector<16x192xf32> to vector<16x16xf32>
    %267 = vector.shape_cast %266 : vector<16x16xf32> to vector<2x8x16xf32>
    %268 = vector.extract_strided_slice %197 {offsets = [0, 176], sizes = [16, 16], strides = [1, 1]} : vector<16x192xf32> to vector<16x16xf32>
    %269 = vector.shape_cast %268 : vector<16x16xf32> to vector<2x8x16xf32>
    "tpu.trace_start"() <{level = 10 : i32, message = "bqd,bkd->bqk"}> : () -> ()
    %cst_102 = arith.constant dense<0.000000e+00> : vector<2x8x8xf32>
    %270 = tpu.matmul %265, %267, %cst_102 {dimension_numbers = #tpu.dot_dimension_numbers<[2], [2], [1], [1], [0, 0, 0, 1, 1, 1], [0], [0]>} : vector<2x8x16xf32>, vector<2x8x16xf32>, vector<2x8x8xf32> -> vector<2x8x8xf32>
    "tpu.trace_stop"() : () -> ()
    %cst_103 = arith.constant 2.500000e-01 : f32
    %271 = vector.broadcast %cst_103 : f32 to vector<2x8x8xf32>
    %272 = arith.mulf %270, %271 : vector<2x8x8xf32>
    %273 = vector.broadcast %15 : vector<2x1x8xf32> to vector<2x8x8xf32>
    %274 = arith.addf %272, %273 : vector<2x8x8xf32>
    %cst_104 = arith.constant dense<0xFF800000> : vector<2x8xf32>
    %275 = vector.multi_reduction <maximumf>, %274, %cst_104 [2] : vector<2x8x8xf32> to vector<2x8xf32>
    %276 = vector.shape_cast %275 : vector<2x8xf32> to vector<2x8x1xf32>
    %277 = vector.broadcast %276 : vector<2x8x1xf32> to vector<2x8x8xf32>
    %278 = arith.subf %274, %277 : vector<2x8x8xf32>
    %279 = math.exp %278 : vector<2x8x8xf32>
    %cst_105 = arith.constant dense<0.000000e+00> : vector<2x8xf32>
    %280 = vector.multi_reduction <add>, %279, %cst_105 [2] : vector<2x8x8xf32> to vector<2x8xf32>
    %281 = vector.shape_cast %280 : vector<2x8xf32> to vector<2x8x1xf32>
    %282 = vector.broadcast %281 : vector<2x8x1xf32> to vector<2x8x8xf32>
    %283 = arith.divf %279, %282 : vector<2x8x8xf32>
    "tpu.trace_start"() <{level = 10 : i32, message = "bqk,bkd->bqd"}> : () -> ()
    %cst_106 = arith.constant dense<0.000000e+00> : vector<2x8x16xf32>
    %284 = tpu.matmul %283, %269, %cst_106 {dimension_numbers = #tpu.dot_dimension_numbers<[2], [1], [1], [2], [0, 0, 0, 1, 1, 2], [0], [0]>} : vector<2x8x8xf32>, vector<2x8x16xf32>, vector<2x8x16xf32> -> vector<2x8x16xf32>
    "tpu.trace_stop"() : () -> ()
    %285 = vector.shape_cast %284 : vector<2x8x16xf32> to vector<16x16xf32>
    %286 = tpu.concatenate %219, %241, %263, %285 in 1 : vector<16x16xf32>, vector<16x16xf32>, vector<16x16xf32>, vector<16x16xf32> -> vector<16x64xf32>
    %c1_107 = arith.constant 1 : index
    %c0_108 = arith.constant 0 : index
    %c0_109 = arith.constant 0 : index
    %287 = vector.load %arg6[%c1_107, %c0_108, %c0_109] : memref<4x64x64xf32, #tpu.memory_space<vmem>>, vector<1x64x64xf32>
    %288 = vector.shape_cast %287 : vector<1x64x64xf32> to vector<64x64xf32>
    %cst_110 = arith.constant dense<0.000000e+00> : vector<16x64xf32>
    %289 = tpu.matmul %286, %288, %cst_110 {dimension_numbers = #tpu.dot_dimension_numbers<[1], [0], [0], [1], [0, 0, 1, 1], [], []>} : vector<16x64xf32>, vector<64x64xf32>, vector<16x64xf32> -> vector<16x64xf32>
    %c1_111 = arith.constant 1 : index
    %c0_112 = arith.constant 0 : index
    %c0_113 = arith.constant 0 : index
    %290 = vector.load %arg7[%c1_111, %c0_112, %c0_113] : memref<4x1x64xf32, #tpu.memory_space<vmem>>, vector<1x1x64xf32>
    %291 = vector.shape_cast %290 : vector<1x1x64xf32> to vector<1x64xf32>
    %292 = vector.broadcast %291 : vector<1x64xf32> to vector<16x64xf32>
    %293 = arith.addf %289, %292 : vector<16x64xf32>
    %294 = arith.addf %190, %293 : vector<16x64xf32>
    %c1_114 = arith.constant 1 : index
    %c0_115 = arith.constant 0 : index
    %c0_116 = arith.constant 0 : index
    %295 = vector.load %arg8[%c1_114, %c0_115, %c0_116] : memref<4x1x64xf32, #tpu.memory_space<vmem>>, vector<1x1x64xf32>
    %296 = vector.shape_cast %295 : vector<1x1x64xf32> to vector<1x64xf32>
    %c1_117 = arith.constant 1 : index
    %c0_118 = arith.constant 0 : index
    %c0_119 = arith.constant 0 : index
    %297 = vector.load %arg9[%c1_117, %c0_118, %c0_119] : memref<4x1x64xf32, #tpu.memory_space<vmem>>, vector<1x1x64xf32>
    %298 = vector.shape_cast %297 : vector<1x1x64xf32> to vector<1x64xf32>
    %cst_120 = arith.constant dense<0.000000e+00> : vector<16xf32>
    %299 = vector.multi_reduction <add>, %294, %cst_120 [1] : vector<16x64xf32> to vector<16xf32>
    %300 = vector.shape_cast %299 : vector<16xf32> to vector<16x1xf32>
    %cst_121 = arith.constant 6.400000e+01 : f32
    %301 = vector.broadcast %cst_121 : f32 to vector<16x1xf32>
    %302 = arith.divf %300, %301 : vector<16x1xf32>
    %303 = vector.broadcast %302 : vector<16x1xf32> to vector<16x64xf32>
    %304 = arith.subf %294, %303 : vector<16x64xf32>
    %305 = arith.mulf %304, %304 : vector<16x64xf32>
    %cst_122 = arith.constant dense<0.000000e+00> : vector<16xf32>
    %306 = vector.multi_reduction <add>, %305, %cst_122 [1] : vector<16x64xf32> to vector<16xf32>
    %307 = vector.shape_cast %306 : vector<16xf32> to vector<16x1xf32>
    %cst_123 = arith.constant 6.400000e+01 : f32
    %308 = vector.broadcast %cst_123 : f32 to vector<16x1xf32>
    %309 = arith.divf %307, %308 : vector<16x1xf32>
    %cst_124 = arith.constant 9.99999974E-6 : f32
    %310 = vector.broadcast %cst_124 : f32 to vector<16x1xf32>
    %311 = arith.addf %309, %310 : vector<16x1xf32>
    %312 = math.rsqrt %311 : vector<16x1xf32>
    %313 = vector.broadcast %312 : vector<16x1xf32> to vector<16x64xf32>
    %314 = arith.mulf %304, %313 : vector<16x64xf32>
    %315 = vector.broadcast %296 : vector<1x64xf32> to vector<16x64xf32>
    %316 = arith.mulf %314, %315 : vector<16x64xf32>
    %317 = vector.broadcast %298 : vector<1x64xf32> to vector<16x64xf32>
    %318 = arith.addf %316, %317 : vector<16x64xf32>
    %c1_125 = arith.constant 1 : index
    %c0_126 = arith.constant 0 : index
    %c0_127 = arith.constant 0 : index
    %319 = vector.load %arg12[%c1_125, %c0_126, %c0_127] : memref<4x64x256xf32, #tpu.memory_space<vmem>>, vector<1x64x256xf32>
    %320 = vector.shape_cast %319 : vector<1x64x256xf32> to vector<64x256xf32>
    %cst_128 = arith.constant dense<0.000000e+00> : vector<16x256xf32>
    %321 = tpu.matmul %318, %320, %cst_128 {dimension_numbers = #tpu.dot_dimension_numbers<[1], [0], [0], [1], [0, 0, 1, 1], [], []>} : vector<16x64xf32>, vector<64x256xf32>, vector<16x256xf32> -> vector<16x256xf32>
    %c1_129 = arith.constant 1 : index
    %c0_130 = arith.constant 0 : index
    %c0_131 = arith.constant 0 : index
    %322 = vector.load %arg13[%c1_129, %c0_130, %c0_131] : memref<4x1x256xf32, #tpu.memory_space<vmem>>, vector<1x1x256xf32>
    %323 = vector.shape_cast %322 : vector<1x1x256xf32> to vector<1x256xf32>
    %324 = vector.broadcast %323 : vector<1x256xf32> to vector<16x256xf32>
    %325 = arith.addf %321, %324 : vector<16x256xf32>
    %cst_132 = arith.constant 0.000000e+00 : f32
    %326 = vector.broadcast %cst_132 : f32 to vector<16x256xf32>
    %327 = arith.maximumf %325, %326 : vector<16x256xf32>
    %c1_133 = arith.constant 1 : index
    %c0_134 = arith.constant 0 : index
    %c0_135 = arith.constant 0 : index
    %328 = vector.load %arg14[%c1_133, %c0_134, %c0_135] : memref<4x256x64xf32, #tpu.memory_space<vmem>>, vector<1x256x64xf32>
    %329 = vector.shape_cast %328 : vector<1x256x64xf32> to vector<256x64xf32>
    %cst_136 = arith.constant dense<0.000000e+00> : vector<16x64xf32>
    %330 = tpu.matmul %327, %329, %cst_136 {dimension_numbers = #tpu.dot_dimension_numbers<[1], [0], [0], [1], [0, 0, 1, 1], [], []>} : vector<16x256xf32>, vector<256x64xf32>, vector<16x64xf32> -> vector<16x64xf32>
    %c1_137 = arith.constant 1 : index
    %c0_138 = arith.constant 0 : index
    %c0_139 = arith.constant 0 : index
    %331 = vector.load %arg15[%c1_137, %c0_138, %c0_139] : memref<4x1x64xf32, #tpu.memory_space<vmem>>, vector<1x1x64xf32>
    %332 = vector.shape_cast %331 : vector<1x1x64xf32> to vector<1x64xf32>
    %333 = vector.broadcast %332 : vector<1x64xf32> to vector<16x64xf32>
    %334 = arith.addf %330, %333 : vector<16x64xf32>
    %335 = arith.addf %318, %334 : vector<16x64xf32>
    %c1_140 = arith.constant 1 : index
    %c0_141 = arith.constant 0 : index
    %c0_142 = arith.constant 0 : index
    %336 = vector.load %arg10[%c1_140, %c0_141, %c0_142] : memref<4x1x64xf32, #tpu.memory_space<vmem>>, vector<1x1x64xf32>
    %337 = vector.shape_cast %336 : vector<1x1x64xf32> to vector<1x64xf32>
    %c1_143 = arith.constant 1 : index
    %c0_144 = arith.constant 0 : index
    %c0_145 = arith.constant 0 : index
    %338 = vector.load %arg11[%c1_143, %c0_144, %c0_145] : memref<4x1x64xf32, #tpu.memory_space<vmem>>, vector<1x1x64xf32>
    %339 = vector.shape_cast %338 : vector<1x1x64xf32> to vector<1x64xf32>
    %cst_146 = arith.constant dense<0.000000e+00> : vector<16xf32>
    %340 = vector.multi_reduction <add>, %335, %cst_146 [1] : vector<16x64xf32> to vector<16xf32>
    %341 = vector.shape_cast %340 : vector<16xf32> to vector<16x1xf32>
    %cst_147 = arith.constant 6.400000e+01 : f32
    %342 = vector.broadcast %cst_147 : f32 to vector<16x1xf32>
    %343 = arith.divf %341, %342 : vector<16x1xf32>
    %344 = vector.broadcast %343 : vector<16x1xf32> to vector<16x64xf32>
    %345 = arith.subf %335, %344 : vector<16x64xf32>
    %346 = arith.mulf %345, %345 : vector<16x64xf32>
    %cst_148 = arith.constant dense<0.000000e+00> : vector<16xf32>
    %347 = vector.multi_reduction <add>, %346, %cst_148 [1] : vector<16x64xf32> to vector<16xf32>
    %348 = vector.shape_cast %347 : vector<16xf32> to vector<16x1xf32>
    %cst_149 = arith.constant 6.400000e+01 : f32
    %349 = vector.broadcast %cst_149 : f32 to vector<16x1xf32>
    %350 = arith.divf %348, %349 : vector<16x1xf32>
    %cst_150 = arith.constant 9.99999974E-6 : f32
    %351 = vector.broadcast %cst_150 : f32 to vector<16x1xf32>
    %352 = arith.addf %350, %351 : vector<16x1xf32>
    %353 = math.rsqrt %352 : vector<16x1xf32>
    %354 = vector.broadcast %353 : vector<16x1xf32> to vector<16x64xf32>
    %355 = arith.mulf %345, %354 : vector<16x64xf32>
    %356 = vector.broadcast %337 : vector<1x64xf32> to vector<16x64xf32>
    %357 = arith.mulf %355, %356 : vector<16x64xf32>
    %358 = vector.broadcast %339 : vector<1x64xf32> to vector<16x64xf32>
    %359 = arith.addf %357, %358 : vector<16x64xf32>
    %c2 = arith.constant 2 : index
    %c0_151 = arith.constant 0 : index
    %c0_152 = arith.constant 0 : index
    %360 = vector.load %arg4[%c2, %c0_151, %c0_152] : memref<4x64x192xf32, #tpu.memory_space<vmem>>, vector<1x64x192xf32>
    %361 = vector.shape_cast %360 : vector<1x64x192xf32> to vector<64x192xf32>
    %cst_153 = arith.constant dense<0.000000e+00> : vector<16x192xf32>
    %362 = tpu.matmul %359, %361, %cst_153 {dimension_numbers = #tpu.dot_dimension_numbers<[1], [0], [0], [1], [0, 0, 1, 1], [], []>} : vector<16x64xf32>, vector<64x192xf32>, vector<16x192xf32> -> vector<16x192xf32>
    %c2_154 = arith.constant 2 : index
    %c0_155 = arith.constant 0 : index
    %c0_156 = arith.constant 0 : index
    %363 = vector.load %arg5[%c2_154, %c0_155, %c0_156] : memref<4x1x192xf32, #tpu.memory_space<vmem>>, vector<1x1x192xf32>
    %364 = vector.shape_cast %363 : vector<1x1x192xf32> to vector<1x192xf32>
    %365 = vector.broadcast %364 : vector<1x192xf32> to vector<16x192xf32>
    %366 = arith.addf %362, %365 : vector<16x192xf32>
    %367 = vector.extract_strided_slice %366 {offsets = [0, 0], sizes = [16, 16], strides = [1, 1]} : vector<16x192xf32> to vector<16x16xf32>
    %368 = vector.shape_cast %367 : vector<16x16xf32> to vector<2x8x16xf32>
    %369 = vector.extract_strided_slice %366 {offsets = [0, 64], sizes = [16, 16], strides = [1, 1]} : vector<16x192xf32> to vector<16x16xf32>
    %370 = vector.shape_cast %369 : vector<16x16xf32> to vector<2x8x16xf32>
    %371 = vector.extract_strided_slice %366 {offsets = [0, 128], sizes = [16, 16], strides = [1, 1]} : vector<16x192xf32> to vector<16x16xf32>
    %372 = vector.shape_cast %371 : vector<16x16xf32> to vector<2x8x16xf32>
    "tpu.trace_start"() <{level = 10 : i32, message = "bqd,bkd->bqk"}> : () -> ()
    %cst_157 = arith.constant dense<0.000000e+00> : vector<2x8x8xf32>
    %373 = tpu.matmul %368, %370, %cst_157 {dimension_numbers = #tpu.dot_dimension_numbers<[2], [2], [1], [1], [0, 0, 0, 1, 1, 1], [0], [0]>} : vector<2x8x16xf32>, vector<2x8x16xf32>, vector<2x8x8xf32> -> vector<2x8x8xf32>
    "tpu.trace_stop"() : () -> ()
    %cst_158 = arith.constant 2.500000e-01 : f32
    %374 = vector.broadcast %cst_158 : f32 to vector<2x8x8xf32>
    %375 = arith.mulf %373, %374 : vector<2x8x8xf32>
    %376 = vector.broadcast %15 : vector<2x1x8xf32> to vector<2x8x8xf32>
    %377 = arith.addf %375, %376 : vector<2x8x8xf32>
    %cst_159 = arith.constant dense<0xFF800000> : vector<2x8xf32>
    %378 = vector.multi_reduction <maximumf>, %377, %cst_159 [2] : vector<2x8x8xf32> to vector<2x8xf32>
    %379 = vector.shape_cast %378 : vector<2x8xf32> to vector<2x8x1xf32>
    %380 = vector.broadcast %379 : vector<2x8x1xf32> to vector<2x8x8xf32>
    %381 = arith.subf %377, %380 : vector<2x8x8xf32>
    %382 = math.exp %381 : vector<2x8x8xf32>
    %cst_160 = arith.constant dense<0.000000e+00> : vector<2x8xf32>
    %383 = vector.multi_reduction <add>, %382, %cst_160 [2] : vector<2x8x8xf32> to vector<2x8xf32>
    %384 = vector.shape_cast %383 : vector<2x8xf32> to vector<2x8x1xf32>
    %385 = vector.broadcast %384 : vector<2x8x1xf32> to vector<2x8x8xf32>
    %386 = arith.divf %382, %385 : vector<2x8x8xf32>
    "tpu.trace_start"() <{level = 10 : i32, message = "bqk,bkd->bqd"}> : () -> ()
    %cst_161 = arith.constant dense<0.000000e+00> : vector<2x8x16xf32>
    %387 = tpu.matmul %386, %372, %cst_161 {dimension_numbers = #tpu.dot_dimension_numbers<[2], [1], [1], [2], [0, 0, 0, 1, 1, 2], [0], [0]>} : vector<2x8x8xf32>, vector<2x8x16xf32>, vector<2x8x16xf32> -> vector<2x8x16xf32>
    "tpu.trace_stop"() : () -> ()
    %388 = vector.shape_cast %387 : vector<2x8x16xf32> to vector<16x16xf32>
    %389 = vector.extract_strided_slice %366 {offsets = [0, 16], sizes = [16, 16], strides = [1, 1]} : vector<16x192xf32> to vector<16x16xf32>
    %390 = vector.shape_cast %389 : vector<16x16xf32> to vector<2x8x16xf32>
    %391 = vector.extract_strided_slice %366 {offsets = [0, 80], sizes = [16, 16], strides = [1, 1]} : vector<16x192xf32> to vector<16x16xf32>
    %392 = vector.shape_cast %391 : vector<16x16xf32> to vector<2x8x16xf32>
    %393 = vector.extract_strided_slice %366 {offsets = [0, 144], sizes = [16, 16], strides = [1, 1]} : vector<16x192xf32> to vector<16x16xf32>
    %394 = vector.shape_cast %393 : vector<16x16xf32> to vector<2x8x16xf32>
    "tpu.trace_start"() <{level = 10 : i32, message = "bqd,bkd->bqk"}> : () -> ()
    %cst_162 = arith.constant dense<0.000000e+00> : vector<2x8x8xf32>
    %395 = tpu.matmul %390, %392, %cst_162 {dimension_numbers = #tpu.dot_dimension_numbers<[2], [2], [1], [1], [0, 0, 0, 1, 1, 1], [0], [0]>} : vector<2x8x16xf32>, vector<2x8x16xf32>, vector<2x8x8xf32> -> vector<2x8x8xf32>
    "tpu.trace_stop"() : () -> ()
    %cst_163 = arith.constant 2.500000e-01 : f32
    %396 = vector.broadcast %cst_163 : f32 to vector<2x8x8xf32>
    %397 = arith.mulf %395, %396 : vector<2x8x8xf32>
    %398 = vector.broadcast %15 : vector<2x1x8xf32> to vector<2x8x8xf32>
    %399 = arith.addf %397, %398 : vector<2x8x8xf32>
    %cst_164 = arith.constant dense<0xFF800000> : vector<2x8xf32>
    %400 = vector.multi_reduction <maximumf>, %399, %cst_164 [2] : vector<2x8x8xf32> to vector<2x8xf32>
    %401 = vector.shape_cast %400 : vector<2x8xf32> to vector<2x8x1xf32>
    %402 = vector.broadcast %401 : vector<2x8x1xf32> to vector<2x8x8xf32>
    %403 = arith.subf %399, %402 : vector<2x8x8xf32>
    %404 = math.exp %403 : vector<2x8x8xf32>
    %cst_165 = arith.constant dense<0.000000e+00> : vector<2x8xf32>
    %405 = vector.multi_reduction <add>, %404, %cst_165 [2] : vector<2x8x8xf32> to vector<2x8xf32>
    %406 = vector.shape_cast %405 : vector<2x8xf32> to vector<2x8x1xf32>
    %407 = vector.broadcast %406 : vector<2x8x1xf32> to vector<2x8x8xf32>
    %408 = arith.divf %404, %407 : vector<2x8x8xf32>
    "tpu.trace_start"() <{level = 10 : i32, message = "bqk,bkd->bqd"}> : () -> ()
    %cst_166 = arith.constant dense<0.000000e+00> : vector<2x8x16xf32>
    %409 = tpu.matmul %408, %394, %cst_166 {dimension_numbers = #tpu.dot_dimension_numbers<[2], [1], [1], [2], [0, 0, 0, 1, 1, 2], [0], [0]>} : vector<2x8x8xf32>, vector<2x8x16xf32>, vector<2x8x16xf32> -> vector<2x8x16xf32>
    "tpu.trace_stop"() : () -> ()
    %410 = vector.shape_cast %409 : vector<2x8x16xf32> to vector<16x16xf32>
    %411 = vector.extract_strided_slice %366 {offsets = [0, 32], sizes = [16, 16], strides = [1, 1]} : vector<16x192xf32> to vector<16x16xf32>
    %412 = vector.shape_cast %411 : vector<16x16xf32> to vector<2x8x16xf32>
    %413 = vector.extract_strided_slice %366 {offsets = [0, 96], sizes = [16, 16], strides = [1, 1]} : vector<16x192xf32> to vector<16x16xf32>
    %414 = vector.shape_cast %413 : vector<16x16xf32> to vector<2x8x16xf32>
    %415 = vector.extract_strided_slice %366 {offsets = [0, 160], sizes = [16, 16], strides = [1, 1]} : vector<16x192xf32> to vector<16x16xf32>
    %416 = vector.shape_cast %415 : vector<16x16xf32> to vector<2x8x16xf32>
    "tpu.trace_start"() <{level = 10 : i32, message = "bqd,bkd->bqk"}> : () -> ()
    %cst_167 = arith.constant dense<0.000000e+00> : vector<2x8x8xf32>
    %417 = tpu.matmul %412, %414, %cst_167 {dimension_numbers = #tpu.dot_dimension_numbers<[2], [2], [1], [1], [0, 0, 0, 1, 1, 1], [0], [0]>} : vector<2x8x16xf32>, vector<2x8x16xf32>, vector<2x8x8xf32> -> vector<2x8x8xf32>
    "tpu.trace_stop"() : () -> ()
    %cst_168 = arith.constant 2.500000e-01 : f32
    %418 = vector.broadcast %cst_168 : f32 to vector<2x8x8xf32>
    %419 = arith.mulf %417, %418 : vector<2x8x8xf32>
    %420 = vector.broadcast %15 : vector<2x1x8xf32> to vector<2x8x8xf32>
    %421 = arith.addf %419, %420 : vector<2x8x8xf32>
    %cst_169 = arith.constant dense<0xFF800000> : vector<2x8xf32>
    %422 = vector.multi_reduction <maximumf>, %421, %cst_169 [2] : vector<2x8x8xf32> to vector<2x8xf32>
    %423 = vector.shape_cast %422 : vector<2x8xf32> to vector<2x8x1xf32>
    %424 = vector.broadcast %423 : vector<2x8x1xf32> to vector<2x8x8xf32>
    %425 = arith.subf %421, %424 : vector<2x8x8xf32>
    %426 = math.exp %425 : vector<2x8x8xf32>
    %cst_170 = arith.constant dense<0.000000e+00> : vector<2x8xf32>
    %427 = vector.multi_reduction <add>, %426, %cst_170 [2] : vector<2x8x8xf32> to vector<2x8xf32>
    %428 = vector.shape_cast %427 : vector<2x8xf32> to vector<2x8x1xf32>
    %429 = vector.broadcast %428 : vector<2x8x1xf32> to vector<2x8x8xf32>
    %430 = arith.divf %426, %429 : vector<2x8x8xf32>
    "tpu.trace_start"() <{level = 10 : i32, message = "bqk,bkd->bqd"}> : () -> ()
    %cst_171 = arith.constant dense<0.000000e+00> : vector<2x8x16xf32>
    %431 = tpu.matmul %430, %416, %cst_171 {dimension_numbers = #tpu.dot_dimension_numbers<[2], [1], [1], [2], [0, 0, 0, 1, 1, 2], [0], [0]>} : vector<2x8x8xf32>, vector<2x8x16xf32>, vector<2x8x16xf32> -> vector<2x8x16xf32>
    "tpu.trace_stop"() : () -> ()
    %432 = vector.shape_cast %431 : vector<2x8x16xf32> to vector<16x16xf32>
    %433 = vector.extract_strided_slice %366 {offsets = [0, 48], sizes = [16, 16], strides = [1, 1]} : vector<16x192xf32> to vector<16x16xf32>
    %434 = vector.shape_cast %433 : vector<16x16xf32> to vector<2x8x16xf32>
    %435 = vector.extract_strided_slice %366 {offsets = [0, 112], sizes = [16, 16], strides = [1, 1]} : vector<16x192xf32> to vector<16x16xf32>
    %436 = vector.shape_cast %435 : vector<16x16xf32> to vector<2x8x16xf32>
    %437 = vector.extract_strided_slice %366 {offsets = [0, 176], sizes = [16, 16], strides = [1, 1]} : vector<16x192xf32> to vector<16x16xf32>
    %438 = vector.shape_cast %437 : vector<16x16xf32> to vector<2x8x16xf32>
    "tpu.trace_start"() <{level = 10 : i32, message = "bqd,bkd->bqk"}> : () -> ()
    %cst_172 = arith.constant dense<0.000000e+00> : vector<2x8x8xf32>
    %439 = tpu.matmul %434, %436, %cst_172 {dimension_numbers = #tpu.dot_dimension_numbers<[2], [2], [1], [1], [0, 0, 0, 1, 1, 1], [0], [0]>} : vector<2x8x16xf32>, vector<2x8x16xf32>, vector<2x8x8xf32> -> vector<2x8x8xf32>
    "tpu.trace_stop"() : () -> ()
    %cst_173 = arith.constant 2.500000e-01 : f32
    %440 = vector.broadcast %cst_173 : f32 to vector<2x8x8xf32>
    %441 = arith.mulf %439, %440 : vector<2x8x8xf32>
    %442 = vector.broadcast %15 : vector<2x1x8xf32> to vector<2x8x8xf32>
    %443 = arith.addf %441, %442 : vector<2x8x8xf32>
    %cst_174 = arith.constant dense<0xFF800000> : vector<2x8xf32>
    %444 = vector.multi_reduction <maximumf>, %443, %cst_174 [2] : vector<2x8x8xf32> to vector<2x8xf32>
    %445 = vector.shape_cast %444 : vector<2x8xf32> to vector<2x8x1xf32>
    %446 = vector.broadcast %445 : vector<2x8x1xf32> to vector<2x8x8xf32>
    %447 = arith.subf %443, %446 : vector<2x8x8xf32>
    %448 = math.exp %447 : vector<2x8x8xf32>
    %cst_175 = arith.constant dense<0.000000e+00> : vector<2x8xf32>
    %449 = vector.multi_reduction <add>, %448, %cst_175 [2] : vector<2x8x8xf32> to vector<2x8xf32>
    %450 = vector.shape_cast %449 : vector<2x8xf32> to vector<2x8x1xf32>
    %451 = vector.broadcast %450 : vector<2x8x1xf32> to vector<2x8x8xf32>
    %452 = arith.divf %448, %451 : vector<2x8x8xf32>
    "tpu.trace_start"() <{level = 10 : i32, message = "bqk,bkd->bqd"}> : () -> ()
    %cst_176 = arith.constant dense<0.000000e+00> : vector<2x8x16xf32>
    %453 = tpu.matmul %452, %438, %cst_176 {dimension_numbers = #tpu.dot_dimension_numbers<[2], [1], [1], [2], [0, 0, 0, 1, 1, 2], [0], [0]>} : vector<2x8x8xf32>, vector<2x8x16xf32>, vector<2x8x16xf32> -> vector<2x8x16xf32>
    "tpu.trace_stop"() : () -> ()
    %454 = vector.shape_cast %453 : vector<2x8x16xf32> to vector<16x16xf32>
    %455 = tpu.concatenate %388, %410, %432, %454 in 1 : vector<16x16xf32>, vector<16x16xf32>, vector<16x16xf32>, vector<16x16xf32> -> vector<16x64xf32>
    %c2_177 = arith.constant 2 : index
    %c0_178 = arith.constant 0 : index
    %c0_179 = arith.constant 0 : index
    %456 = vector.load %arg6[%c2_177, %c0_178, %c0_179] : memref<4x64x64xf32, #tpu.memory_space<vmem>>, vector<1x64x64xf32>
    %457 = vector.shape_cast %456 : vector<1x64x64xf32> to vector<64x64xf32>
    %cst_180 = arith.constant dense<0.000000e+00> : vector<16x64xf32>
    %458 = tpu.matmul %455, %457, %cst_180 {dimension_numbers = #tpu.dot_dimension_numbers<[1], [0], [0], [1], [0, 0, 1, 1], [], []>} : vector<16x64xf32>, vector<64x64xf32>, vector<16x64xf32> -> vector<16x64xf32>
    %c2_181 = arith.constant 2 : index
    %c0_182 = arith.constant 0 : index
    %c0_183 = arith.constant 0 : index
    %459 = vector.load %arg7[%c2_181, %c0_182, %c0_183] : memref<4x1x64xf32, #tpu.memory_space<vmem>>, vector<1x1x64xf32>
    %460 = vector.shape_cast %459 : vector<1x1x64xf32> to vector<1x64xf32>
    %461 = vector.broadcast %460 : vector<1x64xf32> to vector<16x64xf32>
    %462 = arith.addf %458, %461 : vector<16x64xf32>
    %463 = arith.addf %359, %462 : vector<16x64xf32>
    %c2_184 = arith.constant 2 : index
    %c0_185 = arith.constant 0 : index
    %c0_186 = arith.constant 0 : index
    %464 = vector.load %arg8[%c2_184, %c0_185, %c0_186] : memref<4x1x64xf32, #tpu.memory_space<vmem>>, vector<1x1x64xf32>
    %465 = vector.shape_cast %464 : vector<1x1x64xf32> to vector<1x64xf32>
    %c2_187 = arith.constant 2 : index
    %c0_188 = arith.constant 0 : index
    %c0_189 = arith.constant 0 : index
    %466 = vector.load %arg9[%c2_187, %c0_188, %c0_189] : memref<4x1x64xf32, #tpu.memory_space<vmem>>, vector<1x1x64xf32>
    %467 = vector.shape_cast %466 : vector<1x1x64xf32> to vector<1x64xf32>
    %cst_190 = arith.constant dense<0.000000e+00> : vector<16xf32>
    %468 = vector.multi_reduction <add>, %463, %cst_190 [1] : vector<16x64xf32> to vector<16xf32>
    %469 = vector.shape_cast %468 : vector<16xf32> to vector<16x1xf32>
    %cst_191 = arith.constant 6.400000e+01 : f32
    %470 = vector.broadcast %cst_191 : f32 to vector<16x1xf32>
    %471 = arith.divf %469, %470 : vector<16x1xf32>
    %472 = vector.broadcast %471 : vector<16x1xf32> to vector<16x64xf32>
    %473 = arith.subf %463, %472 : vector<16x64xf32>
    %474 = arith.mulf %473, %473 : vector<16x64xf32>
    %cst_192 = arith.constant dense<0.000000e+00> : vector<16xf32>
    %475 = vector.multi_reduction <add>, %474, %cst_192 [1] : vector<16x64xf32> to vector<16xf32>
    %476 = vector.shape_cast %475 : vector<16xf32> to vector<16x1xf32>
    %cst_193 = arith.constant 6.400000e+01 : f32
    %477 = vector.broadcast %cst_193 : f32 to vector<16x1xf32>
    %478 = arith.divf %476, %477 : vector<16x1xf32>
    %cst_194 = arith.constant 9.99999974E-6 : f32
    %479 = vector.broadcast %cst_194 : f32 to vector<16x1xf32>
    %480 = arith.addf %478, %479 : vector<16x1xf32>
    %481 = math.rsqrt %480 : vector<16x1xf32>
    %482 = vector.broadcast %481 : vector<16x1xf32> to vector<16x64xf32>
    %483 = arith.mulf %473, %482 : vector<16x64xf32>
    %484 = vector.broadcast %465 : vector<1x64xf32> to vector<16x64xf32>
    %485 = arith.mulf %483, %484 : vector<16x64xf32>
    %486 = vector.broadcast %467 : vector<1x64xf32> to vector<16x64xf32>
    %487 = arith.addf %485, %486 : vector<16x64xf32>
    %c2_195 = arith.constant 2 : index
    %c0_196 = arith.constant 0 : index
    %c0_197 = arith.constant 0 : index
    %488 = vector.load %arg12[%c2_195, %c0_196, %c0_197] : memref<4x64x256xf32, #tpu.memory_space<vmem>>, vector<1x64x256xf32>
    %489 = vector.shape_cast %488 : vector<1x64x256xf32> to vector<64x256xf32>
    %cst_198 = arith.constant dense<0.000000e+00> : vector<16x256xf32>
    %490 = tpu.matmul %487, %489, %cst_198 {dimension_numbers = #tpu.dot_dimension_numbers<[1], [0], [0], [1], [0, 0, 1, 1], [], []>} : vector<16x64xf32>, vector<64x256xf32>, vector<16x256xf32> -> vector<16x256xf32>
    %c2_199 = arith.constant 2 : index
    %c0_200 = arith.constant 0 : index
    %c0_201 = arith.constant 0 : index
    %491 = vector.load %arg13[%c2_199, %c0_200, %c0_201] : memref<4x1x256xf32, #tpu.memory_space<vmem>>, vector<1x1x256xf32>
    %492 = vector.shape_cast %491 : vector<1x1x256xf32> to vector<1x256xf32>
    %493 = vector.broadcast %492 : vector<1x256xf32> to vector<16x256xf32>
    %494 = arith.addf %490, %493 : vector<16x256xf32>
    %cst_202 = arith.constant 0.000000e+00 : f32
    %495 = vector.broadcast %cst_202 : f32 to vector<16x256xf32>
    %496 = arith.maximumf %494, %495 : vector<16x256xf32>
    %c2_203 = arith.constant 2 : index
    %c0_204 = arith.constant 0 : index
    %c0_205 = arith.constant 0 : index
    %497 = vector.load %arg14[%c2_203, %c0_204, %c0_205] : memref<4x256x64xf32, #tpu.memory_space<vmem>>, vector<1x256x64xf32>
    %498 = vector.shape_cast %497 : vector<1x256x64xf32> to vector<256x64xf32>
    %cst_206 = arith.constant dense<0.000000e+00> : vector<16x64xf32>
    %499 = tpu.matmul %496, %498, %cst_206 {dimension_numbers = #tpu.dot_dimension_numbers<[1], [0], [0], [1], [0, 0, 1, 1], [], []>} : vector<16x256xf32>, vector<256x64xf32>, vector<16x64xf32> -> vector<16x64xf32>
    %c2_207 = arith.constant 2 : index
    %c0_208 = arith.constant 0 : index
    %c0_209 = arith.constant 0 : index
    %500 = vector.load %arg15[%c2_207, %c0_208, %c0_209] : memref<4x1x64xf32, #tpu.memory_space<vmem>>, vector<1x1x64xf32>
    %501 = vector.shape_cast %500 : vector<1x1x64xf32> to vector<1x64xf32>
    %502 = vector.broadcast %501 : vector<1x64xf32> to vector<16x64xf32>
    %503 = arith.addf %499, %502 : vector<16x64xf32>
    %504 = arith.addf %487, %503 : vector<16x64xf32>
    %c2_210 = arith.constant 2 : index
    %c0_211 = arith.constant 0 : index
    %c0_212 = arith.constant 0 : index
    %505 = vector.load %arg10[%c2_210, %c0_211, %c0_212] : memref<4x1x64xf32, #tpu.memory_space<vmem>>, vector<1x1x64xf32>
    %506 = vector.shape_cast %505 : vector<1x1x64xf32> to vector<1x64xf32>
    %c2_213 = arith.constant 2 : index
    %c0_214 = arith.constant 0 : index
    %c0_215 = arith.constant 0 : index
    %507 = vector.load %arg11[%c2_213, %c0_214, %c0_215] : memref<4x1x64xf32, #tpu.memory_space<vmem>>, vector<1x1x64xf32>
    %508 = vector.shape_cast %507 : vector<1x1x64xf32> to vector<1x64xf32>
    %cst_216 = arith.constant dense<0.000000e+00> : vector<16xf32>
    %509 = vector.multi_reduction <add>, %504, %cst_216 [1] : vector<16x64xf32> to vector<16xf32>
    %510 = vector.shape_cast %509 : vector<16xf32> to vector<16x1xf32>
    %cst_217 = arith.constant 6.400000e+01 : f32
    %511 = vector.broadcast %cst_217 : f32 to vector<16x1xf32>
    %512 = arith.divf %510, %511 : vector<16x1xf32>
    %513 = vector.broadcast %512 : vector<16x1xf32> to vector<16x64xf32>
    %514 = arith.subf %504, %513 : vector<16x64xf32>
    %515 = arith.mulf %514, %514 : vector<16x64xf32>
    %cst_218 = arith.constant dense<0.000000e+00> : vector<16xf32>
    %516 = vector.multi_reduction <add>, %515, %cst_218 [1] : vector<16x64xf32> to vector<16xf32>
    %517 = vector.shape_cast %516 : vector<16xf32> to vector<16x1xf32>
    %cst_219 = arith.constant 6.400000e+01 : f32
    %518 = vector.broadcast %cst_219 : f32 to vector<16x1xf32>
    %519 = arith.divf %517, %518 : vector<16x1xf32>
    %cst_220 = arith.constant 9.99999974E-6 : f32
    %520 = vector.broadcast %cst_220 : f32 to vector<16x1xf32>
    %521 = arith.addf %519, %520 : vector<16x1xf32>
    %522 = math.rsqrt %521 : vector<16x1xf32>
    %523 = vector.broadcast %522 : vector<16x1xf32> to vector<16x64xf32>
    %524 = arith.mulf %514, %523 : vector<16x64xf32>
    %525 = vector.broadcast %506 : vector<1x64xf32> to vector<16x64xf32>
    %526 = arith.mulf %524, %525 : vector<16x64xf32>
    %527 = vector.broadcast %508 : vector<1x64xf32> to vector<16x64xf32>
    %528 = arith.addf %526, %527 : vector<16x64xf32>
    %c3 = arith.constant 3 : index
    %c0_221 = arith.constant 0 : index
    %c0_222 = arith.constant 0 : index
    %529 = vector.load %arg4[%c3, %c0_221, %c0_222] : memref<4x64x192xf32, #tpu.memory_space<vmem>>, vector<1x64x192xf32>
    %530 = vector.shape_cast %529 : vector<1x64x192xf32> to vector<64x192xf32>
    %cst_223 = arith.constant dense<0.000000e+00> : vector<16x192xf32>
    %531 = tpu.matmul %528, %530, %cst_223 {dimension_numbers = #tpu.dot_dimension_numbers<[1], [0], [0], [1], [0, 0, 1, 1], [], []>} : vector<16x64xf32>, vector<64x192xf32>, vector<16x192xf32> -> vector<16x192xf32>
    %c3_224 = arith.constant 3 : index
    %c0_225 = arith.constant 0 : index
    %c0_226 = arith.constant 0 : index
    %532 = vector.load %arg5[%c3_224, %c0_225, %c0_226] : memref<4x1x192xf32, #tpu.memory_space<vmem>>, vector<1x1x192xf32>
    %533 = vector.shape_cast %532 : vector<1x1x192xf32> to vector<1x192xf32>
    %534 = vector.broadcast %533 : vector<1x192xf32> to vector<16x192xf32>
    %535 = arith.addf %531, %534 : vector<16x192xf32>
    %536 = vector.extract_strided_slice %535 {offsets = [0, 0], sizes = [16, 16], strides = [1, 1]} : vector<16x192xf32> to vector<16x16xf32>
    %537 = vector.shape_cast %536 : vector<16x16xf32> to vector<2x8x16xf32>
    %538 = vector.extract_strided_slice %535 {offsets = [0, 64], sizes = [16, 16], strides = [1, 1]} : vector<16x192xf32> to vector<16x16xf32>
    %539 = vector.shape_cast %538 : vector<16x16xf32> to vector<2x8x16xf32>
    %540 = vector.extract_strided_slice %535 {offsets = [0, 128], sizes = [16, 16], strides = [1, 1]} : vector<16x192xf32> to vector<16x16xf32>
    %541 = vector.shape_cast %540 : vector<16x16xf32> to vector<2x8x16xf32>
    "tpu.trace_start"() <{level = 10 : i32, message = "bqd,bkd->bqk"}> : () -> ()
    %cst_227 = arith.constant dense<0.000000e+00> : vector<2x8x8xf32>
    %542 = tpu.matmul %537, %539, %cst_227 {dimension_numbers = #tpu.dot_dimension_numbers<[2], [2], [1], [1], [0, 0, 0, 1, 1, 1], [0], [0]>} : vector<2x8x16xf32>, vector<2x8x16xf32>, vector<2x8x8xf32> -> vector<2x8x8xf32>
    "tpu.trace_stop"() : () -> ()
    %cst_228 = arith.constant 2.500000e-01 : f32
    %543 = vector.broadcast %cst_228 : f32 to vector<2x8x8xf32>
    %544 = arith.mulf %542, %543 : vector<2x8x8xf32>
    %545 = vector.broadcast %15 : vector<2x1x8xf32> to vector<2x8x8xf32>
    %546 = arith.addf %544, %545 : vector<2x8x8xf32>
    %cst_229 = arith.constant dense<0xFF800000> : vector<2x8xf32>
    %547 = vector.multi_reduction <maximumf>, %546, %cst_229 [2] : vector<2x8x8xf32> to vector<2x8xf32>
    %548 = vector.shape_cast %547 : vector<2x8xf32> to vector<2x8x1xf32>
    %549 = vector.broadcast %548 : vector<2x8x1xf32> to vector<2x8x8xf32>
    %550 = arith.subf %546, %549 : vector<2x8x8xf32>
    %551 = math.exp %550 : vector<2x8x8xf32>
    %cst_230 = arith.constant dense<0.000000e+00> : vector<2x8xf32>
    %552 = vector.multi_reduction <add>, %551, %cst_230 [2] : vector<2x8x8xf32> to vector<2x8xf32>
    %553 = vector.shape_cast %552 : vector<2x8xf32> to vector<2x8x1xf32>
    %554 = vector.broadcast %553 : vector<2x8x1xf32> to vector<2x8x8xf32>
    %555 = arith.divf %551, %554 : vector<2x8x8xf32>
    "tpu.trace_start"() <{level = 10 : i32, message = "bqk,bkd->bqd"}> : () -> ()
    %cst_231 = arith.constant dense<0.000000e+00> : vector<2x8x16xf32>
    %556 = tpu.matmul %555, %541, %cst_231 {dimension_numbers = #tpu.dot_dimension_numbers<[2], [1], [1], [2], [0, 0, 0, 1, 1, 2], [0], [0]>} : vector<2x8x8xf32>, vector<2x8x16xf32>, vector<2x8x16xf32> -> vector<2x8x16xf32>
    "tpu.trace_stop"() : () -> ()
    %557 = vector.shape_cast %556 : vector<2x8x16xf32> to vector<16x16xf32>
    %558 = vector.extract_strided_slice %535 {offsets = [0, 16], sizes = [16, 16], strides = [1, 1]} : vector<16x192xf32> to vector<16x16xf32>
    %559 = vector.shape_cast %558 : vector<16x16xf32> to vector<2x8x16xf32>
    %560 = vector.extract_strided_slice %535 {offsets = [0, 80], sizes = [16, 16], strides = [1, 1]} : vector<16x192xf32> to vector<16x16xf32>
    %561 = vector.shape_cast %560 : vector<16x16xf32> to vector<2x8x16xf32>
    %562 = vector.extract_strided_slice %535 {offsets = [0, 144], sizes = [16, 16], strides = [1, 1]} : vector<16x192xf32> to vector<16x16xf32>
    %563 = vector.shape_cast %562 : vector<16x16xf32> to vector<2x8x16xf32>
    "tpu.trace_start"() <{level = 10 : i32, message = "bqd,bkd->bqk"}> : () -> ()
    %cst_232 = arith.constant dense<0.000000e+00> : vector<2x8x8xf32>
    %564 = tpu.matmul %559, %561, %cst_232 {dimension_numbers = #tpu.dot_dimension_numbers<[2], [2], [1], [1], [0, 0, 0, 1, 1, 1], [0], [0]>} : vector<2x8x16xf32>, vector<2x8x16xf32>, vector<2x8x8xf32> -> vector<2x8x8xf32>
    "tpu.trace_stop"() : () -> ()
    %cst_233 = arith.constant 2.500000e-01 : f32
    %565 = vector.broadcast %cst_233 : f32 to vector<2x8x8xf32>
    %566 = arith.mulf %564, %565 : vector<2x8x8xf32>
    %567 = vector.broadcast %15 : vector<2x1x8xf32> to vector<2x8x8xf32>
    %568 = arith.addf %566, %567 : vector<2x8x8xf32>
    %cst_234 = arith.constant dense<0xFF800000> : vector<2x8xf32>
    %569 = vector.multi_reduction <maximumf>, %568, %cst_234 [2] : vector<2x8x8xf32> to vector<2x8xf32>
    %570 = vector.shape_cast %569 : vector<2x8xf32> to vector<2x8x1xf32>
    %571 = vector.broadcast %570 : vector<2x8x1xf32> to vector<2x8x8xf32>
    %572 = arith.subf %568, %571 : vector<2x8x8xf32>
    %573 = math.exp %572 : vector<2x8x8xf32>
    %cst_235 = arith.constant dense<0.000000e+00> : vector<2x8xf32>
    %574 = vector.multi_reduction <add>, %573, %cst_235 [2] : vector<2x8x8xf32> to vector<2x8xf32>
    %575 = vector.shape_cast %574 : vector<2x8xf32> to vector<2x8x1xf32>
    %576 = vector.broadcast %575 : vector<2x8x1xf32> to vector<2x8x8xf32>
    %577 = arith.divf %573, %576 : vector<2x8x8xf32>
    "tpu.trace_start"() <{level = 10 : i32, message = "bqk,bkd->bqd"}> : () -> ()
    %cst_236 = arith.constant dense<0.000000e+00> : vector<2x8x16xf32>
    %578 = tpu.matmul %577, %563, %cst_236 {dimension_numbers = #tpu.dot_dimension_numbers<[2], [1], [1], [2], [0, 0, 0, 1, 1, 2], [0], [0]>} : vector<2x8x8xf32>, vector<2x8x16xf32>, vector<2x8x16xf32> -> vector<2x8x16xf32>
    "tpu.trace_stop"() : () -> ()
    %579 = vector.shape_cast %578 : vector<2x8x16xf32> to vector<16x16xf32>
    %580 = vector.extract_strided_slice %535 {offsets = [0, 32], sizes = [16, 16], strides = [1, 1]} : vector<16x192xf32> to vector<16x16xf32>
    %581 = vector.shape_cast %580 : vector<16x16xf32> to vector<2x8x16xf32>
    %582 = vector.extract_strided_slice %535 {offsets = [0, 96], sizes = [16, 16], strides = [1, 1]} : vector<16x192xf32> to vector<16x16xf32>
    %583 = vector.shape_cast %582 : vector<16x16xf32> to vector<2x8x16xf32>
    %584 = vector.extract_strided_slice %535 {offsets = [0, 160], sizes = [16, 16], strides = [1, 1]} : vector<16x192xf32> to vector<16x16xf32>
    %585 = vector.shape_cast %584 : vector<16x16xf32> to vector<2x8x16xf32>
    "tpu.trace_start"() <{level = 10 : i32, message = "bqd,bkd->bqk"}> : () -> ()
    %cst_237 = arith.constant dense<0.000000e+00> : vector<2x8x8xf32>
    %586 = tpu.matmul %581, %583, %cst_237 {dimension_numbers = #tpu.dot_dimension_numbers<[2], [2], [1], [1], [0, 0, 0, 1, 1, 1], [0], [0]>} : vector<2x8x16xf32>, vector<2x8x16xf32>, vector<2x8x8xf32> -> vector<2x8x8xf32>
    "tpu.trace_stop"() : () -> ()
    %cst_238 = arith.constant 2.500000e-01 : f32
    %587 = vector.broadcast %cst_238 : f32 to vector<2x8x8xf32>
    %588 = arith.mulf %586, %587 : vector<2x8x8xf32>
    %589 = vector.broadcast %15 : vector<2x1x8xf32> to vector<2x8x8xf32>
    %590 = arith.addf %588, %589 : vector<2x8x8xf32>
    %cst_239 = arith.constant dense<0xFF800000> : vector<2x8xf32>
    %591 = vector.multi_reduction <maximumf>, %590, %cst_239 [2] : vector<2x8x8xf32> to vector<2x8xf32>
    %592 = vector.shape_cast %591 : vector<2x8xf32> to vector<2x8x1xf32>
    %593 = vector.broadcast %592 : vector<2x8x1xf32> to vector<2x8x8xf32>
    %594 = arith.subf %590, %593 : vector<2x8x8xf32>
    %595 = math.exp %594 : vector<2x8x8xf32>
    %cst_240 = arith.constant dense<0.000000e+00> : vector<2x8xf32>
    %596 = vector.multi_reduction <add>, %595, %cst_240 [2] : vector<2x8x8xf32> to vector<2x8xf32>
    %597 = vector.shape_cast %596 : vector<2x8xf32> to vector<2x8x1xf32>
    %598 = vector.broadcast %597 : vector<2x8x1xf32> to vector<2x8x8xf32>
    %599 = arith.divf %595, %598 : vector<2x8x8xf32>
    "tpu.trace_start"() <{level = 10 : i32, message = "bqk,bkd->bqd"}> : () -> ()
    %cst_241 = arith.constant dense<0.000000e+00> : vector<2x8x16xf32>
    %600 = tpu.matmul %599, %585, %cst_241 {dimension_numbers = #tpu.dot_dimension_numbers<[2], [1], [1], [2], [0, 0, 0, 1, 1, 2], [0], [0]>} : vector<2x8x8xf32>, vector<2x8x16xf32>, vector<2x8x16xf32> -> vector<2x8x16xf32>
    "tpu.trace_stop"() : () -> ()
    %601 = vector.shape_cast %600 : vector<2x8x16xf32> to vector<16x16xf32>
    %602 = vector.extract_strided_slice %535 {offsets = [0, 48], sizes = [16, 16], strides = [1, 1]} : vector<16x192xf32> to vector<16x16xf32>
    %603 = vector.shape_cast %602 : vector<16x16xf32> to vector<2x8x16xf32>
    %604 = vector.extract_strided_slice %535 {offsets = [0, 112], sizes = [16, 16], strides = [1, 1]} : vector<16x192xf32> to vector<16x16xf32>
    %605 = vector.shape_cast %604 : vector<16x16xf32> to vector<2x8x16xf32>
    %606 = vector.extract_strided_slice %535 {offsets = [0, 176], sizes = [16, 16], strides = [1, 1]} : vector<16x192xf32> to vector<16x16xf32>
    %607 = vector.shape_cast %606 : vector<16x16xf32> to vector<2x8x16xf32>
    "tpu.trace_start"() <{level = 10 : i32, message = "bqd,bkd->bqk"}> : () -> ()
    %cst_242 = arith.constant dense<0.000000e+00> : vector<2x8x8xf32>
    %608 = tpu.matmul %603, %605, %cst_242 {dimension_numbers = #tpu.dot_dimension_numbers<[2], [2], [1], [1], [0, 0, 0, 1, 1, 1], [0], [0]>} : vector<2x8x16xf32>, vector<2x8x16xf32>, vector<2x8x8xf32> -> vector<2x8x8xf32>
    "tpu.trace_stop"() : () -> ()
    %cst_243 = arith.constant 2.500000e-01 : f32
    %609 = vector.broadcast %cst_243 : f32 to vector<2x8x8xf32>
    %610 = arith.mulf %608, %609 : vector<2x8x8xf32>
    %611 = vector.broadcast %15 : vector<2x1x8xf32> to vector<2x8x8xf32>
    %612 = arith.addf %610, %611 : vector<2x8x8xf32>
    %cst_244 = arith.constant dense<0xFF800000> : vector<2x8xf32>
    %613 = vector.multi_reduction <maximumf>, %612, %cst_244 [2] : vector<2x8x8xf32> to vector<2x8xf32>
    %614 = vector.shape_cast %613 : vector<2x8xf32> to vector<2x8x1xf32>
    %615 = vector.broadcast %614 : vector<2x8x1xf32> to vector<2x8x8xf32>
    %616 = arith.subf %612, %615 : vector<2x8x8xf32>
    %617 = math.exp %616 : vector<2x8x8xf32>
    %cst_245 = arith.constant dense<0.000000e+00> : vector<2x8xf32>
    %618 = vector.multi_reduction <add>, %617, %cst_245 [2] : vector<2x8x8xf32> to vector<2x8xf32>
    %619 = vector.shape_cast %618 : vector<2x8xf32> to vector<2x8x1xf32>
    %620 = vector.broadcast %619 : vector<2x8x1xf32> to vector<2x8x8xf32>
    %621 = arith.divf %617, %620 : vector<2x8x8xf32>
    "tpu.trace_start"() <{level = 10 : i32, message = "bqk,bkd->bqd"}> : () -> ()
    %cst_246 = arith.constant dense<0.000000e+00> : vector<2x8x16xf32>
    %622 = tpu.matmul %621, %607, %cst_246 {dimension_numbers = #tpu.dot_dimension_numbers<[2], [1], [1], [2], [0, 0, 0, 1, 1, 2], [0], [0]>} : vector<2x8x8xf32>, vector<2x8x16xf32>, vector<2x8x16xf32> -> vector<2x8x16xf32>
    "tpu.trace_stop"() : () -> ()
    %623 = vector.shape_cast %622 : vector<2x8x16xf32> to vector<16x16xf32>
    %624 = tpu.concatenate %557, %579, %601, %623 in 1 : vector<16x16xf32>, vector<16x16xf32>, vector<16x16xf32>, vector<16x16xf32> -> vector<16x64xf32>
    %c3_247 = arith.constant 3 : index
    %c0_248 = arith.constant 0 : index
    %c0_249 = arith.constant 0 : index
    %625 = vector.load %arg6[%c3_247, %c0_248, %c0_249] : memref<4x64x64xf32, #tpu.memory_space<vmem>>, vector<1x64x64xf32>
    %626 = vector.shape_cast %625 : vector<1x64x64xf32> to vector<64x64xf32>
    %cst_250 = arith.constant dense<0.000000e+00> : vector<16x64xf32>
    %627 = tpu.matmul %624, %626, %cst_250 {dimension_numbers = #tpu.dot_dimension_numbers<[1], [0], [0], [1], [0, 0, 1, 1], [], []>} : vector<16x64xf32>, vector<64x64xf32>, vector<16x64xf32> -> vector<16x64xf32>
    %c3_251 = arith.constant 3 : index
    %c0_252 = arith.constant 0 : index
    %c0_253 = arith.constant 0 : index
    %628 = vector.load %arg7[%c3_251, %c0_252, %c0_253] : memref<4x1x64xf32, #tpu.memory_space<vmem>>, vector<1x1x64xf32>
    %629 = vector.shape_cast %628 : vector<1x1x64xf32> to vector<1x64xf32>
    %630 = vector.broadcast %629 : vector<1x64xf32> to vector<16x64xf32>
    %631 = arith.addf %627, %630 : vector<16x64xf32>
    %632 = arith.addf %528, %631 : vector<16x64xf32>
    %c3_254 = arith.constant 3 : index
    %c0_255 = arith.constant 0 : index
    %c0_256 = arith.constant 0 : index
    %633 = vector.load %arg8[%c3_254, %c0_255, %c0_256] : memref<4x1x64xf32, #tpu.memory_space<vmem>>, vector<1x1x64xf32>
    %634 = vector.shape_cast %633 : vector<1x1x64xf32> to vector<1x64xf32>
    %c3_257 = arith.constant 3 : index
    %c0_258 = arith.constant 0 : index
    %c0_259 = arith.constant 0 : index
    %635 = vector.load %arg9[%c3_257, %c0_258, %c0_259] : memref<4x1x64xf32, #tpu.memory_space<vmem>>, vector<1x1x64xf32>
    %636 = vector.shape_cast %635 : vector<1x1x64xf32> to vector<1x64xf32>
    %cst_260 = arith.constant dense<0.000000e+00> : vector<16xf32>
    %637 = vector.multi_reduction <add>, %632, %cst_260 [1] : vector<16x64xf32> to vector<16xf32>
    %638 = vector.shape_cast %637 : vector<16xf32> to vector<16x1xf32>
    %cst_261 = arith.constant 6.400000e+01 : f32
    %639 = vector.broadcast %cst_261 : f32 to vector<16x1xf32>
    %640 = arith.divf %638, %639 : vector<16x1xf32>
    %641 = vector.broadcast %640 : vector<16x1xf32> to vector<16x64xf32>
    %642 = arith.subf %632, %641 : vector<16x64xf32>
    %643 = arith.mulf %642, %642 : vector<16x64xf32>
    %cst_262 = arith.constant dense<0.000000e+00> : vector<16xf32>
    %644 = vector.multi_reduction <add>, %643, %cst_262 [1] : vector<16x64xf32> to vector<16xf32>
    %645 = vector.shape_cast %644 : vector<16xf32> to vector<16x1xf32>
    %cst_263 = arith.constant 6.400000e+01 : f32
    %646 = vector.broadcast %cst_263 : f32 to vector<16x1xf32>
    %647 = arith.divf %645, %646 : vector<16x1xf32>
    %cst_264 = arith.constant 9.99999974E-6 : f32
    %648 = vector.broadcast %cst_264 : f32 to vector<16x1xf32>
    %649 = arith.addf %647, %648 : vector<16x1xf32>
    %650 = math.rsqrt %649 : vector<16x1xf32>
    %651 = vector.broadcast %650 : vector<16x1xf32> to vector<16x64xf32>
    %652 = arith.mulf %642, %651 : vector<16x64xf32>
    %653 = vector.broadcast %634 : vector<1x64xf32> to vector<16x64xf32>
    %654 = arith.mulf %652, %653 : vector<16x64xf32>
    %655 = vector.broadcast %636 : vector<1x64xf32> to vector<16x64xf32>
    %656 = arith.addf %654, %655 : vector<16x64xf32>
    %c3_265 = arith.constant 3 : index
    %c0_266 = arith.constant 0 : index
    %c0_267 = arith.constant 0 : index
    %657 = vector.load %arg12[%c3_265, %c0_266, %c0_267] : memref<4x64x256xf32, #tpu.memory_space<vmem>>, vector<1x64x256xf32>
    %658 = vector.shape_cast %657 : vector<1x64x256xf32> to vector<64x256xf32>
    %cst_268 = arith.constant dense<0.000000e+00> : vector<16x256xf32>
    %659 = tpu.matmul %656, %658, %cst_268 {dimension_numbers = #tpu.dot_dimension_numbers<[1], [0], [0], [1], [0, 0, 1, 1], [], []>} : vector<16x64xf32>, vector<64x256xf32>, vector<16x256xf32> -> vector<16x256xf32>
    %c3_269 = arith.constant 3 : index
    %c0_270 = arith.constant 0 : index
    %c0_271 = arith.constant 0 : index
    %660 = vector.load %arg13[%c3_269, %c0_270, %c0_271] : memref<4x1x256xf32, #tpu.memory_space<vmem>>, vector<1x1x256xf32>
    %661 = vector.shape_cast %660 : vector<1x1x256xf32> to vector<1x256xf32>
    %662 = vector.broadcast %661 : vector<1x256xf32> to vector<16x256xf32>
    %663 = arith.addf %659, %662 : vector<16x256xf32>
    %cst_272 = arith.constant 0.000000e+00 : f32
    %664 = vector.broadcast %cst_272 : f32 to vector<16x256xf32>
    %665 = arith.maximumf %663, %664 : vector<16x256xf32>
    %c3_273 = arith.constant 3 : index
    %c0_274 = arith.constant 0 : index
    %c0_275 = arith.constant 0 : index
    %666 = vector.load %arg14[%c3_273, %c0_274, %c0_275] : memref<4x256x64xf32, #tpu.memory_space<vmem>>, vector<1x256x64xf32>
    %667 = vector.shape_cast %666 : vector<1x256x64xf32> to vector<256x64xf32>
    %cst_276 = arith.constant dense<0.000000e+00> : vector<16x64xf32>
    %668 = tpu.matmul %665, %667, %cst_276 {dimension_numbers = #tpu.dot_dimension_numbers<[1], [0], [0], [1], [0, 0, 1, 1], [], []>} : vector<16x256xf32>, vector<256x64xf32>, vector<16x64xf32> -> vector<16x64xf32>
    %c3_277 = arith.constant 3 : index
    %c0_278 = arith.constant 0 : index
    %c0_279 = arith.constant 0 : index
    %669 = vector.load %arg15[%c3_277, %c0_278, %c0_279] : memref<4x1x64xf32, #tpu.memory_space<vmem>>, vector<1x1x64xf32>
    %670 = vector.shape_cast %669 : vector<1x1x64xf32> to vector<1x64xf32>
    %671 = vector.broadcast %670 : vector<1x64xf32> to vector<16x64xf32>
    %672 = arith.addf %668, %671 : vector<16x64xf32>
    %673 = arith.addf %656, %672 : vector<16x64xf32>
    %c3_280 = arith.constant 3 : index
    %c0_281 = arith.constant 0 : index
    %c0_282 = arith.constant 0 : index
    %674 = vector.load %arg10[%c3_280, %c0_281, %c0_282] : memref<4x1x64xf32, #tpu.memory_space<vmem>>, vector<1x1x64xf32>
    %675 = vector.shape_cast %674 : vector<1x1x64xf32> to vector<1x64xf32>
    %c3_283 = arith.constant 3 : index
    %c0_284 = arith.constant 0 : index
    %c0_285 = arith.constant 0 : index
    %676 = vector.load %arg11[%c3_283, %c0_284, %c0_285] : memref<4x1x64xf32, #tpu.memory_space<vmem>>, vector<1x1x64xf32>
    %677 = vector.shape_cast %676 : vector<1x1x64xf32> to vector<1x64xf32>
    %cst_286 = arith.constant dense<0.000000e+00> : vector<16xf32>
    %678 = vector.multi_reduction <add>, %673, %cst_286 [1] : vector<16x64xf32> to vector<16xf32>
    %679 = vector.shape_cast %678 : vector<16xf32> to vector<16x1xf32>
    %cst_287 = arith.constant 6.400000e+01 : f32
    %680 = vector.broadcast %cst_287 : f32 to vector<16x1xf32>
    %681 = arith.divf %679, %680 : vector<16x1xf32>
    %682 = vector.broadcast %681 : vector<16x1xf32> to vector<16x64xf32>
    %683 = arith.subf %673, %682 : vector<16x64xf32>
    %684 = arith.mulf %683, %683 : vector<16x64xf32>
    %cst_288 = arith.constant dense<0.000000e+00> : vector<16xf32>
    %685 = vector.multi_reduction <add>, %684, %cst_288 [1] : vector<16x64xf32> to vector<16xf32>
    %686 = vector.shape_cast %685 : vector<16xf32> to vector<16x1xf32>
    %cst_289 = arith.constant 6.400000e+01 : f32
    %687 = vector.broadcast %cst_289 : f32 to vector<16x1xf32>
    %688 = arith.divf %686, %687 : vector<16x1xf32>
    %cst_290 = arith.constant 9.99999974E-6 : f32
    %689 = vector.broadcast %cst_290 : f32 to vector<16x1xf32>
    %690 = arith.addf %688, %689 : vector<16x1xf32>
    %691 = math.rsqrt %690 : vector<16x1xf32>
    %692 = vector.broadcast %691 : vector<16x1xf32> to vector<16x64xf32>
    %693 = arith.mulf %683, %692 : vector<16x64xf32>
    %694 = vector.broadcast %675 : vector<1x64xf32> to vector<16x64xf32>
    %695 = arith.mulf %693, %694 : vector<16x64xf32>
    %696 = vector.broadcast %677 : vector<1x64xf32> to vector<16x64xf32>
    %697 = arith.addf %695, %696 : vector<16x64xf32>
    %698 = vector.shape_cast %697 : vector<16x64xf32> to vector<2x8x64xf32>
    %cst_291 = arith.constant dense<0.000000e+00> : vector<2x64xf32>
    %699 = vector.multi_reduction <add>, %698, %cst_291 [1] : vector<2x8x64xf32> to vector<2x64xf32>
    %cst_292 = arith.constant 8.000000e+00 : f32
    %700 = vector.broadcast %cst_292 : f32 to vector<2x64xf32>
    %701 = arith.divf %699, %700 : vector<2x64xf32>
    %cst_293 = arith.constant dense<0xFF800000> : vector<2xf32>
    %702 = vector.multi_reduction <maximumf>, %701, %cst_293 [1] : vector<2x64xf32> to vector<2xf32>
    %703 = vector.shape_cast %702 : vector<2xf32> to vector<2x1xf32>
    %704 = vector.broadcast %703 : vector<2x1xf32> to vector<2x64xf32>
    %705 = arith.subf %701, %704 : vector<2x64xf32>
    %706 = math.exp %705 : vector<2x64xf32>
    %cst_294 = arith.constant dense<0.000000e+00> : vector<2xf32>
    %707 = vector.multi_reduction <add>, %706, %cst_294 [1] : vector<2x64xf32> to vector<2xf32>
    %708 = vector.shape_cast %707 : vector<2xf32> to vector<2x1xf32>
    %709 = vector.broadcast %708 : vector<2x1xf32> to vector<2x64xf32>
    %710 = arith.divf %706, %709 : vector<2x64xf32>
    %c0_295 = arith.constant 0 : index
    %c0_296 = arith.constant 0 : index
    %711 = vector.load %arg16[%c0_295, %c0_296] : memref<2x64xf32, #tpu.memory_space<vmem>>, vector<2x64xf32>
    tpu.vector_store %arg16[%c0_295, %c0_296], %710 {strides = array<i32>} : memref<2x64xf32, #tpu.memory_space<vmem>>, vector<2x64xf32>,
    return
  }
  func.func @transform_0(%arg0: i32) -> (i32, i32, i32) {
    %c0_i32 = arith.constant 0 : i32
    %c0_i32_0 = arith.constant 0 : i32
    %c0_i32_1 = arith.constant 0 : i32
    return %arg0, %c0_i32, %c0_i32_0 : i32, i32, i32
  }
  func.func @transform_1(%arg0: i32) -> (i32, i32) {
    %c0_i32 = arith.constant 0 : i32
    %c0_i32_0 = arith.constant 0 : i32
    %c0_i32_1 = arith.constant 0 : i32
    return %c0_i32, %c0_i32_0 : i32, i32
  }
  func.func @transform_2(%arg0: i32) -> (i32, i32) {
    %c0_i32 = arith.constant 0 : i32
    %c0_i32_0 = arith.constant 0 : i32
    %c0_i32_1 = arith.constant 0 : i32
    return %c0_i32, %c0_i32_0 : i32, i32
  }
  func.func @transform_3(%arg0: i32) -> (i32, i32, i32) {
    %c0_i32 = arith.constant 0 : i32
    %c0_i32_0 = arith.constant 0 : i32
    %c0_i32_1 = arith.constant 0 : i32
    %c0_i32_2 = arith.constant 0 : i32
    return %c0_i32, %c0_i32_0, %c0_i32_1 : i32, i32, i32
  }
  func.func @transform_4(%arg0: i32) -> (i32, i32, i32) {
    %c0_i32 = arith.constant 0 : i32
    %c0_i32_0 = arith.constant 0 : i32
    %c0_i32_1 = arith.constant 0 : i32
    %c0_i32_2 = arith.constant 0 : i32
    return %c0_i32, %c0_i32_0, %c0_i32_1 : i32, i32, i32
  }
  func.func @transform_5(%arg0: i32) -> (i32, i32, i32) {
    %c0_i32 = arith.constant 0 : i32
    %c0_i32_0 = arith.constant 0 : i32
    %c0_i32_1 = arith.constant 0 : i32
    %c0_i32_2 = arith.constant 0 : i32
    return %c0_i32, %c0_i32_0, %c0_i32_1 : i32, i32, i32
  }
  func.func @transform_6(%arg0: i32) -> (i32, i32, i32) {
    %c0_i32 = arith.constant 0 : i32
    %c0_i32_0 = arith.constant 0 : i32
    %c0_i32_1 = arith.constant 0 : i32
    %c0_i32_2 = arith.constant 0 : i32
    return %c0_i32, %c0_i32_0, %c0_i32_1 : i32, i32, i32
  }
  func.func @transform_7(%arg0: i32) -> (i32, i32, i32) {
    %c0_i32 = arith.constant 0 : i32
    %c0_i32_0 = arith.constant 0 : i32
    %c0_i32_1 = arith.constant 0 : i32
    %c0_i32_2 = arith.constant 0 : i32
    return %c0_i32, %c0_i32_0, %c0_i32_1 : i32, i32, i32
  }
  func.func @transform_8(%arg0: i32) -> (i32, i32, i32) {
    %c0_i32 = arith.constant 0 : i32
    %c0_i32_0 = arith.constant 0 : i32
    %c0_i32_1 = arith.constant 0 : i32
    %c0_i32_2 = arith.constant 0 : i32
    return %c0_i32, %c0_i32_0, %c0_i32_1 : i32, i32, i32
  }
  func.func @transform_9(%arg0: i32) -> (i32, i32, i32) {
    %c0_i32 = arith.constant 0 : i32
    %c0_i32_0 = arith.constant 0 : i32
    %c0_i32_1 = arith.constant 0 : i32
    %c0_i32_2 = arith.constant 0 : i32
    return %c0_i32, %c0_i32_0, %c0_i32_1 : i32, i32, i32
  }
  func.func @transform_10(%arg0: i32) -> (i32, i32, i32) {
    %c0_i32 = arith.constant 0 : i32
    %c0_i32_0 = arith.constant 0 : i32
    %c0_i32_1 = arith.constant 0 : i32
    %c0_i32_2 = arith.constant 0 : i32
    return %c0_i32, %c0_i32_0, %c0_i32_1 : i32, i32, i32
  }
  func.func @transform_11(%arg0: i32) -> (i32, i32, i32) {
    %c0_i32 = arith.constant 0 : i32
    %c0_i32_0 = arith.constant 0 : i32
    %c0_i32_1 = arith.constant 0 : i32
    %c0_i32_2 = arith.constant 0 : i32
    return %c0_i32, %c0_i32_0, %c0_i32_1 : i32, i32, i32
  }
  func.func @transform_12(%arg0: i32) -> (i32, i32, i32) {
    %c0_i32 = arith.constant 0 : i32
    %c0_i32_0 = arith.constant 0 : i32
    %c0_i32_1 = arith.constant 0 : i32
    %c0_i32_2 = arith.constant 0 : i32
    return %c0_i32, %c0_i32_0, %c0_i32_1 : i32, i32, i32
  }
  func.func @transform_13(%arg0: i32) -> (i32, i32, i32) {
    %c0_i32 = arith.constant 0 : i32
    %c0_i32_0 = arith.constant 0 : i32
    %c0_i32_1 = arith.constant 0 : i32
    %c0_i32_2 = arith.constant 0 : i32
    return %c0_i32, %c0_i32_0, %c0_i32_1 : i32, i32, i32
  }
  func.func @transform_14(%arg0: i32) -> (i32, i32, i32) {
    %c0_i32 = arith.constant 0 : i32
    %c0_i32_0 = arith.constant 0 : i32
    %c0_i32_1 = arith.constant 0 : i32
    %c0_i32_2 = arith.constant 0 : i32
    return %c0_i32, %c0_i32_0, %c0_i32_1 : i32, i32, i32
  }
  func.func @transform_15(%arg0: i32) -> (i32, i32) {
    %c0_i32 = arith.constant 0 : i32
    %c0_i32_0 = arith.constant 0 : i32
    return %arg0, %c0_i32 : i32, i32
  }
}

</mosaic_0001>

<llo_original>
// kernel: transformer_cls_forward.1
$region0: #{transformer_cls_forward.1}
  #allocation0 [shape = 'u32[]', space=smem, size = 0x4, offset = 0x4, fixed_abs, tag = 'smem constant byte address 0x4 - core index']
  #allocation1 [shape = 'u32[144,128]{1,0:T(1,128)}', space=vmem, size = 0x12000, scoped, tag = 'internal scratch']
  %s0 = inlined_call_operand.vmem [shape: f32[2,8,6], index: 0, kind: input, shape index: {}]
  %s1 = inlined_call_operand.vmem [shape: f32[6,64], index: 1, kind: input, shape index: {}]
  %s2 = inlined_call_operand.vmem [shape: f32[1,64], index: 2, kind: input, shape index: {}]
  %s3 = inlined_call_operand.vmem [shape: f32[4,64,192], index: 3, kind: input, shape index: {}]
  %s4 = inlined_call_operand.vmem [shape: f32[4,1,192], index: 4, kind: input, shape index: {}]
  %s5 = inlined_call_operand.vmem [shape: f32[4,64,64], index: 5, kind: input, shape index: {}]
  %s6 = inlined_call_operand.vmem [shape: f32[4,1,64], index: 6, kind: input, shape index: {}]
  %s7 = inlined_call_operand.vmem [shape: f32[4,1,64], index: 7, kind: input, shape index: {}]
  %s8 = inlined_call_operand.vmem [shape: f32[4,1,64], index: 8, kind: input, shape index: {}]
  %s9 = inlined_call_operand.vmem [shape: f32[4,1,64], index: 9, kind: input, shape index: {}]
  %s10 = inlined_call_operand.vmem [shape: f32[4,1,64], index: 10, kind: input, shape index: {}]
  %s11 = inlined_call_operand.vmem [shape: f32[4,64,256], index: 11, kind: input, shape index: {}]
  %s12 = inlined_call_operand.vmem [shape: f32[4,1,256], index: 12, kind: input, shape index: {}]
  %s13 = inlined_call_operand.vmem [shape: f32[4,256,64], index: 13, kind: input, shape index: {}]
  %s14 = inlined_call_operand.vmem [shape: f32[4,1,64], index: 14, kind: input, shape index: {}]
  %s15 = inlined_call_operand.hbm [shape: f32[2,64], index: 15, kind: output, shape index: {}]
  %s16 = sld [smem:[#allocation0]]
  $region70: #{transformer_cls_forward.1} parent=0
    _
  %s18 = ssub.s32 1, %s16
  %s19 = scalar_select 0, %s18, %s16
  $region1: #{transformer_cls_forward.1} parent=0
    #allocation2 [shape = 'u8[1024]{0}', space=vmem, size = 0x400, scoped, tag = 'output window, operand 0, single buffered']
    #allocation3 [shape = 's32[1]{0}', space=sflag, size = 0x4, scoped, tag = 'scoped memory for transformer_cls_forward.1']
    %20 = vsyncpa [#allocation3], 0
    // Predicated region
    $region2: #{transformer_cls_forward.1} parent=1 // pred_check
      _
    $region3: #{transformer_cls_forward.1} parent=1 // pred_check_branch
      %22 = sbr.rel (0) target = $region5
    $region4: #{transformer_cls_forward.1} parent=1 // pred_region
      _
    $region5: #{transformer_cls_forward.1} parent=1 // pred_fallthru
      _
    // Predicated region
    $region6: #{transformer_cls_forward.1} parent=1 // pred_check
      _
    $region7: #{transformer_cls_forward.1} parent=1 // pred_check_branch
      %24 = sbr.rel (0) target = $region9
    $region8: #{transformer_cls_forward.1} parent=1 // pred_region
      _
    $region9: #{transformer_cls_forward.1} parent=1 // pred_fallthru
      _
    // Predicated region
    $region10: #{transformer_cls_forward.1} parent=1 // pred_check
      _
    $region11: #{transformer_cls_forward.1} parent=1 // pred_check_branch
      %26 = sbr.rel (0) target = $region13
    $region12: #{transformer_cls_forward.1} parent=1 // pred_region
      _
    $region13: #{transformer_cls_forward.1} parent=1 // pred_fallthru
      _
    // Predicated region
    $region14: #{transformer_cls_forward.1} parent=1 // pred_check
      _
    $region15: #{transformer_cls_forward.1} parent=1 // pred_check_branch
      %28 = sbr.rel (0) target = $region17
    $region16: #{transformer_cls_forward.1} parent=1 // pred_region
      _
    $region17: #{transformer_cls_forward.1} parent=1 // pred_fallthru
      _
    // Predicated region
    $region18: #{transformer_cls_forward.1} parent=1 // pred_check
      _
    $region19: #{transformer_cls_forward.1} parent=1 // pred_check_branch
      %30 = sbr.rel (0) target = $region21
    $region20: #{transformer_cls_forward.1} parent=1 // pred_region
      _
    $region21: #{transformer_cls_forward.1} parent=1 // pred_fallthru
      _
    // Predicated region
    $region22: #{transformer_cls_forward.1} parent=1 // pred_check
      _
    $region23: #{transformer_cls_forward.1} parent=1 // pred_check_branch
      %32 = sbr.rel (0) target = $region25
    $region24: #{transformer_cls_forward.1} parent=1 // pred_region
      _
    $region25: #{transformer_cls_forward.1} parent=1 // pred_fallthru
      _
    // Predicated region
    $region26: #{transformer_cls_forward.1} parent=1 // pred_check
      _
    $region27: #{transformer_cls_forward.1} parent=1 // pred_check_branch
      %34 = sbr.rel (0) target = $region29
    $region28: #{transformer_cls_forward.1} parent=1 // pred_region
      _
    $region29: #{transformer_cls_forward.1} parent=1 // pred_fallthru
      _
    // Predicated region
    $region30: #{transformer_cls_forward.1} parent=1 // pred_check
      _
    $region31: #{transformer_cls_forward.1} parent=1 // pred_check_branch
      %36 = sbr.rel (0) target = $region33
    $region32: #{transformer_cls_forward.1} parent=1 // pred_region
      _
    $region33: #{transformer_cls_forward.1} parent=1 // pred_fallthru
      _
    // Predicated region
    $region34: #{transformer_cls_forward.1} parent=1 // pred_check
      _
    $region35: #{transformer_cls_forward.1} parent=1 // pred_check_branch
      %38 = sbr.rel (0) target = $region37
    $region36: #{transformer_cls_forward.1} parent=1 // pred_region
      _
    $region37: #{transformer_cls_forward.1} parent=1 // pred_fallthru
      _
    // Predicated region
    $region38: #{transformer_cls_forward.1} parent=1 // pred_check
      _
    $region39: #{transformer_cls_forward.1} parent=1 // pred_check_branch
      %40 = sbr.rel (0) target = $region41
    $region40: #{transformer_cls_forward.1} parent=1 // pred_region
      _
    $region41: #{transformer_cls_forward.1} parent=1 // pred_fallthru
      _
    // Predicated region
    $region42: #{transformer_cls_forward.1} parent=1 // pred_check
      _
    $region43: #{transformer_cls_forward.1} parent=1 // pred_check_branch
      %42 = sbr.rel (0) target = $region45
    $region44: #{transformer_cls_forward.1} parent=1 // pred_region
      _
    $region45: #{transformer_cls_forward.1} parent=1 // pred_fallthru
      _
    // Predicated region
    $region46: #{transformer_cls_forward.1} parent=1 // pred_check
      _
    $region47: #{transformer_cls_forward.1} parent=1 // pred_check_branch
      %44 = sbr.rel (0) target = $region49
    $region48: #{transformer_cls_forward.1} parent=1 // pred_region
      _
    $region49: #{transformer_cls_forward.1} parent=1 // pred_fallthru
      _
    // Predicated region
    $region50: #{transformer_cls_forward.1} parent=1 // pred_check
      _
    $region51: #{transformer_cls_forward.1} parent=1 // pred_check_branch
      %46 = sbr.rel (0) target = $region53
    $region52: #{transformer_cls_forward.1} parent=1 // pred_region
      _
    $region53: #{transformer_cls_forward.1} parent=1 // pred_fallthru
      _
    // Predicated region
    $region54: #{transformer_cls_forward.1} parent=1 // pred_check
      _
    $region55: #{transformer_cls_forward.1} parent=1 // pred_check_branch
      %48 = sbr.rel (0) target = $region57
    $region56: #{transformer_cls_forward.1} parent=1 // pred_region
      _
    $region57: #{transformer_cls_forward.1} parent=1 // pred_fallthru
      _
    // Predicated region
    $region58: #{transformer_cls_forward.1} parent=1 // pred_check
      _
    $region59: #{transformer_cls_forward.1} parent=1 // pred_check_branch
      %50 = sbr.rel (0) target = $region61
    $region60: #{transformer_cls_forward.1} parent=1 // pred_region
      _
    $region61: #{transformer_cls_forward.1} parent=1 // pred_fallthru
      _
    %v51 = vld [vmem:[%s0] sm:$0xff]
    %v52 = vld [vmem:[%s0 + $0x8] sm:$0xff]
    %v53 = vlaneseq
    %v54 = vand.u32 %v53, 127
    %vm55 = vcmp.eq.f32.partialorder %v51, -1.0
    %vm56 = vcmp.eq.f32.partialorder %v52, -1.0
    %vm57 = vcmp.eq.f32.partialorder %v51, -99.0
    %vm58 = vcmp.eq.f32.partialorder %v52, -99.0
    %vm59 = vmor %vm55, %vm57
    %vm60 = vmor %vm56, %vm58
    %vm61 = vcmp.eq.s32.totalorder %v54, 0
    %v62 = vsel %vm61, 1, 0
    %64 = vbcast.lane.b32.xlu0 %v62, 256
    %v65 = vpop.permute.xlu0 %64
    %vm66 = vcmp.ne.s32.totalorder %v65, 0
    %vm67 = vmor %vm59, %vm66
    %vm68 = vmor %vm60, %vm66
    %v69 = vsel %vm67, -1e+30, 0.0
    %v70 = vsel %vm68, -1e+30, 0.0
    %v71 = vld [vmem:[%s1] sm:$0x3f]
    %v72 = vld [vmem:[%s2] sm:$0x1]
    %v74 = vlaneseq
    %v75 = vshrl.u32 %v74, 7
    %v76 = vsub.s32 0, %v75
    %v77 = vrot.slane %v72, %v76
    %vm79 = vcmask 48128
    %v81 = vsel %vm79, %v51, 0
    %v84 = vsel %vm79, %v52, 0
    %vm86 = vcmask 1045504
    %v88 = vsel %vm86, %v71, 0
    %90 = vmatprep.subr.mxu0 0.0
    %91 = vmatpush1.msra.mxu0 %v88
    %92 = vmatprep.subr.mxu0 0.0
    %93 = vmatpush1.msra.mxu0 0.0
    %94 = vmatprep.subr.mxu0 0.0
    %95 = vmatpush1.msra.mxu0 0.0
    %96 = vmatprep.subr.mxu0 0.0
    %97 = vmatpush1.msra.mxu0 0.0
    %98 = vmatprep.subr.mxu0 0.0
    %99 = vmatpush1.msra.mxu0 0.0
    %100 = vmatprep.subr.mxu0 0.0
    %101 = vmatpush1.msra.mxu0 0.0
    %102 = vmatprep.subr.mxu0 0.0
    %103 = vmatpush1.msra.mxu0 0.0
    %104 = vmatprep.subr.mxu0 0.0
    %105 = vmatpush1.msra.mxu0 0.0
    %106 = vmatprep.subr.mxu0 0.0
    %107 = vmatpush1.msra.mxu0 0.0
    %108 = vmatprep.subr.mxu0 0.0
    %109 = vmatpush1.msra.mxu0 0.0
    %110 = vmatprep.subr.mxu0 0.0
    %111 = vmatpush1.msra.mxu0 0.0
    %112 = vmatprep.subr.mxu0 0.0
    %113 = vmatpush1.msra.mxu0 0.0
    %114 = vmatprep.subr.mxu0 0.0
    %115 = vmatpush1.msra.mxu0 0.0
    %116 = vmatprep.subr.mxu0 0.0
    %117 = vmatpush1.msra.mxu0 0.0
    %118 = vmatprep.subr.mxu0 0.0
    %119 = vmatpush1.msra.mxu0 0.0
    %120 = vmatprep.subr.mxu0 0.0
    %121 = vmatpush1.msra.mxu0 0.0
    %122 = vmatprep.subr.mxu0 0.0
    %123 = vmatpush1.msra.mxu0 0.0
    %124 = vmatprep.subr.mxu0 0.0
    %125 = vmatpush1.msra.mxu0 0.0
    %126 = vmatprep.subr.mxu0 0.0
    %127 = vmatpush1.msra.mxu0 0.0
    %128 = vmatprep.subr.mxu0 0.0
    %129 = vmatpush1.msra.mxu0 0.0
    %130 = vmatprep.subr.mxu0 0.0
    %131 = vmatpush1.msra.mxu0 0.0
    %132 = vmatprep.subr.mxu0 0.0
    %133 = vmatpush1.msra.mxu0 0.0
    %134 = vmatprep.subr.mxu0 0.0
    %135 = vmatpush1.msra.mxu0 0.0
    %136 = vmatprep.subr.mxu0 0.0
    %137 = vmatpush1.msra.mxu0 0.0
    %138 = vmatprep.subr.mxu0 0.0
    %139 = vmatpush1.msra.mxu0 0.0
    %140 = vmatprep.subr.mxu0 0.0
    %141 = vmatpush1.msra.mxu0 0.0
    %142 = vmatprep.subr.mxu0 0.0
    %143 = vmatpush1.msra.mxu0 0.0
    %144 = vmatprep.subr.mxu0 0.0
    %145 = vmatpush1.msra.mxu0 0.0
    %146 = vmatprep.subr.mxu0 0.0
    %147 = vmatpush1.msra.mxu0 0.0
    %148 = vmatprep.subr.mxu0 0.0
    %149 = vmatpush1.msra.mxu0 0.0
    %150 = vmatprep.subr.mxu0 0.0
    %151 = vmatpush1.msra.mxu0 0.0
    %152 = vmatprep.subr.mxu0 0.0
    %153 = vmatpush1.msra.mxu0 0.0
    %154 = vmatprep.mubr.f32.mxu0 0.0
    %155 = vmatmul.mubr.f32.gmra.mrb[0].mxu0 %v81
    %v156 = vpop.f32.mrb[0].mxu0
    %v157 = vadd.f32 %v77, %v156
    %v158 = vpop.f32.mrb[0].mxu0
    %159 = vmatprep.mubr.f32.mxu0 0.0
    %160 = vmatmul.mubr.f32.gmra.mrb[0].mxu0 %v84
    %v161 = vpop.f32.mrb[0].mxu0
    %v162 = vadd.f32 %v77, %v161
    %v163 = vpop.f32.mrb[0].mxu0
    %164 = vdwg.mxu0
    %v165 = vld [vmem:[%s3] sm:$0xff]
    %v166 = vld [vmem:[%s3 + $0x8] sm:$0xff]
    %v167 = vld [vmem:[%s3 + $0x10] sm:$0xff]
    %v168 = vld [vmem:[%s3 + $0x18] sm:$0xff]
    %v169 = vld [vmem:[%s3 + $0x20] sm:$0xff]
    %v170 = vld [vmem:[%s3 + $0x28] sm:$0xff]
    %v171 = vld [vmem:[%s3 + $0x30] sm:$0xff]
    %v172 = vld [vmem:[%s3 + $0x38] sm:$0xff]
    %v173 = vld [vmem:[%s3 + $0x40] sm:$0xff]
    %v174 = vld [vmem:[%s3 + $0x48] sm:$0xff]
    %v175 = vld [vmem:[%s3 + $0x50] sm:$0xff]
    %v176 = vld [vmem:[%s3 + $0x58] sm:$0xff]
    %v177 = vld [vmem:[%s3 + $0x60] sm:$0xff]
    %v178 = vld [vmem:[%s3 + $0x68] sm:$0xff]
    %v179 = vld [vmem:[%s3 + $0x70] sm:$0xff]
    %v180 = vld [vmem:[%s3 + $0x78] sm:$0xff]
    %v181 = vld [vmem:[%s4] sm:$0x3]
    %v183 = vlaneseq
    %v184 = vshrl.u32 %v183, 7
    %v185 = vsub.s32 0, %v184
    %v186 = vrot.slane %v181, %v185
    %v187 = vlaneseq
    %v188 = vshrl.u32 %v187, 7
    %v189 = vsub.s32 1, %v188
    %v190 = vrot.slane %v181, %v189
    %vm193 = vcmask 523264
    %v195 = vsel %vm193, %v157, 0
    %v198 = vsel %vm193, %v162, 0
    %200 = vmatprep.subr.mxu0 %v166
    %201 = vmatpush1.msra.mxu0 %v165
    %202 = vmatprep.subr.mxu0 %v168
    %203 = vmatpush1.msra.mxu0 %v167
    %204 = vmatprep.subr.mxu0 %v170
    %205 = vmatpush1.msra.mxu0 %v169
    %206 = vmatprep.subr.mxu0 %v172
    %207 = vmatpush1.msra.mxu0 %v171
    %208 = vmatprep.subr.mxu0 %v174
    %209 = vmatpush1.msra.mxu0 %v173
    %210 = vmatprep.subr.mxu0 %v176
    %211 = vmatpush1.msra.mxu0 %v175
    %212 = vmatprep.subr.mxu0 %v178
    %213 = vmatpush1.msra.mxu0 %v177
    %214 = vmatprep.subr.mxu0 %v180
    %215 = vmatpush1.msra.mxu0 %v179
    %216 = vmatprep.subr.mxu0 0.0
    %217 = vmatpush1.msra.mxu0 0.0
    %218 = vmatprep.subr.mxu0 0.0
    %219 = vmatpush1.msra.mxu0 0.0
    %220 = vmatprep.subr.mxu0 0.0
    %221 = vmatpush1.msra.mxu0 0.0
    %222 = vmatprep.subr.mxu0 0.0
    %223 = vmatpush1.msra.mxu0 0.0
    %224 = vmatprep.subr.mxu0 0.0
    %225 = vmatpush1.msra.mxu0 0.0
    %226 = vmatprep.subr.mxu0 0.0
    %227 = vmatpush1.msra.mxu0 0.0
    %228 = vmatprep.subr.mxu0 0.0
    %229 = vmatpush1.msra.mxu0 0.0
    %230 = vmatprep.subr.mxu0 0.0
    %231 = vmatpush1.msra.mxu0 0.0
    %232 = vmatprep.subr.mxu0 0.0
    %233 = vmatpush1.msra.mxu0 0.0
    %234 = vmatprep.subr.mxu0 0.0
    %235 = vmatpush1.msra.mxu0 0.0
    %236 = vmatprep.subr.mxu0 0.0
    %237 = vmatpush1.msra.mxu0 0.0
    %238 = vmatprep.subr.mxu0 0.0
    %239 = vmatpush1.msra.mxu0 0.0
    %240 = vmatprep.subr.mxu0 0.0
    %241 = vmatpush1.msra.mxu0 0.0
    %242 = vmatprep.subr.mxu0 0.0
    %243 = vmatpush1.msra.mxu0 0.0
    %244 = vmatprep.subr.mxu0 0.0
    %245 = vmatpush1.msra.mxu0 0.0
    %246 = vmatprep.subr.mxu0 0.0
    %247 = vmatpush1.msra.mxu0 0.0
    %248 = vmatprep.subr.mxu0 0.0
    %249 = vmatpush1.msra.mxu0 0.0
    %250 = vmatprep.subr.mxu0 0.0
    %251 = vmatpush1.msra.mxu0 0.0
    %252 = vmatprep.subr.mxu0 0.0
    %253 = vmatpush1.msra.mxu0 0.0
    %254 = vmatprep.subr.mxu0 0.0
    %255 = vmatpush1.msra.mxu0 0.0
    %256 = vmatprep.subr.mxu0 0.0
    %257 = vmatpush1.msra.mxu0 0.0
    %258 = vmatprep.subr.mxu0 0.0
    %259 = vmatpush1.msra.mxu0 0.0
    %260 = vmatprep.subr.mxu0 0.0
    %261 = vmatpush1.msra.mxu0 0.0
    %262 = vmatprep.subr.mxu0 0.0
    %263 = vmatpush1.msra.mxu0 0.0
    %264 = vmatprep.mubr.f32.mxu0 0.0
    %265 = vmatmul.mubr.f32.gmra.mrb[0].mxu0 %v195
    %v266 = vpop.f32.mrb[0].mxu0
    %v267 = vadd.f32 %v186, %v266
    %v268 = vpop.f32.mrb[0].mxu0
    %v269 = vadd.f32 %v190, %v268
    %270 = vmatprep.mubr.f32.mxu0 0.0
    %271 = vmatmul.mubr.f32.gmra.mrb[0].mxu0 %v198
    %v272 = vpop.f32.mrb[0].mxu0
    %v273 = vadd.f32 %v186, %v272
    %v274 = vpop.f32.mrb[0].mxu0
    %v275 = vadd.f32 %v190, %v274
    %276 = vdwg.mxu0
    %278 = vrot.lane.b32.xlu0 %v267, 64
    %v279 = vpop.permute.xlu0 %278
    %vm280 = vcmask 130048
    %v281 = vsel %vm280, %v267, 0
    %v283 = vsel %vm280, %v279, 0
    %285 = vmatprep.subr.mxu0 0.0
    %286 = vmatpush1.xpose.msra.mxu0 %v283
    %287 = vmatprep.subr.mxu0 0.0
    %288 = vmatpush1.xpose.msra.mxu0 0.0
    %289 = vmatprep.subr.mxu0 0.0
    %290 = vmatpush1.xpose.msra.mxu0 0.0
    %291 = vmatprep.subr.mxu0 0.0
    %292 = vmatpush1.xpose.msra.mxu0 0.0
    %293 = vmatprep.subr.mxu0 0.0
    %294 = vmatpush1.xpose.msra.mxu0 0.0
    %295 = vmatprep.subr.mxu0 0.0
    %296 = vmatpush1.xpose.msra.mxu0 0.0
    %297 = vmatprep.subr.mxu0 0.0
    %298 = vmatpush1.xpose.msra.mxu0 0.0
    %299 = vmatprep.subr.mxu0 0.0
    %300 = vmatpush1.xpose.msra.mxu0 0.0
    %301 = vmatprep.subr.mxu0 0.0
    %302 = vmatpush1.xpose.msra.mxu0 0.0
    %303 = vmatprep.subr.mxu0 0.0
    %304 = vmatpush1.xpose.msra.mxu0 0.0
    %305 = vmatprep.subr.mxu0 0.0
    %306 = vmatpush1.xpose.msra.mxu0 0.0
    %307 = vmatprep.subr.mxu0 0.0
    %308 = vmatpush1.xpose.msra.mxu0 0.0
    %309 = vmatprep.subr.mxu0 0.0
    %310 = vmatpush1.xpose.msra.mxu0 0.0
    %311 = vmatprep.subr.mxu0 0.0
    %312 = vmatpush1.xpose.msra.mxu0 0.0
    %313 = vmatprep.subr.mxu0 0.0
    %314 = vmatpush1.xpose.msra.mxu0 0.0
    %315 = vmatprep.subr.mxu0 0.0
    %316 = vmatpush1.xpose.msra.mxu0 0.0
    %317 = vmatprep.subr.mxu0 0.0
    %318 = vmatpush1.xpose.msra.mxu0 0.0
    %319 = vmatprep.subr.mxu0 0.0
    %320 = vmatpush1.xpose.msra.mxu0 0.0
    %321 = vmatprep.subr.mxu0 0.0
    %322 = vmatpush1.xpose.msra.mxu0 0.0
    %323 = vmatprep.subr.mxu0 0.0
    %324 = vmatpush1.xpose.msra.mxu0 0.0
    %325 = vmatprep.subr.mxu0 0.0
    %326 = vmatpush1.xpose.msra.mxu0 0.0
    %327 = vmatprep.subr.mxu0 0.0
    %328 = vmatpush1.xpose.msra.mxu0 0.0
    %329 = vmatprep.subr.mxu0 0.0
    %330 = vmatpush1.xpose.msra.mxu0 0.0
    %331 = vmatprep.subr.mxu0 0.0
    %332 = vmatpush1.xpose.msra.mxu0 0.0
    %333 = vmatprep.subr.mxu0 0.0
    %334 = vmatpush1.xpose.msra.mxu0 0.0
    %335 = vmatprep.subr.mxu0 0.0
    %336 = vmatpush1.xpose.msra.mxu0 0.0
    %337 = vmatprep.subr.mxu0 0.0
    %338 = vmatpush1.xpose.msra.mxu0 0.0
    %339 = vmatprep.subr.mxu0 0.0
    %340 = vmatpush1.xpose.msra.mxu0 0.0
    %341 = vmatprep.subr.mxu0 0.0
    %342 = vmatpush1.xpose.msra.mxu0 0.0
    %343 = vmatprep.subr.mxu0 0.0
    %344 = vmatpush1.xpose.msra.mxu0 0.0
    %345 = vmatprep.subr.mxu0 0.0
    %346 = vmatpush1.xpose.msra.mxu0 0.0
    %347 = vmatprep.subr.mxu0 0.0
    %348 = vmatpush1.xpose.msra.mxu0 0.0
    %349 = vmatprep.mubr.f32.mxu0 0.0
    %350 = vmatmul.mubr.f32.gmra.mrb[0].mxu0 %v281
    %v351 = vpop.f32.mrb[0].mxu0
    %v352 = vadd.f32 0.0, %v351
    %v353 = vpop.f32.mrb[0].mxu0
    %354 = vdwg.mxu0
    %356 = vrot.lane.b32.xlu0 %v273, 64
    %v357 = vpop.permute.xlu0 %356
    %v358 = vsel %vm280, %v273, 0
    %v360 = vsel %vm280, %v357, 0
    %362 = vmatprep.subr.mxu0 0.0
    %363 = vmatpush1.xpose.msra.mxu0 %v360
    %364 = vmatprep.subr.mxu0 0.0
    %365 = vmatpush1.xpose.msra.mxu0 0.0
    %366 = vmatprep.subr.mxu0 0.0
    %367 = vmatpush1.xpose.msra.mxu0 0.0
    %368 = vmatprep.subr.mxu0 0.0
    %369 = vmatpush1.xpose.msra.mxu0 0.0
    %370 = vmatprep.subr.mxu0 0.0
    %371 = vmatpush1.xpose.msra.mxu0 0.0
    %372 = vmatprep.subr.mxu0 0.0
    %373 = vmatpush1.xpose.msra.mxu0 0.0
    %374 = vmatprep.subr.mxu0 0.0
    %375 = vmatpush1.xpose.msra.mxu0 0.0
    %376 = vmatprep.subr.mxu0 0.0
    %377 = vmatpush1.xpose.msra.mxu0 0.0
    %378 = vmatprep.subr.mxu0 0.0
    %379 = vmatpush1.xpose.msra.mxu0 0.0
    %380 = vmatprep.subr.mxu0 0.0
    %381 = vmatpush1.xpose.msra.mxu0 0.0
    %382 = vmatprep.subr.mxu0 0.0
    %383 = vmatpush1.xpose.msra.mxu0 0.0
    %384 = vmatprep.subr.mxu0 0.0
    %385 = vmatpush1.xpose.msra.mxu0 0.0
    %386 = vmatprep.subr.mxu0 0.0
    %387 = vmatpush1.xpose.msra.mxu0 0.0
    %388 = vmatprep.subr.mxu0 0.0
    %389 = vmatpush1.xpose.msra.mxu0 0.0
    %390 = vmatprep.subr.mxu0 0.0
    %391 = vmatpush1.xpose.msra.mxu0 0.0
    %392 = vmatprep.subr.mxu0 0.0
    %393 = vmatpush1.xpose.msra.mxu0 0.0
    %394 = vmatprep.subr.mxu0 0.0
    %395 = vmatpush1.xpose.msra.mxu0 0.0
    %396 = vmatprep.subr.mxu0 0.0
    %397 = vmatpush1.xpose.msra.mxu0 0.0
    %398 = vmatprep.subr.mxu0 0.0
    %399 = vmatpush1.xpose.msra.mxu0 0.0
    %400 = vmatprep.subr.mxu0 0.0
    %401 = vmatpush1.xpose.msra.mxu0 0.0
    %402 = vmatprep.subr.mxu0 0.0
    %403 = vmatpush1.xpose.msra.mxu0 0.0
    %404 = vmatprep.subr.mxu0 0.0
    %405 = vmatpush1.xpose.msra.mxu0 0.0
    %406 = vmatprep.subr.mxu0 0.0
    %407 = vmatpush1.xpose.msra.mxu0 0.0
    %408 = vmatprep.subr.mxu0 0.0
    %409 = vmatpush1.xpose.msra.mxu0 0.0
    %410 = vmatprep.subr.mxu0 0.0
    %411 = vmatpush1.xpose.msra.mxu0 0.0
    %412 = vmatprep.subr.mxu0 0.0
    %413 = vmatpush1.xpose.msra.mxu0 0.0
    %414 = vmatprep.subr.mxu0 0.0
    %415 = vmatpush1.xpose.msra.mxu0 0.0
    %416 = vmatprep.subr.mxu0 0.0
    %417 = vmatpush1.xpose.msra.mxu0 0.0
    %418 = vmatprep.subr.mxu0 0.0
    %419 = vmatpush1.xpose.msra.mxu0 0.0
    %420 = vmatprep.subr.mxu0 0.0
    %421 = vmatpush1.xpose.msra.mxu0 0.0
    %422 = vmatprep.subr.mxu0 0.0
    %423 = vmatpush1.xpose.msra.mxu0 0.0
    %424 = vmatprep.subr.mxu0 0.0
    %425 = vmatpush1.xpose.msra.mxu0 0.0
    %426 = vmatprep.mubr.f32.mxu0 0.0
    %427 = vmatmul.mubr.f32.gmra.mrb[0].mxu0 %v358
    %v428 = vpop.f32.mrb[0].mxu0
    %v429 = vadd.f32 0.0, %v428
    %v430 = vpop.f32.mrb[0].mxu0
    %431 = vdwg.mxu0
    %v432 = vmul.f32 %v352, 0.25
    %v433 = vmul.f32 %v429, 0.25
    %436 = vset.pattern.permute.xlu0 0
    %437 = vperm.xlu0 %436, %v69
    %v438 = vpop.permute.xlu0 %437
    %439 = vset.pattern.permute.xlu0 0
    %440 = vperm.xlu0 %439, %v70
    %v441 = vpop.permute.xlu0 %440
    %v442 = vlaneseq
    %v443 = vshrl.u32 %v442, 7
    %v444 = vsub.s32 %v54, %v443
    %v445 = vrot.slane %v438, %v444
    %v446 = vlaneseq
    %v447 = vshrl.u32 %v446, 7
    %v448 = vsub.s32 %v54, %v447
    %v449 = vrot.slane %v441, %v448
    %vm450 = vcmask 1041409
    %vm451 = vcmask 1042434
    %v452 = vsel %vm451, %v445, %v445
    %vm453 = vcmask 1043459
    %v454 = vsel %vm453, %v445, %v452
    %vm455 = vcmask 1044484
    %v456 = vsel %vm455, %v445, %v454
    %vm457 = vcmask 1045509
    %v458 = vsel %vm457, %v445, %v456
    %vm459 = vcmask 1046534
    %v460 = vsel %vm459, %v445, %v458
    %vm461 = vcmask 1047559
    %v462 = vsel %vm461, %v445, %v460
    %v463 = vsel %vm451, %v449, %v449
    %v464 = vsel %vm453, %v449, %v463
    %v465 = vsel %vm455, %v449, %v464
    %v466 = vsel %vm457, %v449, %v465
    %v467 = vsel %vm459, %v449, %v466
    %v468 = vsel %vm461, %v449, %v467
    %v471 = vadd.f32 %v432, %v462
    %v472 = vadd.f32 %v433, %v468
    %vm473 = vcmask 64512
    %v474 = vsel %vm473, %v471, -inf
    %475 = vmax.xlane.f32.xlu0 %v474
    %v476 = vpop.xlane.xlu0 %475
    %v477 = vsel %vm473, %v472, -inf
    %478 = vmax.xlane.f32.xlu0 %v477
    %v479 = vpop.xlane.xlu0 %478
    %v480 = vsub.f32 %v471, %v476
    %v481 = vsub.f32 %v472, %v479
    %v482 = vmul.f32 %v480, 1.442695
    %v483 = vpow.pop %v482
    %v484 = vmul.f32 %v481, 1.442695
    %v485 = vpow.pop %v484
    %v486 = vsel %vm473, %v483, 0.0
    %487 = vadd.xlane.f32.xlu0 %v486
    %v488 = vpop.xlane.xlu0 %487
    %v489 = vsel %vm473, %v485, 0.0
    %490 = vadd.xlane.f32.xlu0 %v489
    %v491 = vpop.xlane.xlu0 %490
    %v492 = vrcp.pop %v488
    %v493 = vmul.f32 %v483, %v492
    %v494 = vrcp.pop %v491
    %v495 = vmul.f32 %v485, %v494
    %v497 = vsel %vm473, %v493, 0
    %499 = vmatprep.subr.mxu0 0.0
    %500 = vmatpush1.msra.mxu0 %v269
    %501 = vmatprep.subr.mxu0 0.0
    %502 = vmatpush1.msra.mxu0 0.0
    %503 = vmatprep.subr.mxu0 0.0
    %504 = vmatpush1.msra.mxu0 0.0
    %505 = vmatprep.subr.mxu0 0.0
    %506 = vmatpush1.msra.mxu0 0.0
    %507 = vmatprep.subr.mxu0 0.0
    %508 = vmatpush1.msra.mxu0 0.0
    %509 = vmatprep.subr.mxu0 0.0
    %510 = vmatpush1.msra.mxu0 0.0
    %511 = vmatprep.subr.mxu0 0.0
    %512 = vmatpush1.msra.mxu0 0.0
    %513 = vmatprep.subr.mxu0 0.0
    %514 = vmatpush1.msra.mxu0 0.0
    %515 = vmatprep.subr.mxu0 0.0
    %516 = vmatpush1.msra.mxu0 0.0
    %517 = vmatprep.subr.mxu0 0.0
    %518 = vmatpush1.msra.mxu0 0.0
    %519 = vmatprep.subr.mxu0 0.0
    %520 = vmatpush1.msra.mxu0 0.0
    %521 = vmatprep.subr.mxu0 0.0
    %522 = vmatpush1.msra.mxu0 0.0
    %523 = vmatprep.subr.mxu0 0.0
    %524 = vmatpush1.msra.mxu0 0.0
    %525 = vmatprep.subr.mxu0 0.0
    %526 = vmatpush1.msra.mxu0 0.0
    %527 = vmatprep.subr.mxu0 0.0
    %528 = vmatpush1.msra.mxu0 0.0
    %529 = vmatprep.subr.mxu0 0.0
    %530 = vmatpush1.msra.mxu0 0.0
    %531 = vmatprep.subr.mxu0 0.0
    %532 = vmatpush1.msra.mxu0 0.0
    %533 = vmatprep.subr.mxu0 0.0
    %534 = vmatpush1.msra.mxu0 0.0
    %535 = vmatprep.subr.mxu0 0.0
    %536 = vmatpush1.msra.mxu0 0.0
    %537 = vmatprep.subr.mxu0 0.0
    %538 = vmatpush1.msra.mxu0 0.0
    %539 = vmatprep.subr.mxu0 0.0
    %540 = vmatpush1.msra.mxu0 0.0
    %541 = vmatprep.subr.mxu0 0.0
    %542 = vmatpush1.msra.mxu0 0.0
    %543 = vmatprep.subr.mxu0 0.0
    %544 = vmatpush1.msra.mxu0 0.0
    %545 = vmatprep.subr.mxu0 0.0
    %546 = vmatpush1.msra.mxu0 0.0
    %547 = vmatprep.subr.mxu0 0.0
    %548 = vmatpush1.msra.mxu0 0.0
    %549 = vmatprep.subr.mxu0 0.0
    %550 = vmatpush1.msra.mxu0 0.0
    %551 = vmatprep.subr.mxu0 0.0
    %552 = vmatpush1.msra.mxu0 0.0
    %553 = vmatprep.subr.mxu0 0.0
    %554 = vmatpush1.msra.mxu0 0.0
    %555 = vmatprep.subr.mxu0 0.0
    %556 = vmatpush1.msra.mxu0 0.0
    %557 = vmatprep.subr.mxu0 0.0
    %558 = vmatpush1.msra.mxu0 0.0
    %559 = vmatprep.subr.mxu0 0.0
    %560 = vmatpush1.msra.mxu0 0.0
    %561 = vmatprep.subr.mxu0 0.0
    %562 = vmatpush1.msra.mxu0 0.0
    %563 = vmatprep.mubr.f32.mxu0 0.0
    %564 = vmatmul.mubr.f32.gmra.mrb[0].mxu0 %v497
    %v565 = vpop.f32.mrb[0].mxu0
    %v566 = vadd.f32 0.0, %v565
    %v567 = vpop.f32.mrb[0].mxu0
    %568 = vdwg.mxu0
    %v570 = vsel %vm473, %v495, 0
    %572 = vmatprep.subr.mxu0 0.0
    %573 = vmatpush1.msra.mxu0 %v275
    %574 = vmatprep.subr.mxu0 0.0
    %575 = vmatpush1.msra.mxu0 0.0
    %576 = vmatprep.subr.mxu0 0.0
    %577 = vmatpush1.msra.mxu0 0.0
    %578 = vmatprep.subr.mxu0 0.0
    %579 = vmatpush1.msra.mxu0 0.0
    %580 = vmatprep.subr.mxu0 0.0
    %581 = vmatpush1.msra.mxu0 0.0
    %582 = vmatprep.subr.mxu0 0.0
    %583 = vmatpush1.msra.mxu0 0.0
    %584 = vmatprep.subr.mxu0 0.0
    %585 = vmatpush1.msra.mxu0 0.0
    %586 = vmatprep.subr.mxu0 0.0
    %587 = vmatpush1.msra.mxu0 0.0
    %588 = vmatprep.subr.mxu0 0.0
    %589 = vmatpush1.msra.mxu0 0.0
    %590 = vmatprep.subr.mxu0 0.0
    %591 = vmatpush1.msra.mxu0 0.0
    %592 = vmatprep.subr.mxu0 0.0
    %593 = vmatpush1.msra.mxu0 0.0
    %594 = vmatprep.subr.mxu0 0.0
    %595 = vmatpush1.msra.mxu0 0.0
    %596 = vmatprep.subr.mxu0 0.0
    %597 = vmatpush1.msra.mxu0 0.0
    %598 = vmatprep.subr.mxu0 0.0
    %599 = vmatpush1.msra.mxu0 0.0
    %600 = vmatprep.subr.mxu0 0.0
    %601 = vmatpush1.msra.mxu0 0.0
    %602 = vmatprep.subr.mxu0 0.0
    %603 = vmatpush1.msra.mxu0 0.0
    %604 = vmatprep.subr.mxu0 0.0
    %605 = vmatpush1.msra.mxu0 0.0
    %606 = vmatprep.subr.mxu0 0.0
    %607 = vmatpush1.msra.mxu0 0.0
    %608 = vmatprep.subr.mxu0 0.0
    %609 = vmatpush1.msra.mxu0 0.0
    %610 = vmatprep.subr.mxu0 0.0
    %611 = vmatpush1.msra.mxu0 0.0
    %612 = vmatprep.subr.mxu0 0.0
    %613 = vmatpush1.msra.mxu0 0.0
    %614 = vmatprep.subr.mxu0 0.0
    %615 = vmatpush1.msra.mxu0 0.0
    %616 = vmatprep.subr.mxu0 0.0
    %617 = vmatpush1.msra.mxu0 0.0
    %618 = vmatprep.subr.mxu0 0.0
    %619 = vmatpush1.msra.mxu0 0.0
    %620 = vmatprep.subr.mxu0 0.0
    %621 = vmatpush1.msra.mxu0 0.0
    %622 = vmatprep.subr.mxu0 0.0
    %623 = vmatpush1.msra.mxu0 0.0
    %624 = vmatprep.subr.mxu0 0.0
    %625 = vmatpush1.msra.mxu0 0.0
    %626 = vmatprep.subr.mxu0 0.0
    %627 = vmatpush1.msra.mxu0 0.0
    %628 = vmatprep.subr.mxu0 0.0
    %629 = vmatpush1.msra.mxu0 0.0
    %630 = vmatprep.subr.mxu0 0.0
    %631 = vmatpush1.msra.mxu0 0.0
    %632 = vmatprep.subr.mxu0 0.0
    %633 = vmatpush1.msra.mxu0 0.0
    %634 = vmatprep.subr.mxu0 0.0
    %635 = vmatpush1.msra.mxu0 0.0
    %636 = vmatprep.mubr.f32.mxu0 0.0
    %637 = vmatmul.mubr.f32.gmra.mrb[0].mxu0 %v570
    %v638 = vpop.f32.mrb[0].mxu0
    %v639 = vadd.f32 0.0, %v638
    %v640 = vpop.f32.mrb[0].mxu0
    %641 = vdwg.mxu0
    %642 = vrot.lane.b32.xlu0 %v267, 112
    %v643 = vpop.permute.xlu0 %642
    %644 = vrot.lane.b32.xlu0 %v267, 48
    %v645 = vpop.permute.xlu0 %644
    %v646 = vsel %vm280, %v643, 0
    %v648 = vsel %vm280, %v645, 0
    %650 = vmatprep.subr.mxu0 0.0
    %651 = vmatpush1.xpose.msra.mxu0 %v648
    %652 = vmatprep.subr.mxu0 0.0
    %653 = vmatpush1.xpose.msra.mxu0 0.0
    %654 = vmatprep.subr.mxu0 0.0
    %655 = vmatpush1.xpose.msra.mxu0 0.0
    %656 = vmatprep.subr.mxu0 0.0
    %657 = vmatpush1.xpose.msra.mxu0 0.0
    %658 = vmatprep.subr.mxu0 0.0
    %659 = vmatpush1.xpose.msra.mxu0 0.0
    %660 = vmatprep.subr.mxu0 0.0
    %661 = vmatpush1.xpose.msra.mxu0 0.0
    %662 = vmatprep.subr.mxu0 0.0
    %663 = vmatpush1.xpose.msra.mxu0 0.0
    %664 = vmatprep.subr.mxu0 0.0
    %665 = vmatpush1.xpose.msra.mxu0 0.0
    %666 = vmatprep.subr.mxu0 0.0
    %667 = vmatpush1.xpose.msra.mxu0 0.0
    %668 = vmatprep.subr.mxu0 0.0
    %669 = vmatpush1.xpose.msra.mxu0 0.0
    %670 = vmatprep.subr.mxu0 0.0
    %671 = vmatpush1.xpose.msra.mxu0 0.0
    %672 = vmatprep.subr.mxu0 0.0
    %673 = vmatpush1.xpose.msra.mxu0 0.0
    %674 = vmatprep.subr.mxu0 0.0
    %675 = vmatpush1.xpose.msra.mxu0 0.0
    %676 = vmatprep.subr.mxu0 0.0
    %677 = vmatpush1.xpose.msra.mxu0 0.0
    %678 = vmatprep.subr.mxu0 0.0
    %679 = vmatpush1.xpose.msra.mxu0 0.0
    %680 = vmatprep.subr.mxu0 0.0
    %681 = vmatpush1.xpose.msra.mxu0 0.0
    %682 = vmatprep.subr.mxu0 0.0
    %683 = vmatpush1.xpose.msra.mxu0 0.0
    %684 = vmatprep.subr.mxu0 0.0
    %685 = vmatpush1.xpose.msra.mxu0 0.0
    %686 = vmatprep.subr.mxu0 0.0
    %687 = vmatpush1.xpose.msra.mxu0 0.0
    %688 = vmatprep.subr.mxu0 0.0
    %689 = vmatpush1.xpose.msra.mxu0 0.0
    %690 = vmatprep.subr.mxu0 0.0
    %691 = vmatpush1.xpose.msra.mxu0 0.0
    %692 = vmatprep.subr.mxu0 0.0
    %693 = vmatpush1.xpose.msra.mxu0 0.0
    %694 = vmatprep.subr.mxu0 0.0
    %695 = vmatpush1.xpose.msra.mxu0 0.0
    %696 = vmatprep.subr.mxu0 0.0
    %697 = vmatpush1.xpose.msra.mxu0 0.0
    %698 = vmatprep.subr.mxu0 0.0
    %699 = vmatpush1.xpose.msra.mxu0 0.0
    %700 = vmatprep.subr.mxu0 0.0
    %701 = vmatpush1.xpose.msra.mxu0 0.0
    %702 = vmatprep.subr.mxu0 0.0
    %703 = vmatpush1.xpose.msra.mxu0 0.0
    %704 = vmatprep.subr.mxu0 0.0
    %705 = vmatpush1.xpose.msra.mxu0 0.0
    %706 = vmatprep.subr.mxu0 0.0
    %707 = vmatpush1.xpose.msra.mxu0 0.0
    %708 = vmatprep.subr.mxu0 0.0
    %709 = vmatpush1.xpose.msra.mxu0 0.0
    %710 = vmatprep.subr.mxu0 0.0
    %711 = vmatpush1.xpose.msra.mxu0 0.0
    %712 = vmatprep.subr.mxu0 0.0
    %713 = vmatpush1.xpose.msra.mxu0 0.0
    %714 = vmatprep.mubr.f32.mxu0 0.0
    %715 = vmatmul.mubr.f32.gmra.mrb[0].mxu0 %v646
    %v716 = vpop.f32.mrb[0].mxu0
    %v717 = vadd.f32 0.0, %v716
    %v718 = vpop.f32.mrb[0].mxu0
    %719 = vdwg.mxu0
    %720 = vrot.lane.b32.xlu0 %v273, 112
    %v721 = vpop.permute.xlu0 %720
    %722 = vrot.lane.b32.xlu0 %v273, 48
    %v723 = vpop.permute.xlu0 %722
    %v724 = vsel %vm280, %v721, 0
    %v726 = vsel %vm280, %v723, 0
    %728 = vmatprep.subr.mxu0 0.0
    %729 = vmatpush1.xpose.msra.mxu0 %v726
    %730 = vmatprep.subr.mxu0 0.0
    %731 = vmatpush1.xpose.msra.mxu0 0.0
    %732 = vmatprep.subr.mxu0 0.0
    %733 = vmatpush1.xpose.msra.mxu0 0.0
    %734 = vmatprep.subr.mxu0 0.0
    %735 = vmatpush1.xpose.msra.mxu0 0.0
    %736 = vmatprep.subr.mxu0 0.0
    %737 = vmatpush1.xpose.msra.mxu0 0.0
    %738 = vmatprep.subr.mxu0 0.0
    %739 = vmatpush1.xpose.msra.mxu0 0.0
    %740 = vmatprep.subr.mxu0 0.0
    %741 = vmatpush1.xpose.msra.mxu0 0.0
    %742 = vmatprep.subr.mxu0 0.0
    %743 = vmatpush1.xpose.msra.mxu0 0.0
    %744 = vmatprep.subr.mxu0 0.0
    %745 = vmatpush1.xpose.msra.mxu0 0.0
    %746 = vmatprep.subr.mxu0 0.0
    %747 = vmatpush1.xpose.msra.mxu0 0.0
    %748 = vmatprep.subr.mxu0 0.0
    %749 = vmatpush1.xpose.msra.mxu0 0.0
    %750 = vmatprep.subr.mxu0 0.0
    %751 = vmatpush1.xpose.msra.mxu0 0.0
    %752 = vmatprep.subr.mxu0 0.0
    %753 = vmatpush1.xpose.msra.mxu0 0.0
    %754 = vmatprep.subr.mxu0 0.0
    %755 = vmatpush1.xpose.msra.mxu0 0.0
    %756 = vmatprep.subr.mxu0 0.0
    %757 = vmatpush1.xpose.msra.mxu0 0.0
    %758 = vmatprep.subr.mxu0 0.0
    %759 = vmatpush1.xpose.msra.mxu0 0.0
    %760 = vmatprep.subr.mxu0 0.0
    %761 = vmatpush1.xpose.msra.mxu0 0.0
    %762 = vmatprep.subr.mxu0 0.0
    %763 = vmatpush1.xpose.msra.mxu0 0.0
    %764 = vmatprep.subr.mxu0 0.0
    %765 = vmatpush1.xpose.msra.mxu0 0.0
    %766 = vmatprep.subr.mxu0 0.0
    %767 = vmatpush1.xpose.msra.mxu0 0.0
    %768 = vmatprep.subr.mxu0 0.0
    %769 = vmatpush1.xpose.msra.mxu0 0.0
    %770 = vmatprep.subr.mxu0 0.0
    %771 = vmatpush1.xpose.msra.mxu0 0.0
    %772 = vmatprep.subr.mxu0 0.0
    %773 = vmatpush1.xpose.msra.mxu0 0.0
    %774 = vmatprep.subr.mxu0 0.0
    %775 = vmatpush1.xpose.msra.mxu0 0.0
    %776 = vmatprep.subr.mxu0 0.0
    %777 = vmatpush1.xpose.msra.mxu0 0.0
    %778 = vmatprep.subr.mxu0 0.0
    %779 = vmatpush1.xpose.msra.mxu0 0.0
    %780 = vmatprep.subr.mxu0 0.0
    %781 = vmatpush1.xpose.msra.mxu0 0.0
    %782 = vmatprep.subr.mxu0 0.0
    %783 = vmatpush1.xpose.msra.mxu0 0.0
    %784 = vmatprep.subr.mxu0 0.0
    %785 = vmatpush1.xpose.msra.mxu0 0.0
    %786 = vmatprep.subr.mxu0 0.0
    %787 = vmatpush1.xpose.msra.mxu0 0.0
    %788 = vmatprep.subr.mxu0 0.0
    %789 = vmatpush1.xpose.msra.mxu0 0.0
    %790 = vmatprep.subr.mxu0 0.0
    %791 = vmatpush1.xpose.msra.mxu0 0.0
    %792 = vmatprep.mubr.f32.mxu0 0.0
    %793 = vmatmul.mubr.f32.gmra.mrb[0].mxu0 %v724
    %v794 = vpop.f32.mrb[0].mxu0
    %v795 = vadd.f32 0.0, %v794
    %v796 = vpop.f32.mrb[0].mxu0
    %797 = vdwg.mxu0
    %v798 = vmul.f32 %v717, 0.25
    %v799 = vmul.f32 %v795, 0.25
    %v800 = vadd.f32 %v798, %v462
    %v801 = vadd.f32 %v799, %v468
    %v802 = vsel %vm473, %v800, -inf
    %803 = vmax.xlane.f32.xlu0 %v802
    %v804 = vpop.xlane.xlu0 %803
    %v805 = vsel %vm473, %v801, -inf
    %806 = vmax.xlane.f32.xlu0 %v805
    %v807 = vpop.xlane.xlu0 %806
    %v808 = vsub.f32 %v800, %v804
    %v809 = vsub.f32 %v801, %v807
    %v810 = vmul.f32 %v808, 1.442695
    %v811 = vpow.pop %v810
    %v812 = vmul.f32 %v809, 1.442695
    %v813 = vpow.pop %v812
    %v814 = vsel %vm473, %v811, 0.0
    %815 = vadd.xlane.f32.xlu0 %v814
    %v816 = vpop.xlane.xlu0 %815
    %v817 = vsel %vm473, %v813, 0.0
    %818 = vadd.xlane.f32.xlu0 %v817
    %v819 = vpop.xlane.xlu0 %818
    %v820 = vrcp.pop %v816
    %v821 = vmul.f32 %v811, %v820
    %v822 = vrcp.pop %v819
    %v823 = vmul.f32 %v813, %v822
    %825 = vrot.lane.b32.xlu0 %v269, 112
    %v826 = vpop.permute.xlu0 %825
    %v829 = vsel %vm473, %v821, 0
    %831 = vmatprep.subr.mxu0 0.0
    %832 = vmatpush1.msra.mxu0 %v826
    %833 = vmatprep.subr.mxu0 0.0
    %834 = vmatpush1.msra.mxu0 0.0
    %835 = vmatprep.subr.mxu0 0.0
    %836 = vmatpush1.msra.mxu0 0.0
    %837 = vmatprep.subr.mxu0 0.0
    %838 = vmatpush1.msra.mxu0 0.0
    %839 = vmatprep.subr.mxu0 0.0
    %840 = vmatpush1.msra.mxu0 0.0
    %841 = vmatprep.subr.mxu0 0.0
    %842 = vmatpush1.msra.mxu0 0.0
    %843 = vmatprep.subr.mxu0 0.0
    %844 = vmatpush1.msra.mxu0 0.0
    %845 = vmatprep.subr.mxu0 0.0
    %846 = vmatpush1.msra.mxu0 0.0
    %847 = vmatprep.subr.mxu0 0.0
    %848 = vmatpush1.msra.mxu0 0.0
    %849 = vmatprep.subr.mxu0 0.0
    %850 = vmatpush1.msra.mxu0 0.0
    %851 = vmatprep.subr.mxu0 0.0
    %852 = vmatpush1.msra.mxu0 0.0
    %853 = vmatprep.subr.mxu0 0.0
    %854 = vmatpush1.msra.mxu0 0.0
    %855 = vmatprep.subr.mxu0 0.0
    %856 = vmatpush1.msra.mxu0 0.0
    %857 = vmatprep.subr.mxu0 0.0
    %858 = vmatpush1.msra.mxu0 0.0
    %859 = vmatprep.subr.mxu0 0.0
    %860 = vmatpush1.msra.mxu0 0.0
    %861 = vmatprep.subr.mxu0 0.0
    %862 = vmatpush1.msra.mxu0 0.0
    %863 = vmatprep.subr.mxu0 0.0
    %864 = vmatpush1.msra.mxu0 0.0
    %865 = vmatprep.subr.mxu0 0.0
    %866 = vmatpush1.msra.mxu0 0.0
    %867 = vmatprep.subr.mxu0 0.0
    %868 = vmatpush1.msra.mxu0 0.0
    %869 = vmatprep.subr.mxu0 0.0
    %870 = vmatpush1.msra.mxu0 0.0
    %871 = vmatprep.subr.mxu0 0.0
    %872 = vmatpush1.msra.mxu0 0.0
    %873 = vmatprep.subr.mxu0 0.0
    %874 = vmatpush1.msra.mxu0 0.0
    %875 = vmatprep.subr.mxu0 0.0
    %876 = vmatpush1.msra.mxu0 0.0
    %877 = vmatprep.subr.mxu0 0.0
    %878 = vmatpush1.msra.mxu0 0.0
    %879 = vmatprep.subr.mxu0 0.0
    %880 = vmatpush1.msra.mxu0 0.0
    %881 = vmatprep.subr.mxu0 0.0
    %882 = vmatpush1.msra.mxu0 0.0
    %883 = vmatprep.subr.mxu0 0.0
    %884 = vmatpush1.msra.mxu0 0.0
    %885 = vmatprep.subr.mxu0 0.0
    %886 = vmatpush1.msra.mxu0 0.0
    %887 = vmatprep.subr.mxu0 0.0
    %888 = vmatpush1.msra.mxu0 0.0
    %889 = vmatprep.subr.mxu0 0.0
    %890 = vmatpush1.msra.mxu0 0.0
    %891 = vmatprep.subr.mxu0 0.0
    %892 = vmatpush1.msra.mxu0 0.0
    %893 = vmatprep.subr.mxu0 0.0
    %894 = vmatpush1.msra.mxu0 0.0
    %895 = vmatprep.mubr.f32.mxu0 0.0
    %896 = vmatmul.mubr.f32.gmra.mrb[0].mxu0 %v829
    %v897 = vpop.f32.mrb[0].mxu0
    %v898 = vadd.f32 0.0, %v897
    %v899 = vpop.f32.mrb[0].mxu0
    %900 = vdwg.mxu0
    %902 = vrot.lane.b32.xlu0 %v275, 112
    %v903 = vpop.permute.xlu0 %902
    %v906 = vsel %vm473, %v823, 0
    %908 = vmatprep.subr.mxu0 0.0
    %909 = vmatpush1.msra.mxu0 %v903
    %910 = vmatprep.subr.mxu0 0.0
    %911 = vmatpush1.msra.mxu0 0.0
    %912 = vmatprep.subr.mxu0 0.0
    %913 = vmatpush1.msra.mxu0 0.0
    %914 = vmatprep.subr.mxu0 0.0
    %915 = vmatpush1.msra.mxu0 0.0
    %916 = vmatprep.subr.mxu0 0.0
    %917 = vmatpush1.msra.mxu0 0.0
    %918 = vmatprep.subr.mxu0 0.0
    %919 = vmatpush1.msra.mxu0 0.0
    %920 = vmatprep.subr.mxu0 0.0
    %921 = vmatpush1.msra.mxu0 0.0
    %922 = vmatprep.subr.mxu0 0.0
    %923 = vmatpush1.msra.mxu0 0.0
    %924 = vmatprep.subr.mxu0 0.0
    %925 = vmatpush1.msra.mxu0 0.0
    %926 = vmatprep.subr.mxu0 0.0
    %927 = vmatpush1.msra.mxu0 0.0
    %928 = vmatprep.subr.mxu0 0.0
    %929 = vmatpush1.msra.mxu0 0.0
    %930 = vmatprep.subr.mxu0 0.0
    %931 = vmatpush1.msra.mxu0 0.0
    %932 = vmatprep.subr.mxu0 0.0
    %933 = vmatpush1.msra.mxu0 0.0
    %934 = vmatprep.subr.mxu0 0.0
    %935 = vmatpush1.msra.mxu0 0.0
    %936 = vmatprep.subr.mxu0 0.0
    %937 = vmatpush1.msra.mxu0 0.0
    %938 = vmatprep.subr.mxu0 0.0
    %939 = vmatpush1.msra.mxu0 0.0
    %940 = vmatprep.subr.mxu0 0.0
    %941 = vmatpush1.msra.mxu0 0.0
    %942 = vmatprep.subr.mxu0 0.0
    %943 = vmatpush1.msra.mxu0 0.0
    %944 = vmatprep.subr.mxu0 0.0
    %945 = vmatpush1.msra.mxu0 0.0
    %946 = vmatprep.subr.mxu0 0.0
    %947 = vmatpush1.msra.mxu0 0.0
    %948 = vmatprep.subr.mxu0 0.0
    %949 = vmatpush1.msra.mxu0 0.0
    %950 = vmatprep.subr.mxu0 0.0
    %951 = vmatpush1.msra.mxu0 0.0
    %952 = vmatprep.subr.mxu0 0.0
    %953 = vmatpush1.msra.mxu0 0.0
    %954 = vmatprep.subr.mxu0 0.0
    %955 = vmatpush1.msra.mxu0 0.0
    %956 = vmatprep.subr.mxu0 0.0
    %957 = vmatpush1.msra.mxu0 0.0
    %958 = vmatprep.subr.mxu0 0.0
    %959 = vmatpush1.msra.mxu0 0.0
    %960 = vmatprep.subr.mxu0 0.0
    %961 = vmatpush1.msra.mxu0 0.0
    %962 = vmatprep.subr.mxu0 0.0
    %963 = vmatpush1.msra.mxu0 0.0
    %964 = vmatprep.subr.mxu0 0.0
    %965 = vmatpush1.msra.mxu0 0.0
    %966 = vmatprep.subr.mxu0 0.0
    %967 = vmatpush1.msra.mxu0 0.0
    %968 = vmatprep.subr.mxu0 0.0
    %969 = vmatpush1.msra.mxu0 0.0
    %970 = vmatprep.subr.mxu0 0.0
    %971 = vmatpush1.msra.mxu0 0.0
    %972 = vmatprep.mubr.f32.mxu0 0.0
    %973 = vmatmul.mubr.f32.gmra.mrb[0].mxu0 %v906
    %v974 = vpop.f32.mrb[0].mxu0
    %v975 = vadd.f32 0.0, %v974
    %v976 = vpop.f32.mrb[0].mxu0
    %977 = vdwg.mxu0
    %978 = vrot.lane.b32.xlu0 %v267, 96
    %v979 = vpop.permute.xlu0 %978
    %980 = vrot.lane.b32.xlu0 %v267, 32
    %v981 = vpop.permute.xlu0 %980
    %v982 = vsel %vm280, %v979, 0
    %v984 = vsel %vm280, %v981, 0
    %986 = vmatprep.subr.mxu0 0.0
    %987 = vmatpush1.xpose.msra.mxu0 %v984
    %988 = vmatprep.subr.mxu0 0.0
    %989 = vmatpush1.xpose.msra.mxu0 0.0
    %990 = vmatprep.subr.mxu0 0.0
    %991 = vmatpush1.xpose.msra.mxu0 0.0
    %992 = vmatprep.subr.mxu0 0.0
    %993 = vmatpush1.xpose.msra.mxu0 0.0
    %994 = vmatprep.subr.mxu0 0.0
    %995 = vmatpush1.xpose.msra.mxu0 0.0
    %996 = vmatprep.subr.mxu0 0.0
    %997 = vmatpush1.xpose.msra.mxu0 0.0
    %998 = vmatprep.subr.mxu0 0.0
    %999 = vmatpush1.xpose.msra.mxu0 0.0
    %1000 = vmatprep.subr.mxu0 0.0
    %1001 = vmatpush1.xpose.msra.mxu0 0.0
    %1002 = vmatprep.subr.mxu0 0.0
    %1003 = vmatpush1.xpose.msra.mxu0 0.0
    %1004 = vmatprep.subr.mxu0 0.0
    %1005 = vmatpush1.xpose.msra.mxu0 0.0
    %1006 = vmatprep.subr.mxu0 0.0
    %1007 = vmatpush1.xpose.msra.mxu0 0.0
    %1008 = vmatprep.subr.mxu0 0.0
    %1009 = vmatpush1.xpose.msra.mxu0 0.0
    %1010 = vmatprep.subr.mxu0 0.0
    %1011 = vmatpush1.xpose.msra.mxu0 0.0
    %1012 = vmatprep.subr.mxu0 0.0
    %1013 = vmatpush1.xpose.msra.mxu0 0.0
    %1014 = vmatprep.subr.mxu0 0.0
    %1015 = vmatpush1.xpose.msra.mxu0 0.0
    %1016 = vmatprep.subr.mxu0 0.0
    %1017 = vmatpush1.xpose.msra.mxu0 0.0
    %1018 = vmatprep.subr.mxu0 0.0
    %1019 = vmatpush1.xpose.msra.mxu0 0.0
    %1020 = vmatprep.subr.mxu0 0.0
    %1021 = vmatpush1.xpose.msra.mxu0 0.0
    %1022 = vmatprep.subr.mxu0 0.0
    %1023 = vmatpush1.xpose.msra.mxu0 0.0
    %1024 = vmatprep.subr.mxu0 0.0
    %1025 = vmatpush1.xpose.msra.mxu0 0.0
    %1026 = vmatprep.subr.mxu0 0.0
    %1027 = vmatpush1.xpose.msra.mxu0 0.0
    %1028 = vmatprep.subr.mxu0 0.0
    %1029 = vmatpush1.xpose.msra.mxu0 0.0
    %1030 = vmatprep.subr.mxu0 0.0
    %1031 = vmatpush1.xpose.msra.mxu0 0.0
    %1032 = vmatprep.subr.mxu0 0.0
    %1033 = vmatpush1.xpose.msra.mxu0 0.0
    %1034 = vmatprep.subr.mxu0 0.0
    %1035 = vmatpush1.xpose.msra.mxu0 0.0
    %1036 = vmatprep.subr.mxu0 0.0
    %1037 = vmatpush1.xpose.msra.mxu0 0.0
    %1038 = vmatprep.subr.mxu0 0.0
    %1039 = vmatpush1.xpose.msra.mxu0 0.0
    %1040 = vmatprep.subr.mxu0 0.0
    %1041 = vmatpush1.xpose.msra.mxu0 0.0
    %1042 = vmatprep.subr.mxu0 0.0
    %1043 = vmatpush1.xpose.msra.mxu0 0.0
    %1044 = vmatprep.subr.mxu0 0.0
    %1045 = vmatpush1.xpose.msra.mxu0 0.0
    %1046 = vmatprep.subr.mxu0 0.0
    %1047 = vmatpush1.xpose.msra.mxu0 0.0
    %1048 = vmatprep.subr.mxu0 0.0
    %1049 = vmatpush1.xpose.msra.mxu0 0.0
    %1050 = vmatprep.mubr.f32.mxu0 0.0
    %1051 = vmatmul.mubr.f32.gmra.mrb[0].mxu0 %v982
    %v1052 = vpop.f32.mrb[0].mxu0
    %v1053 = vadd.f32 0.0, %v1052
    %v1054 = vpop.f32.mrb[0].mxu0
    %1055 = vdwg.mxu0
    %1056 = vrot.lane.b32.xlu0 %v273, 96
    %v1057 = vpop.permute.xlu0 %1056
    %1058 = vrot.lane.b32.xlu0 %v273, 32
    %v1059 = vpop.permute.xlu0 %1058
    %v1060 = vsel %vm280, %v1057, 0
    %v1062 = vsel %vm280, %v1059, 0
    %1064 = vmatprep.subr.mxu0 0.0
    %1065 = vmatpush1.xpose.msra.mxu0 %v1062
    %1066 = vmatprep.subr.mxu0 0.0
    %1067 = vmatpush1.xpose.msra.mxu0 0.0
    %1068 = vmatprep.subr.mxu0 0.0
    %1069 = vmatpush1.xpose.msra.mxu0 0.0
    %1070 = vmatprep.subr.mxu0 0.0
    %1071 = vmatpush1.xpose.msra.mxu0 0.0
    %1072 = vmatprep.subr.mxu0 0.0
    %1073 = vmatpush1.xpose.msra.mxu0 0.0
    %1074 = vmatprep.subr.mxu0 0.0
    %1075 = vmatpush1.xpose.msra.mxu0 0.0
    %1076 = vmatprep.subr.mxu0 0.0
    %1077 = vmatpush1.xpose.msra.mxu0 0.0
    %1078 = vmatprep.subr.mxu0 0.0
    %1079 = vmatpush1.xpose.msra.mxu0 0.0
    %1080 = vmatprep.subr.mxu0 0.0
    %1081 = vmatpush1.xpose.msra.mxu0 0.0
    %1082 = vmatprep.subr.mxu0 0.0
    %1083 = vmatpush1.xpose.msra.mxu0 0.0
    %1084 = vmatprep.subr.mxu0 0.0
    %1085 = vmatpush1.xpose.msra.mxu0 0.0
    %1086 = vmatprep.subr.mxu0 0.0
    %1087 = vmatpush1.xpose.msra.mxu0 0.0
    %1088 = vmatprep.subr.mxu0 0.0
    %1089 = vmatpush1.xpose.msra.mxu0 0.0
    %1090 = vmatprep.subr.mxu0 0.0
    %1091 = vmatpush1.xpose.msra.mxu0 0.0
    %1092 = vmatprep.subr.mxu0 0.0
    %1093 = vmatpush1.xpose.msra.mxu0 0.0
    %1094 = vmatprep.subr.mxu0 0.0
    %1095 = vmatpush1.xpose.msra.mxu0 0.0
    %1096 = vmatprep.subr.mxu0 0.0
    %1097 = vmatpush1.xpose.msra.mxu0 0.0
    %1098 = vmatprep.subr.mxu0 0.0
    %1099 = vmatpush1.xpose.msra.mxu0 0.0
    %1100 = vmatprep.subr.mxu0 0.0
    %1101 = vmatpush1.xpose.msra.mxu0 0.0
    %1102 = vmatprep.subr.mxu0 0.0
    %1103 = vmatpush1.xpose.msra.mxu0 0.0
    %1104 = vmatprep.subr.mxu0 0.0
    %1105 = vmatpush1.xpose.msra.mxu0 0.0
    %1106 = vmatprep.subr.mxu0 0.0
    %1107 = vmatpush1.xpose.msra.mxu0 0.0
    %1108 = vmatprep.subr.mxu0 0.0
    %1109 = vmatpush1.xpose.msra.mxu0 0.0
    %1110 = vmatprep.subr.mxu0 0.0
    %1111 = vmatpush1.xpose.msra.mxu0 0.0
    %1112 = vmatprep.subr.mxu0 0.0
    %1113 = vmatpush1.xpose.msra.mxu0 0.0
    %1114 = vmatprep.subr.mxu0 0.0
    %1115 = vmatpush1.xpose.msra.mxu0 0.0
    %1116 = vmatprep.subr.mxu0 0.0
    %1117 = vmatpush1.xpose.msra.mxu0 0.0
    %1118 = vmatprep.subr.mxu0 0.0
    %1119 = vmatpush1.xpose.msra.mxu0 0.0
    %1120 = vmatprep.subr.mxu0 0.0
    %1121 = vmatpush1.xpose.msra.mxu0 0.0
    %1122 = vmatprep.subr.mxu0 0.0
    %1123 = vmatpush1.xpose.msra.mxu0 0.0
    %1124 = vmatprep.subr.mxu0 0.0
    %1125 = vmatpush1.xpose.msra.mxu0 0.0
    %1126 = vmatprep.subr.mxu0 0.0
    %1127 = vmatpush1.xpose.msra.mxu0 0.0
    %1128 = vmatprep.mubr.f32.mxu0 0.0
    %1129 = vmatmul.mubr.f32.gmra.mrb[0].mxu0 %v1060
    %v1130 = vpop.f32.mrb[0].mxu0
    %v1131 = vadd.f32 0.0, %v1130
    %v1132 = vpop.f32.mrb[0].mxu0
    %1133 = vdwg.mxu0
    %v1134 = vmul.f32 %v1053, 0.25
    %v1135 = vmul.f32 %v1131, 0.25
    %v1136 = vadd.f32 %v1134, %v462
    %v1137 = vadd.f32 %v1135, %v468
    %v1138 = vsel %vm473, %v1136, -inf
    %1139 = vmax.xlane.f32.xlu0 %v1138
    %v1140 = vpop.xlane.xlu0 %1139
    %v1141 = vsel %vm473, %v1137, -inf
    %1142 = vmax.xlane.f32.xlu0 %v1141
    %v1143 = vpop.xlane.xlu0 %1142
    %v1144 = vsub.f32 %v1136, %v1140
    %v1145 = vsub.f32 %v1137, %v1143
    %v1146 = vmul.f32 %v1144, 1.442695
    %v1147 = vpow.pop %v1146
    %v1148 = vmul.f32 %v1145, 1.442695
    %v1149 = vpow.pop %v1148
    %v1150 = vsel %vm473, %v1147, 0.0
    %1151 = vadd.xlane.f32.xlu0 %v1150
    %v1152 = vpop.xlane.xlu0 %1151
    %v1153 = vsel %vm473, %v1149, 0.0
    %1154 = vadd.xlane.f32.xlu0 %v1153
    %v1155 = vpop.xlane.xlu0 %1154
    %v1156 = vrcp.pop %v1152
    %v1157 = vmul.f32 %v1147, %v1156
    %v1158 = vrcp.pop %v1155
    %v1159 = vmul.f32 %v1149, %v1158
    %1160 = vrot.lane.b32.xlu0 %v269, 96
    %v1161 = vpop.permute.xlu0 %1160
    %v1164 = vsel %vm473, %v1157, 0
    %1166 = vmatprep.subr.mxu0 0.0
    %1167 = vmatpush1.msra.mxu0 %v1161
    %1168 = vmatprep.subr.mxu0 0.0
    %1169 = vmatpush1.msra.mxu0 0.0
    %1170 = vmatprep.subr.mxu0 0.0
    %1171 = vmatpush1.msra.mxu0 0.0
    %1172 = vmatprep.subr.mxu0 0.0
    %1173 = vmatpush1.msra.mxu0 0.0
    %1174 = vmatprep.subr.mxu0 0.0
    %1175 = vmatpush1.msra.mxu0 0.0
    %1176 = vmatprep.subr.mxu0 0.0
    %1177 = vmatpush1.msra.mxu0 0.0
    %1178 = vmatprep.subr.mxu0 0.0
    %1179 = vmatpush1.msra.mxu0 0.0
    %1180 = vmatprep.subr.mxu0 0.0
    %1181 = vmatpush1.msra.mxu0 0.0
    %1182 = vmatprep.subr.mxu0 0.0
    %1183 = vmatpush1.msra.mxu0 0.0
    %1184 = vmatprep.subr.mxu0 0.0
    %1185 = vmatpush1.msra.mxu0 0.0
    %1186 = vmatprep.subr.mxu0 0.0
    %1187 = vmatpush1.msra.mxu0 0.0
    %1188 = vmatprep.subr.mxu0 0.0
    %1189 = vmatpush1.msra.mxu0 0.0
    %1190 = vmatprep.subr.mxu0 0.0
    %1191 = vmatpush1.msra.mxu0 0.0
    %1192 = vmatprep.subr.mxu0 0.0
    %1193 = vmatpush1.msra.mxu0 0.0
    %1194 = vmatprep.subr.mxu0 0.0
    %1195 = vmatpush1.msra.mxu0 0.0
    %1196 = vmatprep.subr.mxu0 0.0
    %1197 = vmatpush1.msra.mxu0 0.0
    %1198 = vmatprep.subr.mxu0 0.0
    %1199 = vmatpush1.msra.mxu0 0.0
    %1200 = vmatprep.subr.mxu0 0.0
    %1201 = vmatpush1.msra.mxu0 0.0
    %1202 = vmatprep.subr.mxu0 0.0
    %1203 = vmatpush1.msra.mxu0 0.0
    %1204 = vmatprep.subr.mxu0 0.0
    %1205 = vmatpush1.msra.mxu0 0.0
    %1206 = vmatprep.subr.mxu0 0.0
    %1207 = vmatpush1.msra.mxu0 0.0
    %1208 = vmatprep.subr.mxu0 0.0
    %1209 = vmatpush1.msra.mxu0 0.0
    %1210 = vmatprep.subr.mxu0 0.0
    %1211 = vmatpush1.msra.mxu0 0.0
    %1212 = vmatprep.subr.mxu0 0.0
    %1213 = vmatpush1.msra.mxu0 0.0
    %1214 = vmatprep.subr.mxu0 0.0
    %1215 = vmatpush1.msra.mxu0 0.0
    %1216 = vmatprep.subr.mxu0 0.0
    %1217 = vmatpush1.msra.mxu0 0.0
    %1218 = vmatprep.subr.mxu0 0.0
    %1219 = vmatpush1.msra.mxu0 0.0
    %1220 = vmatprep.subr.mxu0 0.0
    %1221 = vmatpush1.msra.mxu0 0.0
    %1222 = vmatprep.subr.mxu0 0.0
    %1223 = vmatpush1.msra.mxu0 0.0
    %1224 = vmatprep.subr.mxu0 0.0
    %1225 = vmatpush1.msra.mxu0 0.0
    %1226 = vmatprep.subr.mxu0 0.0
    %1227 = vmatpush1.msra.mxu0 0.0
    %1228 = vmatprep.subr.mxu0 0.0
    %1229 = vmatpush1.msra.mxu0 0.0
    %1230 = vmatprep.mubr.f32.mxu0 0.0
    %1231 = vmatmul.mubr.f32.gmra.mrb[0].mxu0 %v1164
    %v1232 = vpop.f32.mrb[0].mxu0
    %v1233 = vadd.f32 0.0, %v1232
    %v1234 = vpop.f32.mrb[0].mxu0
    %1235 = vdwg.mxu0
    %1236 = vrot.lane.b32.xlu0 %v275, 96
    %v1237 = vpop.permute.xlu0 %1236
    %v1240 = vsel %vm473, %v1159, 0
    %1242 = vmatprep.subr.mxu0 0.0
    %1243 = vmatpush1.msra.mxu0 %v1237
    %1244 = vmatprep.subr.mxu0 0.0
    %1245 = vmatpush1.msra.mxu0 0.0
    %1246 = vmatprep.subr.mxu0 0.0
    %1247 = vmatpush1.msra.mxu0 0.0
    %1248 = vmatprep.subr.mxu0 0.0
    %1249 = vmatpush1.msra.mxu0 0.0
    %1250 = vmatprep.subr.mxu0 0.0
    %1251 = vmatpush1.msra.mxu0 0.0
    %1252 = vmatprep.subr.mxu0 0.0
    %1253 = vmatpush1.msra.mxu0 0.0
    %1254 = vmatprep.subr.mxu0 0.0
    %1255 = vmatpush1.msra.mxu0 0.0
    %1256 = vmatprep.subr.mxu0 0.0
    %1257 = vmatpush1.msra.mxu0 0.0
    %1258 = vmatprep.subr.mxu0 0.0
    %1259 = vmatpush1.msra.mxu0 0.0
    %1260 = vmatprep.subr.mxu0 0.0
    %1261 = vmatpush1.msra.mxu0 0.0
    %1262 = vmatprep.subr.mxu0 0.0
    %1263 = vmatpush1.msra.mxu0 0.0
    %1264 = vmatprep.subr.mxu0 0.0
    %1265 = vmatpush1.msra.mxu0 0.0
    %1266 = vmatprep.subr.mxu0 0.0
    %1267 = vmatpush1.msra.mxu0 0.0
    %1268 = vmatprep.subr.mxu0 0.0
    %1269 = vmatpush1.msra.mxu0 0.0
    %1270 = vmatprep.subr.mxu0 0.0
    %1271 = vmatpush1.msra.mxu0 0.0
    %1272 = vmatprep.subr.mxu0 0.0
    %1273 = vmatpush1.msra.mxu0 0.0
    %1274 = vmatprep.subr.mxu0 0.0
    %1275 = vmatpush1.msra.mxu0 0.0
    %1276 = vmatprep.subr.mxu0 0.0
    %1277 = vmatpush1.msra.mxu0 0.0
    %1278 = vmatprep.subr.mxu0 0.0
    %1279 = vmatpush1.msra.mxu0 0.0
    %1280 = vmatprep.subr.mxu0 0.0
    %1281 = vmatpush1.msra.mxu0 0.0
    %1282 = vmatprep.subr.mxu0 0.0
    %1283 = vmatpush1.msra.mxu0 0.0
    %1284 = vmatprep.subr.mxu0 0.0
    %1285 = vmatpush1.msra.mxu0 0.0
    %1286 = vmatprep.subr.mxu0 0.0
    %1287 = vmatpush1.msra.mxu0 0.0
    %1288 = vmatprep.subr.mxu0 0.0
    %1289 = vmatpush1.msra.mxu0 0.0
    %1290 = vmatprep.subr.mxu0 0.0
    %1291 = vmatpush1.msra.mxu0 0.0
    %1292 = vmatprep.subr.mxu0 0.0
    %1293 = vmatpush1.msra.mxu0 0.0
    %1294 = vmatprep.subr.mxu0 0.0
    %1295 = vmatpush1.msra.mxu0 0.0
    %1296 = vmatprep.subr.mxu0 0.0
    %1297 = vmatpush1.msra.mxu0 0.0
    %1298 = vmatprep.subr.mxu0 0.0
    %1299 = vmatpush1.msra.mxu0 0.0
    %1300 = vmatprep.subr.mxu0 0.0
    %1301 = vmatpush1.msra.mxu0 0.0
    %1302 = vmatprep.subr.mxu0 0.0
    %1303 = vmatpush1.msra.mxu0 0.0
    %1304 = vmatprep.subr.mxu0 0.0
    %1305 = vmatpush1.msra.mxu0 0.0
    %1306 = vmatprep.mubr.f32.mxu0 0.0
    %1307 = vmatmul.mubr.f32.gmra.mrb[0].mxu0 %v1240
    %v1308 = vpop.f32.mrb[0].mxu0
    %v1309 = vadd.f32 0.0, %v1308
    %v1310 = vpop.f32.mrb[0].mxu0
    %1311 = vdwg.mxu0
    %1312 = vrot.lane.b32.xlu0 %v267, 80
    %v1313 = vpop.permute.xlu0 %1312
    %1314 = vrot.lane.b32.xlu0 %v267, 16
    %v1315 = vpop.permute.xlu0 %1314
    %v1316 = vsel %vm280, %v1313, 0
    %v1318 = vsel %vm280, %v1315, 0
    %1320 = vmatprep.subr.mxu0 0.0
    %1321 = vmatpush1.xpose.msra.mxu0 %v1318
    %1322 = vmatprep.subr.mxu0 0.0
    %1323 = vmatpush1.xpose.msra.mxu0 0.0
    %1324 = vmatprep.subr.mxu0 0.0
    %1325 = vmatpush1.xpose.msra.mxu0 0.0
    %1326 = vmatprep.subr.mxu0 0.0
    %1327 = vmatpush1.xpose.msra.mxu0 0.0
    %1328 = vmatprep.subr.mxu0 0.0
    %1329 = vmatpush1.xpose.msra.mxu0 0.0
    %1330 = vmatprep.subr.mxu0 0.0
    %1331 = vmatpush1.xpose.msra.mxu0 0.0
    %1332 = vmatprep.subr.mxu0 0.0
    %1333 = vmatpush1.xpose.msra.mxu0 0.0
    %1334 = vmatprep.subr.mxu0 0.0
    %1335 = vmatpush1.xpose.msra.mxu0 0.0
    %1336 = vmatprep.subr.mxu0 0.0
    %1337 = vmatpush1.xpose.msra.mxu0 0.0
    %1338 = vmatprep.subr.mxu0 0.0
    %1339 = vmatpush1.xpose.msra.mxu0 0.0
    %1340 = vmatprep.subr.mxu0 0.0
    %1341 = vmatpush1.xpose.msra.mxu0 0.0
    %1342 = vmatprep.subr.mxu0 0.0
    %1343 = vmatpush1.xpose.msra.mxu0 0.0
    %1344 = vmatprep.subr.mxu0 0.0
    %1345 = vmatpush1.xpose.msra.mxu0 0.0
    %1346 = vmatprep.subr.mxu0 0.0
    %1347 = vmatpush1.xpose.msra.mxu0 0.0
    %1348 = vmatprep.subr.mxu0 0.0
    %1349 = vmatpush1.xpose.msra.mxu0 0.0
    %1350 = vmatprep.subr.mxu0 0.0
    %1351 = vmatpush1.xpose.msra.mxu0 0.0
    %1352 = vmatprep.subr.mxu0 0.0
    %1353 = vmatpush1.xpose.msra.mxu0 0.0
    %1354 = vmatprep.subr.mxu0 0.0
    %1355 = vmatpush1.xpose.msra.mxu0 0.0
    %1356 = vmatprep.subr.mxu0 0.0
    %1357 = vmatpush1.xpose.msra.mxu0 0.0
    %1358 = vmatprep.subr.mxu0 0.0
    %1359 = vmatpush1.xpose.msra.mxu0 0.0
    %1360 = vmatprep.subr.mxu0 0.0
    %1361 = vmatpush1.xpose.msra.mxu0 0.0
    %1362 = vmatprep.subr.mxu0 0.0
    %1363 = vmatpush1.xpose.msra.mxu0 0.0
    %1364 = vmatprep.subr.mxu0 0.0
    %1365 = vmatpush1.xpose.msra.mxu0 0.0
    %1366 = vmatprep.subr.mxu0 0.0
    %1367 = vmatpush1.xpose.msra.mxu0 0.0
    %1368 = vmatprep.subr.mxu0 0.0
    %1369 = vmatpush1.xpose.msra.mxu0 0.0
    %1370 = vmatprep.subr.mxu0 0.0
    %1371 = vmatpush1.xpose.msra.mxu0 0.0
    %1372 = vmatprep.subr.mxu0 0.0
    %1373 = vmatpush1.xpose.msra.mxu0 0.0
    %1374 = vmatprep.subr.mxu0 0.0
    %1375 = vmatpush1.xpose.msra.mxu0 0.0
    %1376 = vmatprep.subr.mxu0 0.0
    %1377 = vmatpush1.xpose.msra.mxu0 0.0
    %1378 = vmatprep.subr.mxu0 0.0
    %1379 = vmatpush1.xpose.msra.mxu0 0.0
    %1380 = vmatprep.subr.mxu0 0.0
    %1381 = vmatpush1.xpose.msra.mxu0 0.0
    %1382 = vmatprep.subr.mxu0 0.0
    %1383 = vmatpush1.xpose.msra.mxu0 0.0
    %1384 = vmatprep.mubr.f32.mxu0 0.0
    %1385 = vmatmul.mubr.f32.gmra.mrb[0].mxu0 %v1316
    %v1386 = vpop.f32.mrb[0].mxu0
    %v1387 = vadd.f32 0.0, %v1386
    %v1388 = vpop.f32.mrb[0].mxu0
    %1389 = vdwg.mxu0
    %1390 = vrot.lane.b32.xlu0 %v273, 80
    %v1391 = vpop.permute.xlu0 %1390
    %1392 = vrot.lane.b32.xlu0 %v273, 16
    %v1393 = vpop.permute.xlu0 %1392
    %v1394 = vsel %vm280, %v1391, 0
    %v1396 = vsel %vm280, %v1393, 0
    %1398 = vmatprep.subr.mxu0 0.0
    %1399 = vmatpush1.xpose.msra.mxu0 %v1396
    %1400 = vmatprep.subr.mxu0 0.0
    %1401 = vmatpush1.xpose.msra.mxu0 0.0
    %1402 = vmatprep.subr.mxu0 0.0
    %1403 = vmatpush1.xpose.msra.mxu0 0.0
    %1404 = vmatprep.subr.mxu0 0.0
    %1405 = vmatpush1.xpose.msra.mxu0 0.0
    %1406 = vmatprep.subr.mxu0 0.0
    %1407 = vmatpush1.xpose.msra.mxu0 0.0
    %1408 = vmatprep.subr.mxu0 0.0
    %1409 = vmatpush1.xpose.msra.mxu0 0.0
    %1410 = vmatprep.subr.mxu0 0.0
    %1411 = vmatpush1.xpose.msra.mxu0 0.0
    %1412 = vmatprep.subr.mxu0 0.0
    %1413 = vmatpush1.xpose.msra.mxu0 0.0
    %1414 = vmatprep.subr.mxu0 0.0
    %1415 = vmatpush1.xpose.msra.mxu0 0.0
    %1416 = vmatprep.subr.mxu0 0.0
    %1417 = vmatpush1.xpose.msra.mxu0 0.0
    %1418 = vmatprep.subr.mxu0 0.0
    %1419 = vmatpush1.xpose.msra.mxu0 0.0
    %1420 = vmatprep.subr.mxu0 0.0
    %1421 = vmatpush1.xpose.msra.mxu0 0.0
    %1422 = vmatprep.subr.mxu0 0.0
    %1423 = vmatpush1.xpose.msra.mxu0 0.0
    %1424 = vmatprep.subr.mxu0 0.0
    %1425 = vmatpush1.xpose.msra.mxu0 0.0
    %1426 = vmatprep.subr.mxu0 0.0
    %1427 = vmatpush1.xpose.msra.mxu0 0.0
    %1428 = vmatprep.subr.mxu0 0.0
    %1429 = vmatpush1.xpose.msra.mxu0 0.0
    %1430 = vmatprep.subr.mxu0 0.0
    %1431 = vmatpush1.xpose.msra.mxu0 0.0
    %1432 = vmatprep.subr.mxu0 0.0
    %1433 = vmatpush1.xpose.msra.mxu0 0.0
    %1434 = vmatprep.subr.mxu0 0.0
    %1435 = vmatpush1.xpose.msra.mxu0 0.0
    %1436 = vmatprep.subr.mxu0 0.0
    %1437 = vmatpush1.xpose.msra.mxu0 0.0
    %1438 = vmatprep.subr.mxu0 0.0
    %1439 = vmatpush1.xpose.msra.mxu0 0.0
    %1440 = vmatprep.subr.mxu0 0.0
    %1441 = vmatpush1.xpose.msra.mxu0 0.0
    %1442 = vmatprep.subr.mxu0 0.0
    %1443 = vmatpush1.xpose.msra.mxu0 0.0
    %1444 = vmatprep.subr.mxu0 0.0
    %1445 = vmatpush1.xpose.msra.mxu0 0.0
    %1446 = vmatprep.subr.mxu0 0.0
    %1447 = vmatpush1.xpose.msra.mxu0 0.0
    %1448 = vmatprep.subr.mxu0 0.0
    %1449 = vmatpush1.xpose.msra.mxu0 0.0
    %1450 = vmatprep.subr.mxu0 0.0
    %1451 = vmatpush1.xpose.msra.mxu0 0.0
    %1452 = vmatprep.subr.mxu0 0.0
    %1453 = vmatpush1.xpose.msra.mxu0 0.0
    %1454 = vmatprep.subr.mxu0 0.0
    %1455 = vmatpush1.xpose.msra.mxu0 0.0
    %1456 = vmatprep.subr.mxu0 0.0
    %1457 = vmatpush1.xpose.msra.mxu0 0.0
    %1458 = vmatprep.subr.mxu0 0.0
    %1459 = vmatpush1.xpose.msra.mxu0 0.0
    %1460 = vmatprep.subr.mxu0 0.0
    %1461 = vmatpush1.xpose.msra.mxu0 0.0
    %1462 = vmatprep.mubr.f32.mxu0 0.0
    %1463 = vmatmul.mubr.f32.gmra.mrb[0].mxu0 %v1394
    %v1464 = vpop.f32.mrb[0].mxu0
    %v1465 = vadd.f32 0.0, %v1464
    %v1466 = vpop.f32.mrb[0].mxu0
    %1467 = vdwg.mxu0
    %v1468 = vmul.f32 %v1387, 0.25
    %v1469 = vmul.f32 %v1465, 0.25
    %v1470 = vadd.f32 %v1468, %v462
    %v1471 = vadd.f32 %v1469, %v468
    %v1472 = vsel %vm473, %v1470, -inf
    %1473 = vmax.xlane.f32.xlu0 %v1472
    %v1474 = vpop.xlane.xlu0 %1473
    %v1475 = vsel %vm473, %v1471, -inf
    %1476 = vmax.xlane.f32.xlu0 %v1475
    %v1477 = vpop.xlane.xlu0 %1476
    %v1478 = vsub.f32 %v1470, %v1474
    %v1479 = vsub.f32 %v1471, %v1477
    %v1480 = vmul.f32 %v1478, 1.442695
    %v1481 = vpow.pop %v1480
    %v1482 = vmul.f32 %v1479, 1.442695
    %v1483 = vpow.pop %v1482
    %v1484 = vsel %vm473, %v1481, 0.0
    %1485 = vadd.xlane.f32.xlu0 %v1484
    %v1486 = vpop.xlane.xlu0 %1485
    %v1487 = vsel %vm473, %v1483, 0.0
    %1488 = vadd.xlane.f32.xlu0 %v1487
    %v1489 = vpop.xlane.xlu0 %1488
    %v1490 = vrcp.pop %v1486
    %v1491 = vmul.f32 %v1481, %v1490
    %v1492 = vrcp.pop %v1489
    %v1493 = vmul.f32 %v1483, %v1492
    %1494 = vrot.lane.b32.xlu0 %v269, 80
    %v1495 = vpop.permute.xlu0 %1494
    %v1498 = vsel %vm473, %v1491, 0
    %1500 = vmatprep.subr.mxu0 0.0
    %1501 = vmatpush1.msra.mxu0 %v1495
    %1502 = vmatprep.subr.mxu0 0.0
    %1503 = vmatpush1.msra.mxu0 0.0
    %1504 = vmatprep.subr.mxu0 0.0
    %1505 = vmatpush1.msra.mxu0 0.0
    %1506 = vmatprep.subr.mxu0 0.0
    %1507 = vmatpush1.msra.mxu0 0.0
    %1508 = vmatprep.subr.mxu0 0.0
    %1509 = vmatpush1.msra.mxu0 0.0
    %1510 = vmatprep.subr.mxu0 0.0
    %1511 = vmatpush1.msra.mxu0 0.0
    %1512 = vmatprep.subr.mxu0 0.0
    %1513 = vmatpush1.msra.mxu0 0.0
    %1514 = vmatprep.subr.mxu0 0.0
    %1515 = vmatpush1.msra.mxu0 0.0
    %1516 = vmatprep.subr.mxu0 0.0
    %1517 = vmatpush1.msra.mxu0 0.0
    %1518 = vmatprep.subr.mxu0 0.0
    %1519 = vmatpush1.msra.mxu0 0.0
    %1520 = vmatprep.subr.mxu0 0.0
    %1521 = vmatpush1.msra.mxu0 0.0
    %1522 = vmatprep.subr.mxu0 0.0
    %1523 = vmatpush1.msra.mxu0 0.0
    %1524 = vmatprep.subr.mxu0 0.0
    %1525 = vmatpush1.msra.mxu0 0.0
    %1526 = vmatprep.subr.mxu0 0.0
    %1527 = vmatpush1.msra.mxu0 0.0
    %1528 = vmatprep.subr.mxu0 0.0
    %1529 = vmatpush1.msra.mxu0 0.0
    %1530 = vmatprep.subr.mxu0 0.0
    %1531 = vmatpush1.msra.mxu0 0.0
    %1532 = vmatprep.subr.mxu0 0.0
    %1533 = vmatpush1.msra.mxu0 0.0
    %1534 = vmatprep.subr.mxu0 0.0
    %1535 = vmatpush1.msra.mxu0 0.0
    %1536 = vmatprep.subr.mxu0 0.0
    %1537 = vmatpush1.msra.mxu0 0.0
    %1538 = vmatprep.subr.mxu0 0.0
    %1539 = vmatpush1.msra.mxu0 0.0
    %1540 = vmatprep.subr.mxu0 0.0
    %1541 = vmatpush1.msra.mxu0 0.0
    %1542 = vmatprep.subr.mxu0 0.0
    %1543 = vmatpush1.msra.mxu0 0.0
    %1544 = vmatprep.subr.mxu0 0.0
    %1545 = vmatpush1.msra.mxu0 0.0
    %1546 = vmatprep.subr.mxu0 0.0
    %1547 = vmatpush1.msra.mxu0 0.0
    %1548 = vmatprep.subr.mxu0 0.0
    %1549 = vmatpush1.msra.mxu0 0.0
    %1550 = vmatprep.subr.mxu0 0.0
    %1551 = vmatpush1.msra.mxu0 0.0
    %1552 = vmatprep.subr.mxu0 0.0
    %1553 = vmatpush1.msra.mxu0 0.0
    %1554 = vmatprep.subr.mxu0 0.0
    %1555 = vmatpush1.msra.mxu0 0.0
    %1556 = vmatprep.subr.mxu0 0.0
    %1557 = vmatpush1.msra.mxu0 0.0
    %1558 = vmatprep.subr.mxu0 0.0
    %1559 = vmatpush1.msra.mxu0 0.0
    %1560 = vmatprep.subr.mxu0 0.0
    %1561 = vmatpush1.msra.mxu0 0.0
    %1562 = vmatprep.subr.mxu0 0.0
    %1563 = vmatpush1.msra.mxu0 0.0
    %1564 = vmatprep.mubr.f32.mxu0 0.0
    %1565 = vmatmul.mubr.f32.gmra.mrb[0].mxu0 %v1498
    %v1566 = vpop.f32.mrb[0].mxu0
    %v1567 = vadd.f32 0.0, %v1566
    %v1568 = vpop.f32.mrb[0].mxu0
    %1569 = vdwg.mxu0
    %1570 = vrot.lane.b32.xlu0 %v275, 80
    %v1571 = vpop.permute.xlu0 %1570
    %v1574 = vsel %vm473, %v1493, 0
    %1576 = vmatprep.subr.mxu0 0.0
    %1577 = vmatpush1.msra.mxu0 %v1571
    %1578 = vmatprep.subr.mxu0 0.0
    %1579 = vmatpush1.msra.mxu0 0.0
    %1580 = vmatprep.subr.mxu0 0.0
    %1581 = vmatpush1.msra.mxu0 0.0
    %1582 = vmatprep.subr.mxu0 0.0
    %1583 = vmatpush1.msra.mxu0 0.0
    %1584 = vmatprep.subr.mxu0 0.0
    %1585 = vmatpush1.msra.mxu0 0.0
    %1586 = vmatprep.subr.mxu0 0.0
    %1587 = vmatpush1.msra.mxu0 0.0
    %1588 = vmatprep.subr.mxu0 0.0
    %1589 = vmatpush1.msra.mxu0 0.0
    %1590 = vmatprep.subr.mxu0 0.0
    %1591 = vmatpush1.msra.mxu0 0.0
    %1592 = vmatprep.subr.mxu0 0.0
    %1593 = vmatpush1.msra.mxu0 0.0
    %1594 = vmatprep.subr.mxu0 0.0
    %1595 = vmatpush1.msra.mxu0 0.0
    %1596 = vmatprep.subr.mxu0 0.0
    %1597 = vmatpush1.msra.mxu0 0.0
    %1598 = vmatprep.subr.mxu0 0.0
    %1599 = vmatpush1.msra.mxu0 0.0
    %1600 = vmatprep.subr.mxu0 0.0
    %1601 = vmatpush1.msra.mxu0 0.0
    %1602 = vmatprep.subr.mxu0 0.0
    %1603 = vmatpush1.msra.mxu0 0.0
    %1604 = vmatprep.subr.mxu0 0.0
    %1605 = vmatpush1.msra.mxu0 0.0
    %1606 = vmatprep.subr.mxu0 0.0
    %1607 = vmatpush1.msra.mxu0 0.0
    %1608 = vmatprep.subr.mxu0 0.0
    %1609 = vmatpush1.msra.mxu0 0.0
    %1610 = vmatprep.subr.mxu0 0.0
    %1611 = vmatpush1.msra.mxu0 0.0
    %1612 = vmatprep.subr.mxu0 0.0
    %1613 = vmatpush1.msra.mxu0 0.0
    %1614 = vmatprep.subr.mxu0 0.0
    %1615 = vmatpush1.msra.mxu0 0.0
    %1616 = vmatprep.subr.mxu0 0.0
    %1617 = vmatpush1.msra.mxu0 0.0
    %1618 = vmatprep.subr.mxu0 0.0
    %1619 = vmatpush1.msra.mxu0 0.0
    %1620 = vmatprep.subr.mxu0 0.0
    %1621 = vmatpush1.msra.mxu0 0.0
    %1622 = vmatprep.subr.mxu0 0.0
    %1623 = vmatpush1.msra.mxu0 0.0
    %1624 = vmatprep.subr.mxu0 0.0
    %1625 = vmatpush1.msra.mxu0 0.0
    %1626 = vmatprep.subr.mxu0 0.0
    %1627 = vmatpush1.msra.mxu0 0.0
    %1628 = vmatprep.subr.mxu0 0.0
    %1629 = vmatpush1.msra.mxu0 0.0
    %1630 = vmatprep.subr.mxu0 0.0
    %1631 = vmatpush1.msra.mxu0 0.0
    %1632 = vmatprep.subr.mxu0 0.0
    %1633 = vmatpush1.msra.mxu0 0.0
    %1634 = vmatprep.subr.mxu0 0.0
    %1635 = vmatpush1.msra.mxu0 0.0
    %1636 = vmatprep.subr.mxu0 0.0
    %1637 = vmatpush1.msra.mxu0 0.0
    %1638 = vmatprep.subr.mxu0 0.0
    %1639 = vmatpush1.msra.mxu0 0.0
    %1640 = vmatprep.mubr.f32.mxu0 0.0
    %1641 = vmatmul.mubr.f32.gmra.mrb[0].mxu0 %v1574
    %v1642 = vpop.f32.mrb[0].mxu0
    %v1643 = vadd.f32 0.0, %v1642
    %v1644 = vpop.f32.mrb[0].mxu0
    %1645 = vdwg.mxu0
    %1648 = vrot.lane.b32.xlu0 %v898, 16
    %v1649 = vpop.permute.xlu0 %1648
    %1650 = vrot.lane.b32.xlu0 %v975, 16
    %v1651 = vpop.permute.xlu0 %1650
    %1656 = vrot.lane.b32.xlu0 %v1233, 32
    %v1657 = vpop.permute.xlu0 %1656
    %1658 = vrot.lane.b32.xlu0 %v1309, 32
    %v1659 = vpop.permute.xlu0 %1658
    %1664 = vrot.lane.b32.xlu0 %v1567, 48
    %v1665 = vpop.permute.xlu0 %1664
    %1666 = vrot.lane.b32.xlu0 %v1643, 48
    %v1667 = vpop.permute.xlu0 %1666
    %v1670 = vsel %vm280, %v566, %v1649
    %v1671 = vsel %vm280, %v639, %v1651
    %vm1672 = vcmask 261120
    %v1673 = vsel %vm1672, %v1670, %v1657
    %v1674 = vsel %vm1672, %v1671, %v1659
    %vm1675 = vcmask 392192
    %v1676 = vsel %vm1675, %v1673, %v1665
    %v1677 = vsel %vm1675, %v1674, %v1667
    %v1678 = vld [vmem:[%s5] sm:$0xff]
    %v1679 = vld [vmem:[%s5 + $0x8] sm:$0xff]
    %v1680 = vld [vmem:[%s5 + $0x10] sm:$0xff]
    %v1681 = vld [vmem:[%s5 + $0x18] sm:$0xff]
    %v1682 = vld [vmem:[%s5 + $0x20] sm:$0xff]
    %v1683 = vld [vmem:[%s5 + $0x28] sm:$0xff]
    %v1684 = vld [vmem:[%s5 + $0x30] sm:$0xff]
    %v1685 = vld [vmem:[%s5 + $0x38] sm:$0xff]
    %v1686 = vld [vmem:[%s6] sm:$0x1]
    %v1688 = vlaneseq
    %v1689 = vshrl.u32 %v1688, 7
    %v1690 = vsub.s32 0, %v1689
    %v1691 = vrot.slane %v1686, %v1690
    %v1694 = vsel %vm193, %v1676, 0
    %v1697 = vsel %vm193, %v1677, 0
    %1699 = vmatprep.subr.mxu0 0.0
    %1700 = vmatpush1.msra.mxu0 %v1678
    %1701 = vmatprep.subr.mxu0 0.0
    %1702 = vmatpush1.msra.mxu0 %v1679
    %1703 = vmatprep.subr.mxu0 0.0
    %1704 = vmatpush1.msra.mxu0 %v1680
    %1705 = vmatprep.subr.mxu0 0.0
    %1706 = vmatpush1.msra.mxu0 %v1681
    %1707 = vmatprep.subr.mxu0 0.0
    %1708 = vmatpush1.msra.mxu0 %v1682
    %1709 = vmatprep.subr.mxu0 0.0
    %1710 = vmatpush1.msra.mxu0 %v1683
    %1711 = vmatprep.subr.mxu0 0.0
    %1712 = vmatpush1.msra.mxu0 %v1684
    %1713 = vmatprep.subr.mxu0 0.0
    %1714 = vmatpush1.msra.mxu0 %v1685
    %1715 = vmatprep.subr.mxu0 0.0
    %1716 = vmatpush1.msra.mxu0 0.0
    %1717 = vmatprep.subr.mxu0 0.0
    %1718 = vmatpush1.msra.mxu0 0.0
    %1719 = vmatprep.subr.mxu0 0.0
    %1720 = vmatpush1.msra.mxu0 0.0
    %1721 = vmatprep.subr.mxu0 0.0
    %1722 = vmatpush1.msra.mxu0 0.0
    %1723 = vmatprep.subr.mxu0 0.0
    %1724 = vmatpush1.msra.mxu0 0.0
    %1725 = vmatprep.subr.mxu0 0.0
    %1726 = vmatpush1.msra.mxu0 0.0
    %1727 = vmatprep.subr.mxu0 0.0
    %1728 = vmatpush1.msra.mxu0 0.0
    %1729 = vmatprep.subr.mxu0 0.0
    %1730 = vmatpush1.msra.mxu0 0.0
    %1731 = vmatprep.subr.mxu0 0.0
    %1732 = vmatpush1.msra.mxu0 0.0
    %1733 = vmatprep.subr.mxu0 0.0
    %1734 = vmatpush1.msra.mxu0 0.0
    %1735 = vmatprep.subr.mxu0 0.0
    %1736 = vmatpush1.msra.mxu0 0.0
    %1737 = vmatprep.subr.mxu0 0.0
    %1738 = vmatpush1.msra.mxu0 0.0
    %1739 = vmatprep.subr.mxu0 0.0
    %1740 = vmatpush1.msra.mxu0 0.0
    %1741 = vmatprep.subr.mxu0 0.0
    %1742 = vmatpush1.msra.mxu0 0.0
    %1743 = vmatprep.subr.mxu0 0.0
    %1744 = vmatpush1.msra.mxu0 0.0
    %1745 = vmatprep.subr.mxu0 0.0
    %1746 = vmatpush1.msra.mxu0 0.0
    %1747 = vmatprep.subr.mxu0 0.0
    %1748 = vmatpush1.msra.mxu0 0.0
    %1749 = vmatprep.subr.mxu0 0.0
    %1750 = vmatpush1.msra.mxu0 0.0
    %1751 = vmatprep.subr.mxu0 0.0
    %1752 = vmatpush1.msra.mxu0 0.0
    %1753 = vmatprep.subr.mxu0 0.0
    %1754 = vmatpush1.msra.mxu0 0.0
    %1755 = vmatprep.subr.mxu0 0.0
    %1756 = vmatpush1.msra.mxu0 0.0
    %1757 = vmatprep.subr.mxu0 0.0
    %1758 = vmatpush1.msra.mxu0 0.0
    %1759 = vmatprep.subr.mxu0 0.0
    %1760 = vmatpush1.msra.mxu0 0.0
    %1761 = vmatprep.subr.mxu0 0.0
    %1762 = vmatpush1.msra.mxu0 0.0
    %1763 = vmatprep.mubr.f32.mxu0 0.0
    %1764 = vmatmul.mubr.f32.gmra.mrb[0].mxu0 %v1694
    %v1765 = vpop.f32.mrb[0].mxu0
    %v1766 = vadd.f32 %v1691, %v1765
    %v1767 = vpop.f32.mrb[0].mxu0
    %1768 = vmatprep.mubr.f32.mxu0 0.0
    %1769 = vmatmul.mubr.f32.gmra.mrb[0].mxu0 %v1697
    %v1770 = vpop.f32.mrb[0].mxu0
    %v1771 = vadd.f32 %v1691, %v1770
    %v1772 = vpop.f32.mrb[0].mxu0
    %1773 = vdwg.mxu0
    %v1774 = vadd.f32 %v157, %v1766
    %v1775 = vadd.f32 %v162, %v1771
    %v1776 = vld [vmem:[%s7] sm:$0x1]
    %v1777 = vld [vmem:[%s8] sm:$0x1]
    %v1778 = vsel %vm193, %v1774, 0.0
    %1779 = vadd.xlane.f32.xlu0 %v1778
    %v1780 = vpop.xlane.xlu0 %1779
    %v1781 = vsel %vm193, %v1775, 0.0
    %1782 = vadd.xlane.f32.xlu0 %v1781
    %v1783 = vpop.xlane.xlu0 %1782
    %v1784 = vrcp.pop 64.0
    %v1785 = vmul.f32 %v1780, %v1784
    %v1786 = vmul.f32 %v1783, %v1784
    %v1787 = vsub.f32 %v1774, %v1785
    %v1788 = vsub.f32 %v1775, %v1786
    %v1789 = vmul.f32 %v1787, %v1787
    %v1790 = vmul.f32 %v1788, %v1788
    %v1791 = vsel %vm193, %v1789, 0.0
    %1792 = vadd.xlane.f32.xlu0 %v1791
    %v1793 = vpop.xlane.xlu0 %1792
    %v1794 = vsel %vm193, %v1790, 0.0
    %1795 = vadd.xlane.f32.xlu0 %v1794
    %v1796 = vpop.xlane.xlu0 %1795
    %v1797 = vmul.f32 %v1793, %v1784
    %v1798 = vmul.f32 %v1796, %v1784
    %v1799 = vadd.f32 %v1797, 1e-05
    %v1800 = vadd.f32 %v1798, 1e-05
    %v1801 = vrsqrt.pop %v1799
    %v1802 = vrsqrt.pop %v1800
    %v1803 = vmul.f32 %v1787, %v1801
    %v1804 = vmul.f32 %v1788, %v1802
    %v1806 = vlaneseq
    %v1807 = vshrl.u32 %v1806, 7
    %v1808 = vsub.s32 0, %v1807
    %v1809 = vrot.slane %v1776, %v1808
    %v1811 = vmul.f32 %v1803, %v1809
    %v1812 = vmul.f32 %v1804, %v1809
    %v1814 = vlaneseq
    %v1815 = vshrl.u32 %v1814, 7
    %v1816 = vsub.s32 0, %v1815
    %v1817 = vrot.slane %v1777, %v1816
    %v1819 = vadd.f32 %v1811, %v1817
    %v1820 = vadd.f32 %v1812, %v1817
    %v1821 = vld [vmem:[%s11] sm:$0xff]
    %v1822 = vld [vmem:[%s11 + $0x8] sm:$0xff]
    %v1823 = vld [vmem:[%s11 + $0x10] sm:$0xff]
    %v1824 = vld [vmem:[%s11 + $0x18] sm:$0xff]
    %v1825 = vld [vmem:[%s11 + $0x20] sm:$0xff]
    %v1826 = vld [vmem:[%s11 + $0x28] sm:$0xff]
    %v1827 = vld [vmem:[%s11 + $0x30] sm:$0xff]
    %v1828 = vld [vmem:[%s11 + $0x38] sm:$0xff]
    %v1829 = vld [vmem:[%s11 + $0x40] sm:$0xff]
    %v1830 = vld [vmem:[%s11 + $0x48] sm:$0xff]
    %v1831 = vld [vmem:[%s11 + $0x50] sm:$0xff]
    %v1832 = vld [vmem:[%s11 + $0x58] sm:$0xff]
    %v1833 = vld [vmem:[%s11 + $0x60] sm:$0xff]
    %v1834 = vld [vmem:[%s11 + $0x68] sm:$0xff]
    %v1835 = vld [vmem:[%s11 + $0x70] sm:$0xff]
    %v1836 = vld [vmem:[%s11 + $0x78] sm:$0xff]
    %v1837 = vld [vmem:[%s12] sm:$0x3]
    %v1839 = vlaneseq
    %v1840 = vshrl.u32 %v1839, 7
    %v1841 = vsub.s32 0, %v1840
    %v1842 = vrot.slane %v1837, %v1841
    %v1843 = vlaneseq
    %v1844 = vshrl.u32 %v1843, 7
    %v1845 = vsub.s32 1, %v1844
    %v1846 = vrot.slane %v1837, %v1845
    %v1850 = vsel %vm193, %v1819, 0
    %v1853 = vsel %vm193, %v1820, 0
    %1855 = vmatprep.subr.mxu0 %v1822
    %1856 = vmatpush1.msra.mxu0 %v1821
    %1857 = vmatprep.subr.mxu0 %v1824
    %1858 = vmatpush1.msra.mxu0 %v1823
    %1859 = vmatprep.subr.mxu0 %v1826
    %1860 = vmatpush1.msra.mxu0 %v1825
    %1861 = vmatprep.subr.mxu0 %v1828
    %1862 = vmatpush1.msra.mxu0 %v1827
    %1863 = vmatprep.subr.mxu0 %v1830
    %1864 = vmatpush1.msra.mxu0 %v1829
    %1865 = vmatprep.subr.mxu0 %v1832
    %1866 = vmatpush1.msra.mxu0 %v1831
    %1867 = vmatprep.subr.mxu0 %v1834
    %1868 = vmatpush1.msra.mxu0 %v1833
    %1869 = vmatprep.subr.mxu0 %v1836
    %1870 = vmatpush1.msra.mxu0 %v1835
    %1871 = vmatprep.subr.mxu0 0.0
    %1872 = vmatpush1.msra.mxu0 0.0
    %1873 = vmatprep.subr.mxu0 0.0
    %1874 = vmatpush1.msra.mxu0 0.0
    %1875 = vmatprep.subr.mxu0 0.0
    %1876 = vmatpush1.msra.mxu0 0.0
    %1877 = vmatprep.subr.mxu0 0.0
    %1878 = vmatpush1.msra.mxu0 0.0
    %1879 = vmatprep.subr.mxu0 0.0
    %1880 = vmatpush1.msra.mxu0 0.0
    %1881 = vmatprep.subr.mxu0 0.0
    %1882 = vmatpush1.msra.mxu0 0.0
    %1883 = vmatprep.subr.mxu0 0.0
    %1884 = vmatpush1.msra.mxu0 0.0
    %1885 = vmatprep.subr.mxu0 0.0
    %1886 = vmatpush1.msra.mxu0 0.0
    %1887 = vmatprep.subr.mxu0 0.0
    %1888 = vmatpush1.msra.mxu0 0.0
    %1889 = vmatprep.subr.mxu0 0.0
    %1890 = vmatpush1.msra.mxu0 0.0
    %1891 = vmatprep.subr.mxu0 0.0
    %1892 = vmatpush1.msra.mxu0 0.0
    %1893 = vmatprep.subr.mxu0 0.0
    %1894 = vmatpush1.msra.mxu0 0.0
    %1895 = vmatprep.subr.mxu0 0.0
    %1896 = vmatpush1.msra.mxu0 0.0
    %1897 = vmatprep.subr.mxu0 0.0
    %1898 = vmatpush1.msra.mxu0 0.0
    %1899 = vmatprep.subr.mxu0 0.0
    %1900 = vmatpush1.msra.mxu0 0.0
    %1901 = vmatprep.subr.mxu0 0.0
    %1902 = vmatpush1.msra.mxu0 0.0
    %1903 = vmatprep.subr.mxu0 0.0
    %1904 = vmatpush1.msra.mxu0 0.0
    %1905 = vmatprep.subr.mxu0 0.0
    %1906 = vmatpush1.msra.mxu0 0.0
    %1907 = vmatprep.subr.mxu0 0.0
    %1908 = vmatpush1.msra.mxu0 0.0
    %1909 = vmatprep.subr.mxu0 0.0
    %1910 = vmatpush1.msra.mxu0 0.0
    %1911 = vmatprep.subr.mxu0 0.0
    %1912 = vmatpush1.msra.mxu0 0.0
    %1913 = vmatprep.subr.mxu0 0.0
    %1914 = vmatpush1.msra.mxu0 0.0
    %1915 = vmatprep.subr.mxu0 0.0
    %1916 = vmatpush1.msra.mxu0 0.0
    %1917 = vmatprep.subr.mxu0 0.0
    %1918 = vmatpush1.msra.mxu0 0.0
    %1919 = vmatprep.mubr.f32.mxu0 0.0
    %1920 = vmatmul.mubr.f32.gmra.mrb[0].mxu0 %v1850
    %v1921 = vpop.f32.mrb[0].mxu0
    %v1922 = vadd.f32 %v1842, %v1921
    %v1923 = vpop.f32.mrb[0].mxu0
    %v1924 = vadd.f32 %v1846, %v1923
    %1925 = vmatprep.mubr.f32.mxu0 0.0
    %1926 = vmatmul.mubr.f32.gmra.mrb[0].mxu0 %v1853
    %v1927 = vpop.f32.mrb[0].mxu0
    %v1928 = vadd.f32 %v1842, %v1927
    %v1929 = vpop.f32.mrb[0].mxu0
    %v1930 = vadd.f32 %v1846, %v1929
    %1931 = vdwg.mxu0
    %v1932 = vmax.f32 %v1922, 0.0
    %v1933 = vmax.f32 %v1924, 0.0
    %v1934 = vmax.f32 %v1928, 0.0
    %v1935 = vmax.f32 %v1930, 0.0
    %v1936 = vld [vmem:[%s13] sm:$0xff]
    %v1937 = vld [vmem:[%s13 + $0x8] sm:$0xff]
    %v1938 = vld [vmem:[%s13 + $0x10] sm:$0xff]
    %v1939 = vld [vmem:[%s13 + $0x18] sm:$0xff]
    %v1940 = vld [vmem:[%s13 + $0x20] sm:$0xff]
    %v1941 = vld [vmem:[%s13 + $0x28] sm:$0xff]
    %v1942 = vld [vmem:[%s13 + $0x30] sm:$0xff]
    %v1943 = vld [vmem:[%s13 + $0x38] sm:$0xff]
    %v1944 = vld [vmem:[%s13 + $0x40] sm:$0xff]
    %v1945 = vld [vmem:[%s13 + $0x48] sm:$0xff]
    %v1946 = vld [vmem:[%s13 + $0x50] sm:$0xff]
    %v1947 = vld [vmem:[%s13 + $0x58] sm:$0xff]
    %v1948 = vld [vmem:[%s13 + $0x60] sm:$0xff]
    %v1949 = vld [vmem:[%s13 + $0x68] sm:$0xff]
    %v1950 = vld [vmem:[%s13 + $0x70] sm:$0xff]
    %v1951 = vld [vmem:[%s13 + $0x78] sm:$0xff]
    %v1952 = vld [vmem:[%s13 + $0x80] sm:$0xff]
    %v1953 = vld [vmem:[%s13 + $0x88] sm:$0xff]
    %v1954 = vld [vmem:[%s13 + $0x90] sm:$0xff]
    %v1955 = vld [vmem:[%s13 + $0x98] sm:$0xff]
    %v1956 = vld [vmem:[%s13 + $0xa0] sm:$0xff]
    %v1957 = vld [vmem:[%s13 + $0xa8] sm:$0xff]
    %v1958 = vld [vmem:[%s13 + $0xb0] sm:$0xff]
    %v1959 = vld [vmem:[%s13 + $0xb8] sm:$0xff]
    %v1960 = vld [vmem:[%s13 + $0xc0] sm:$0xff]
    %v1961 = vld [vmem:[%s13 + $0xc8] sm:$0xff]
    %v1962 = vld [vmem:[%s13 + $0xd0] sm:$0xff]
    %v1963 = vld [vmem:[%s13 + $0xd8] sm:$0xff]
    %v1964 = vld [vmem:[%s13 + $0xe0] sm:$0xff]
    %v1965 = vld [vmem:[%s13 + $0xe8] sm:$0xff]
    %v1966 = vld [vmem:[%s13 + $0xf0] sm:$0xff]
    %v1967 = vld [vmem:[%s13 + $0xf8] sm:$0xff]
    %v1968 = vld [vmem:[%s14] sm:$0x1]
    %v1970 = vlaneseq
    %v1971 = vshrl.u32 %v1970, 7
    %v1972 = vsub.s32 0, %v1971
    %v1973 = vrot.slane %v1968, %v1972
    %1975 = vmatprep.subr.mxu0 0.0
    %1976 = vmatpush1.msra.mxu0 %v1936
    %1977 = vmatprep.subr.mxu0 0.0
    %1978 = vmatpush1.msra.mxu0 %v1937
    %1979 = vmatprep.subr.mxu0 0.0
    %1980 = vmatpush1.msra.mxu0 %v1938
    %1981 = vmatprep.subr.mxu0 0.0
    %1982 = vmatpush1.msra.mxu0 %v1939
    %1983 = vmatprep.subr.mxu0 0.0
    %1984 = vmatpush1.msra.mxu0 %v1940
    %1985 = vmatprep.subr.mxu0 0.0
    %1986 = vmatpush1.msra.mxu0 %v1941
    %1987 = vmatprep.subr.mxu0 0.0
    %1988 = vmatpush1.msra.mxu0 %v1942
    %1989 = vmatprep.subr.mxu0 0.0
    %1990 = vmatpush1.msra.mxu0 %v1943
    %1991 = vmatprep.subr.mxu0 0.0
    %1992 = vmatpush1.msra.mxu0 %v1944
    %1993 = vmatprep.subr.mxu0 0.0
    %1994 = vmatpush1.msra.mxu0 %v1945
    %1995 = vmatprep.subr.mxu0 0.0
    %1996 = vmatpush1.msra.mxu0 %v1946
    %1997 = vmatprep.subr.mxu0 0.0
    %1998 = vmatpush1.msra.mxu0 %v1947
    %1999 = vmatprep.subr.mxu0 0.0
    %2000 = vmatpush1.msra.mxu0 %v1948
    %2001 = vmatprep.subr.mxu0 0.0
    %2002 = vmatpush1.msra.mxu0 %v1949
    %2003 = vmatprep.subr.mxu0 0.0
    %2004 = vmatpush1.msra.mxu0 %v1950
    %2005 = vmatprep.subr.mxu0 0.0
    %2006 = vmatpush1.msra.mxu0 %v1951
    %2007 = vmatprep.subr.mxu0 0.0
    %2008 = vmatpush1.msra.mxu0 %v1952
    %2009 = vmatprep.subr.mxu0 0.0
    %2010 = vmatpush1.msra.mxu0 %v1953
    %2011 = vmatprep.subr.mxu0 0.0
    %2012 = vmatpush1.msra.mxu0 %v1954
    %2013 = vmatprep.subr.mxu0 0.0
    %2014 = vmatpush1.msra.mxu0 %v1955
    %2015 = vmatprep.subr.mxu0 0.0
    %2016 = vmatpush1.msra.mxu0 %v1956
    %2017 = vmatprep.subr.mxu0 0.0
    %2018 = vmatpush1.msra.mxu0 %v1957
    %2019 = vmatprep.subr.mxu0 0.0
    %2020 = vmatpush1.msra.mxu0 %v1958
    %2021 = vmatprep.subr.mxu0 0.0
    %2022 = vmatpush1.msra.mxu0 %v1959
    %2023 = vmatprep.subr.mxu0 0.0
    %2024 = vmatpush1.msra.mxu0 %v1960
    %2025 = vmatprep.subr.mxu0 0.0
    %2026 = vmatpush1.msra.mxu0 %v1961
    %2027 = vmatprep.subr.mxu0 0.0
    %2028 = vmatpush1.msra.mxu0 %v1962
    %2029 = vmatprep.subr.mxu0 0.0
    %2030 = vmatpush1.msra.mxu0 %v1963
    %2031 = vmatprep.subr.mxu0 0.0
    %2032 = vmatpush1.msra.mxu0 %v1964
    %2033 = vmatprep.subr.mxu0 0.0
    %2034 = vmatpush1.msra.mxu0 %v1965
    %2035 = vmatprep.subr.mxu0 0.0
    %2036 = vmatpush1.msra.mxu0 %v1966
    %2037 = vmatprep.subr.mxu0 0.0
    %2038 = vmatpush1.msra.mxu0 %v1967
    %2039 = vmatprep.mubr.f32.mxu0 %v1933
    %2040 = vmatmul.mubr.f32.gmra.mrb[0].mxu0 %v1932
    %v2041 = vpop.f32.mrb[0].mxu0
    %v2042 = vadd.f32 %v1973, %v2041
    %v2043 = vpop.f32.mrb[0].mxu0
    %2044 = vmatprep.mubr.f32.mxu0 %v1935
    %2045 = vmatmul.mubr.f32.gmra.mrb[0].mxu0 %v1934
    %v2046 = vpop.f32.mrb[0].mxu0
    %v2047 = vadd.f32 %v1973, %v2046
    %v2048 = vpop.f32.mrb[0].mxu0
    %2049 = vdwg.mxu0
    %v2050 = vadd.f32 %v1819, %v2042
    %v2051 = vadd.f32 %v1820, %v2047
    %v2052 = vld [vmem:[%s9] sm:$0x1]
    %v2053 = vld [vmem:[%s10] sm:$0x1]
    %v2054 = vsel %vm193, %v2050, 0.0
    %2055 = vadd.xlane.f32.xlu0 %v2054
    %v2056 = vpop.xlane.xlu0 %2055
    %v2057 = vsel %vm193, %v2051, 0.0
    %2058 = vadd.xlane.f32.xlu0 %v2057
    %v2059 = vpop.xlane.xlu0 %2058
    %v2060 = vmul.f32 %v2056, %v1784
    %v2061 = vmul.f32 %v2059, %v1784
    %v2062 = vsub.f32 %v2050, %v2060
    %v2063 = vsub.f32 %v2051, %v2061
    %v2064 = vmul.f32 %v2062, %v2062
    %v2065 = vmul.f32 %v2063, %v2063
    %v2066 = vsel %vm193, %v2064, 0.0
    %2067 = vadd.xlane.f32.xlu0 %v2066
    %v2068 = vpop.xlane.xlu0 %2067
    %v2069 = vsel %vm193, %v2065, 0.0
    %2070 = vadd.xlane.f32.xlu0 %v2069
    %v2071 = vpop.xlane.xlu0 %2070
    %v2072 = vmul.f32 %v2068, %v1784
    %v2073 = vmul.f32 %v2071, %v1784
    %v2074 = vadd.f32 %v2072, 1e-05
    %v2075 = vadd.f32 %v2073, 1e-05
    %v2076 = vrsqrt.pop %v2074
    %v2077 = vrsqrt.pop %v2075
    %v2078 = vmul.f32 %v2062, %v2076
    %v2079 = vmul.f32 %v2063, %v2077
    %v2081 = vlaneseq
    %v2082 = vshrl.u32 %v2081, 7
    %v2083 = vsub.s32 0, %v2082
    %v2084 = vrot.slane %v2052, %v2083
    %v2086 = vmul.f32 %v2078, %v2084
    %v2087 = vmul.f32 %v2079, %v2084
    %v2089 = vlaneseq
    %v2090 = vshrl.u32 %v2089, 7
    %v2091 = vsub.s32 0, %v2090
    %v2092 = vrot.slane %v2053, %v2091
    %v2094 = vadd.f32 %v2086, %v2092
    %v2095 = vadd.f32 %v2087, %v2092
    %s2096 = scalar_lea.vmem %s3, 128
    %v2097 = vld [vmem:[%s2096] sm:$0xff]
    %v2098 = vld [vmem:[%s2096 + $0x8] sm:$0xff]
    %v2099 = vld [vmem:[%s2096 + $0x10] sm:$0xff]
    %v2100 = vld [vmem:[%s2096 + $0x18] sm:$0xff]
    %v2101 = vld [vmem:[%s2096 + $0x20] sm:$0xff]
    %v2102 = vld [vmem:[%s2096 + $0x28] sm:$0xff]
    %v2103 = vld [vmem:[%s2096 + $0x30] sm:$0xff]
    %v2104 = vld [vmem:[%s2096 + $0x38] sm:$0xff]
    %v2105 = vld [vmem:[%s2096 + $0x40] sm:$0xff]
    %v2106 = vld [vmem:[%s2096 + $0x48] sm:$0xff]
    %v2107 = vld [vmem:[%s2096 + $0x50] sm:$0xff]
    %v2108 = vld [vmem:[%s2096 + $0x58] sm:$0xff]
    %v2109 = vld [vmem:[%s2096 + $0x60] sm:$0xff]
    %v2110 = vld [vmem:[%s2096 + $0x68] sm:$0xff]
    %v2111 = vld [vmem:[%s2096 + $0x70] sm:$0xff]
    %v2112 = vld [vmem:[%s2096 + $0x78] sm:$0xff]
    %s2113 = scalar_lea.vmem %s4, 2
    %v2114 = vld [vmem:[%s2113] sm:$0x3]
    %v2116 = vlaneseq
    %v2117 = vshrl.u32 %v2116, 7
    %v2118 = vsub.s32 0, %v2117
    %v2119 = vrot.slane %v2114, %v2118
    %v2120 = vlaneseq
    %v2121 = vshrl.u32 %v2120, 7
    %v2122 = vsub.s32 1, %v2121
    %v2123 = vrot.slane %v2114, %v2122
    %v2127 = vsel %vm193, %v2094, 0
    %v2130 = vsel %vm193, %v2095, 0
    %2132 = vmatprep.subr.mxu0 %v2098
    %2133 = vmatpush1.msra.mxu0 %v2097
    %2134 = vmatprep.subr.mxu0 %v2100
    %2135 = vmatpush1.msra.mxu0 %v2099
    %2136 = vmatprep.subr.mxu0 %v2102
    %2137 = vmatpush1.msra.mxu0 %v2101
    %2138 = vmatprep.subr.mxu0 %v2104
    %2139 = vmatpush1.msra.mxu0 %v2103
    %2140 = vmatprep.subr.mxu0 %v2106
    %2141 = vmatpush1.msra.mxu0 %v2105
    %2142 = vmatprep.subr.mxu0 %v2108
    %2143 = vmatpush1.msra.mxu0 %v2107
    %2144 = vmatprep.subr.mxu0 %v2110
    %2145 = vmatpush1.msra.mxu0 %v2109
    %2146 = vmatprep.subr.mxu0 %v2112
    %2147 = vmatpush1.msra.mxu0 %v2111
    %2148 = vmatprep.subr.mxu0 0.0
    %2149 = vmatpush1.msra.mxu0 0.0
    %2150 = vmatprep.subr.mxu0 0.0
    %2151 = vmatpush1.msra.mxu0 0.0
    %2152 = vmatprep.subr.mxu0 0.0
    %2153 = vmatpush1.msra.mxu0 0.0
    %2154 = vmatprep.subr.mxu0 0.0
    %2155 = vmatpush1.msra.mxu0 0.0
    %2156 = vmatprep.subr.mxu0 0.0
    %2157 = vmatpush1.msra.mxu0 0.0
    %2158 = vmatprep.subr.mxu0 0.0
    %2159 = vmatpush1.msra.mxu0 0.0
    %2160 = vmatprep.subr.mxu0 0.0
    %2161 = vmatpush1.msra.mxu0 0.0
    %2162 = vmatprep.subr.mxu0 0.0
    %2163 = vmatpush1.msra.mxu0 0.0
    %2164 = vmatprep.subr.mxu0 0.0
    %2165 = vmatpush1.msra.mxu0 0.0
    %2166 = vmatprep.subr.mxu0 0.0
    %2167 = vmatpush1.msra.mxu0 0.0
    %2168 = vmatprep.subr.mxu0 0.0
    %2169 = vmatpush1.msra.mxu0 0.0
    %2170 = vmatprep.subr.mxu0 0.0
    %2171 = vmatpush1.msra.mxu0 0.0
    %2172 = vmatprep.subr.mxu0 0.0
    %2173 = vmatpush1.msra.mxu0 0.0
    %2174 = vmatprep.subr.mxu0 0.0
    %2175 = vmatpush1.msra.mxu0 0.0
    %2176 = vmatprep.subr.mxu0 0.0
    %2177 = vmatpush1.msra.mxu0 0.0
    %2178 = vmatprep.subr.mxu0 0.0
    %2179 = vmatpush1.msra.mxu0 0.0
    %2180 = vmatprep.subr.mxu0 0.0
    %2181 = vmatpush1.msra.mxu0 0.0
    %2182 = vmatprep.subr.mxu0 0.0
    %2183 = vmatpush1.msra.mxu0 0.0
    %2184 = vmatprep.subr.mxu0 0.0
    %2185 = vmatpush1.msra.mxu0 0.0
    %2186 = vmatprep.subr.mxu0 0.0
    %2187 = vmatpush1.msra.mxu0 0.0
    %2188 = vmatprep.subr.mxu0 0.0
    %2189 = vmatpush1.msra.mxu0 0.0
    %2190 = vmatprep.subr.mxu0 0.0
    %2191 = vmatpush1.msra.mxu0 0.0
    %2192 = vmatprep.subr.mxu0 0.0
    %2193 = vmatpush1.msra.mxu0 0.0
    %2194 = vmatprep.subr.mxu0 0.0
    %2195 = vmatpush1.msra.mxu0 0.0
    %2196 = vmatprep.mubr.f32.mxu0 0.0
    %2197 = vmatmul.mubr.f32.gmra.mrb[0].mxu0 %v2127
    %v2198 = vpop.f32.mrb[0].mxu0
    %v2199 = vadd.f32 %v2119, %v2198
    %v2200 = vpop.f32.mrb[0].mxu0
    %v2201 = vadd.f32 %v2123, %v2200
    %2202 = vmatprep.mubr.f32.mxu0 0.0
    %2203 = vmatmul.mubr.f32.gmra.mrb[0].mxu0 %v2130
    %v2204 = vpop.f32.mrb[0].mxu0
    %v2205 = vadd.f32 %v2119, %v2204
    %v2206 = vpop.f32.mrb[0].mxu0
    %v2207 = vadd.f32 %v2123, %v2206
    %2208 = vdwg.mxu0
    %2210 = vrot.lane.b32.xlu0 %v2199, 64
    %v2211 = vpop.permute.xlu0 %2210
    %v2212 = vsel %vm280, %v2199, 0
    %v2214 = vsel %vm280, %v2211, 0
    %2216 = vmatprep.subr.mxu0 0.0
    %2217 = vmatpush1.xpose.msra.mxu0 %v2214
    %2218 = vmatprep.subr.mxu0 0.0
    %2219 = vmatpush1.xpose.msra.mxu0 0.0
    %2220 = vmatprep.subr.mxu0 0.0
    %2221 = vmatpush1.xpose.msra.mxu0 0.0
    %2222 = vmatprep.subr.mxu0 0.0
    %2223 = vmatpush1.xpose.msra.mxu0 0.0
    %2224 = vmatprep.subr.mxu0 0.0
    %2225 = vmatpush1.xpose.msra.mxu0 0.0
    %2226 = vmatprep.subr.mxu0 0.0
    %2227 = vmatpush1.xpose.msra.mxu0 0.0
    %2228 = vmatprep.subr.mxu0 0.0
    %2229 = vmatpush1.xpose.msra.mxu0 0.0
    %2230 = vmatprep.subr.mxu0 0.0
    %2231 = vmatpush1.xpose.msra.mxu0 0.0
    %2232 = vmatprep.subr.mxu0 0.0
    %2233 = vmatpush1.xpose.msra.mxu0 0.0
    %2234 = vmatprep.subr.mxu0 0.0
    %2235 = vmatpush1.xpose.msra.mxu0 0.0
    %2236 = vmatprep.subr.mxu0 0.0
    %2237 = vmatpush1.xpose.msra.mxu0 0.0
    %2238 = vmatprep.subr.mxu0 0.0
    %2239 = vmatpush1.xpose.msra.mxu0 0.0
    %2240 = vmatprep.subr.mxu0 0.0
    %2241 = vmatpush1.xpose.msra.mxu0 0.0
    %2242 = vmatprep.subr.mxu0 0.0
    %2243 = vmatpush1.xpose.msra.mxu0 0.0
    %2244 = vmatprep.subr.mxu0 0.0
    %2245 = vmatpush1.xpose.msra.mxu0 0.0
    %2246 = vmatprep.subr.mxu0 0.0
    %2247 = vmatpush1.xpose.msra.mxu0 0.0
    %2248 = vmatprep.subr.mxu0 0.0
    %2249 = vmatpush1.xpose.msra.mxu0 0.0
    %2250 = vmatprep.subr.mxu0 0.0
    %2251 = vmatpush1.xpose.msra.mxu0 0.0
    %2252 = vmatprep.subr.mxu0 0.0
    %2253 = vmatpush1.xpose.msra.mxu0 0.0
    %2254 = vmatprep.subr.mxu0 0.0
    %2255 = vmatpush1.xpose.msra.mxu0 0.0
    %2256 = vmatprep.subr.mxu0 0.0
    %2257 = vmatpush1.xpose.msra.mxu0 0.0
    %2258 = vmatprep.subr.mxu0 0.0
    %2259 = vmatpush1.xpose.msra.mxu0 0.0
    %2260 = vmatprep.subr.mxu0 0.0
    %2261 = vmatpush1.xpose.msra.mxu0 0.0
    %2262 = vmatprep.subr.mxu0 0.0
    %2263 = vmatpush1.xpose.msra.mxu0 0.0
    %2264 = vmatprep.subr.mxu0 0.0
    %2265 = vmatpush1.xpose.msra.mxu0 0.0
    %2266 = vmatprep.subr.mxu0 0.0
    %2267 = vmatpush1.xpose.msra.mxu0 0.0
    %2268 = vmatprep.subr.mxu0 0.0
    %2269 = vmatpush1.xpose.msra.mxu0 0.0
    %2270 = vmatprep.subr.mxu0 0.0
    %2271 = vmatpush1.xpose.msra.mxu0 0.0
    %2272 = vmatprep.subr.mxu0 0.0
    %2273 = vmatpush1.xpose.msra.mxu0 0.0
    %2274 = vmatprep.subr.mxu0 0.0
    %2275 = vmatpush1.xpose.msra.mxu0 0.0
    %2276 = vmatprep.subr.mxu0 0.0
    %2277 = vmatpush1.xpose.msra.mxu0 0.0
    %2278 = vmatprep.subr.mxu0 0.0
    %2279 = vmatpush1.xpose.msra.mxu0 0.0
    %2280 = vmatprep.mubr.f32.mxu0 0.0
    %2281 = vmatmul.mubr.f32.gmra.mrb[0].mxu0 %v2212
    %v2282 = vpop.f32.mrb[0].mxu0
    %v2283 = vadd.f32 0.0, %v2282
    %v2284 = vpop.f32.mrb[0].mxu0
    %2285 = vdwg.mxu0
    %2287 = vrot.lane.b32.xlu0 %v2205, 64
    %v2288 = vpop.permute.xlu0 %2287
    %v2289 = vsel %vm280, %v2205, 0
    %v2291 = vsel %vm280, %v2288, 0
    %2293 = vmatprep.subr.mxu0 0.0
    %2294 = vmatpush1.xpose.msra.mxu0 %v2291
    %2295 = vmatprep.subr.mxu0 0.0
    %2296 = vmatpush1.xpose.msra.mxu0 0.0
    %2297 = vmatprep.subr.mxu0 0.0
    %2298 = vmatpush1.xpose.msra.mxu0 0.0
    %2299 = vmatprep.subr.mxu0 0.0
    %2300 = vmatpush1.xpose.msra.mxu0 0.0
    %2301 = vmatprep.subr.mxu0 0.0
    %2302 = vmatpush1.xpose.msra.mxu0 0.0
    %2303 = vmatprep.subr.mxu0 0.0
    %2304 = vmatpush1.xpose.msra.mxu0 0.0
    %2305 = vmatprep.subr.mxu0 0.0
    %2306 = vmatpush1.xpose.msra.mxu0 0.0
    %2307 = vmatprep.subr.mxu0 0.0
    %2308 = vmatpush1.xpose.msra.mxu0 0.0
    %2309 = vmatprep.subr.mxu0 0.0
    %2310 = vmatpush1.xpose.msra.mxu0 0.0
    %2311 = vmatprep.subr.mxu0 0.0
    %2312 = vmatpush1.xpose.msra.mxu0 0.0
    %2313 = vmatprep.subr.mxu0 0.0
    %2314 = vmatpush1.xpose.msra.mxu0 0.0
    %2315 = vmatprep.subr.mxu0 0.0
    %2316 = vmatpush1.xpose.msra.mxu0 0.0
    %2317 = vmatprep.subr.mxu0 0.0
    %2318 = vmatpush1.xpose.msra.mxu0 0.0
    %2319 = vmatprep.subr.mxu0 0.0
    %2320 = vmatpush1.xpose.msra.mxu0 0.0
    %2321 = vmatprep.subr.mxu0 0.0
    %2322 = vmatpush1.xpose.msra.mxu0 0.0
    %2323 = vmatprep.subr.mxu0 0.0
    %2324 = vmatpush1.xpose.msra.mxu0 0.0
    %2325 = vmatprep.subr.mxu0 0.0
    %2326 = vmatpush1.xpose.msra.mxu0 0.0
    %2327 = vmatprep.subr.mxu0 0.0
    %2328 = vmatpush1.xpose.msra.mxu0 0.0
    %2329 = vmatprep.subr.mxu0 0.0
    %2330 = vmatpush1.xpose.msra.mxu0 0.0
    %2331 = vmatprep.subr.mxu0 0.0
    %2332 = vmatpush1.xpose.msra.mxu0 0.0
    %2333 = vmatprep.subr.mxu0 0.0
    %2334 = vmatpush1.xpose.msra.mxu0 0.0
    %2335 = vmatprep.subr.mxu0 0.0
    %2336 = vmatpush1.xpose.msra.mxu0 0.0
    %2337 = vmatprep.subr.mxu0 0.0
    %2338 = vmatpush1.xpose.msra.mxu0 0.0
    %2339 = vmatprep.subr.mxu0 0.0
    %2340 = vmatpush1.xpose.msra.mxu0 0.0
    %2341 = vmatprep.subr.mxu0 0.0
    %2342 = vmatpush1.xpose.msra.mxu0 0.0
    %2343 = vmatprep.subr.mxu0 0.0
    %2344 = vmatpush1.xpose.msra.mxu0 0.0
    %2345 = vmatprep.subr.mxu0 0.0
    %2346 = vmatpush1.xpose.msra.mxu0 0.0
    %2347 = vmatprep.subr.mxu0 0.0
    %2348 = vmatpush1.xpose.msra.mxu0 0.0
    %2349 = vmatprep.subr.mxu0 0.0
    %2350 = vmatpush1.xpose.msra.mxu0 0.0
    %2351 = vmatprep.subr.mxu0 0.0
    %2352 = vmatpush1.xpose.msra.mxu0 0.0
    %2353 = vmatprep.subr.mxu0 0.0
    %2354 = vmatpush1.xpose.msra.mxu0 0.0
    %2355 = vmatprep.subr.mxu0 0.0
    %2356 = vmatpush1.xpose.msra.mxu0 0.0
    %2357 = vmatprep.mubr.f32.mxu0 0.0
    %2358 = vmatmul.mubr.f32.gmra.mrb[0].mxu0 %v2289
    %v2359 = vpop.f32.mrb[0].mxu0
    %v2360 = vadd.f32 0.0, %v2359
    %v2361 = vpop.f32.mrb[0].mxu0
    %2362 = vdwg.mxu0
    %v2363 = vmul.f32 %v2283, 0.25
    %v2364 = vmul.f32 %v2360, 0.25
    %v2365 = vadd.f32 %v2363, %v462
    %v2366 = vadd.f32 %v2364, %v468
    %v2367 = vsel %vm473, %v2365, -inf
    %2368 = vmax.xlane.f32.xlu0 %v2367
    %v2369 = vpop.xlane.xlu0 %2368
    %v2370 = vsel %vm473, %v2366, -inf
    %2371 = vmax.xlane.f32.xlu0 %v2370
    %v2372 = vpop.xlane.xlu0 %2371
    %v2373 = vsub.f32 %v2365, %v2369
    %v2374 = vsub.f32 %v2366, %v2372
    %v2375 = vmul.f32 %v2373, 1.442695
    %v2376 = vpow.pop %v2375
    %v2377 = vmul.f32 %v2374, 1.442695
    %v2378 = vpow.pop %v2377
    %v2379 = vsel %vm473, %v2376, 0.0
    %2380 = vadd.xlane.f32.xlu0 %v2379
    %v2381 = vpop.xlane.xlu0 %2380
    %v2382 = vsel %vm473, %v2378, 0.0
    %2383 = vadd.xlane.f32.xlu0 %v2382
    %v2384 = vpop.xlane.xlu0 %2383
    %v2385 = vrcp.pop %v2381
    %v2386 = vmul.f32 %v2376, %v2385
    %v2387 = vrcp.pop %v2384
    %v2388 = vmul.f32 %v2378, %v2387
    %v2390 = vsel %vm473, %v2386, 0
    %2392 = vmatprep.subr.mxu0 0.0
    %2393 = vmatpush1.msra.mxu0 %v2201
    %2394 = vmatprep.subr.mxu0 0.0
    %2395 = vmatpush1.msra.mxu0 0.0
    %2396 = vmatprep.subr.mxu0 0.0
    %2397 = vmatpush1.msra.mxu0 0.0
    %2398 = vmatprep.subr.mxu0 0.0
    %2399 = vmatpush1.msra.mxu0 0.0
    %2400 = vmatprep.subr.mxu0 0.0
    %2401 = vmatpush1.msra.mxu0 0.0
    %2402 = vmatprep.subr.mxu0 0.0
    %2403 = vmatpush1.msra.mxu0 0.0
    %2404 = vmatprep.subr.mxu0 0.0
    %2405 = vmatpush1.msra.mxu0 0.0
    %2406 = vmatprep.subr.mxu0 0.0
    %2407 = vmatpush1.msra.mxu0 0.0
    %2408 = vmatprep.subr.mxu0 0.0
    %2409 = vmatpush1.msra.mxu0 0.0
    %2410 = vmatprep.subr.mxu0 0.0
    %2411 = vmatpush1.msra.mxu0 0.0
    %2412 = vmatprep.subr.mxu0 0.0
    %2413 = vmatpush1.msra.mxu0 0.0
    %2414 = vmatprep.subr.mxu0 0.0
    %2415 = vmatpush1.msra.mxu0 0.0
    %2416 = vmatprep.subr.mxu0 0.0
    %2417 = vmatpush1.msra.mxu0 0.0
    %2418 = vmatprep.subr.mxu0 0.0
    %2419 = vmatpush1.msra.mxu0 0.0
    %2420 = vmatprep.subr.mxu0 0.0
    %2421 = vmatpush1.msra.mxu0 0.0
    %2422 = vmatprep.subr.mxu0 0.0
    %2423 = vmatpush1.msra.mxu0 0.0
    %2424 = vmatprep.subr.mxu0 0.0
    %2425 = vmatpush1.msra.mxu0 0.0
    %2426 = vmatprep.subr.mxu0 0.0
    %2427 = vmatpush1.msra.mxu0 0.0
    %2428 = vmatprep.subr.mxu0 0.0
    %2429 = vmatpush1.msra.mxu0 0.0
    %2430 = vmatprep.subr.mxu0 0.0
    %2431 = vmatpush1.msra.mxu0 0.0
    %2432 = vmatprep.subr.mxu0 0.0
    %2433 = vmatpush1.msra.mxu0 0.0
    %2434 = vmatprep.subr.mxu0 0.0
    %2435 = vmatpush1.msra.mxu0 0.0
    %2436 = vmatprep.subr.mxu0 0.0
    %2437 = vmatpush1.msra.mxu0 0.0
    %2438 = vmatprep.subr.mxu0 0.0
    %2439 = vmatpush1.msra.mxu0 0.0
    %2440 = vmatprep.subr.mxu0 0.0
    %2441 = vmatpush1.msra.mxu0 0.0
    %2442 = vmatprep.subr.mxu0 0.0
    %2443 = vmatpush1.msra.mxu0 0.0
    %2444 = vmatprep.subr.mxu0 0.0
    %2445 = vmatpush1.msra.mxu0 0.0
    %2446 = vmatprep.subr.mxu0 0.0
    %2447 = vmatpush1.msra.mxu0 0.0
    %2448 = vmatprep.subr.mxu0 0.0
    %2449 = vmatpush1.msra.mxu0 0.0
    %2450 = vmatprep.subr.mxu0 0.0
    %2451 = vmatpush1.msra.mxu0 0.0
    %2452 = vmatprep.subr.mxu0 0.0
    %2453 = vmatpush1.msra.mxu0 0.0
    %2454 = vmatprep.subr.mxu0 0.0
    %2455 = vmatpush1.msra.mxu0 0.0
    %2456 = vmatprep.mubr.f32.mxu0 0.0
    %2457 = vmatmul.mubr.f32.gmra.mrb[0].mxu0 %v2390
    %v2458 = vpop.f32.mrb[0].mxu0
    %v2459 = vadd.f32 0.0, %v2458
    %v2460 = vpop.f32.mrb[0].mxu0
    %2461 = vdwg.mxu0
    %v2463 = vsel %vm473, %v2388, 0
    %2465 = vmatprep.subr.mxu0 0.0
    %2466 = vmatpush1.msra.mxu0 %v2207
    %2467 = vmatprep.subr.mxu0 0.0
    %2468 = vmatpush1.msra.mxu0 0.0
    %2469 = vmatprep.subr.mxu0 0.0
    %2470 = vmatpush1.msra.mxu0 0.0
    %2471 = vmatprep.subr.mxu0 0.0
    %2472 = vmatpush1.msra.mxu0 0.0
    %2473 = vmatprep.subr.mxu0 0.0
    %2474 = vmatpush1.msra.mxu0 0.0
    %2475 = vmatprep.subr.mxu0 0.0
    %2476 = vmatpush1.msra.mxu0 0.0
    %2477 = vmatprep.subr.mxu0 0.0
    %2478 = vmatpush1.msra.mxu0 0.0
    %2479 = vmatprep.subr.mxu0 0.0
    %2480 = vmatpush1.msra.mxu0 0.0
    %2481 = vmatprep.subr.mxu0 0.0
    %2482 = vmatpush1.msra.mxu0 0.0
    %2483 = vmatprep.subr.mxu0 0.0
    %2484 = vmatpush1.msra.mxu0 0.0
    %2485 = vmatprep.subr.mxu0 0.0
    %2486 = vmatpush1.msra.mxu0 0.0
    %2487 = vmatprep.subr.mxu0 0.0
    %2488 = vmatpush1.msra.mxu0 0.0
    %2489 = vmatprep.subr.mxu0 0.0
    %2490 = vmatpush1.msra.mxu0 0.0
    %2491 = vmatprep.subr.mxu0 0.0
    %2492 = vmatpush1.msra.mxu0 0.0
    %2493 = vmatprep.subr.mxu0 0.0
    %2494 = vmatpush1.msra.mxu0 0.0
    %2495 = vmatprep.subr.mxu0 0.0
    %2496 = vmatpush1.msra.mxu0 0.0
    %2497 = vmatprep.subr.mxu0 0.0
    %2498 = vmatpush1.msra.mxu0 0.0
    %2499 = vmatprep.subr.mxu0 0.0
    %2500 = vmatpush1.msra.mxu0 0.0
    %2501 = vmatprep.subr.mxu0 0.0
    %2502 = vmatpush1.msra.mxu0 0.0
    %2503 = vmatprep.subr.mxu0 0.0
    %2504 = vmatpush1.msra.mxu0 0.0
    %2505 = vmatprep.subr.mxu0 0.0
    %2506 = vmatpush1.msra.mxu0 0.0
    %2507 = vmatprep.subr.mxu0 0.0
    %2508 = vmatpush1.msra.mxu0 0.0
    %2509 = vmatprep.subr.mxu0 0.0
    %2510 = vmatpush1.msra.mxu0 0.0
    %2511 = vmatprep.subr.mxu0 0.0
    %2512 = vmatpush1.msra.mxu0 0.0
    %2513 = vmatprep.subr.mxu0 0.0
    %2514 = vmatpush1.msra.mxu0 0.0
    %2515 = vmatprep.subr.mxu0 0.0
    %2516 = vmatpush1.msra.mxu0 0.0
    %2517 = vmatprep.subr.mxu0 0.0
    %2518 = vmatpush1.msra.mxu0 0.0
    %2519 = vmatprep.subr.mxu0 0.0
    %2520 = vmatpush1.msra.mxu0 0.0
    %2521 = vmatprep.subr.mxu0 0.0
    %2522 = vmatpush1.msra.mxu0 0.0
    %2523 = vmatprep.subr.mxu0 0.0
    %2524 = vmatpush1.msra.mxu0 0.0
    %2525 = vmatprep.subr.mxu0 0.0
    %2526 = vmatpush1.msra.mxu0 0.0
    %2527 = vmatprep.subr.mxu0 0.0
    %2528 = vmatpush1.msra.mxu0 0.0
    %2529 = vmatprep.mubr.f32.mxu0 0.0
    %2530 = vmatmul.mubr.f32.gmra.mrb[0].mxu0 %v2463
    %v2531 = vpop.f32.mrb[0].mxu0
    %v2532 = vadd.f32 0.0, %v2531
    %v2533 = vpop.f32.mrb[0].mxu0
    %2534 = vdwg.mxu0
    %2535 = vrot.lane.b32.xlu0 %v2199, 112
    %v2536 = vpop.permute.xlu0 %2535
    %2537 = vrot.lane.b32.xlu0 %v2199, 48
    %v2538 = vpop.permute.xlu0 %2537
    %v2539 = vsel %vm280, %v2536, 0
    %v2541 = vsel %vm280, %v2538, 0
    %2543 = vmatprep.subr.mxu0 0.0
    %2544 = vmatpush1.xpose.msra.mxu0 %v2541
    %2545 = vmatprep.subr.mxu0 0.0
    %2546 = vmatpush1.xpose.msra.mxu0 0.0
    %2547 = vmatprep.subr.mxu0 0.0
    %2548 = vmatpush1.xpose.msra.mxu0 0.0
    %2549 = vmatprep.subr.mxu0 0.0
    %2550 = vmatpush1.xpose.msra.mxu0 0.0
    %2551 = vmatprep.subr.mxu0 0.0
    %2552 = vmatpush1.xpose.msra.mxu0 0.0
    %2553 = vmatprep.subr.mxu0 0.0
    %2554 = vmatpush1.xpose.msra.mxu0 0.0
    %2555 = vmatprep.subr.mxu0 0.0
    %2556 = vmatpush1.xpose.msra.mxu0 0.0
    %2557 = vmatprep.subr.mxu0 0.0
    %2558 = vmatpush1.xpose.msra.mxu0 0.0
    %2559 = vmatprep.subr.mxu0 0.0
    %2560 = vmatpush1.xpose.msra.mxu0 0.0
    %2561 = vmatprep.subr.mxu0 0.0
    %2562 = vmatpush1.xpose.msra.mxu0 0.0
    %2563 = vmatprep.subr.mxu0 0.0
    %2564 = vmatpush1.xpose.msra.mxu0 0.0
    %2565 = vmatprep.subr.mxu0 0.0
    %2566 = vmatpush1.xpose.msra.mxu0 0.0
    %2567 = vmatprep.subr.mxu0 0.0
    %2568 = vmatpush1.xpose.msra.mxu0 0.0
    %2569 = vmatprep.subr.mxu0 0.0
    %2570 = vmatpush1.xpose.msra.mxu0 0.0
    %2571 = vmatprep.subr.mxu0 0.0
    %2572 = vmatpush1.xpose.msra.mxu0 0.0
    %2573 = vmatprep.subr.mxu0 0.0
    %2574 = vmatpush1.xpose.msra.mxu0 0.0
    %2575 = vmatprep.subr.mxu0 0.0
    %2576 = vmatpush1.xpose.msra.mxu0 0.0
    %2577 = vmatprep.subr.mxu0 0.0
    %2578 = vmatpush1.xpose.msra.mxu0 0.0
    %2579 = vmatprep.subr.mxu0 0.0
    %2580 = vmatpush1.xpose.msra.mxu0 0.0
    %2581 = vmatprep.subr.mxu0 0.0
    %2582 = vmatpush1.xpose.msra.mxu0 0.0
    %2583 = vmatprep.subr.mxu0 0.0
    %2584 = vmatpush1.xpose.msra.mxu0 0.0
    %2585 = vmatprep.subr.mxu0 0.0
    %2586 = vmatpush1.xpose.msra.mxu0 0.0
    %2587 = vmatprep.subr.mxu0 0.0
    %2588 = vmatpush1.xpose.msra.mxu0 0.0
    %2589 = vmatprep.subr.mxu0 0.0
    %2590 = vmatpush1.xpose.msra.mxu0 0.0
    %2591 = vmatprep.subr.mxu0 0.0
    %2592 = vmatpush1.xpose.msra.mxu0 0.0
    %2593 = vmatprep.subr.mxu0 0.0
    %2594 = vmatpush1.xpose.msra.mxu0 0.0
    %2595 = vmatprep.subr.mxu0 0.0
    %2596 = vmatpush1.xpose.msra.mxu0 0.0
    %2597 = vmatprep.subr.mxu0 0.0
    %2598 = vmatpush1.xpose.msra.mxu0 0.0
    %2599 = vmatprep.subr.mxu0 0.0
    %2600 = vmatpush1.xpose.msra.mxu0 0.0
    %2601 = vmatprep.subr.mxu0 0.0
    %2602 = vmatpush1.xpose.msra.mxu0 0.0
    %2603 = vmatprep.subr.mxu0 0.0
    %2604 = vmatpush1.xpose.msra.mxu0 0.0
    %2605 = vmatprep.subr.mxu0 0.0
    %2606 = vmatpush1.xpose.msra.mxu0 0.0
    %2607 = vmatprep.mubr.f32.mxu0 0.0
    %2608 = vmatmul.mubr.f32.gmra.mrb[0].mxu0 %v2539
    %v2609 = vpop.f32.mrb[0].mxu0
    %v2610 = vadd.f32 0.0, %v2609
    %v2611 = vpop.f32.mrb[0].mxu0
    %2612 = vdwg.mxu0
    %2613 = vrot.lane.b32.xlu0 %v2205, 112
    %v2614 = vpop.permute.xlu0 %2613
    %2615 = vrot.lane.b32.xlu0 %v2205, 48
    %v2616 = vpop.permute.xlu0 %2615
    %v2617 = vsel %vm280, %v2614, 0
    %v2619 = vsel %vm280, %v2616, 0
    %2621 = vmatprep.subr.mxu0 0.0
    %2622 = vmatpush1.xpose.msra.mxu0 %v2619
    %2623 = vmatprep.subr.mxu0 0.0
    %2624 = vmatpush1.xpose.msra.mxu0 0.0
    %2625 = vmatprep.subr.mxu0 0.0
    %2626 = vmatpush1.xpose.msra.mxu0 0.0
    %2627 = vmatprep.subr.mxu0 0.0
    %2628 = vmatpush1.xpose.msra.mxu0 0.0
    %2629 = vmatprep.subr.mxu0 0.0
    %2630 = vmatpush1.xpose.msra.mxu0 0.0
    %2631 = vmatprep.subr.mxu0 0.0
    %2632 = vmatpush1.xpose.msra.mxu0 0.0
    %2633 = vmatprep.subr.mxu0 0.0
    %2634 = vmatpush1.xpose.msra.mxu0 0.0
    %2635 = vmatprep.subr.mxu0 0.0
    %2636 = vmatpush1.xpose.msra.mxu0 0.0
    %2637 = vmatprep.subr.mxu0 0.0
    %2638 = vmatpush1.xpose.msra.mxu0 0.0
    %2639 = vmatprep.subr.mxu0 0.0
    %2640 = vmatpush1.xpose.msra.mxu0 0.0
    %2641 = vmatprep.subr.mxu0 0.0
    %2642 = vmatpush1.xpose.msra.mxu0 0.0
    %2643 = vmatprep.subr.mxu0 0.0
    %2644 = vmatpush1.xpose.msra.mxu0 0.0
    %2645 = vmatprep.subr.mxu0 0.0
    %2646 = vmatpush1.xpose.msra.mxu0 0.0
    %2647 = vmatprep.subr.mxu0 0.0
    %2648 = vmatpush1.xpose.msra.mxu0 0.0
    %2649 = vmatprep.subr.mxu0 0.0
    %2650 = vmatpush1.xpose.msra.mxu0 0.0
    %2651 = vmatprep.subr.mxu0 0.0
    %2652 = vmatpush1.xpose.msra.mxu0 0.0
    %2653 = vmatprep.subr.mxu0 0.0
    %2654 = vmatpush1.xpose.msra.mxu0 0.0
    %2655 = vmatprep.subr.mxu0 0.0
    %2656 = vmatpush1.xpose.msra.mxu0 0.0
    %2657 = vmatprep.subr.mxu0 0.0
    %2658 = vmatpush1.xpose.msra.mxu0 0.0
    %2659 = vmatprep.subr.mxu0 0.0
    %2660 = vmatpush1.xpose.msra.mxu0 0.0
    %2661 = vmatprep.subr.mxu0 0.0
    %2662 = vmatpush1.xpose.msra.mxu0 0.0
    %2663 = vmatprep.subr.mxu0 0.0
    %2664 = vmatpush1.xpose.msra.mxu0 0.0
    %2665 = vmatprep.subr.mxu0 0.0
    %2666 = vmatpush1.xpose.msra.mxu0 0.0
    %2667 = vmatprep.subr.mxu0 0.0
    %2668 = vmatpush1.xpose.msra.mxu0 0.0
    %2669 = vmatprep.subr.mxu0 0.0
    %2670 = vmatpush1.xpose.msra.mxu0 0.0
    %2671 = vmatprep.subr.mxu0 0.0
    %2672 = vmatpush1.xpose.msra.mxu0 0.0
    %2673 = vmatprep.subr.mxu0 0.0
    %2674 = vmatpush1.xpose.msra.mxu0 0.0
    %2675 = vmatprep.subr.mxu0 0.0
    %2676 = vmatpush1.xpose.msra.mxu0 0.0
    %2677 = vmatprep.subr.mxu0 0.0
    %2678 = vmatpush1.xpose.msra.mxu0 0.0
    %2679 = vmatprep.subr.mxu0 0.0
    %2680 = vmatpush1.xpose.msra.mxu0 0.0
    %2681 = vmatprep.subr.mxu0 0.0
    %2682 = vmatpush1.xpose.msra.mxu0 0.0
    %2683 = vmatprep.subr.mxu0 0.0
    %2684 = vmatpush1.xpose.msra.mxu0 0.0
    %2685 = vmatprep.mubr.f32.mxu0 0.0
    %2686 = vmatmul.mubr.f32.gmra.mrb[0].mxu0 %v2617
    %v2687 = vpop.f32.mrb[0].mxu0
    %v2688 = vadd.f32 0.0, %v2687
    %v2689 = vpop.f32.mrb[0].mxu0
    %2690 = vdwg.mxu0
    %v2691 = vmul.f32 %v2610, 0.25
    %v2692 = vmul.f32 %v2688, 0.25
    %v2693 = vadd.f32 %v2691, %v462
    %v2694 = vadd.f32 %v2692, %v468
    %v2695 = vsel %vm473, %v2693, -inf
    %2696 = vmax.xlane.f32.xlu0 %v2695
    %v2697 = vpop.xlane.xlu0 %2696
    %v2698 = vsel %vm473, %v2694, -inf
    %2699 = vmax.xlane.f32.xlu0 %v2698
    %v2700 = vpop.xlane.xlu0 %2699
    %v2701 = vsub.f32 %v2693, %v2697
    %v2702 = vsub.f32 %v2694, %v2700
    %v2703 = vmul.f32 %v2701, 1.442695
    %v2704 = vpow.pop %v2703
    %v2705 = vmul.f32 %v2702, 1.442695
    %v2706 = vpow.pop %v2705
    %v2707 = vsel %vm473, %v2704, 0.0
    %2708 = vadd.xlane.f32.xlu0 %v2707
    %v2709 = vpop.xlane.xlu0 %2708
    %v2710 = vsel %vm473, %v2706, 0.0
    %2711 = vadd.xlane.f32.xlu0 %v2710
    %v2712 = vpop.xlane.xlu0 %2711
    %v2713 = vrcp.pop %v2709
    %v2714 = vmul.f32 %v2704, %v2713
    %v2715 = vrcp.pop %v2712
    %v2716 = vmul.f32 %v2706, %v2715
    %2718 = vrot.lane.b32.xlu0 %v2201, 112
    %v2719 = vpop.permute.xlu0 %2718
    %v2722 = vsel %vm473, %v2714, 0
    %2724 = vmatprep.subr.mxu0 0.0
    %2725 = vmatpush1.msra.mxu0 %v2719
    %2726 = vmatprep.subr.mxu0 0.0
    %2727 = vmatpush1.msra.mxu0 0.0
    %2728 = vmatprep.subr.mxu0 0.0
    %2729 = vmatpush1.msra.mxu0 0.0
    %2730 = vmatprep.subr.mxu0 0.0
    %2731 = vmatpush1.msra.mxu0 0.0
    %2732 = vmatprep.subr.mxu0 0.0
    %2733 = vmatpush1.msra.mxu0 0.0
    %2734 = vmatprep.subr.mxu0 0.0
    %2735 = vmatpush1.msra.mxu0 0.0
    %2736 = vmatprep.subr.mxu0 0.0
    %2737 = vmatpush1.msra.mxu0 0.0
    %2738 = vmatprep.subr.mxu0 0.0
    %2739 = vmatpush1.msra.mxu0 0.0
    %2740 = vmatprep.subr.mxu0 0.0
    %2741 = vmatpush1.msra.mxu0 0.0
    %2742 = vmatprep.subr.mxu0 0.0
    %2743 = vmatpush1.msra.mxu0 0.0
    %2744 = vmatprep.subr.mxu0 0.0
    %2745 = vmatpush1.msra.mxu0 0.0
    %2746 = vmatprep.subr.mxu0 0.0
    %2747 = vmatpush1.msra.mxu0 0.0
    %2748 = vmatprep.subr.mxu0 0.0
    %2749 = vmatpush1.msra.mxu0 0.0
    %2750 = vmatprep.subr.mxu0 0.0
    %2751 = vmatpush1.msra.mxu0 0.0
    %2752 = vmatprep.subr.mxu0 0.0
    %2753 = vmatpush1.msra.mxu0 0.0
    %2754 = vmatprep.subr.mxu0 0.0
    %2755 = vmatpush1.msra.mxu0 0.0
    %2756 = vmatprep.subr.mxu0 0.0
    %2757 = vmatpush1.msra.mxu0 0.0
    %2758 = vmatprep.subr.mxu0 0.0
    %2759 = vmatpush1.msra.mxu0 0.0
    %2760 = vmatprep.subr.mxu0 0.0
    %2761 = vmatpush1.msra.mxu0 0.0
    %2762 = vmatprep.subr.mxu0 0.0
    %2763 = vmatpush1.msra.mxu0 0.0
    %2764 = vmatprep.subr.mxu0 0.0
    %2765 = vmatpush1.msra.mxu0 0.0
    %2766 = vmatprep.subr.mxu0 0.0
    %2767 = vmatpush1.msra.mxu0 0.0
    %2768 = vmatprep.subr.mxu0 0.0
    %2769 = vmatpush1.msra.mxu0 0.0
    %2770 = vmatprep.subr.mxu0 0.0
    %2771 = vmatpush1.msra.mxu0 0.0
    %2772 = vmatprep.subr.mxu0 0.0
    %2773 = vmatpush1.msra.mxu0 0.0
    %2774 = vmatprep.subr.mxu0 0.0
    %2775 = vmatpush1.msra.mxu0 0.0
    %2776 = vmatprep.subr.mxu0 0.0
    %2777 = vmatpush1.msra.mxu0 0.0
    %2778 = vmatprep.subr.mxu0 0.0
    %2779 = vmatpush1.msra.mxu0 0.0
    %2780 = vmatprep.subr.mxu0 0.0
    %2781 = vmatpush1.msra.mxu0 0.0
    %2782 = vmatprep.subr.mxu0 0.0
    %2783 = vmatpush1.msra.mxu0 0.0
    %2784 = vmatprep.subr.mxu0 0.0
    %2785 = vmatpush1.msra.mxu0 0.0
    %2786 = vmatprep.subr.mxu0 0.0
    %2787 = vmatpush1.msra.mxu0 0.0
    %2788 = vmatprep.mubr.f32.mxu0 0.0
    %2789 = vmatmul.mubr.f32.gmra.mrb[0].mxu0 %v2722
    %v2790 = vpop.f32.mrb[0].mxu0
    %v2791 = vadd.f32 0.0, %v2790
    %v2792 = vpop.f32.mrb[0].mxu0
    %2793 = vdwg.mxu0
    %2795 = vrot.lane.b32.xlu0 %v2207, 112
    %v2796 = vpop.permute.xlu0 %2795
    %v2799 = vsel %vm473, %v2716, 0
    %2801 = vmatprep.subr.mxu0 0.0
    %2802 = vmatpush1.msra.mxu0 %v2796
    %2803 = vmatprep.subr.mxu0 0.0
    %2804 = vmatpush1.msra.mxu0 0.0
    %2805 = vmatprep.subr.mxu0 0.0
    %2806 = vmatpush1.msra.mxu0 0.0
    %2807 = vmatprep.subr.mxu0 0.0
    %2808 = vmatpush1.msra.mxu0 0.0
    %2809 = vmatprep.subr.mxu0 0.0
    %2810 = vmatpush1.msra.mxu0 0.0
    %2811 = vmatprep.subr.mxu0 0.0
    %2812 = vmatpush1.msra.mxu0 0.0
    %2813 = vmatprep.subr.mxu0 0.0
    %2814 = vmatpush1.msra.mxu0 0.0
    %2815 = vmatprep.subr.mxu0 0.0
    %2816 = vmatpush1.msra.mxu0 0.0
    %2817 = vmatprep.subr.mxu0 0.0
    %2818 = vmatpush1.msra.mxu0 0.0
    %2819 = vmatprep.subr.mxu0 0.0
    %2820 = vmatpush1.msra.mxu0 0.0
    %2821 = vmatprep.subr.mxu0 0.0
    %2822 = vmatpush1.msra.mxu0 0.0
    %2823 = vmatprep.subr.mxu0 0.0
    %2824 = vmatpush1.msra.mxu0 0.0
    %2825 = vmatprep.subr.mxu0 0.0
    %2826 = vmatpush1.msra.mxu0 0.0
    %2827 = vmatprep.subr.mxu0 0.0
    %2828 = vmatpush1.msra.mxu0 0.0
    %2829 = vmatprep.subr.mxu0 0.0
    %2830 = vmatpush1.msra.mxu0 0.0
    %2831 = vmatprep.subr.mxu0 0.0
    %2832 = vmatpush1.msra.mxu0 0.0
    %2833 = vmatprep.subr.mxu0 0.0
    %2834 = vmatpush1.msra.mxu0 0.0
    %2835 = vmatprep.subr.mxu0 0.0
    %2836 = vmatpush1.msra.mxu0 0.0
    %2837 = vmatprep.subr.mxu0 0.0
    %2838 = vmatpush1.msra.mxu0 0.0
    %2839 = vmatprep.subr.mxu0 0.0
    %2840 = vmatpush1.msra.mxu0 0.0
    %2841 = vmatprep.subr.mxu0 0.0
    %2842 = vmatpush1.msra.mxu0 0.0
    %2843 = vmatprep.subr.mxu0 0.0
    %2844 = vmatpush1.msra.mxu0 0.0
    %2845 = vmatprep.subr.mxu0 0.0
    %2846 = vmatpush1.msra.mxu0 0.0
    %2847 = vmatprep.subr.mxu0 0.0
    %2848 = vmatpush1.msra.mxu0 0.0
    %2849 = vmatprep.subr.mxu0 0.0
    %2850 = vmatpush1.msra.mxu0 0.0
    %2851 = vmatprep.subr.mxu0 0.0
    %2852 = vmatpush1.msra.mxu0 0.0
    %2853 = vmatprep.subr.mxu0 0.0
    %2854 = vmatpush1.msra.mxu0 0.0
    %2855 = vmatprep.subr.mxu0 0.0
    %2856 = vmatpush1.msra.mxu0 0.0
    %2857 = vmatprep.subr.mxu0 0.0
    %2858 = vmatpush1.msra.mxu0 0.0
    %2859 = vmatprep.subr.mxu0 0.0
    %2860 = vmatpush1.msra.mxu0 0.0
    %2861 = vmatprep.subr.mxu0 0.0
    %2862 = vmatpush1.msra.mxu0 0.0
    %2863 = vmatprep.subr.mxu0 0.0
    %2864 = vmatpush1.msra.mxu0 0.0
    %2865 = vmatprep.mubr.f32.mxu0 0.0
    %2866 = vmatmul.mubr.f32.gmra.mrb[0].mxu0 %v2799
    %v2867 = vpop.f32.mrb[0].mxu0
    %v2868 = vadd.f32 0.0, %v2867
    %v2869 = vpop.f32.mrb[0].mxu0
    %2870 = vdwg.mxu0
    %2871 = vrot.lane.b32.xlu0 %v2199, 96
    %v2872 = vpop.permute.xlu0 %2871
    %2873 = vrot.lane.b32.xlu0 %v2199, 32
    %v2874 = vpop.permute.xlu0 %2873
    %v2875 = vsel %vm280, %v2872, 0
    %v2877 = vsel %vm280, %v2874, 0
    %2879 = vmatprep.subr.mxu0 0.0
    %2880 = vmatpush1.xpose.msra.mxu0 %v2877
    %2881 = vmatprep.subr.mxu0 0.0
    %2882 = vmatpush1.xpose.msra.mxu0 0.0
    %2883 = vmatprep.subr.mxu0 0.0
    %2884 = vmatpush1.xpose.msra.mxu0 0.0
    %2885 = vmatprep.subr.mxu0 0.0
    %2886 = vmatpush1.xpose.msra.mxu0 0.0
    %2887 = vmatprep.subr.mxu0 0.0
    %2888 = vmatpush1.xpose.msra.mxu0 0.0
    %2889 = vmatprep.subr.mxu0 0.0
    %2890 = vmatpush1.xpose.msra.mxu0 0.0
    %2891 = vmatprep.subr.mxu0 0.0
    %2892 = vmatpush1.xpose.msra.mxu0 0.0
    %2893 = vmatprep.subr.mxu0 0.0
    %2894 = vmatpush1.xpose.msra.mxu0 0.0
    %2895 = vmatprep.subr.mxu0 0.0
    %2896 = vmatpush1.xpose.msra.mxu0 0.0
    %2897 = vmatprep.subr.mxu0 0.0
    %2898 = vmatpush1.xpose.msra.mxu0 0.0
    %2899 = vmatprep.subr.mxu0 0.0
    %2900 = vmatpush1.xpose.msra.mxu0 0.0
    %2901 = vmatprep.subr.mxu0 0.0
    %2902 = vmatpush1.xpose.msra.mxu0 0.0
    %2903 = vmatprep.subr.mxu0 0.0
    %2904 = vmatpush1.xpose.msra.mxu0 0.0
    %2905 = vmatprep.subr.mxu0 0.0
    %2906 = vmatpush1.xpose.msra.mxu0 0.0
    %2907 = vmatprep.subr.mxu0 0.0
    %2908 = vmatpush1.xpose.msra.mxu0 0.0
    %2909 = vmatprep.subr.mxu0 0.0
    %2910 = vmatpush1.xpose.msra.mxu0 0.0
    %2911 = vmatprep.subr.mxu0 0.0
    %2912 = vmatpush1.xpose.msra.mxu0 0.0
    %2913 = vmatprep.subr.mxu0 0.0
    %2914 = vmatpush1.xpose.msra.mxu0 0.0
    %2915 = vmatprep.subr.mxu0 0.0
    %2916 = vmatpush1.xpose.msra.mxu0 0.0
    %2917 = vmatprep.subr.mxu0 0.0
    %2918 = vmatpush1.xpose.msra.mxu0 0.0
    %2919 = vmatprep.subr.mxu0 0.0
    %2920 = vmatpush1.xpose.msra.mxu0 0.0
    %2921 = vmatprep.subr.mxu0 0.0
    %2922 = vmatpush1.xpose.msra.mxu0 0.0
    %2923 = vmatprep.subr.mxu0 0.0
    %2924 = vmatpush1.xpose.msra.mxu0 0.0
    %2925 = vmatprep.subr.mxu0 0.0
    %2926 = vmatpush1.xpose.msra.mxu0 0.0
    %2927 = vmatprep.subr.mxu0 0.0
    %2928 = vmatpush1.xpose.msra.mxu0 0.0
    %2929 = vmatprep.subr.mxu0 0.0
    %2930 = vmatpush1.xpose.msra.mxu0 0.0
    %2931 = vmatprep.subr.mxu0 0.0
    %2932 = vmatpush1.xpose.msra.mxu0 0.0
    %2933 = vmatprep.subr.mxu0 0.0
    %2934 = vmatpush1.xpose.msra.mxu0 0.0
    %2935 = vmatprep.subr.mxu0 0.0
    %2936 = vmatpush1.xpose.msra.mxu0 0.0
    %2937 = vmatprep.subr.mxu0 0.0
    %2938 = vmatpush1.xpose.msra.mxu0 0.0
    %2939 = vmatprep.subr.mxu0 0.0
    %2940 = vmatpush1.xpose.msra.mxu0 0.0
    %2941 = vmatprep.subr.mxu0 0.0
    %2942 = vmatpush1.xpose.msra.mxu0 0.0
    %2943 = vmatprep.mubr.f32.mxu0 0.0
    %2944 = vmatmul.mubr.f32.gmra.mrb[0].mxu0 %v2875
    %v2945 = vpop.f32.mrb[0].mxu0
    %v2946 = vadd.f32 0.0, %v2945
    %v2947 = vpop.f32.mrb[0].mxu0
    %2948 = vdwg.mxu0
    %2949 = vrot.lane.b32.xlu0 %v2205, 96
    %v2950 = vpop.permute.xlu0 %2949
    %2951 = vrot.lane.b32.xlu0 %v2205, 32
    %v2952 = vpop.permute.xlu0 %2951
    %v2953 = vsel %vm280, %v2950, 0
    %v2955 = vsel %vm280, %v2952, 0
    %2957 = vmatprep.subr.mxu0 0.0
    %2958 = vmatpush1.xpose.msra.mxu0 %v2955
    %2959 = vmatprep.subr.mxu0 0.0
    %2960 = vmatpush1.xpose.msra.mxu0 0.0
    %2961 = vmatprep.subr.mxu0 0.0
    %2962 = vmatpush1.xpose.msra.mxu0 0.0
    %2963 = vmatprep.subr.mxu0 0.0
    %2964 = vmatpush1.xpose.msra.mxu0 0.0
    %2965 = vmatprep.subr.mxu0 0.0
    %2966 = vmatpush1.xpose.msra.mxu0 0.0
    %2967 = vmatprep.subr.mxu0 0.0
    %2968 = vmatpush1.xpose.msra.mxu0 0.0
    %2969 = vmatprep.subr.mxu0 0.0
    %2970 = vmatpush1.xpose.msra.mxu0 0.0
    %2971 = vmatprep.subr.mxu0 0.0
    %2972 = vmatpush1.xpose.msra.mxu0 0.0
    %2973 = vmatprep.subr.mxu0 0.0
    %2974 = vmatpush1.xpose.msra.mxu0 0.0
    %2975 = vmatprep.subr.mxu0 0.0
    %2976 = vmatpush1.xpose.msra.mxu0 0.0
    %2977 = vmatprep.subr.mxu0 0.0
    %2978 = vmatpush1.xpose.msra.mxu0 0.0
    %2979 = vmatprep.subr.mxu0 0.0
    %2980 = vmatpush1.xpose.msra.mxu0 0.0
    %2981 = vmatprep.subr.mxu0 0.0
    %2982 = vmatpush1.xpose.msra.mxu0 0.0
    %2983 = vmatprep.subr.mxu0 0.0
    %2984 = vmatpush1.xpose.msra.mxu0 0.0
    %2985 = vmatprep.subr.mxu0 0.0
    %2986 = vmatpush1.xpose.msra.mxu0 0.0
    %2987 = vmatprep.subr.mxu0 0.0
    %2988 = vmatpush1.xpose.msra.mxu0 0.0
    %2989 = vmatprep.subr.mxu0 0.0
    %2990 = vmatpush1.xpose.msra.mxu0 0.0
    %2991 = vmatprep.subr.mxu0 0.0
    %2992 = vmatpush1.xpose.msra.mxu0 0.0
    %2993 = vmatprep.subr.mxu0 0.0
    %2994 = vmatpush1.xpose.msra.mxu0 0.0
    %2995 = vmatprep.subr.mxu0 0.0
    %2996 = vmatpush1.xpose.msra.mxu0 0.0
    %2997 = vmatprep.subr.mxu0 0.0
    %2998 = vmatpush1.xpose.msra.mxu0 0.0
    %2999 = vmatprep.subr.mxu0 0.0
    %3000 = vmatpush1.xpose.msra.mxu0 0.0
    %3001 = vmatprep.subr.mxu0 0.0
    %3002 = vmatpush1.xpose.msra.mxu0 0.0
    %3003 = vmatprep.subr.mxu0 0.0
    %3004 = vmatpush1.xpose.msra.mxu0 0.0
    %3005 = vmatprep.subr.mxu0 0.0
    %3006 = vmatpush1.xpose.msra.mxu0 0.0
    %3007 = vmatprep.subr.mxu0 0.0
    %3008 = vmatpush1.xpose.msra.mxu0 0.0
    %3009 = vmatprep.subr.mxu0 0.0
    %3010 = vmatpush1.xpose.msra.mxu0 0.0
    %3011 = vmatprep.subr.mxu0 0.0
    %3012 = vmatpush1.xpose.msra.mxu0 0.0
    %3013 = vmatprep.subr.mxu0 0.0
    %3014 = vmatpush1.xpose.msra.mxu0 0.0
    %3015 = vmatprep.subr.mxu0 0.0
    %3016 = vmatpush1.xpose.msra.mxu0 0.0
    %3017 = vmatprep.subr.mxu0 0.0
    %3018 = vmatpush1.xpose.msra.mxu0 0.0
    %3019 = vmatprep.subr.mxu0 0.0
    %3020 = vmatpush1.xpose.msra.mxu0 0.0
    %3021 = vmatprep.mubr.f32.mxu0 0.0
    %3022 = vmatmul.mubr.f32.gmra.mrb[0].mxu0 %v2953
    %v3023 = vpop.f32.mrb[0].mxu0
    %v3024 = vadd.f32 0.0, %v3023
    %v3025 = vpop.f32.mrb[0].mxu0
    %3026 = vdwg.mxu0
    %v3027 = vmul.f32 %v2946, 0.25
    %v3028 = vmul.f32 %v3024, 0.25
    %v3029 = vadd.f32 %v3027, %v462
    %v3030 = vadd.f32 %v3028, %v468
    %v3031 = vsel %vm473, %v3029, -inf
    %3032 = vmax.xlane.f32.xlu0 %v3031
    %v3033 = vpop.xlane.xlu0 %3032
    %v3034 = vsel %vm473, %v3030, -inf
    %3035 = vmax.xlane.f32.xlu0 %v3034
    %v3036 = vpop.xlane.xlu0 %3035
    %v3037 = vsub.f32 %v3029, %v3033
    %v3038 = vsub.f32 %v3030, %v3036
    %v3039 = vmul.f32 %v3037, 1.442695
    %v3040 = vpow.pop %v3039
    %v3041 = vmul.f32 %v3038, 1.442695
    %v3042 = vpow.pop %v3041
    %v3043 = vsel %vm473, %v3040, 0.0
    %3044 = vadd.xlane.f32.xlu0 %v3043
    %v3045 = vpop.xlane.xlu0 %3044
    %v3046 = vsel %vm473, %v3042, 0.0
    %3047 = vadd.xlane.f32.xlu0 %v3046
    %v3048 = vpop.xlane.xlu0 %3047
    %v3049 = vrcp.pop %v3045
    %v3050 = vmul.f32 %v3040, %v3049
    %v3051 = vrcp.pop %v3048
    %v3052 = vmul.f32 %v3042, %v3051
    %3053 = vrot.lane.b32.xlu0 %v2201, 96
    %v3054 = vpop.permute.xlu0 %3053
    %v3057 = vsel %vm473, %v3050, 0
    %3059 = vmatprep.subr.mxu0 0.0
    %3060 = vmatpush1.msra.mxu0 %v3054
    %3061 = vmatprep.subr.mxu0 0.0
    %3062 = vmatpush1.msra.mxu0 0.0
    %3063 = vmatprep.subr.mxu0 0.0
    %3064 = vmatpush1.msra.mxu0 0.0
    %3065 = vmatprep.subr.mxu0 0.0
    %3066 = vmatpush1.msra.mxu0 0.0
    %3067 = vmatprep.subr.mxu0 0.0
    %3068 = vmatpush1.msra.mxu0 0.0
    %3069 = vmatprep.subr.mxu0 0.0
    %3070 = vmatpush1.msra.mxu0 0.0
    %3071 = vmatprep.subr.mxu0 0.0
    %3072 = vmatpush1.msra.mxu0 0.0
    %3073 = vmatprep.subr.mxu0 0.0
    %3074 = vmatpush1.msra.mxu0 0.0
    %3075 = vmatprep.subr.mxu0 0.0
    %3076 = vmatpush1.msra.mxu0 0.0
    %3077 = vmatprep.subr.mxu0 0.0
    %3078 = vmatpush1.msra.mxu0 0.0
    %3079 = vmatprep.subr.mxu0 0.0
    %3080 = vmatpush1.msra.mxu0 0.0
    %3081 = vmatprep.subr.mxu0 0.0
    %3082 = vmatpush1.msra.mxu0 0.0
    %3083 = vmatprep.subr.mxu0 0.0
    %3084 = vmatpush1.msra.mxu0 0.0
    %3085 = vmatprep.subr.mxu0 0.0
    %3086 = vmatpush1.msra.mxu0 0.0
    %3087 = vmatprep.subr.mxu0 0.0
    %3088 = vmatpush1.msra.mxu0 0.0
    %3089 = vmatprep.subr.mxu0 0.0
    %3090 = vmatpush1.msra.mxu0 0.0
    %3091 = vmatprep.subr.mxu0 0.0
    %3092 = vmatpush1.msra.mxu0 0.0
    %3093 = vmatprep.subr.mxu0 0.0
    %3094 = vmatpush1.msra.mxu0 0.0
    %3095 = vmatprep.subr.mxu0 0.0
    %3096 = vmatpush1.msra.mxu0 0.0
    %3097 = vmatprep.subr.mxu0 0.0
    %3098 = vmatpush1.msra.mxu0 0.0
    %3099 = vmatprep.subr.mxu0 0.0
    %3100 = vmatpush1.msra.mxu0 0.0
    %3101 = vmatprep.subr.mxu0 0.0
    %3102 = vmatpush1.msra.mxu0 0.0
    %3103 = vmatprep.subr.mxu0 0.0
    %3104 = vmatpush1.msra.mxu0 0.0
    %3105 = vmatprep.subr.mxu0 0.0
    %3106 = vmatpush1.msra.mxu0 0.0
    %3107 = vmatprep.subr.mxu0 0.0
    %3108 = vmatpush1.msra.mxu0 0.0
    %3109 = vmatprep.subr.mxu0 0.0
    %3110 = vmatpush1.msra.mxu0 0.0
    %3111 = vmatprep.subr.mxu0 0.0
    %3112 = vmatpush1.msra.mxu0 0.0
    %3113 = vmatprep.subr.mxu0 0.0
    %3114 = vmatpush1.msra.mxu0 0.0
    %3115 = vmatprep.subr.mxu0 0.0
    %3116 = vmatpush1.msra.mxu0 0.0
    %3117 = vmatprep.subr.mxu0 0.0
    %3118 = vmatpush1.msra.mxu0 0.0
    %3119 = vmatprep.subr.mxu0 0.0
    %3120 = vmatpush1.msra.mxu0 0.0
    %3121 = vmatprep.subr.mxu0 0.0
    %3122 = vmatpush1.msra.mxu0 0.0
    %3123 = vmatprep.mubr.f32.mxu0 0.0
    %3124 = vmatmul.mubr.f32.gmra.mrb[0].mxu0 %v3057
    %v3125 = vpop.f32.mrb[0].mxu0
    %v3126 = vadd.f32 0.0, %v3125
    %v3127 = vpop.f32.mrb[0].mxu0
    %3128 = vdwg.mxu0
    %3129 = vrot.lane.b32.xlu0 %v2207, 96
    %v3130 = vpop.permute.xlu0 %3129
    %v3133 = vsel %vm473, %v3052, 0
    %3135 = vmatprep.subr.mxu0 0.0
    %3136 = vmatpush1.msra.mxu0 %v3130
    %3137 = vmatprep.subr.mxu0 0.0
    %3138 = vmatpush1.msra.mxu0 0.0
    %3139 = vmatprep.subr.mxu0 0.0
    %3140 = vmatpush1.msra.mxu0 0.0
    %3141 = vmatprep.subr.mxu0 0.0
    %3142 = vmatpush1.msra.mxu0 0.0
    %3143 = vmatprep.subr.mxu0 0.0
    %3144 = vmatpush1.msra.mxu0 0.0
    %3145 = vmatprep.subr.mxu0 0.0
    %3146 = vmatpush1.msra.mxu0 0.0
    %3147 = vmatprep.subr.mxu0 0.0
    %3148 = vmatpush1.msra.mxu0 0.0
    %3149 = vmatprep.subr.mxu0 0.0
    %3150 = vmatpush1.msra.mxu0 0.0
    %3151 = vmatprep.subr.mxu0 0.0
    %3152 = vmatpush1.msra.mxu0 0.0
    %3153 = vmatprep.subr.mxu0 0.0
    %3154 = vmatpush1.msra.mxu0 0.0
    %3155 = vmatprep.subr.mxu0 0.0
    %3156 = vmatpush1.msra.mxu0 0.0
    %3157 = vmatprep.subr.mxu0 0.0
    %3158 = vmatpush1.msra.mxu0 0.0
    %3159 = vmatprep.subr.mxu0 0.0
    %3160 = vmatpush1.msra.mxu0 0.0
    %3161 = vmatprep.subr.mxu0 0.0
    %3162 = vmatpush1.msra.mxu0 0.0
    %3163 = vmatprep.subr.mxu0 0.0
    %3164 = vmatpush1.msra.mxu0 0.0
    %3165 = vmatprep.subr.mxu0 0.0
    %3166 = vmatpush1.msra.mxu0 0.0
    %3167 = vmatprep.subr.mxu0 0.0
    %3168 = vmatpush1.msra.mxu0 0.0
    %3169 = vmatprep.subr.mxu0 0.0
    %3170 = vmatpush1.msra.mxu0 0.0
    %3171 = vmatprep.subr.mxu0 0.0
    %3172 = vmatpush1.msra.mxu0 0.0
    %3173 = vmatprep.subr.mxu0 0.0
    %3174 = vmatpush1.msra.mxu0 0.0
    %3175 = vmatprep.subr.mxu0 0.0
    %3176 = vmatpush1.msra.mxu0 0.0
    %3177 = vmatprep.subr.mxu0 0.0
    %3178 = vmatpush1.msra.mxu0 0.0
    %3179 = vmatprep.subr.mxu0 0.0
    %3180 = vmatpush1.msra.mxu0 0.0
    %3181 = vmatprep.subr.mxu0 0.0
    %3182 = vmatpush1.msra.mxu0 0.0
    %3183 = vmatprep.subr.mxu0 0.0
    %3184 = vmatpush1.msra.mxu0 0.0
    %3185 = vmatprep.subr.mxu0 0.0
    %3186 = vmatpush1.msra.mxu0 0.0
    %3187 = vmatprep.subr.mxu0 0.0
    %3188 = vmatpush1.msra.mxu0 0.0
    %3189 = vmatprep.subr.mxu0 0.0
    %3190 = vmatpush1.msra.mxu0 0.0
    %3191 = vmatprep.subr.mxu0 0.0
    %3192 = vmatpush1.msra.mxu0 0.0
    %3193 = vmatprep.subr.mxu0 0.0
    %3194 = vmatpush1.msra.mxu0 0.0
    %3195 = vmatprep.subr.mxu0 0.0
    %3196 = vmatpush1.msra.mxu0 0.0
    %3197 = vmatprep.subr.mxu0 0.0
    %3198 = vmatpush1.msra.mxu0 0.0
    %3199 = vmatprep.mubr.f32.mxu0 0.0
    %3200 = vmatmul.mubr.f32.gmra.mrb[0].mxu0 %v3133
    %v3201 = vpop.f32.mrb[0].mxu0
    %v3202 = vadd.f32 0.0, %v3201
    %v3203 = vpop.f32.mrb[0].mxu0
    %3204 = vdwg.mxu0
    %3205 = vrot.lane.b32.xlu0 %v2199, 80
    %v3206 = vpop.permute.xlu0 %3205
    %3207 = vrot.lane.b32.xlu0 %v2199, 16
    %v3208 = vpop.permute.xlu0 %3207
    %v3209 = vsel %vm280, %v3206, 0
    %v3211 = vsel %vm280, %v3208, 0
    %3213 = vmatprep.subr.mxu0 0.0
    %3214 = vmatpush1.xpose.msra.mxu0 %v3211
    %3215 = vmatprep.subr.mxu0 0.0
    %3216 = vmatpush1.xpose.msra.mxu0 0.0
    %3217 = vmatprep.subr.mxu0 0.0
    %3218 = vmatpush1.xpose.msra.mxu0 0.0
    %3219 = vmatprep.subr.mxu0 0.0
    %3220 = vmatpush1.xpose.msra.mxu0 0.0
    %3221 = vmatprep.subr.mxu0 0.0
    %3222 = vmatpush1.xpose.msra.mxu0 0.0
    %3223 = vmatprep.subr.mxu0 0.0
    %3224 = vmatpush1.xpose.msra.mxu0 0.0
    %3225 = vmatprep.subr.mxu0 0.0
    %3226 = vmatpush1.xpose.msra.mxu0 0.0
    %3227 = vmatprep.subr.mxu0 0.0
    %3228 = vmatpush1.xpose.msra.mxu0 0.0
    %3229 = vmatprep.subr.mxu0 0.0
    %3230 = vmatpush1.xpose.msra.mxu0 0.0
    %3231 = vmatprep.subr.mxu0 0.0
    %3232 = vmatpush1.xpose.msra.mxu0 0.0
    %3233 = vmatprep.subr.mxu0 0.0
    %3234 = vmatpush1.xpose.msra.mxu0 0.0
    %3235 = vmatprep.subr.mxu0 0.0
    %3236 = vmatpush1.xpose.msra.mxu0 0.0
    %3237 = vmatprep.subr.mxu0 0.0
    %3238 = vmatpush1.xpose.msra.mxu0 0.0
    %3239 = vmatprep.subr.mxu0 0.0
    %3240 = vmatpush1.xpose.msra.mxu0 0.0
    %3241 = vmatprep.subr.mxu0 0.0
    %3242 = vmatpush1.xpose.msra.mxu0 0.0
    %3243 = vmatprep.subr.mxu0 0.0
    %3244 = vmatpush1.xpose.msra.mxu0 0.0
    %3245 = vmatprep.subr.mxu0 0.0
    %3246 = vmatpush1.xpose.msra.mxu0 0.0
    %3247 = vmatprep.subr.mxu0 0.0
    %3248 = vmatpush1.xpose.msra.mxu0 0.0
    %3249 = vmatprep.subr.mxu0 0.0
    %3250 = vmatpush1.xpose.msra.mxu0 0.0
    %3251 = vmatprep.subr.mxu0 0.0
    %3252 = vmatpush1.xpose.msra.mxu0 0.0
    %3253 = vmatprep.subr.mxu0 0.0
    %3254 = vmatpush1.xpose.msra.mxu0 0.0
    %3255 = vmatprep.subr.mxu0 0.0
    %3256 = vmatpush1.xpose.msra.mxu0 0.0
    %3257 = vmatprep.subr.mxu0 0.0
    %3258 = vmatpush1.xpose.msra.mxu0 0.0
    %3259 = vmatprep.subr.mxu0 0.0
    %3260 = vmatpush1.xpose.msra.mxu0 0.0
    %3261 = vmatprep.subr.mxu0 0.0
    %3262 = vmatpush1.xpose.msra.mxu0 0.0
    %3263 = vmatprep.subr.mxu0 0.0
    %3264 = vmatpush1.xpose.msra.mxu0 0.0
    %3265 = vmatprep.subr.mxu0 0.0
    %3266 = vmatpush1.xpose.msra.mxu0 0.0
    %3267 = vmatprep.subr.mxu0 0.0
    %3268 = vmatpush1.xpose.msra.mxu0 0.0
    %3269 = vmatprep.subr.mxu0 0.0
    %3270 = vmatpush1.xpose.msra.mxu0 0.0
    %3271 = vmatprep.subr.mxu0 0.0
    %3272 = vmatpush1.xpose.msra.mxu0 0.0
    %3273 = vmatprep.subr.mxu0 0.0
    %3274 = vmatpush1.xpose.msra.mxu0 0.0
    %3275 = vmatprep.subr.mxu0 0.0
    %3276 = vmatpush1.xpose.msra.mxu0 0.0
    %3277 = vmatprep.mubr.f32.mxu0 0.0
    %3278 = vmatmul.mubr.f32.gmra.mrb[0].mxu0 %v3209
    %v3279 = vpop.f32.mrb[0].mxu0
    %v3280 = vadd.f32 0.0, %v3279
    %v3281 = vpop.f32.mrb[0].mxu0
    %3282 = vdwg.mxu0
    %3283 = vrot.lane.b32.xlu0 %v2205, 80
    %v3284 = vpop.permute.xlu0 %3283
    %3285 = vrot.lane.b32.xlu0 %v2205, 16
    %v3286 = vpop.permute.xlu0 %3285
    %v3287 = vsel %vm280, %v3284, 0
    %v3289 = vsel %vm280, %v3286, 0
    %3291 = vmatprep.subr.mxu0 0.0
    %3292 = vmatpush1.xpose.msra.mxu0 %v3289
    %3293 = vmatprep.subr.mxu0 0.0
    %3294 = vmatpush1.xpose.msra.mxu0 0.0
    %3295 = vmatprep.subr.mxu0 0.0
    %3296 = vmatpush1.xpose.msra.mxu0 0.0
    %3297 = vmatprep.subr.mxu0 0.0
    %3298 = vmatpush1.xpose.msra.mxu0 0.0
    %3299 = vmatprep.subr.mxu0 0.0
    %3300 = vmatpush1.xpose.msra.mxu0 0.0
    %3301 = vmatprep.subr.mxu0 0.0
    %3302 = vmatpush1.xpose.msra.mxu0 0.0
    %3303 = vmatprep.subr.mxu0 0.0
    %3304 = vmatpush1.xpose.msra.mxu0 0.0
    %3305 = vmatprep.subr.mxu0 0.0
    %3306 = vmatpush1.xpose.msra.mxu0 0.0
    %3307 = vmatprep.subr.mxu0 0.0
    %3308 = vmatpush1.xpose.msra.mxu0 0.0
    %3309 = vmatprep.subr.mxu0 0.0
    %3310 = vmatpush1.xpose.msra.mxu0 0.0
    %3311 = vmatprep.subr.mxu0 0.0
    %3312 = vmatpush1.xpose.msra.mxu0 0.0
    %3313 = vmatprep.subr.mxu0 0.0
    %3314 = vmatpush1.xpose.msra.mxu0 0.0
    %3315 = vmatprep.subr.mxu0 0.0
    %3316 = vmatpush1.xpose.msra.mxu0 0.0
    %3317 = vmatprep.subr.mxu0 0.0
    %3318 = vmatpush1.xpose.msra.mxu0 0.0
    %3319 = vmatprep.subr.mxu0 0.0
    %3320 = vmatpush1.xpose.msra.mxu0 0.0
    %3321 = vmatprep.subr.mxu0 0.0
    %3322 = vmatpush1.xpose.msra.mxu0 0.0
    %3323 = vmatprep.subr.mxu0 0.0
    %3324 = vmatpush1.xpose.msra.mxu0 0.0
    %3325 = vmatprep.subr.mxu0 0.0
    %3326 = vmatpush1.xpose.msra.mxu0 0.0
    %3327 = vmatprep.subr.mxu0 0.0
    %3328 = vmatpush1.xpose.msra.mxu0 0.0
    %3329 = vmatprep.subr.mxu0 0.0
    %3330 = vmatpush1.xpose.msra.mxu0 0.0
    %3331 = vmatprep.subr.mxu0 0.0
    %3332 = vmatpush1.xpose.msra.mxu0 0.0
    %3333 = vmatprep.subr.mxu0 0.0
    %3334 = vmatpush1.xpose.msra.mxu0 0.0
    %3335 = vmatprep.subr.mxu0 0.0
    %3336 = vmatpush1.xpose.msra.mxu0 0.0
    %3337 = vmatprep.subr.mxu0 0.0
    %3338 = vmatpush1.xpose.msra.mxu0 0.0
    %3339 = vmatprep.subr.mxu0 0.0
    %3340 = vmatpush1.xpose.msra.mxu0 0.0
    %3341 = vmatprep.subr.mxu0 0.0
    %3342 = vmatpush1.xpose.msra.mxu0 0.0
    %3343 = vmatprep.subr.mxu0 0.0
    %3344 = vmatpush1.xpose.msra.mxu0 0.0
    %3345 = vmatprep.subr.mxu0 0.0
    %3346 = vmatpush1.xpose.msra.mxu0 0.0
    %3347 = vmatprep.subr.mxu0 0.0
    %3348 = vmatpush1.xpose.msra.mxu0 0.0
    %3349 = vmatprep.subr.mxu0 0.0
    %3350 = vmatpush1.xpose.msra.mxu0 0.0
    %3351 = vmatprep.subr.mxu0 0.0
    %3352 = vmatpush1.xpose.msra.mxu0 0.0
    %3353 = vmatprep.subr.mxu0 0.0
    %3354 = vmatpush1.xpose.msra.mxu0 0.0
    %3355 = vmatprep.mubr.f32.mxu0 0.0
    %3356 = vmatmul.mubr.f32.gmra.mrb[0].mxu0 %v3287
    %v3357 = vpop.f32.mrb[0].mxu0
    %v3358 = vadd.f32 0.0, %v3357
    %v3359 = vpop.f32.mrb[0].mxu0
    %3360 = vdwg.mxu0
    %v3361 = vmul.f32 %v3280, 0.25
    %v3362 = vmul.f32 %v3358, 0.25
    %v3363 = vadd.f32 %v3361, %v462
    %v3364 = vadd.f32 %v3362, %v468
    %v3365 = vsel %vm473, %v3363, -inf
    %3366 = vmax.xlane.f32.xlu0 %v3365
    %v3367 = vpop.xlane.xlu0 %3366
    %v3368 = vsel %vm473, %v3364, -inf
    %3369 = vmax.xlane.f32.xlu0 %v3368
    %v3370 = vpop.xlane.xlu0 %3369
    %v3371 = vsub.f32 %v3363, %v3367
    %v3372 = vsub.f32 %v3364, %v3370
    %v3373 = vmul.f32 %v3371, 1.442695
    %v3374 = vpow.pop %v3373
    %v3375 = vmul.f32 %v3372, 1.442695
    %v3376 = vpow.pop %v3375
    %v3377 = vsel %vm473, %v3374, 0.0
    %3378 = vadd.xlane.f32.xlu0 %v3377
    %v3379 = vpop.xlane.xlu0 %3378
    %v3380 = vsel %vm473, %v3376, 0.0
    %3381 = vadd.xlane.f32.xlu0 %v3380
    %v3382 = vpop.xlane.xlu0 %3381
    %v3383 = vrcp.pop %v3379
    %v3384 = vmul.f32 %v3374, %v3383
    %v3385 = vrcp.pop %v3382
    %v3386 = vmul.f32 %v3376, %v3385
    %3387 = vrot.lane.b32.xlu0 %v2201, 80
    %v3388 = vpop.permute.xlu0 %3387
    %v3391 = vsel %vm473, %v3384, 0
    %3393 = vmatprep.subr.mxu0 0.0
    %3394 = vmatpush1.msra.mxu0 %v3388
    %3395 = vmatprep.subr.mxu0 0.0
    %3396 = vmatpush1.msra.mxu0 0.0
    %3397 = vmatprep.subr.mxu0 0.0
    %3398 = vmatpush1.msra.mxu0 0.0
    %3399 = vmatprep.subr.mxu0 0.0
    %3400 = vmatpush1.msra.mxu0 0.0
    %3401 = vmatprep.subr.mxu0 0.0
    %3402 = vmatpush1.msra.mxu0 0.0
    %3403 = vmatprep.subr.mxu0 0.0
    %3404 = vmatpush1.msra.mxu0 0.0
    %3405 = vmatprep.subr.mxu0 0.0
    %3406 = vmatpush1.msra.mxu0 0.0
    %3407 = vmatprep.subr.mxu0 0.0
    %3408 = vmatpush1.msra.mxu0 0.0
    %3409 = vmatprep.subr.mxu0 0.0
    %3410 = vmatpush1.msra.mxu0 0.0
    %3411 = vmatprep.subr.mxu0 0.0
    %3412 = vmatpush1.msra.mxu0 0.0
    %3413 = vmatprep.subr.mxu0 0.0
    %3414 = vmatpush1.msra.mxu0 0.0
    %3415 = vmatprep.subr.mxu0 0.0
    %3416 = vmatpush1.msra.mxu0 0.0
    %3417 = vmatprep.subr.mxu0 0.0
    %3418 = vmatpush1.msra.mxu0 0.0
    %3419 = vmatprep.subr.mxu0 0.0
    %3420 = vmatpush1.msra.mxu0 0.0
    %3421 = vmatprep.subr.mxu0 0.0
    %3422 = vmatpush1.msra.mxu0 0.0
    %3423 = vmatprep.subr.mxu0 0.0
    %3424 = vmatpush1.msra.mxu0 0.0
    %3425 = vmatprep.subr.mxu0 0.0
    %3426 = vmatpush1.msra.mxu0 0.0
    %3427 = vmatprep.subr.mxu0 0.0
    %3428 = vmatpush1.msra.mxu0 0.0
    %3429 = vmatprep.subr.mxu0 0.0
    %3430 = vmatpush1.msra.mxu0 0.0
    %3431 = vmatprep.subr.mxu0 0.0
    %3432 = vmatpush1.msra.mxu0 0.0
    %3433 = vmatprep.subr.mxu0 0.0
    %3434 = vmatpush1.msra.mxu0 0.0
    %3435 = vmatprep.subr.mxu0 0.0
    %3436 = vmatpush1.msra.mxu0 0.0
    %3437 = vmatprep.subr.mxu0 0.0
    %3438 = vmatpush1.msra.mxu0 0.0
    %3439 = vmatprep.subr.mxu0 0.0
    %3440 = vmatpush1.msra.mxu0 0.0
    %3441 = vmatprep.subr.mxu0 0.0
    %3442 = vmatpush1.msra.mxu0 0.0
    %3443 = vmatprep.subr.mxu0 0.0
    %3444 = vmatpush1.msra.mxu0 0.0
    %3445 = vmatprep.subr.mxu0 0.0
    %3446 = vmatpush1.msra.mxu0 0.0
    %3447 = vmatprep.subr.mxu0 0.0
    %3448 = vmatpush1.msra.mxu0 0.0
    %3449 = vmatprep.subr.mxu0 0.0
    %3450 = vmatpush1.msra.mxu0 0.0
    %3451 = vmatprep.subr.mxu0 0.0
    %3452 = vmatpush1.msra.mxu0 0.0
    %3453 = vmatprep.subr.mxu0 0.0
    %3454 = vmatpush1.msra.mxu0 0.0
    %3455 = vmatprep.subr.mxu0 0.0
    %3456 = vmatpush1.msra.mxu0 0.0
    %3457 = vmatprep.mubr.f32.mxu0 0.0
    %3458 = vmatmul.mubr.f32.gmra.mrb[0].mxu0 %v3391
    %v3459 = vpop.f32.mrb[0].mxu0
    %v3460 = vadd.f32 0.0, %v3459
    %v3461 = vpop.f32.mrb[0].mxu0
    %3462 = vdwg.mxu0
    %3463 = vrot.lane.b32.xlu0 %v2207, 80
    %v3464 = vpop.permute.xlu0 %3463
    %v3467 = vsel %vm473, %v3386, 0
    %3469 = vmatprep.subr.mxu0 0.0
    %3470 = vmatpush1.msra.mxu0 %v3464
    %3471 = vmatprep.subr.mxu0 0.0
    %3472 = vmatpush1.msra.mxu0 0.0
    %3473 = vmatprep.subr.mxu0 0.0
    %3474 = vmatpush1.msra.mxu0 0.0
    %3475 = vmatprep.subr.mxu0 0.0
    %3476 = vmatpush1.msra.mxu0 0.0
    %3477 = vmatprep.subr.mxu0 0.0
    %3478 = vmatpush1.msra.mxu0 0.0
    %3479 = vmatprep.subr.mxu0 0.0
    %3480 = vmatpush1.msra.mxu0 0.0
    %3481 = vmatprep.subr.mxu0 0.0
    %3482 = vmatpush1.msra.mxu0 0.0
    %3483 = vmatprep.subr.mxu0 0.0
    %3484 = vmatpush1.msra.mxu0 0.0
    %3485 = vmatprep.subr.mxu0 0.0
    %3486 = vmatpush1.msra.mxu0 0.0
    %3487 = vmatprep.subr.mxu0 0.0
    %3488 = vmatpush1.msra.mxu0 0.0
    %3489 = vmatprep.subr.mxu0 0.0
    %3490 = vmatpush1.msra.mxu0 0.0
    %3491 = vmatprep.subr.mxu0 0.0
    %3492 = vmatpush1.msra.mxu0 0.0
    %3493 = vmatprep.subr.mxu0 0.0
    %3494 = vmatpush1.msra.mxu0 0.0
    %3495 = vmatprep.subr.mxu0 0.0
    %3496 = vmatpush1.msra.mxu0 0.0
    %3497 = vmatprep.subr.mxu0 0.0
    %3498 = vmatpush1.msra.mxu0 0.0
    %3499 = vmatprep.subr.mxu0 0.0
    %3500 = vmatpush1.msra.mxu0 0.0
    %3501 = vmatprep.subr.mxu0 0.0
    %3502 = vmatpush1.msra.mxu0 0.0
    %3503 = vmatprep.subr.mxu0 0.0
    %3504 = vmatpush1.msra.mxu0 0.0
    %3505 = vmatprep.subr.mxu0 0.0
    %3506 = vmatpush1.msra.mxu0 0.0
    %3507 = vmatprep.subr.mxu0 0.0
    %3508 = vmatpush1.msra.mxu0 0.0
    %3509 = vmatprep.subr.mxu0 0.0
    %3510 = vmatpush1.msra.mxu0 0.0
    %3511 = vmatprep.subr.mxu0 0.0
    %3512 = vmatpush1.msra.mxu0 0.0
    %3513 = vmatprep.subr.mxu0 0.0
    %3514 = vmatpush1.msra.mxu0 0.0
    %3515 = vmatprep.subr.mxu0 0.0
    %3516 = vmatpush1.msra.mxu0 0.0
    %3517 = vmatprep.subr.mxu0 0.0
    %3518 = vmatpush1.msra.mxu0 0.0
    %3519 = vmatprep.subr.mxu0 0.0
    %3520 = vmatpush1.msra.mxu0 0.0
    %3521 = vmatprep.subr.mxu0 0.0
    %3522 = vmatpush1.msra.mxu0 0.0
    %3523 = vmatprep.subr.mxu0 0.0
    %3524 = vmatpush1.msra.mxu0 0.0
    %3525 = vmatprep.subr.mxu0 0.0
    %3526 = vmatpush1.msra.mxu0 0.0
    %3527 = vmatprep.subr.mxu0 0.0
    %3528 = vmatpush1.msra.mxu0 0.0
    %3529 = vmatprep.subr.mxu0 0.0
    %3530 = vmatpush1.msra.mxu0 0.0
    %3531 = vmatprep.subr.mxu0 0.0
    %3532 = vmatpush1.msra.mxu0 0.0
    %3533 = vmatprep.mubr.f32.mxu0 0.0
    %3534 = vmatmul.mubr.f32.gmra.mrb[0].mxu0 %v3467
    %v3535 = vpop.f32.mrb[0].mxu0
    %v3536 = vadd.f32 0.0, %v3535
    %v3537 = vpop.f32.mrb[0].mxu0
    %3538 = vdwg.mxu0
    %3541 = vrot.lane.b32.xlu0 %v2791, 16
    %v3542 = vpop.permute.xlu0 %3541
    %3543 = vrot.lane.b32.xlu0 %v2868, 16
    %v3544 = vpop.permute.xlu0 %3543
    %3549 = vrot.lane.b32.xlu0 %v3126, 32
    %v3550 = vpop.permute.xlu0 %3549
    %3551 = vrot.lane.b32.xlu0 %v3202, 32
    %v3552 = vpop.permute.xlu0 %3551
    %3557 = vrot.lane.b32.xlu0 %v3460, 48
    %v3558 = vpop.permute.xlu0 %3557
    %3559 = vrot.lane.b32.xlu0 %v3536, 48
    %v3560 = vpop.permute.xlu0 %3559
    %v3563 = vsel %vm280, %v2459, %v3542
    %v3564 = vsel %vm280, %v2532, %v3544
    %v3565 = vsel %vm1672, %v3563, %v3550
    %v3566 = vsel %vm1672, %v3564, %v3552
    %v3567 = vsel %vm1675, %v3565, %v3558
    %v3568 = vsel %vm1675, %v3566, %v3560
    %s3569 = scalar_lea.vmem %s5, 64
    %v3570 = vld [vmem:[%s3569] sm:$0xff]
    %v3571 = vld [vmem:[%s3569 + $0x8] sm:$0xff]
    %v3572 = vld [vmem:[%s3569 + $0x10] sm:$0xff]
    %v3573 = vld [vmem:[%s3569 + $0x18] sm:$0xff]
    %v3574 = vld [vmem:[%s3569 + $0x20] sm:$0xff]
    %v3575 = vld [vmem:[%s3569 + $0x28] sm:$0xff]
    %v3576 = vld [vmem:[%s3569 + $0x30] sm:$0xff]
    %v3577 = vld [vmem:[%s3569 + $0x38] sm:$0xff]
    %s3578 = scalar_lea.vmem %s6, 1
    %v3579 = vld [vmem:[%s3578] sm:$0x1]
    %v3581 = vlaneseq
    %v3582 = vshrl.u32 %v3581, 7
    %v3583 = vsub.s32 0, %v3582
    %v3584 = vrot.slane %v3579, %v3583
    %v3587 = vsel %vm193, %v3567, 0
    %v3590 = vsel %vm193, %v3568, 0
    %3592 = vmatprep.subr.mxu0 0.0
    %3593 = vmatpush1.msra.mxu0 %v3570
    %3594 = vmatprep.subr.mxu0 0.0
    %3595 = vmatpush1.msra.mxu0 %v3571
    %3596 = vmatprep.subr.mxu0 0.0
    %3597 = vmatpush1.msra.mxu0 %v3572
    %3598 = vmatprep.subr.mxu0 0.0
    %3599 = vmatpush1.msra.mxu0 %v3573
    %3600 = vmatprep.subr.mxu0 0.0
    %3601 = vmatpush1.msra.mxu0 %v3574
    %3602 = vmatprep.subr.mxu0 0.0
    %3603 = vmatpush1.msra.mxu0 %v3575
    %3604 = vmatprep.subr.mxu0 0.0
    %3605 = vmatpush1.msra.mxu0 %v3576
    %3606 = vmatprep.subr.mxu0 0.0
    %3607 = vmatpush1.msra.mxu0 %v3577
    %3608 = vmatprep.subr.mxu0 0.0
    %3609 = vmatpush1.msra.mxu0 0.0
    %3610 = vmatprep.subr.mxu0 0.0
    %3611 = vmatpush1.msra.mxu0 0.0
    %3612 = vmatprep.subr.mxu0 0.0
    %3613 = vmatpush1.msra.mxu0 0.0
    %3614 = vmatprep.subr.mxu0 0.0
    %3615 = vmatpush1.msra.mxu0 0.0
    %3616 = vmatprep.subr.mxu0 0.0
    %3617 = vmatpush1.msra.mxu0 0.0
    %3618 = vmatprep.subr.mxu0 0.0
    %3619 = vmatpush1.msra.mxu0 0.0
    %3620 = vmatprep.subr.mxu0 0.0
    %3621 = vmatpush1.msra.mxu0 0.0
    %3622 = vmatprep.subr.mxu0 0.0
    %3623 = vmatpush1.msra.mxu0 0.0
    %3624 = vmatprep.subr.mxu0 0.0
    %3625 = vmatpush1.msra.mxu0 0.0
    %3626 = vmatprep.subr.mxu0 0.0
    %3627 = vmatpush1.msra.mxu0 0.0
    %3628 = vmatprep.subr.mxu0 0.0
    %3629 = vmatpush1.msra.mxu0 0.0
    %3630 = vmatprep.subr.mxu0 0.0
    %3631 = vmatpush1.msra.mxu0 0.0
    %3632 = vmatprep.subr.mxu0 0.0
    %3633 = vmatpush1.msra.mxu0 0.0
    %3634 = vmatprep.subr.mxu0 0.0
    %3635 = vmatpush1.msra.mxu0 0.0
    %3636 = vmatprep.subr.mxu0 0.0
    %3637 = vmatpush1.msra.mxu0 0.0
    %3638 = vmatprep.subr.mxu0 0.0
    %3639 = vmatpush1.msra.mxu0 0.0
    %3640 = vmatprep.subr.mxu0 0.0
    %3641 = vmatpush1.msra.mxu0 0.0
    %3642 = vmatprep.subr.mxu0 0.0
    %3643 = vmatpush1.msra.mxu0 0.0
    %3644 = vmatprep.subr.mxu0 0.0
    %3645 = vmatpush1.msra.mxu0 0.0
    %3646 = vmatprep.subr.mxu0 0.0
    %3647 = vmatpush1.msra.mxu0 0.0
    %3648 = vmatprep.subr.mxu0 0.0
    %3649 = vmatpush1.msra.mxu0 0.0
    %3650 = vmatprep.subr.mxu0 0.0
    %3651 = vmatpush1.msra.mxu0 0.0
    %3652 = vmatprep.subr.mxu0 0.0
    %3653 = vmatpush1.msra.mxu0 0.0
    %3654 = vmatprep.subr.mxu0 0.0
    %3655 = vmatpush1.msra.mxu0 0.0
    %3656 = vmatprep.mubr.f32.mxu0 0.0
    %3657 = vmatmul.mubr.f32.gmra.mrb[0].mxu0 %v3587
    %v3658 = vpop.f32.mrb[0].mxu0
    %v3659 = vadd.f32 %v3584, %v3658
    %v3660 = vpop.f32.mrb[0].mxu0
    %3661 = vmatprep.mubr.f32.mxu0 0.0
    %3662 = vmatmul.mubr.f32.gmra.mrb[0].mxu0 %v3590
    %v3663 = vpop.f32.mrb[0].mxu0
    %v3664 = vadd.f32 %v3584, %v3663
    %v3665 = vpop.f32.mrb[0].mxu0
    %3666 = vdwg.mxu0
    %v3667 = vadd.f32 %v2094, %v3659
    %v3668 = vadd.f32 %v2095, %v3664
    %s3669 = scalar_lea.vmem %s7, 1
    %v3670 = vld [vmem:[%s3669] sm:$0x1]
    %s3671 = scalar_lea.vmem %s8, 1
    %v3672 = vld [vmem:[%s3671] sm:$0x1]
    %v3673 = vsel %vm193, %v3667, 0.0
    %3674 = vadd.xlane.f32.xlu0 %v3673
    %v3675 = vpop.xlane.xlu0 %3674
    %v3676 = vsel %vm193, %v3668, 0.0
    %3677 = vadd.xlane.f32.xlu0 %v3676
    %v3678 = vpop.xlane.xlu0 %3677
    %v3679 = vmul.f32 %v3675, %v1784
    %v3680 = vmul.f32 %v3678, %v1784
    %v3681 = vsub.f32 %v3667, %v3679
    %v3682 = vsub.f32 %v3668, %v3680
    %v3683 = vmul.f32 %v3681, %v3681
    %v3684 = vmul.f32 %v3682, %v3682
    %v3685 = vsel %vm193, %v3683, 0.0
    %3686 = vadd.xlane.f32.xlu0 %v3685
    %v3687 = vpop.xlane.xlu0 %3686
    %v3688 = vsel %vm193, %v3684, 0.0
    %3689 = vadd.xlane.f32.xlu0 %v3688
    %v3690 = vpop.xlane.xlu0 %3689
    %v3691 = vmul.f32 %v3687, %v1784
    %v3692 = vmul.f32 %v3690, %v1784
    %v3693 = vadd.f32 %v3691, 1e-05
    %v3694 = vadd.f32 %v3692, 1e-05
    %v3695 = vrsqrt.pop %v3693
    %v3696 = vrsqrt.pop %v3694
    %v3697 = vmul.f32 %v3681, %v3695
    %v3698 = vmul.f32 %v3682, %v3696
    %v3700 = vlaneseq
    %v3701 = vshrl.u32 %v3700, 7
    %v3702 = vsub.s32 0, %v3701
    %v3703 = vrot.slane %v3670, %v3702
    %v3705 = vmul.f32 %v3697, %v3703
    %v3706 = vmul.f32 %v3698, %v3703
    %v3708 = vlaneseq
    %v3709 = vshrl.u32 %v3708, 7
    %v3710 = vsub.s32 0, %v3709
    %v3711 = vrot.slane %v3672, %v3710
    %v3713 = vadd.f32 %v3705, %v3711
    %v3714 = vadd.f32 %v3706, %v3711
    %s3715 = scalar_lea.vmem %s11, 128
    %v3716 = vld [vmem:[%s3715] sm:$0xff]
    %v3717 = vld [vmem:[%s3715 + $0x8] sm:$0xff]
    %v3718 = vld [vmem:[%s3715 + $0x10] sm:$0xff]
    %v3719 = vld [vmem:[%s3715 + $0x18] sm:$0xff]
    %v3720 = vld [vmem:[%s3715 + $0x20] sm:$0xff]
    %v3721 = vld [vmem:[%s3715 + $0x28] sm:$0xff]
    %v3722 = vld [vmem:[%s3715 + $0x30] sm:$0xff]
    %v3723 = vld [vmem:[%s3715 + $0x38] sm:$0xff]
    %v3724 = vld [vmem:[%s3715 + $0x40] sm:$0xff]
    %v3725 = vld [vmem:[%s3715 + $0x48] sm:$0xff]
    %v3726 = vld [vmem:[%s3715 + $0x50] sm:$0xff]
    %v3727 = vld [vmem:[%s3715 + $0x58] sm:$0xff]
    %v3728 = vld [vmem:[%s3715 + $0x60] sm:$0xff]
    %v3729 = vld [vmem:[%s3715 + $0x68] sm:$0xff]
    %v3730 = vld [vmem:[%s3715 + $0x70] sm:$0xff]
    %v3731 = vld [vmem:[%s3715 + $0x78] sm:$0xff]
    %s3732 = scalar_lea.vmem %s12, 2
    %v3733 = vld [vmem:[%s3732] sm:$0x3]
    %v3735 = vlaneseq
    %v3736 = vshrl.u32 %v3735, 7
    %v3737 = vsub.s32 0, %v3736
    %v3738 = vrot.slane %v3733, %v3737
    %v3739 = vlaneseq
    %v3740 = vshrl.u32 %v3739, 7
    %v3741 = vsub.s32 1, %v3740
    %v3742 = vrot.slane %v3733, %v3741
    %v3746 = vsel %vm193, %v3713, 0
    %v3749 = vsel %vm193, %v3714, 0
    %3751 = vmatprep.subr.mxu0 %v3717
    %3752 = vmatpush1.msra.mxu0 %v3716
    %3753 = vmatprep.subr.mxu0 %v3719
    %3754 = vmatpush1.msra.mxu0 %v3718
    %3755 = vmatprep.subr.mxu0 %v3721
    %3756 = vmatpush1.msra.mxu0 %v3720
    %3757 = vmatprep.subr.mxu0 %v3723
    %3758 = vmatpush1.msra.mxu0 %v3722
    %3759 = vmatprep.subr.mxu0 %v3725
    %3760 = vmatpush1.msra.mxu0 %v3724
    %3761 = vmatprep.subr.mxu0 %v3727
    %3762 = vmatpush1.msra.mxu0 %v3726
    %3763 = vmatprep.subr.mxu0 %v3729
    %3764 = vmatpush1.msra.mxu0 %v3728
    %3765 = vmatprep.subr.mxu0 %v3731
    %3766 = vmatpush1.msra.mxu0 %v3730
    %3767 = vmatprep.subr.mxu0 0.0
    %3768 = vmatpush1.msra.mxu0 0.0
    %3769 = vmatprep.subr.mxu0 0.0
    %3770 = vmatpush1.msra.mxu0 0.0
    %3771 = vmatprep.subr.mxu0 0.0
    %3772 = vmatpush1.msra.mxu0 0.0
    %3773 = vmatprep.subr.mxu0 0.0
    %3774 = vmatpush1.msra.mxu0 0.0
    %3775 = vmatprep.subr.mxu0 0.0
    %3776 = vmatpush1.msra.mxu0 0.0
    %3777 = vmatprep.subr.mxu0 0.0
    %3778 = vmatpush1.msra.mxu0 0.0
    %3779 = vmatprep.subr.mxu0 0.0
    %3780 = vmatpush1.msra.mxu0 0.0
    %3781 = vmatprep.subr.mxu0 0.0
    %3782 = vmatpush1.msra.mxu0 0.0
    %3783 = vmatprep.subr.mxu0 0.0
    %3784 = vmatpush1.msra.mxu0 0.0
    %3785 = vmatprep.subr.mxu0 0.0
    %3786 = vmatpush1.msra.mxu0 0.0
    %3787 = vmatprep.subr.mxu0 0.0
    %3788 = vmatpush1.msra.mxu0 0.0
    %3789 = vmatprep.subr.mxu0 0.0
    %3790 = vmatpush1.msra.mxu0 0.0
    %3791 = vmatprep.subr.mxu0 0.0
    %3792 = vmatpush1.msra.mxu0 0.0
    %3793 = vmatprep.subr.mxu0 0.0
    %3794 = vmatpush1.msra.mxu0 0.0
    %3795 = vmatprep.subr.mxu0 0.0
    %3796 = vmatpush1.msra.mxu0 0.0
    %3797 = vmatprep.subr.mxu0 0.0
    %3798 = vmatpush1.msra.mxu0 0.0
    %3799 = vmatprep.subr.mxu0 0.0
    %3800 = vmatpush1.msra.mxu0 0.0
    %3801 = vmatprep.subr.mxu0 0.0
    %3802 = vmatpush1.msra.mxu0 0.0
    %3803 = vmatprep.subr.mxu0 0.0
    %3804 = vmatpush1.msra.mxu0 0.0
    %3805 = vmatprep.subr.mxu0 0.0
    %3806 = vmatpush1.msra.mxu0 0.0
    %3807 = vmatprep.subr.mxu0 0.0
    %3808 = vmatpush1.msra.mxu0 0.0
    %3809 = vmatprep.subr.mxu0 0.0
    %3810 = vmatpush1.msra.mxu0 0.0
    %3811 = vmatprep.subr.mxu0 0.0
    %3812 = vmatpush1.msra.mxu0 0.0
    %3813 = vmatprep.subr.mxu0 0.0
    %3814 = vmatpush1.msra.mxu0 0.0
    %3815 = vmatprep.mubr.f32.mxu0 0.0
    %3816 = vmatmul.mubr.f32.gmra.mrb[0].mxu0 %v3746
    %v3817 = vpop.f32.mrb[0].mxu0
    %v3818 = vadd.f32 %v3738, %v3817
    %v3819 = vpop.f32.mrb[0].mxu0
    %v3820 = vadd.f32 %v3742, %v3819
    %3821 = vmatprep.mubr.f32.mxu0 0.0
    %3822 = vmatmul.mubr.f32.gmra.mrb[0].mxu0 %v3749
    %v3823 = vpop.f32.mrb[0].mxu0
    %v3824 = vadd.f32 %v3738, %v3823
    %v3825 = vpop.f32.mrb[0].mxu0
    %v3826 = vadd.f32 %v3742, %v3825
    %3827 = vdwg.mxu0
    %v3828 = vmax.f32 %v3818, 0.0
    %v3829 = vmax.f32 %v3820, 0.0
    %v3830 = vmax.f32 %v3824, 0.0
    %v3831 = vmax.f32 %v3826, 0.0
    %s3832 = scalar_lea.vmem %s13, 256
    %v3833 = vld [vmem:[%s3832] sm:$0xff]
    %v3834 = vld [vmem:[%s3832 + $0x8] sm:$0xff]
    %v3835 = vld [vmem:[%s3832 + $0x10] sm:$0xff]
    %v3836 = vld [vmem:[%s3832 + $0x18] sm:$0xff]
    %v3837 = vld [vmem:[%s3832 + $0x20] sm:$0xff]
    %v3838 = vld [vmem:[%s3832 + $0x28] sm:$0xff]
    %v3839 = vld [vmem:[%s3832 + $0x30] sm:$0xff]
    %v3840 = vld [vmem:[%s3832 + $0x38] sm:$0xff]
    %v3841 = vld [vmem:[%s3832 + $0x40] sm:$0xff]
    %v3842 = vld [vmem:[%s3832 + $0x48] sm:$0xff]
    %v3843 = vld [vmem:[%s3832 + $0x50] sm:$0xff]
    %v3844 = vld [vmem:[%s3832 + $0x58] sm:$0xff]
    %v3845 = vld [vmem:[%s3832 + $0x60] sm:$0xff]
    %v3846 = vld [vmem:[%s3832 + $0x68] sm:$0xff]
    %v3847 = vld [vmem:[%s3832 + $0x70] sm:$0xff]
    %v3848 = vld [vmem:[%s3832 + $0x78] sm:$0xff]
    %v3849 = vld [vmem:[%s3832 + $0x80] sm:$0xff]
    %v3850 = vld [vmem:[%s3832 + $0x88] sm:$0xff]
    %v3851 = vld [vmem:[%s3832 + $0x90] sm:$0xff]
    %v3852 = vld [vmem:[%s3832 + $0x98] sm:$0xff]
    %v3853 = vld [vmem:[%s3832 + $0xa0] sm:$0xff]
    %v3854 = vld [vmem:[%s3832 + $0xa8] sm:$0xff]
    %v3855 = vld [vmem:[%s3832 + $0xb0] sm:$0xff]
    %v3856 = vld [vmem:[%s3832 + $0xb8] sm:$0xff]
    %v3857 = vld [vmem:[%s3832 + $0xc0] sm:$0xff]
    %v3858 = vld [vmem:[%s3832 + $0xc8] sm:$0xff]
    %v3859 = vld [vmem:[%s3832 + $0xd0] sm:$0xff]
    %v3860 = vld [vmem:[%s3832 + $0xd8] sm:$0xff]
    %v3861 = vld [vmem:[%s3832 + $0xe0] sm:$0xff]
    %v3862 = vld [vmem:[%s3832 + $0xe8] sm:$0xff]
    %v3863 = vld [vmem:[%s3832 + $0xf0] sm:$0xff]
    %v3864 = vld [vmem:[%s3832 + $0xf8] sm:$0xff]
    %s3865 = scalar_lea.vmem %s14, 1
    %v3866 = vld [vmem:[%s3865] sm:$0x1]
    %v3868 = vlaneseq
    %v3869 = vshrl.u32 %v3868, 7
    %v3870 = vsub.s32 0, %v3869
    %v3871 = vrot.slane %v3866, %v3870
    %3873 = vmatprep.subr.mxu0 0.0
    %3874 = vmatpush1.msra.mxu0 %v3833
    %3875 = vmatprep.subr.mxu0 0.0
    %3876 = vmatpush1.msra.mxu0 %v3834
    %3877 = vmatprep.subr.mxu0 0.0
    %3878 = vmatpush1.msra.mxu0 %v3835
    %3879 = vmatprep.subr.mxu0 0.0
    %3880 = vmatpush1.msra.mxu0 %v3836
    %3881 = vmatprep.subr.mxu0 0.0
    %3882 = vmatpush1.msra.mxu0 %v3837
    %3883 = vmatprep.subr.mxu0 0.0
    %3884 = vmatpush1.msra.mxu0 %v3838
    %3885 = vmatprep.subr.mxu0 0.0
    %3886 = vmatpush1.msra.mxu0 %v3839
    %3887 = vmatprep.subr.mxu0 0.0
    %3888 = vmatpush1.msra.mxu0 %v3840
    %3889 = vmatprep.subr.mxu0 0.0
    %3890 = vmatpush1.msra.mxu0 %v3841
    %3891 = vmatprep.subr.mxu0 0.0
    %3892 = vmatpush1.msra.mxu0 %v3842
    %3893 = vmatprep.subr.mxu0 0.0
    %3894 = vmatpush1.msra.mxu0 %v3843
    %3895 = vmatprep.subr.mxu0 0.0
    %3896 = vmatpush1.msra.mxu0 %v3844
    %3897 = vmatprep.subr.mxu0 0.0
    %3898 = vmatpush1.msra.mxu0 %v3845
    %3899 = vmatprep.subr.mxu0 0.0
    %3900 = vmatpush1.msra.mxu0 %v3846
    %3901 = vmatprep.subr.mxu0 0.0
    %3902 = vmatpush1.msra.mxu0 %v3847
    %3903 = vmatprep.subr.mxu0 0.0
    %3904 = vmatpush1.msra.mxu0 %v3848
    %3905 = vmatprep.subr.mxu0 0.0
    %3906 = vmatpush1.msra.mxu0 %v3849
    %3907 = vmatprep.subr.mxu0 0.0
    %3908 = vmatpush1.msra.mxu0 %v3850
    %3909 = vmatprep.subr.mxu0 0.0
    %3910 = vmatpush1.msra.mxu0 %v3851
    %3911 = vmatprep.subr.mxu0 0.0
    %3912 = vmatpush1.msra.mxu0 %v3852
    %3913 = vmatprep.subr.mxu0 0.0
    %3914 = vmatpush1.msra.mxu0 %v3853
    %3915 = vmatprep.subr.mxu0 0.0
    %3916 = vmatpush1.msra.mxu0 %v3854
    %3917 = vmatprep.subr.mxu0 0.0
    %3918 = vmatpush1.msra.mxu0 %v3855
    %3919 = vmatprep.subr.mxu0 0.0
    %3920 = vmatpush1.msra.mxu0 %v3856
    %3921 = vmatprep.subr.mxu0 0.0
    %3922 = vmatpush1.msra.mxu0 %v3857
    %3923 = vmatprep.subr.mxu0 0.0
    %3924 = vmatpush1.msra.mxu0 %v3858
    %3925 = vmatprep.subr.mxu0 0.0
    %3926 = vmatpush1.msra.mxu0 %v3859
    %3927 = vmatprep.subr.mxu0 0.0
    %3928 = vmatpush1.msra.mxu0 %v3860
    %3929 = vmatprep.subr.mxu0 0.0
    %3930 = vmatpush1.msra.mxu0 %v3861
    %3931 = vmatprep.subr.mxu0 0.0
    %3932 = vmatpush1.msra.mxu0 %v3862
    %3933 = vmatprep.subr.mxu0 0.0
    %3934 = vmatpush1.msra.mxu0 %v3863
    %3935 = vmatprep.subr.mxu0 0.0
    %3936 = vmatpush1.msra.mxu0 %v3864
    %3937 = vmatprep.mubr.f32.mxu0 %v3829
    %3938 = vmatmul.mubr.f32.gmra.mrb[0].mxu0 %v3828
    %v3939 = vpop.f32.mrb[0].mxu0
    %v3940 = vadd.f32 %v3871, %v3939
    %v3941 = vpop.f32.mrb[0].mxu0
    %3942 = vmatprep.mubr.f32.mxu0 %v3831
    %3943 = vmatmul.mubr.f32.gmra.mrb[0].mxu0 %v3830
    %v3944 = vpop.f32.mrb[0].mxu0
    %v3945 = vadd.f32 %v3871, %v3944
    %v3946 = vpop.f32.mrb[0].mxu0
    %3947 = vdwg.mxu0
    %v3948 = vadd.f32 %v3713, %v3940
    %v3949 = vadd.f32 %v3714, %v3945
    %s3950 = scalar_lea.vmem %s9, 1
    %v3951 = vld [vmem:[%s3950] sm:$0x1]
    %s3952 = scalar_lea.vmem %s10, 1
    %v3953 = vld [vmem:[%s3952] sm:$0x1]
    %v3954 = vsel %vm193, %v3948, 0.0
    %3955 = vadd.xlane.f32.xlu0 %v3954
    %v3956 = vpop.xlane.xlu0 %3955
    %v3957 = vsel %vm193, %v3949, 0.0
    %3958 = vadd.xlane.f32.xlu0 %v3957
    %v3959 = vpop.xlane.xlu0 %3958
    %v3960 = vmul.f32 %v3956, %v1784
    %v3961 = vmul.f32 %v3959, %v1784
    %v3962 = vsub.f32 %v3948, %v3960
    %v3963 = vsub.f32 %v3949, %v3961
    %v3964 = vmul.f32 %v3962, %v3962
    %v3965 = vmul.f32 %v3963, %v3963
    %v3966 = vsel %vm193, %v3964, 0.0
    %3967 = vadd.xlane.f32.xlu0 %v3966
    %v3968 = vpop.xlane.xlu0 %3967
    %v3969 = vsel %vm193, %v3965, 0.0
    %3970 = vadd.xlane.f32.xlu0 %v3969
    %v3971 = vpop.xlane.xlu0 %3970
    %v3972 = vmul.f32 %v3968, %v1784
    %v3973 = vmul.f32 %v3971, %v1784
    %v3974 = vadd.f32 %v3972, 1e-05
    %v3975 = vadd.f32 %v3973, 1e-05
    %v3976 = vrsqrt.pop %v3974
    %v3977 = vrsqrt.pop %v3975
    %v3978 = vmul.f32 %v3962, %v3976
    %v3979 = vmul.f32 %v3963, %v3977
    %v3981 = vlaneseq
    %v3982 = vshrl.u32 %v3981, 7
    %v3983 = vsub.s32 0, %v3982
    %v3984 = vrot.slane %v3951, %v3983
    %v3986 = vmul.f32 %v3978, %v3984
    %v3987 = vmul.f32 %v3979, %v3984
    %v3989 = vlaneseq
    %v3990 = vshrl.u32 %v3989, 7
    %v3991 = vsub.s32 0, %v3990
    %v3992 = vrot.slane %v3953, %v3991
    %v3994 = vadd.f32 %v3986, %v3992
    %v3995 = vadd.f32 %v3987, %v3992
    %s3996 = scalar_lea.vmem %s3, 256
    %v3997 = vld [vmem:[%s3996] sm:$0xff]
    %v3998 = vld [vmem:[%s3996 + $0x8] sm:$0xff]
    %v3999 = vld [vmem:[%s3996 + $0x10] sm:$0xff]
    %v4000 = vld [vmem:[%s3996 + $0x18] sm:$0xff]
    %v4001 = vld [vmem:[%s3996 + $0x20] sm:$0xff]
    %v4002 = vld [vmem:[%s3996 + $0x28] sm:$0xff]
    %v4003 = vld [vmem:[%s3996 + $0x30] sm:$0xff]
    %v4004 = vld [vmem:[%s3996 + $0x38] sm:$0xff]
    %v4005 = vld [vmem:[%s3996 + $0x40] sm:$0xff]
    %v4006 = vld [vmem:[%s3996 + $0x48] sm:$0xff]
    %v4007 = vld [vmem:[%s3996 + $0x50] sm:$0xff]
    %v4008 = vld [vmem:[%s3996 + $0x58] sm:$0xff]
    %v4009 = vld [vmem:[%s3996 + $0x60] sm:$0xff]
    %v4010 = vld [vmem:[%s3996 + $0x68] sm:$0xff]
    %v4011 = vld [vmem:[%s3996 + $0x70] sm:$0xff]
    %v4012 = vld [vmem:[%s3996 + $0x78] sm:$0xff]
    %s4013 = scalar_lea.vmem %s4, 4
    %v4014 = vld [vmem:[%s4013] sm:$0x3]
    %v4016 = vlaneseq
    %v4017 = vshrl.u32 %v4016, 7
    %v4018 = vsub.s32 0, %v4017
    %v4019 = vrot.slane %v4014, %v4018
    %v4020 = vlaneseq
    %v4021 = vshrl.u32 %v4020, 7
    %v4022 = vsub.s32 1, %v4021
    %v4023 = vrot.slane %v4014, %v4022
    %v4027 = vsel %vm193, %v3994, 0
    %v4030 = vsel %vm193, %v3995, 0
    %4032 = vmatprep.subr.mxu0 %v3998
    %4033 = vmatpush1.msra.mxu0 %v3997
    %4034 = vmatprep.subr.mxu0 %v4000
    %4035 = vmatpush1.msra.mxu0 %v3999
    %4036 = vmatprep.subr.mxu0 %v4002
    %4037 = vmatpush1.msra.mxu0 %v4001
    %4038 = vmatprep.subr.mxu0 %v4004
    %4039 = vmatpush1.msra.mxu0 %v4003
    %4040 = vmatprep.subr.mxu0 %v4006
    %4041 = vmatpush1.msra.mxu0 %v4005
    %4042 = vmatprep.subr.mxu0 %v4008
    %4043 = vmatpush1.msra.mxu0 %v4007
    %4044 = vmatprep.subr.mxu0 %v4010
    %4045 = vmatpush1.msra.mxu0 %v4009
    %4046 = vmatprep.subr.mxu0 %v4012
    %4047 = vmatpush1.msra.mxu0 %v4011
    %4048 = vmatprep.subr.mxu0 0.0
    %4049 = vmatpush1.msra.mxu0 0.0
    %4050 = vmatprep.subr.mxu0 0.0
    %4051 = vmatpush1.msra.mxu0 0.0
    %4052 = vmatprep.subr.mxu0 0.0
    %4053 = vmatpush1.msra.mxu0 0.0
    %4054 = vmatprep.subr.mxu0 0.0
    %4055 = vmatpush1.msra.mxu0 0.0
    %4056 = vmatprep.subr.mxu0 0.0
    %4057 = vmatpush1.msra.mxu0 0.0
    %4058 = vmatprep.subr.mxu0 0.0
    %4059 = vmatpush1.msra.mxu0 0.0
    %4060 = vmatprep.subr.mxu0 0.0
    %4061 = vmatpush1.msra.mxu0 0.0
    %4062 = vmatprep.subr.mxu0 0.0
    %4063 = vmatpush1.msra.mxu0 0.0
    %4064 = vmatprep.subr.mxu0 0.0
    %4065 = vmatpush1.msra.mxu0 0.0
    %4066 = vmatprep.subr.mxu0 0.0
    %4067 = vmatpush1.msra.mxu0 0.0
    %4068 = vmatprep.subr.mxu0 0.0
    %4069 = vmatpush1.msra.mxu0 0.0
    %4070 = vmatprep.subr.mxu0 0.0
    %4071 = vmatpush1.msra.mxu0 0.0
    %4072 = vmatprep.subr.mxu0 0.0
    %4073 = vmatpush1.msra.mxu0 0.0
    %4074 = vmatprep.subr.mxu0 0.0
    %4075 = vmatpush1.msra.mxu0 0.0
    %4076 = vmatprep.subr.mxu0 0.0
    %4077 = vmatpush1.msra.mxu0 0.0
    %4078 = vmatprep.subr.mxu0 0.0
    %4079 = vmatpush1.msra.mxu0 0.0
    %4080 = vmatprep.subr.mxu0 0.0
    %4081 = vmatpush1.msra.mxu0 0.0
    %4082 = vmatprep.subr.mxu0 0.0
    %4083 = vmatpush1.msra.mxu0 0.0
    %4084 = vmatprep.subr.mxu0 0.0
    %4085 = vmatpush1.msra.mxu0 0.0
    %4086 = vmatprep.subr.mxu0 0.0
    %4087 = vmatpush1.msra.mxu0 0.0
    %4088 = vmatprep.subr.mxu0 0.0
    %4089 = vmatpush1.msra.mxu0 0.0
    %4090 = vmatprep.subr.mxu0 0.0
    %4091 = vmatpush1.msra.mxu0 0.0
    %4092 = vmatprep.subr.mxu0 0.0
    %4093 = vmatpush1.msra.mxu0 0.0
    %4094 = vmatprep.subr.mxu0 0.0
    %4095 = vmatpush1.msra.mxu0 0.0
    %4096 = vmatprep.mubr.f32.mxu0 0.0
    %4097 = vmatmul.mubr.f32.gmra.mrb[0].mxu0 %v4027
    %v4098 = vpop.f32.mrb[0].mxu0
    %v4099 = vadd.f32 %v4019, %v4098
    %v4100 = vpop.f32.mrb[0].mxu0
    %v4101 = vadd.f32 %v4023, %v4100
    %4102 = vmatprep.mubr.f32.mxu0 0.0
    %4103 = vmatmul.mubr.f32.gmra.mrb[0].mxu0 %v4030
    %v4104 = vpop.f32.mrb[0].mxu0
    %v4105 = vadd.f32 %v4019, %v4104
    %v4106 = vpop.f32.mrb[0].mxu0
    %v4107 = vadd.f32 %v4023, %v4106
    %4108 = vdwg.mxu0
    %4110 = vrot.lane.b32.xlu0 %v4099, 64
    %v4111 = vpop.permute.xlu0 %4110
    %v4112 = vsel %vm280, %v4099, 0
    %v4114 = vsel %vm280, %v4111, 0
    %4116 = vmatprep.subr.mxu0 0.0
    %4117 = vmatpush1.xpose.msra.mxu0 %v4114
    %4118 = vmatprep.subr.mxu0 0.0
    %4119 = vmatpush1.xpose.msra.mxu0 0.0
    %4120 = vmatprep.subr.mxu0 0.0
    %4121 = vmatpush1.xpose.msra.mxu0 0.0
    %4122 = vmatprep.subr.mxu0 0.0
    %4123 = vmatpush1.xpose.msra.mxu0 0.0
    %4124 = vmatprep.subr.mxu0 0.0
    %4125 = vmatpush1.xpose.msra.mxu0 0.0
    %4126 = vmatprep.subr.mxu0 0.0
    %4127 = vmatpush1.xpose.msra.mxu0 0.0
    %4128 = vmatprep.subr.mxu0 0.0
    %4129 = vmatpush1.xpose.msra.mxu0 0.0
    %4130 = vmatprep.subr.mxu0 0.0
    %4131 = vmatpush1.xpose.msra.mxu0 0.0
    %4132 = vmatprep.subr.mxu0 0.0
    %4133 = vmatpush1.xpose.msra.mxu0 0.0
    %4134 = vmatprep.subr.mxu0 0.0
    %4135 = vmatpush1.xpose.msra.mxu0 0.0
    %4136 = vmatprep.subr.mxu0 0.0
    %4137 = vmatpush1.xpose.msra.mxu0 0.0
    %4138 = vmatprep.subr.mxu0 0.0
    %4139 = vmatpush1.xpose.msra.mxu0 0.0
    %4140 = vmatprep.subr.mxu0 0.0
    %4141 = vmatpush1.xpose.msra.mxu0 0.0
    %4142 = vmatprep.subr.mxu0 0.0
    %4143 = vmatpush1.xpose.msra.mxu0 0.0
    %4144 = vmatprep.subr.mxu0 0.0
    %4145 = vmatpush1.xpose.msra.mxu0 0.0
    %4146 = vmatprep.subr.mxu0 0.0
    %4147 = vmatpush1.xpose.msra.mxu0 0.0
    %4148 = vmatprep.subr.mxu0 0.0
    %4149 = vmatpush1.xpose.msra.mxu0 0.0
    %4150 = vmatprep.subr.mxu0 0.0
    %4151 = vmatpush1.xpose.msra.mxu0 0.0
    %4152 = vmatprep.subr.mxu0 0.0
    %4153 = vmatpush1.xpose.msra.mxu0 0.0
    %4154 = vmatprep.subr.mxu0 0.0
    %4155 = vmatpush1.xpose.msra.mxu0 0.0
    %4156 = vmatprep.subr.mxu0 0.0
    %4157 = vmatpush1.xpose.msra.mxu0 0.0
    %4158 = vmatprep.subr.mxu0 0.0
    %4159 = vmatpush1.xpose.msra.mxu0 0.0
    %4160 = vmatprep.subr.mxu0 0.0
    %4161 = vmatpush1.xpose.msra.mxu0 0.0
    %4162 = vmatprep.subr.mxu0 0.0
    %4163 = vmatpush1.xpose.msra.mxu0 0.0
    %4164 = vmatprep.subr.mxu0 0.0
    %4165 = vmatpush1.xpose.msra.mxu0 0.0
    %4166 = vmatprep.subr.mxu0 0.0
    %4167 = vmatpush1.xpose.msra.mxu0 0.0
    %4168 = vmatprep.subr.mxu0 0.0
    %4169 = vmatpush1.xpose.msra.mxu0 0.0
    %4170 = vmatprep.subr.mxu0 0.0
    %4171 = vmatpush1.xpose.msra.mxu0 0.0
    %4172 = vmatprep.subr.mxu0 0.0
    %4173 = vmatpush1.xpose.msra.mxu0 0.0
    %4174 = vmatprep.subr.mxu0 0.0
    %4175 = vmatpush1.xpose.msra.mxu0 0.0
    %4176 = vmatprep.subr.mxu0 0.0
    %4177 = vmatpush1.xpose.msra.mxu0 0.0
    %4178 = vmatprep.subr.mxu0 0.0
    %4179 = vmatpush1.xpose.msra.mxu0 0.0
    %4180 = vmatprep.mubr.f32.mxu0 0.0
    %4181 = vmatmul.mubr.f32.gmra.mrb[0].mxu0 %v4112
    %v4182 = vpop.f32.mrb[0].mxu0
    %v4183 = vadd.f32 0.0, %v4182
    %v4184 = vpop.f32.mrb[0].mxu0
    %4185 = vdwg.mxu0
    %4187 = vrot.lane.b32.xlu0 %v4105, 64
    %v4188 = vpop.permute.xlu0 %4187
    %v4189 = vsel %vm280, %v4105, 0
    %v4191 = vsel %vm280, %v4188, 0
    %4193 = vmatprep.subr.mxu0 0.0
    %4194 = vmatpush1.xpose.msra.mxu0 %v4191
    %4195 = vmatprep.subr.mxu0 0.0
    %4196 = vmatpush1.xpose.msra.mxu0 0.0
    %4197 = vmatprep.subr.mxu0 0.0
    %4198 = vmatpush1.xpose.msra.mxu0 0.0
    %4199 = vmatprep.subr.mxu0 0.0
    %4200 = vmatpush1.xpose.msra.mxu0 0.0
    %4201 = vmatprep.subr.mxu0 0.0
    %4202 = vmatpush1.xpose.msra.mxu0 0.0
    %4203 = vmatprep.subr.mxu0 0.0
    %4204 = vmatpush1.xpose.msra.mxu0 0.0
    %4205 = vmatprep.subr.mxu0 0.0
    %4206 = vmatpush1.xpose.msra.mxu0 0.0
    %4207 = vmatprep.subr.mxu0 0.0
    %4208 = vmatpush1.xpose.msra.mxu0 0.0
    %4209 = vmatprep.subr.mxu0 0.0
    %4210 = vmatpush1.xpose.msra.mxu0 0.0
    %4211 = vmatprep.subr.mxu0 0.0
    %4212 = vmatpush1.xpose.msra.mxu0 0.0
    %4213 = vmatprep.subr.mxu0 0.0
    %4214 = vmatpush1.xpose.msra.mxu0 0.0
    %4215 = vmatprep.subr.mxu0 0.0
    %4216 = vmatpush1.xpose.msra.mxu0 0.0
    %4217 = vmatprep.subr.mxu0 0.0
    %4218 = vmatpush1.xpose.msra.mxu0 0.0
    %4219 = vmatprep.subr.mxu0 0.0
    %4220 = vmatpush1.xpose.msra.mxu0 0.0
    %4221 = vmatprep.subr.mxu0 0.0
    %4222 = vmatpush1.xpose.msra.mxu0 0.0
    %4223 = vmatprep.subr.mxu0 0.0
    %4224 = vmatpush1.xpose.msra.mxu0 0.0
    %4225 = vmatprep.subr.mxu0 0.0
    %4226 = vmatpush1.xpose.msra.mxu0 0.0
    %4227 = vmatprep.subr.mxu0 0.0
    %4228 = vmatpush1.xpose.msra.mxu0 0.0
    %4229 = vmatprep.subr.mxu0 0.0
    %4230 = vmatpush1.xpose.msra.mxu0 0.0
    %4231 = vmatprep.subr.mxu0 0.0
    %4232 = vmatpush1.xpose.msra.mxu0 0.0
    %4233 = vmatprep.subr.mxu0 0.0
    %4234 = vmatpush1.xpose.msra.mxu0 0.0
    %4235 = vmatprep.subr.mxu0 0.0
    %4236 = vmatpush1.xpose.msra.mxu0 0.0
    %4237 = vmatprep.subr.mxu0 0.0
    %4238 = vmatpush1.xpose.msra.mxu0 0.0
    %4239 = vmatprep.subr.mxu0 0.0
    %4240 = vmatpush1.xpose.msra.mxu0 0.0
    %4241 = vmatprep.subr.mxu0 0.0
    %4242 = vmatpush1.xpose.msra.mxu0 0.0
    %4243 = vmatprep.subr.mxu0 0.0
    %4244 = vmatpush1.xpose.msra.mxu0 0.0
    %4245 = vmatprep.subr.mxu0 0.0
    %4246 = vmatpush1.xpose.msra.mxu0 0.0
    %4247 = vmatprep.subr.mxu0 0.0
    %4248 = vmatpush1.xpose.msra.mxu0 0.0
    %4249 = vmatprep.subr.mxu0 0.0
    %4250 = vmatpush1.xpose.msra.mxu0 0.0
    %4251 = vmatprep.subr.mxu0 0.0
    %4252 = vmatpush1.xpose.msra.mxu0 0.0
    %4253 = vmatprep.subr.mxu0 0.0
    %4254 = vmatpush1.xpose.msra.mxu0 0.0
    %4255 = vmatprep.subr.mxu0 0.0
    %4256 = vmatpush1.xpose.msra.mxu0 0.0
    %4257 = vmatprep.mubr.f32.mxu0 0.0
    %4258 = vmatmul.mubr.f32.gmra.mrb[0].mxu0 %v4189
    %v4259 = vpop.f32.mrb[0].mxu0
    %v4260 = vadd.f32 0.0, %v4259
    %v4261 = vpop.f32.mrb[0].mxu0
    %4262 = vdwg.mxu0
    %v4263 = vmul.f32 %v4183, 0.25
    %v4264 = vmul.f32 %v4260, 0.25
    %v4265 = vadd.f32 %v4263, %v462
    %v4266 = vadd.f32 %v4264, %v468
    %v4267 = vsel %vm473, %v4265, -inf
    %4268 = vmax.xlane.f32.xlu0 %v4267
    %v4269 = vpop.xlane.xlu0 %4268
    %v4270 = vsel %vm473, %v4266, -inf
    %4271 = vmax.xlane.f32.xlu0 %v4270
    %v4272 = vpop.xlane.xlu0 %4271
    %v4273 = vsub.f32 %v4265, %v4269
    %v4274 = vsub.f32 %v4266, %v4272
    %v4275 = vmul.f32 %v4273, 1.442695
    %v4276 = vpow.pop %v4275
    %v4277 = vmul.f32 %v4274, 1.442695
    %v4278 = vpow.pop %v4277
    %v4279 = vsel %vm473, %v4276, 0.0
    %4280 = vadd.xlane.f32.xlu0 %v4279
    %v4281 = vpop.xlane.xlu0 %4280
    %v4282 = vsel %vm473, %v4278, 0.0
    %4283 = vadd.xlane.f32.xlu0 %v4282
    %v4284 = vpop.xlane.xlu0 %4283
    %v4285 = vrcp.pop %v4281
    %v4286 = vmul.f32 %v4276, %v4285
    %v4287 = vrcp.pop %v4284
    %v4288 = vmul.f32 %v4278, %v4287
    %v4290 = vsel %vm473, %v4286, 0
    %4292 = vmatprep.subr.mxu0 0.0
    %4293 = vmatpush1.msra.mxu0 %v4101
    %4294 = vmatprep.subr.mxu0 0.0
    %4295 = vmatpush1.msra.mxu0 0.0
    %4296 = vmatprep.subr.mxu0 0.0
    %4297 = vmatpush1.msra.mxu0 0.0
    %4298 = vmatprep.subr.mxu0 0.0
    %4299 = vmatpush1.msra.mxu0 0.0
    %4300 = vmatprep.subr.mxu0 0.0
    %4301 = vmatpush1.msra.mxu0 0.0
    %4302 = vmatprep.subr.mxu0 0.0
    %4303 = vmatpush1.msra.mxu0 0.0
    %4304 = vmatprep.subr.mxu0 0.0
    %4305 = vmatpush1.msra.mxu0 0.0
    %4306 = vmatprep.subr.mxu0 0.0
    %4307 = vmatpush1.msra.mxu0 0.0
    %4308 = vmatprep.subr.mxu0 0.0
    %4309 = vmatpush1.msra.mxu0 0.0
    %4310 = vmatprep.subr.mxu0 0.0
    %4311 = vmatpush1.msra.mxu0 0.0
    %4312 = vmatprep.subr.mxu0 0.0
    %4313 = vmatpush1.msra.mxu0 0.0
    %4314 = vmatprep.subr.mxu0 0.0
    %4315 = vmatpush1.msra.mxu0 0.0
    %4316 = vmatprep.subr.mxu0 0.0
    %4317 = vmatpush1.msra.mxu0 0.0
    %4318 = vmatprep.subr.mxu0 0.0
    %4319 = vmatpush1.msra.mxu0 0.0
    %4320 = vmatprep.subr.mxu0 0.0
    %4321 = vmatpush1.msra.mxu0 0.0
    %4322 = vmatprep.subr.mxu0 0.0
    %4323 = vmatpush1.msra.mxu0 0.0
    %4324 = vmatprep.subr.mxu0 0.0
    %4325 = vmatpush1.msra.mxu0 0.0
    %4326 = vmatprep.subr.mxu0 0.0
    %4327 = vmatpush1.msra.mxu0 0.0
    %4328 = vmatprep.subr.mxu0 0.0
    %4329 = vmatpush1.msra.mxu0 0.0
    %4330 = vmatprep.subr.mxu0 0.0
    %4331 = vmatpush1.msra.mxu0 0.0
    %4332 = vmatprep.subr.mxu0 0.0
    %4333 = vmatpush1.msra.mxu0 0.0
    %4334 = vmatprep.subr.mxu0 0.0
    %4335 = vmatpush1.msra.mxu0 0.0
    %4336 = vmatprep.subr.mxu0 0.0
    %4337 = vmatpush1.msra.mxu0 0.0
    %4338 = vmatprep.subr.mxu0 0.0
    %4339 = vmatpush1.msra.mxu0 0.0
    %4340 = vmatprep.subr.mxu0 0.0
    %4341 = vmatpush1.msra.mxu0 0.0
    %4342 = vmatprep.subr.mxu0 0.0
    %4343 = vmatpush1.msra.mxu0 0.0
    %4344 = vmatprep.subr.mxu0 0.0
    %4345 = vmatpush1.msra.mxu0 0.0
    %4346 = vmatprep.subr.mxu0 0.0
    %4347 = vmatpush1.msra.mxu0 0.0
    %4348 = vmatprep.subr.mxu0 0.0
    %4349 = vmatpush1.msra.mxu0 0.0
    %4350 = vmatprep.subr.mxu0 0.0
    %4351 = vmatpush1.msra.mxu0 0.0
    %4352 = vmatprep.subr.mxu0 0.0
    %4353 = vmatpush1.msra.mxu0 0.0
    %4354 = vmatprep.subr.mxu0 0.0
    %4355 = vmatpush1.msra.mxu0 0.0
    %4356 = vmatprep.mubr.f32.mxu0 0.0
    %4357 = vmatmul.mubr.f32.gmra.mrb[0].mxu0 %v4290
    %v4358 = vpop.f32.mrb[0].mxu0
    %v4359 = vadd.f32 0.0, %v4358
    %v4360 = vpop.f32.mrb[0].mxu0
    %4361 = vdwg.mxu0
    %v4363 = vsel %vm473, %v4288, 0
    %4365 = vmatprep.subr.mxu0 0.0
    %4366 = vmatpush1.msra.mxu0 %v4107
    %4367 = vmatprep.subr.mxu0 0.0
    %4368 = vmatpush1.msra.mxu0 0.0
    %4369 = vmatprep.subr.mxu0 0.0
    %4370 = vmatpush1.msra.mxu0 0.0
    %4371 = vmatprep.subr.mxu0 0.0
    %4372 = vmatpush1.msra.mxu0 0.0
    %4373 = vmatprep.subr.mxu0 0.0
    %4374 = vmatpush1.msra.mxu0 0.0
    %4375 = vmatprep.subr.mxu0 0.0
    %4376 = vmatpush1.msra.mxu0 0.0
    %4377 = vmatprep.subr.mxu0 0.0
    %4378 = vmatpush1.msra.mxu0 0.0
    %4379 = vmatprep.subr.mxu0 0.0
    %4380 = vmatpush1.msra.mxu0 0.0
    %4381 = vmatprep.subr.mxu0 0.0
    %4382 = vmatpush1.msra.mxu0 0.0
    %4383 = vmatprep.subr.mxu0 0.0
    %4384 = vmatpush1.msra.mxu0 0.0
    %4385 = vmatprep.subr.mxu0 0.0
    %4386 = vmatpush1.msra.mxu0 0.0
    %4387 = vmatprep.subr.mxu0 0.0
    %4388 = vmatpush1.msra.mxu0 0.0
    %4389 = vmatprep.subr.mxu0 0.0
    %4390 = vmatpush1.msra.mxu0 0.0
    %4391 = vmatprep.subr.mxu0 0.0
    %4392 = vmatpush1.msra.mxu0 0.0
    %4393 = vmatprep.subr.mxu0 0.0
    %4394 = vmatpush1.msra.mxu0 0.0
    %4395 = vmatprep.subr.mxu0 0.0
    %4396 = vmatpush1.msra.mxu0 0.0
    %4397 = vmatprep.subr.mxu0 0.0
    %4398 = vmatpush1.msra.mxu0 0.0
    %4399 = vmatprep.subr.mxu0 0.0
    %4400 = vmatpush1.msra.mxu0 0.0
    %4401 = vmatprep.subr.mxu0 0.0
    %4402 = vmatpush1.msra.mxu0 0.0
    %4403 = vmatprep.subr.mxu0 0.0
    %4404 = vmatpush1.msra.mxu0 0.0
    %4405 = vmatprep.subr.mxu0 0.0
    %4406 = vmatpush1.msra.mxu0 0.0
    %4407 = vmatprep.subr.mxu0 0.0
    %4408 = vmatpush1.msra.mxu0 0.0
    %4409 = vmatprep.subr.mxu0 0.0
    %4410 = vmatpush1.msra.mxu0 0.0
    %4411 = vmatprep.subr.mxu0 0.0
    %4412 = vmatpush1.msra.mxu0 0.0
    %4413 = vmatprep.subr.mxu0 0.0
    %4414 = vmatpush1.msra.mxu0 0.0
    %4415 = vmatprep.subr.mxu0 0.0
    %4416 = vmatpush1.msra.mxu0 0.0
    %4417 = vmatprep.subr.mxu0 0.0
    %4418 = vmatpush1.msra.mxu0 0.0
    %4419 = vmatprep.subr.mxu0 0.0
    %4420 = vmatpush1.msra.mxu0 0.0
    %4421 = vmatprep.subr.mxu0 0.0
    %4422 = vmatpush1.msra.mxu0 0.0
    %4423 = vmatprep.subr.mxu0 0.0
    %4424 = vmatpush1.msra.mxu0 0.0
    %4425 = vmatprep.subr.mxu0 0.0
    %4426 = vmatpush1.msra.mxu0 0.0
    %4427 = vmatprep.subr.mxu0 0.0
    %4428 = vmatpush1.msra.mxu0 0.0
    %4429 = vmatprep.mubr.f32.mxu0 0.0
    %4430 = vmatmul.mubr.f32.gmra.mrb[0].mxu0 %v4363
    %v4431 = vpop.f32.mrb[0].mxu0
    %v4432 = vadd.f32 0.0, %v4431
    %v4433 = vpop.f32.mrb[0].mxu0
    %4434 = vdwg.mxu0
    %4435 = vrot.lane.b32.xlu0 %v4099, 112
    %v4436 = vpop.permute.xlu0 %4435
    %4437 = vrot.lane.b32.xlu0 %v4099, 48
    %v4438 = vpop.permute.xlu0 %4437
    %v4439 = vsel %vm280, %v4436, 0
    %v4441 = vsel %vm280, %v4438, 0
    %4443 = vmatprep.subr.mxu0 0.0
    %4444 = vmatpush1.xpose.msra.mxu0 %v4441
    %4445 = vmatprep.subr.mxu0 0.0
    %4446 = vmatpush1.xpose.msra.mxu0 0.0
    %4447 = vmatprep.subr.mxu0 0.0
    %4448 = vmatpush1.xpose.msra.mxu0 0.0
    %4449 = vmatprep.subr.mxu0 0.0
    %4450 = vmatpush1.xpose.msra.mxu0 0.0
    %4451 = vmatprep.subr.mxu0 0.0
    %4452 = vmatpush1.xpose.msra.mxu0 0.0
    %4453 = vmatprep.subr.mxu0 0.0
    %4454 = vmatpush1.xpose.msra.mxu0 0.0
    %4455 = vmatprep.subr.mxu0 0.0
    %4456 = vmatpush1.xpose.msra.mxu0 0.0
    %4457 = vmatprep.subr.mxu0 0.0
    %4458 = vmatpush1.xpose.msra.mxu0 0.0
    %4459 = vmatprep.subr.mxu0 0.0
    %4460 = vmatpush1.xpose.msra.mxu0 0.0
    %4461 = vmatprep.subr.mxu0 0.0
    %4462 = vmatpush1.xpose.msra.mxu0 0.0
    %4463 = vmatprep.subr.mxu0 0.0
    %4464 = vmatpush1.xpose.msra.mxu0 0.0
    %4465 = vmatprep.subr.mxu0 0.0
    %4466 = vmatpush1.xpose.msra.mxu0 0.0
    %4467 = vmatprep.subr.mxu0 0.0
    %4468 = vmatpush1.xpose.msra.mxu0 0.0
    %4469 = vmatprep.subr.mxu0 0.0
    %4470 = vmatpush1.xpose.msra.mxu0 0.0
    %4471 = vmatprep.subr.mxu0 0.0
    %4472 = vmatpush1.xpose.msra.mxu0 0.0
    %4473 = vmatprep.subr.mxu0 0.0
    %4474 = vmatpush1.xpose.msra.mxu0 0.0
    %4475 = vmatprep.subr.mxu0 0.0
    %4476 = vmatpush1.xpose.msra.mxu0 0.0
    %4477 = vmatprep.subr.mxu0 0.0
    %4478 = vmatpush1.xpose.msra.mxu0 0.0
    %4479 = vmatprep.subr.mxu0 0.0
    %4480 = vmatpush1.xpose.msra.mxu0 0.0
    %4481 = vmatprep.subr.mxu0 0.0
    %4482 = vmatpush1.xpose.msra.mxu0 0.0
    %4483 = vmatprep.subr.mxu0 0.0
    %4484 = vmatpush1.xpose.msra.mxu0 0.0
    %4485 = vmatprep.subr.mxu0 0.0
    %4486 = vmatpush1.xpose.msra.mxu0 0.0
    %4487 = vmatprep.subr.mxu0 0.0
    %4488 = vmatpush1.xpose.msra.mxu0 0.0
    %4489 = vmatprep.subr.mxu0 0.0
    %4490 = vmatpush1.xpose.msra.mxu0 0.0
    %4491 = vmatprep.subr.mxu0 0.0
    %4492 = vmatpush1.xpose.msra.mxu0 0.0
    %4493 = vmatprep.subr.mxu0 0.0
    %4494 = vmatpush1.xpose.msra.mxu0 0.0
    %4495 = vmatprep.subr.mxu0 0.0
    %4496 = vmatpush1.xpose.msra.mxu0 0.0
    %4497 = vmatprep.subr.mxu0 0.0
    %4498 = vmatpush1.xpose.msra.mxu0 0.0
    %4499 = vmatprep.subr.mxu0 0.0
    %4500 = vmatpush1.xpose.msra.mxu0 0.0
    %4501 = vmatprep.subr.mxu0 0.0
    %4502 = vmatpush1.xpose.msra.mxu0 0.0
    %4503 = vmatprep.subr.mxu0 0.0
    %4504 = vmatpush1.xpose.msra.mxu0 0.0
    %4505 = vmatprep.subr.mxu0 0.0
    %4506 = vmatpush1.xpose.msra.mxu0 0.0
    %4507 = vmatprep.mubr.f32.mxu0 0.0
    %4508 = vmatmul.mubr.f32.gmra.mrb[0].mxu0 %v4439
    %v4509 = vpop.f32.mrb[0].mxu0
    %v4510 = vadd.f32 0.0, %v4509
    %v4511 = vpop.f32.mrb[0].mxu0
    %4512 = vdwg.mxu0
    %4513 = vrot.lane.b32.xlu0 %v4105, 112
    %v4514 = vpop.permute.xlu0 %4513
    %4515 = vrot.lane.b32.xlu0 %v4105, 48
    %v4516 = vpop.permute.xlu0 %4515
    %v4517 = vsel %vm280, %v4514, 0
    %v4519 = vsel %vm280, %v4516, 0
    %4521 = vmatprep.subr.mxu0 0.0
    %4522 = vmatpush1.xpose.msra.mxu0 %v4519
    %4523 = vmatprep.subr.mxu0 0.0
    %4524 = vmatpush1.xpose.msra.mxu0 0.0
    %4525 = vmatprep.subr.mxu0 0.0
    %4526 = vmatpush1.xpose.msra.mxu0 0.0
    %4527 = vmatprep.subr.mxu0 0.0
    %4528 = vmatpush1.xpose.msra.mxu0 0.0
    %4529 = vmatprep.subr.mxu0 0.0
    %4530 = vmatpush1.xpose.msra.mxu0 0.0
    %4531 = vmatprep.subr.mxu0 0.0
    %4532 = vmatpush1.xpose.msra.mxu0 0.0
    %4533 = vmatprep.subr.mxu0 0.0
    %4534 = vmatpush1.xpose.msra.mxu0 0.0
    %4535 = vmatprep.subr.mxu0 0.0
    %4536 = vmatpush1.xpose.msra.mxu0 0.0
    %4537 = vmatprep.subr.mxu0 0.0
    %4538 = vmatpush1.xpose.msra.mxu0 0.0
    %4539 = vmatprep.subr.mxu0 0.0
    %4540 = vmatpush1.xpose.msra.mxu0 0.0
    %4541 = vmatprep.subr.mxu0 0.0
    %4542 = vmatpush1.xpose.msra.mxu0 0.0
    %4543 = vmatprep.subr.mxu0 0.0
    %4544 = vmatpush1.xpose.msra.mxu0 0.0
    %4545 = vmatprep.subr.mxu0 0.0
    %4546 = vmatpush1.xpose.msra.mxu0 0.0
    %4547 = vmatprep.subr.mxu0 0.0
    %4548 = vmatpush1.xpose.msra.mxu0 0.0
    %4549 = vmatprep.subr.mxu0 0.0
    %4550 = vmatpush1.xpose.msra.mxu0 0.0
    %4551 = vmatprep.subr.mxu0 0.0
    %4552 = vmatpush1.xpose.msra.mxu0 0.0
    %4553 = vmatprep.subr.mxu0 0.0
    %4554 = vmatpush1.xpose.msra.mxu0 0.0
    %4555 = vmatprep.subr.mxu0 0.0
    %4556 = vmatpush1.xpose.msra.mxu0 0.0
    %4557 = vmatprep.subr.mxu0 0.0
    %4558 = vmatpush1.xpose.msra.mxu0 0.0
    %4559 = vmatprep.subr.mxu0 0.0
    %4560 = vmatpush1.xpose.msra.mxu0 0.0
    %4561 = vmatprep.subr.mxu0 0.0
    %4562 = vmatpush1.xpose.msra.mxu0 0.0
    %4563 = vmatprep.subr.mxu0 0.0
    %4564 = vmatpush1.xpose.msra.mxu0 0.0
    %4565 = vmatprep.subr.mxu0 0.0
    %4566 = vmatpush1.xpose.msra.mxu0 0.0
    %4567 = vmatprep.subr.mxu0 0.0
    %4568 = vmatpush1.xpose.msra.mxu0 0.0
    %4569 = vmatprep.subr.mxu0 0.0
    %4570 = vmatpush1.xpose.msra.mxu0 0.0
    %4571 = vmatprep.subr.mxu0 0.0
    %4572 = vmatpush1.xpose.msra.mxu0 0.0
    %4573 = vmatprep.subr.mxu0 0.0
    %4574 = vmatpush1.xpose.msra.mxu0 0.0
    %4575 = vmatprep.subr.mxu0 0.0
    %4576 = vmatpush1.xpose.msra.mxu0 0.0
    %4577 = vmatprep.subr.mxu0 0.0
    %4578 = vmatpush1.xpose.msra.mxu0 0.0
    %4579 = vmatprep.subr.mxu0 0.0
    %4580 = vmatpush1.xpose.msra.mxu0 0.0
    %4581 = vmatprep.subr.mxu0 0.0
    %4582 = vmatpush1.xpose.msra.mxu0 0.0
    %4583 = vmatprep.subr.mxu0 0.0
    %4584 = vmatpush1.xpose.msra.mxu0 0.0
    %4585 = vmatprep.mubr.f32.mxu0 0.0
    %4586 = vmatmul.mubr.f32.gmra.mrb[0].mxu0 %v4517
    %v4587 = vpop.f32.mrb[0].mxu0
    %v4588 = vadd.f32 0.0, %v4587
    %v4589 = vpop.f32.mrb[0].mxu0
    %4590 = vdwg.mxu0
    %v4591 = vmul.f32 %v4510, 0.25
    %v4592 = vmul.f32 %v4588, 0.25
    %v4593 = vadd.f32 %v4591, %v462
    %v4594 = vadd.f32 %v4592, %v468
    %v4595 = vsel %vm473, %v4593, -inf
    %4596 = vmax.xlane.f32.xlu0 %v4595
    %v4597 = vpop.xlane.xlu0 %4596
    %v4598 = vsel %vm473, %v4594, -inf
    %4599 = vmax.xlane.f32.xlu0 %v4598
    %v4600 = vpop.xlane.xlu0 %4599
    %v4601 = vsub.f32 %v4593, %v4597
    %v4602 = vsub.f32 %v4594, %v4600
    %v4603 = vmul.f32 %v4601, 1.442695
    %v4604 = vpow.pop %v4603
    %v4605 = vmul.f32 %v4602, 1.442695
    %v4606 = vpow.pop %v4605
    %v4607 = vsel %vm473, %v4604, 0.0
    %4608 = vadd.xlane.f32.xlu0 %v4607
    %v4609 = vpop.xlane.xlu0 %4608
    %v4610 = vsel %vm473, %v4606, 0.0
    %4611 = vadd.xlane.f32.xlu0 %v4610
    %v4612 = vpop.xlane.xlu0 %4611
    %v4613 = vrcp.pop %v4609
    %v4614 = vmul.f32 %v4604, %v4613
    %v4615 = vrcp.pop %v4612
    %v4616 = vmul.f32 %v4606, %v4615
    %4618 = vrot.lane.b32.xlu0 %v4101, 112
    %v4619 = vpop.permute.xlu0 %4618
    %v4622 = vsel %vm473, %v4614, 0
    %4624 = vmatprep.subr.mxu0 0.0
    %4625 = vmatpush1.msra.mxu0 %v4619
    %4626 = vmatprep.subr.mxu0 0.0
    %4627 = vmatpush1.msra.mxu0 0.0
    %4628 = vmatprep.subr.mxu0 0.0
    %4629 = vmatpush1.msra.mxu0 0.0
    %4630 = vmatprep.subr.mxu0 0.0
    %4631 = vmatpush1.msra.mxu0 0.0
    %4632 = vmatprep.subr.mxu0 0.0
    %4633 = vmatpush1.msra.mxu0 0.0
    %4634 = vmatprep.subr.mxu0 0.0
    %4635 = vmatpush1.msra.mxu0 0.0
    %4636 = vmatprep.subr.mxu0 0.0
    %4637 = vmatpush1.msra.mxu0 0.0
    %4638 = vmatprep.subr.mxu0 0.0
    %4639 = vmatpush1.msra.mxu0 0.0
    %4640 = vmatprep.subr.mxu0 0.0
    %4641 = vmatpush1.msra.mxu0 0.0
    %4642 = vmatprep.subr.mxu0 0.0
    %4643 = vmatpush1.msra.mxu0 0.0
    %4644 = vmatprep.subr.mxu0 0.0
    %4645 = vmatpush1.msra.mxu0 0.0
    %4646 = vmatprep.subr.mxu0 0.0
    %4647 = vmatpush1.msra.mxu0 0.0
    %4648 = vmatprep.subr.mxu0 0.0
    %4649 = vmatpush1.msra.mxu0 0.0
    %4650 = vmatprep.subr.mxu0 0.0
    %4651 = vmatpush1.msra.mxu0 0.0
    %4652 = vmatprep.subr.mxu0 0.0
    %4653 = vmatpush1.msra.mxu0 0.0
    %4654 = vmatprep.subr.mxu0 0.0
    %4655 = vmatpush1.msra.mxu0 0.0
    %4656 = vmatprep.subr.mxu0 0.0
    %4657 = vmatpush1.msra.mxu0 0.0
    %4658 = vmatprep.subr.mxu0 0.0
    %4659 = vmatpush1.msra.mxu0 0.0
    %4660 = vmatprep.subr.mxu0 0.0
    %4661 = vmatpush1.msra.mxu0 0.0
    %4662 = vmatprep.subr.mxu0 0.0
    %4663 = vmatpush1.msra.mxu0 0.0
    %4664 = vmatprep.subr.mxu0 0.0
    %4665 = vmatpush1.msra.mxu0 0.0
    %4666 = vmatprep.subr.mxu0 0.0
    %4667 = vmatpush1.msra.mxu0 0.0
    %4668 = vmatprep.subr.mxu0 0.0
    %4669 = vmatpush1.msra.mxu0 0.0
    %4670 = vmatprep.subr.mxu0 0.0
    %4671 = vmatpush1.msra.mxu0 0.0
    %4672 = vmatprep.subr.mxu0 0.0
    %4673 = vmatpush1.msra.mxu0 0.0
    %4674 = vmatprep.subr.mxu0 0.0
    %4675 = vmatpush1.msra.mxu0 0.0
    %4676 = vmatprep.subr.mxu0 0.0
    %4677 = vmatpush1.msra.mxu0 0.0
    %4678 = vmatprep.subr.mxu0 0.0
    %4679 = vmatpush1.msra.mxu0 0.0
    %4680 = vmatprep.subr.mxu0 0.0
    %4681 = vmatpush1.msra.mxu0 0.0
    %4682 = vmatprep.subr.mxu0 0.0
    %4683 = vmatpush1.msra.mxu0 0.0
    %4684 = vmatprep.subr.mxu0 0.0
    %4685 = vmatpush1.msra.mxu0 0.0
    %4686 = vmatprep.subr.mxu0 0.0
    %4687 = vmatpush1.msra.mxu0 0.0
    %4688 = vmatprep.mubr.f32.mxu0 0.0
    %4689 = vmatmul.mubr.f32.gmra.mrb[0].mxu0 %v4622
    %v4690 = vpop.f32.mrb[0].mxu0
    %v4691 = vadd.f32 0.0, %v4690
    %v4692 = vpop.f32.mrb[0].mxu0
    %4693 = vdwg.mxu0
    %4695 = vrot.lane.b32.xlu0 %v4107, 112
    %v4696 = vpop.permute.xlu0 %4695
    %v4699 = vsel %vm473, %v4616, 0
    %4701 = vmatprep.subr.mxu0 0.0
    %4702 = vmatpush1.msra.mxu0 %v4696
    %4703 = vmatprep.subr.mxu0 0.0
    %4704 = vmatpush1.msra.mxu0 0.0
    %4705 = vmatprep.subr.mxu0 0.0
    %4706 = vmatpush1.msra.mxu0 0.0
    %4707 = vmatprep.subr.mxu0 0.0
    %4708 = vmatpush1.msra.mxu0 0.0
    %4709 = vmatprep.subr.mxu0 0.0
    %4710 = vmatpush1.msra.mxu0 0.0
    %4711 = vmatprep.subr.mxu0 0.0
    %4712 = vmatpush1.msra.mxu0 0.0
    %4713 = vmatprep.subr.mxu0 0.0
    %4714 = vmatpush1.msra.mxu0 0.0
    %4715 = vmatprep.subr.mxu0 0.0
    %4716 = vmatpush1.msra.mxu0 0.0
    %4717 = vmatprep.subr.mxu0 0.0
    %4718 = vmatpush1.msra.mxu0 0.0
    %4719 = vmatprep.subr.mxu0 0.0
    %4720 = vmatpush1.msra.mxu0 0.0
    %4721 = vmatprep.subr.mxu0 0.0
    %4722 = vmatpush1.msra.mxu0 0.0
    %4723 = vmatprep.subr.mxu0 0.0
    %4724 = vmatpush1.msra.mxu0 0.0
    %4725 = vmatprep.subr.mxu0 0.0
    %4726 = vmatpush1.msra.mxu0 0.0
    %4727 = vmatprep.subr.mxu0 0.0
    %4728 = vmatpush1.msra.mxu0 0.0
    %4729 = vmatprep.subr.mxu0 0.0
    %4730 = vmatpush1.msra.mxu0 0.0
    %4731 = vmatprep.subr.mxu0 0.0
    %4732 = vmatpush1.msra.mxu0 0.0
    %4733 = vmatprep.subr.mxu0 0.0
    %4734 = vmatpush1.msra.mxu0 0.0
    %4735 = vmatprep.subr.mxu0 0.0
    %4736 = vmatpush1.msra.mxu0 0.0
    %4737 = vmatprep.subr.mxu0 0.0
    %4738 = vmatpush1.msra.mxu0 0.0
    %4739 = vmatprep.subr.mxu0 0.0
    %4740 = vmatpush1.msra.mxu0 0.0
    %4741 = vmatprep.subr.mxu0 0.0
    %4742 = vmatpush1.msra.mxu0 0.0
    %4743 = vmatprep.subr.mxu0 0.0
    %4744 = vmatpush1.msra.mxu0 0.0
    %4745 = vmatprep.subr.mxu0 0.0
    %4746 = vmatpush1.msra.mxu0 0.0
    %4747 = vmatprep.subr.mxu0 0.0
    %4748 = vmatpush1.msra.mxu0 0.0
    %4749 = vmatprep.subr.mxu0 0.0
    %4750 = vmatpush1.msra.mxu0 0.0
    %4751 = vmatprep.subr.mxu0 0.0
    %4752 = vmatpush1.msra.mxu0 0.0
    %4753 = vmatprep.subr.mxu0 0.0
    %4754 = vmatpush1.msra.mxu0 0.0
    %4755 = vmatprep.subr.mxu0 0.0
    %4756 = vmatpush1.msra.mxu0 0.0
    %4757 = vmatprep.subr.mxu0 0.0
    %4758 = vmatpush1.msra.mxu0 0.0
    %4759 = vmatprep.subr.mxu0 0.0
    %4760 = vmatpush1.msra.mxu0 0.0
    %4761 = vmatprep.subr.mxu0 0.0
    %4762 = vmatpush1.msra.mxu0 0.0
    %4763 = vmatprep.subr.mxu0 0.0
    %4764 = vmatpush1.msra.mxu0 0.0
    %4765 = vmatprep.mubr.f32.mxu0 0.0
    %4766 = vmatmul.mubr.f32.gmra.mrb[0].mxu0 %v4699
    %v4767 = vpop.f32.mrb[0].mxu0
    %v4768 = vadd.f32 0.0, %v4767
    %v4769 = vpop.f32.mrb[0].mxu0
    %4770 = vdwg.mxu0
    %4771 = vrot.lane.b32.xlu0 %v4099, 96
    %v4772 = vpop.permute.xlu0 %4771
    %4773 = vrot.lane.b32.xlu0 %v4099, 32
    %v4774 = vpop.permute.xlu0 %4773
    %v4775 = vsel %vm280, %v4772, 0
    %v4777 = vsel %vm280, %v4774, 0
    %4779 = vmatprep.subr.mxu0 0.0
    %4780 = vmatpush1.xpose.msra.mxu0 %v4777
    %4781 = vmatprep.subr.mxu0 0.0
    %4782 = vmatpush1.xpose.msra.mxu0 0.0
    %4783 = vmatprep.subr.mxu0 0.0
    %4784 = vmatpush1.xpose.msra.mxu0 0.0
    %4785 = vmatprep.subr.mxu0 0.0
    %4786 = vmatpush1.xpose.msra.mxu0 0.0
    %4787 = vmatprep.subr.mxu0 0.0
    %4788 = vmatpush1.xpose.msra.mxu0 0.0
    %4789 = vmatprep.subr.mxu0 0.0
    %4790 = vmatpush1.xpose.msra.mxu0 0.0
    %4791 = vmatprep.subr.mxu0 0.0
    %4792 = vmatpush1.xpose.msra.mxu0 0.0
    %4793 = vmatprep.subr.mxu0 0.0
    %4794 = vmatpush1.xpose.msra.mxu0 0.0
    %4795 = vmatprep.subr.mxu0 0.0
    %4796 = vmatpush1.xpose.msra.mxu0 0.0
    %4797 = vmatprep.subr.mxu0 0.0
    %4798 = vmatpush1.xpose.msra.mxu0 0.0
    %4799 = vmatprep.subr.mxu0 0.0
    %4800 = vmatpush1.xpose.msra.mxu0 0.0
    %4801 = vmatprep.subr.mxu0 0.0
    %4802 = vmatpush1.xpose.msra.mxu0 0.0
    %4803 = vmatprep.subr.mxu0 0.0
    %4804 = vmatpush1.xpose.msra.mxu0 0.0
    %4805 = vmatprep.subr.mxu0 0.0
    %4806 = vmatpush1.xpose.msra.mxu0 0.0
    %4807 = vmatprep.subr.mxu0 0.0
    %4808 = vmatpush1.xpose.msra.mxu0 0.0
    %4809 = vmatprep.subr.mxu0 0.0
    %4810 = vmatpush1.xpose.msra.mxu0 0.0
    %4811 = vmatprep.subr.mxu0 0.0
    %4812 = vmatpush1.xpose.msra.mxu0 0.0
    %4813 = vmatprep.subr.mxu0 0.0
    %4814 = vmatpush1.xpose.msra.mxu0 0.0
    %4815 = vmatprep.subr.mxu0 0.0
    %4816 = vmatpush1.xpose.msra.mxu0 0.0
    %4817 = vmatprep.subr.mxu0 0.0
    %4818 = vmatpush1.xpose.msra.mxu0 0.0
    %4819 = vmatprep.subr.mxu0 0.0
    %4820 = vmatpush1.xpose.msra.mxu0 0.0
    %4821 = vmatprep.subr.mxu0 0.0
    %4822 = vmatpush1.xpose.msra.mxu0 0.0
    %4823 = vmatprep.subr.mxu0 0.0
    %4824 = vmatpush1.xpose.msra.mxu0 0.0
    %4825 = vmatprep.subr.mxu0 0.0
    %4826 = vmatpush1.xpose.msra.mxu0 0.0
    %4827 = vmatprep.subr.mxu0 0.0
    %4828 = vmatpush1.xpose.msra.mxu0 0.0
    %4829 = vmatprep.subr.mxu0 0.0
    %4830 = vmatpush1.xpose.msra.mxu0 0.0
    %4831 = vmatprep.subr.mxu0 0.0
    %4832 = vmatpush1.xpose.msra.mxu0 0.0
    %4833 = vmatprep.subr.mxu0 0.0
    %4834 = vmatpush1.xpose.msra.mxu0 0.0
    %4835 = vmatprep.subr.mxu0 0.0
    %4836 = vmatpush1.xpose.msra.mxu0 0.0
    %4837 = vmatprep.subr.mxu0 0.0
    %4838 = vmatpush1.xpose.msra.mxu0 0.0
    %4839 = vmatprep.subr.mxu0 0.0
    %4840 = vmatpush1.xpose.msra.mxu0 0.0
    %4841 = vmatprep.subr.mxu0 0.0
    %4842 = vmatpush1.xpose.msra.mxu0 0.0
    %4843 = vmatprep.mubr.f32.mxu0 0.0
    %4844 = vmatmul.mubr.f32.gmra.mrb[0].mxu0 %v4775
    %v4845 = vpop.f32.mrb[0].mxu0
    %v4846 = vadd.f32 0.0, %v4845
    %v4847 = vpop.f32.mrb[0].mxu0
    %4848 = vdwg.mxu0
    %4849 = vrot.lane.b32.xlu0 %v4105, 96
    %v4850 = vpop.permute.xlu0 %4849
    %4851 = vrot.lane.b32.xlu0 %v4105, 32
    %v4852 = vpop.permute.xlu0 %4851
    %v4853 = vsel %vm280, %v4850, 0
    %v4855 = vsel %vm280, %v4852, 0
    %4857 = vmatprep.subr.mxu0 0.0
    %4858 = vmatpush1.xpose.msra.mxu0 %v4855
    %4859 = vmatprep.subr.mxu0 0.0
    %4860 = vmatpush1.xpose.msra.mxu0 0.0
    %4861 = vmatprep.subr.mxu0 0.0
    %4862 = vmatpush1.xpose.msra.mxu0 0.0
    %4863 = vmatprep.subr.mxu0 0.0
    %4864 = vmatpush1.xpose.msra.mxu0 0.0
    %4865 = vmatprep.subr.mxu0 0.0
    %4866 = vmatpush1.xpose.msra.mxu0 0.0
    %4867 = vmatprep.subr.mxu0 0.0
    %4868 = vmatpush1.xpose.msra.mxu0 0.0
    %4869 = vmatprep.subr.mxu0 0.0
    %4870 = vmatpush1.xpose.msra.mxu0 0.0
    %4871 = vmatprep.subr.mxu0 0.0
    %4872 = vmatpush1.xpose.msra.mxu0 0.0
    %4873 = vmatprep.subr.mxu0 0.0
    %4874 = vmatpush1.xpose.msra.mxu0 0.0
    %4875 = vmatprep.subr.mxu0 0.0
    %4876 = vmatpush1.xpose.msra.mxu0 0.0
    %4877 = vmatprep.subr.mxu0 0.0
    %4878 = vmatpush1.xpose.msra.mxu0 0.0
    %4879 = vmatprep.subr.mxu0 0.0
    %4880 = vmatpush1.xpose.msra.mxu0 0.0
    %4881 = vmatprep.subr.mxu0 0.0
    %4882 = vmatpush1.xpose.msra.mxu0 0.0
    %4883 = vmatprep.subr.mxu0 0.0
    %4884 = vmatpush1.xpose.msra.mxu0 0.0
    %4885 = vmatprep.subr.mxu0 0.0
    %4886 = vmatpush1.xpose.msra.mxu0 0.0
    %4887 = vmatprep.subr.mxu0 0.0
    %4888 = vmatpush1.xpose.msra.mxu0 0.0
    %4889 = vmatprep.subr.mxu0 0.0
    %4890 = vmatpush1.xpose.msra.mxu0 0.0
    %4891 = vmatprep.subr.mxu0 0.0
    %4892 = vmatpush1.xpose.msra.mxu0 0.0
    %4893 = vmatprep.subr.mxu0 0.0
    %4894 = vmatpush1.xpose.msra.mxu0 0.0
    %4895 = vmatprep.subr.mxu0 0.0
    %4896 = vmatpush1.xpose.msra.mxu0 0.0
    %4897 = vmatprep.subr.mxu0 0.0
    %4898 = vmatpush1.xpose.msra.mxu0 0.0
    %4899 = vmatprep.subr.mxu0 0.0
    %4900 = vmatpush1.xpose.msra.mxu0 0.0
    %4901 = vmatprep.subr.mxu0 0.0
    %4902 = vmatpush1.xpose.msra.mxu0 0.0
    %4903 = vmatprep.subr.mxu0 0.0
    %4904 = vmatpush1.xpose.msra.mxu0 0.0
    %4905 = vmatprep.subr.mxu0 0.0
    %4906 = vmatpush1.xpose.msra.mxu0 0.0
    %4907 = vmatprep.subr.mxu0 0.0
    %4908 = vmatpush1.xpose.msra.mxu0 0.0
    %4909 = vmatprep.subr.mxu0 0.0
    %4910 = vmatpush1.xpose.msra.mxu0 0.0
    %4911 = vmatprep.subr.mxu0 0.0
    %4912 = vmatpush1.xpose.msra.mxu0 0.0
    %4913 = vmatprep.subr.mxu0 0.0
    %4914 = vmatpush1.xpose.msra.mxu0 0.0
    %4915 = vmatprep.subr.mxu0 0.0
    %4916 = vmatpush1.xpose.msra.mxu0 0.0
    %4917 = vmatprep.subr.mxu0 0.0
    %4918 = vmatpush1.xpose.msra.mxu0 0.0
    %4919 = vmatprep.subr.mxu0 0.0
    %4920 = vmatpush1.xpose.msra.mxu0 0.0
    %4921 = vmatprep.mubr.f32.mxu0 0.0
    %4922 = vmatmul.mubr.f32.gmra.mrb[0].mxu0 %v4853
    %v4923 = vpop.f32.mrb[0].mxu0
    %v4924 = vadd.f32 0.0, %v4923
    %v4925 = vpop.f32.mrb[0].mxu0
    %4926 = vdwg.mxu0
    %v4927 = vmul.f32 %v4846, 0.25
    %v4928 = vmul.f32 %v4924, 0.25
    %v4929 = vadd.f32 %v4927, %v462
    %v4930 = vadd.f32 %v4928, %v468
    %v4931 = vsel %vm473, %v4929, -inf
    %4932 = vmax.xlane.f32.xlu0 %v4931
    %v4933 = vpop.xlane.xlu0 %4932
    %v4934 = vsel %vm473, %v4930, -inf
    %4935 = vmax.xlane.f32.xlu0 %v4934
    %v4936 = vpop.xlane.xlu0 %4935
    %v4937 = vsub.f32 %v4929, %v4933
    %v4938 = vsub.f32 %v4930, %v4936
    %v4939 = vmul.f32 %v4937, 1.442695
    %v4940 = vpow.pop %v4939
    %v4941 = vmul.f32 %v4938, 1.442695
    %v4942 = vpow.pop %v4941
    %v4943 = vsel %vm473, %v4940, 0.0
    %4944 = vadd.xlane.f32.xlu0 %v4943
    %v4945 = vpop.xlane.xlu0 %4944
    %v4946 = vsel %vm473, %v4942, 0.0
    %4947 = vadd.xlane.f32.xlu0 %v4946
    %v4948 = vpop.xlane.xlu0 %4947
    %v4949 = vrcp.pop %v4945
    %v4950 = vmul.f32 %v4940, %v4949
    %v4951 = vrcp.pop %v4948
    %v4952 = vmul.f32 %v4942, %v4951
    %4953 = vrot.lane.b32.xlu0 %v4101, 96
    %v4954 = vpop.permute.xlu0 %4953
    %v4957 = vsel %vm473, %v4950, 0
    %4959 = vmatprep.subr.mxu0 0.0
    %4960 = vmatpush1.msra.mxu0 %v4954
    %4961 = vmatprep.subr.mxu0 0.0
    %4962 = vmatpush1.msra.mxu0 0.0
    %4963 = vmatprep.subr.mxu0 0.0
    %4964 = vmatpush1.msra.mxu0 0.0
    %4965 = vmatprep.subr.mxu0 0.0
    %4966 = vmatpush1.msra.mxu0 0.0
    %4967 = vmatprep.subr.mxu0 0.0
    %4968 = vmatpush1.msra.mxu0 0.0
    %4969 = vmatprep.subr.mxu0 0.0
    %4970 = vmatpush1.msra.mxu0 0.0
    %4971 = vmatprep.subr.mxu0 0.0
    %4972 = vmatpush1.msra.mxu0 0.0
    %4973 = vmatprep.subr.mxu0 0.0
    %4974 = vmatpush1.msra.mxu0 0.0
    %4975 = vmatprep.subr.mxu0 0.0
    %4976 = vmatpush1.msra.mxu0 0.0
    %4977 = vmatprep.subr.mxu0 0.0
    %4978 = vmatpush1.msra.mxu0 0.0
    %4979 = vmatprep.subr.mxu0 0.0
    %4980 = vmatpush1.msra.mxu0 0.0
    %4981 = vmatprep.subr.mxu0 0.0
    %4982 = vmatpush1.msra.mxu0 0.0
    %4983 = vmatprep.subr.mxu0 0.0
    %4984 = vmatpush1.msra.mxu0 0.0
    %4985 = vmatprep.subr.mxu0 0.0
    %4986 = vmatpush1.msra.mxu0 0.0
    %4987 = vmatprep.subr.mxu0 0.0
    %4988 = vmatpush1.msra.mxu0 0.0
    %4989 = vmatprep.subr.mxu0 0.0
    %4990 = vmatpush1.msra.mxu0 0.0
    %4991 = vmatprep.subr.mxu0 0.0
    %4992 = vmatpush1.msra.mxu0 0.0
    %4993 = vmatprep.subr.mxu0 0.0
    %4994 = vmatpush1.msra.mxu0 0.0
    %4995 = vmatprep.subr.mxu0 0.0
    %4996 = vmatpush1.msra.mxu0 0.0
    %4997 = vmatprep.subr.mxu0 0.0
    %4998 = vmatpush1.msra.mxu0 0.0
    %4999 = vmatprep.subr.mxu0 0.0
    %5000 = vmatpush1.msra.mxu0 0.0
    %5001 = vmatprep.subr.mxu0 0.0
    %5002 = vmatpush1.msra.mxu0 0.0
    %5003 = vmatprep.subr.mxu0 0.0
    %5004 = vmatpush1.msra.mxu0 0.0
    %5005 = vmatprep.subr.mxu0 0.0
    %5006 = vmatpush1.msra.mxu0 0.0
    %5007 = vmatprep.subr.mxu0 0.0
    %5008 = vmatpush1.msra.mxu0 0.0
    %5009 = vmatprep.subr.mxu0 0.0
    %5010 = vmatpush1.msra.mxu0 0.0
    %5011 = vmatprep.subr.mxu0 0.0
    %5012 = vmatpush1.msra.mxu0 0.0
    %5013 = vmatprep.subr.mxu0 0.0
    %5014 = vmatpush1.msra.mxu0 0.0
    %5015 = vmatprep.subr.mxu0 0.0
    %5016 = vmatpush1.msra.mxu0 0.0
    %5017 = vmatprep.subr.mxu0 0.0
    %5018 = vmatpush1.msra.mxu0 0.0
    %5019 = vmatprep.subr.mxu0 0.0
    %5020 = vmatpush1.msra.mxu0 0.0
    %5021 = vmatprep.subr.mxu0 0.0
    %5022 = vmatpush1.msra.mxu0 0.0
    %5023 = vmatprep.mubr.f32.mxu0 0.0
    %5024 = vmatmul.mubr.f32.gmra.mrb[0].mxu0 %v4957
    %v5025 = vpop.f32.mrb[0].mxu0
    %v5026 = vadd.f32 0.0, %v5025
    %v5027 = vpop.f32.mrb[0].mxu0
    %5028 = vdwg.mxu0
    %5029 = vrot.lane.b32.xlu0 %v4107, 96
    %v5030 = vpop.permute.xlu0 %5029
    %v5033 = vsel %vm473, %v4952, 0
    %5035 = vmatprep.subr.mxu0 0.0
    %5036 = vmatpush1.msra.mxu0 %v5030
    %5037 = vmatprep.subr.mxu0 0.0
    %5038 = vmatpush1.msra.mxu0 0.0
    %5039 = vmatprep.subr.mxu0 0.0
    %5040 = vmatpush1.msra.mxu0 0.0
    %5041 = vmatprep.subr.mxu0 0.0
    %5042 = vmatpush1.msra.mxu0 0.0
    %5043 = vmatprep.subr.mxu0 0.0
    %5044 = vmatpush1.msra.mxu0 0.0
    %5045 = vmatprep.subr.mxu0 0.0
    %5046 = vmatpush1.msra.mxu0 0.0
    %5047 = vmatprep.subr.mxu0 0.0
    %5048 = vmatpush1.msra.mxu0 0.0
    %5049 = vmatprep.subr.mxu0 0.0
    %5050 = vmatpush1.msra.mxu0 0.0
    %5051 = vmatprep.subr.mxu0 0.0
    %5052 = vmatpush1.msra.mxu0 0.0
    %5053 = vmatprep.subr.mxu0 0.0
    %5054 = vmatpush1.msra.mxu0 0.0
    %5055 = vmatprep.subr.mxu0 0.0
    %5056 = vmatpush1.msra.mxu0 0.0
    %5057 = vmatprep.subr.mxu0 0.0
    %5058 = vmatpush1.msra.mxu0 0.0
    %5059 = vmatprep.subr.mxu0 0.0
    %5060 = vmatpush1.msra.mxu0 0.0
    %5061 = vmatprep.subr.mxu0 0.0
    %5062 = vmatpush1.msra.mxu0 0.0
    %5063 = vmatprep.subr.mxu0 0.0
    %5064 = vmatpush1.msra.mxu0 0.0
    %5065 = vmatprep.subr.mxu0 0.0
    %5066 = vmatpush1.msra.mxu0 0.0
    %5067 = vmatprep.subr.mxu0 0.0
    %5068 = vmatpush1.msra.mxu0 0.0
    %5069 = vmatprep.subr.mxu0 0.0
    %5070 = vmatpush1.msra.mxu0 0.0
    %5071 = vmatprep.subr.mxu0 0.0
    %5072 = vmatpush1.msra.mxu0 0.0
    %5073 = vmatprep.subr.mxu0 0.0
    %5074 = vmatpush1.msra.mxu0 0.0
    %5075 = vmatprep.subr.mxu0 0.0
    %5076 = vmatpush1.msra.mxu0 0.0
    %5077 = vmatprep.subr.mxu0 0.0
    %5078 = vmatpush1.msra.mxu0 0.0
    %5079 = vmatprep.subr.mxu0 0.0
    %5080 = vmatpush1.msra.mxu0 0.0
    %5081 = vmatprep.subr.mxu0 0.0
    %5082 = vmatpush1.msra.mxu0 0.0
    %5083 = vmatprep.subr.mxu0 0.0
    %5084 = vmatpush1.msra.mxu0 0.0
    %5085 = vmatprep.subr.mxu0 0.0
    %5086 = vmatpush1.msra.mxu0 0.0
    %5087 = vmatprep.subr.mxu0 0.0
    %5088 = vmatpush1.msra.mxu0 0.0
    %5089 = vmatprep.subr.mxu0 0.0
    %5090 = vmatpush1.msra.mxu0 0.0
    %5091 = vmatprep.subr.mxu0 0.0
    %5092 = vmatpush1.msra.mxu0 0.0
    %5093 = vmatprep.subr.mxu0 0.0
    %5094 = vmatpush1.msra.mxu0 0.0
    %5095 = vmatprep.subr.mxu0 0.0
    %5096 = vmatpush1.msra.mxu0 0.0
    %5097 = vmatprep.subr.mxu0 0.0
    %5098 = vmatpush1.msra.mxu0 0.0
    %5099 = vmatprep.mubr.f32.mxu0 0.0
    %5100 = vmatmul.mubr.f32.gmra.mrb[0].mxu0 %v5033
    %v5101 = vpop.f32.mrb[0].mxu0
    %v5102 = vadd.f32 0.0, %v5101
    %v5103 = vpop.f32.mrb[0].mxu0
    %5104 = vdwg.mxu0
    %5105 = vrot.lane.b32.xlu0 %v4099, 80
    %v5106 = vpop.permute.xlu0 %5105
    %5107 = vrot.lane.b32.xlu0 %v4099, 16
    %v5108 = vpop.permute.xlu0 %5107
    %v5109 = vsel %vm280, %v5106, 0
    %v5111 = vsel %vm280, %v5108, 0
    %5113 = vmatprep.subr.mxu0 0.0
    %5114 = vmatpush1.xpose.msra.mxu0 %v5111
    %5115 = vmatprep.subr.mxu0 0.0
    %5116 = vmatpush1.xpose.msra.mxu0 0.0
    %5117 = vmatprep.subr.mxu0 0.0
    %5118 = vmatpush1.xpose.msra.mxu0 0.0
    %5119 = vmatprep.subr.mxu0 0.0
    %5120 = vmatpush1.xpose.msra.mxu0 0.0
    %5121 = vmatprep.subr.mxu0 0.0
    %5122 = vmatpush1.xpose.msra.mxu0 0.0
    %5123 = vmatprep.subr.mxu0 0.0
    %5124 = vmatpush1.xpose.msra.mxu0 0.0
    %5125 = vmatprep.subr.mxu0 0.0
    %5126 = vmatpush1.xpose.msra.mxu0 0.0
    %5127 = vmatprep.subr.mxu0 0.0
    %5128 = vmatpush1.xpose.msra.mxu0 0.0
    %5129 = vmatprep.subr.mxu0 0.0
    %5130 = vmatpush1.xpose.msra.mxu0 0.0
    %5131 = vmatprep.subr.mxu0 0.0
    %5132 = vmatpush1.xpose.msra.mxu0 0.0
    %5133 = vmatprep.subr.mxu0 0.0
    %5134 = vmatpush1.xpose.msra.mxu0 0.0
    %5135 = vmatprep.subr.mxu0 0.0
    %5136 = vmatpush1.xpose.msra.mxu0 0.0
    %5137 = vmatprep.subr.mxu0 0.0
    %5138 = vmatpush1.xpose.msra.mxu0 0.0
    %5139 = vmatprep.subr.mxu0 0.0
    %5140 = vmatpush1.xpose.msra.mxu0 0.0
    %5141 = vmatprep.subr.mxu0 0.0
    %5142 = vmatpush1.xpose.msra.mxu0 0.0
    %5143 = vmatprep.subr.mxu0 0.0
    %5144 = vmatpush1.xpose.msra.mxu0 0.0
    %5145 = vmatprep.subr.mxu0 0.0
    %5146 = vmatpush1.xpose.msra.mxu0 0.0
    %5147 = vmatprep.subr.mxu0 0.0
    %5148 = vmatpush1.xpose.msra.mxu0 0.0
    %5149 = vmatprep.subr.mxu0 0.0
    %5150 = vmatpush1.xpose.msra.mxu0 0.0
    %5151 = vmatprep.subr.mxu0 0.0
    %5152 = vmatpush1.xpose.msra.mxu0 0.0
    %5153 = vmatprep.subr.mxu0 0.0
    %5154 = vmatpush1.xpose.msra.mxu0 0.0
    %5155 = vmatprep.subr.mxu0 0.0
    %5156 = vmatpush1.xpose.msra.mxu0 0.0
    %5157 = vmatprep.subr.mxu0 0.0
    %5158 = vmatpush1.xpose.msra.mxu0 0.0
    %5159 = vmatprep.subr.mxu0 0.0
    %5160 = vmatpush1.xpose.msra.mxu0 0.0
    %5161 = vmatprep.subr.mxu0 0.0
    %5162 = vmatpush1.xpose.msra.mxu0 0.0
    %5163 = vmatprep.subr.mxu0 0.0
    %5164 = vmatpush1.xpose.msra.mxu0 0.0
    %5165 = vmatprep.subr.mxu0 0.0
    %5166 = vmatpush1.xpose.msra.mxu0 0.0
    %5167 = vmatprep.subr.mxu0 0.0
    %5168 = vmatpush1.xpose.msra.mxu0 0.0
    %5169 = vmatprep.subr.mxu0 0.0
    %5170 = vmatpush1.xpose.msra.mxu0 0.0
    %5171 = vmatprep.subr.mxu0 0.0
    %5172 = vmatpush1.xpose.msra.mxu0 0.0
    %5173 = vmatprep.subr.mxu0 0.0
    %5174 = vmatpush1.xpose.msra.mxu0 0.0
    %5175 = vmatprep.subr.mxu0 0.0
    %5176 = vmatpush1.xpose.msra.mxu0 0.0
    %5177 = vmatprep.mubr.f32.mxu0 0.0
    %5178 = vmatmul.mubr.f32.gmra.mrb[0].mxu0 %v5109
    %v5179 = vpop.f32.mrb[0].mxu0
    %v5180 = vadd.f32 0.0, %v5179
    %v5181 = vpop.f32.mrb[0].mxu0
    %5182 = vdwg.mxu0
    %5183 = vrot.lane.b32.xlu0 %v4105, 80
    %v5184 = vpop.permute.xlu0 %5183
    %5185 = vrot.lane.b32.xlu0 %v4105, 16
    %v5186 = vpop.permute.xlu0 %5185
    %v5187 = vsel %vm280, %v5184, 0
    %v5189 = vsel %vm280, %v5186, 0
    %5191 = vmatprep.subr.mxu0 0.0
    %5192 = vmatpush1.xpose.msra.mxu0 %v5189
    %5193 = vmatprep.subr.mxu0 0.0
    %5194 = vmatpush1.xpose.msra.mxu0 0.0
    %5195 = vmatprep.subr.mxu0 0.0
    %5196 = vmatpush1.xpose.msra.mxu0 0.0
    %5197 = vmatprep.subr.mxu0 0.0
    %5198 = vmatpush1.xpose.msra.mxu0 0.0
    %5199 = vmatprep.subr.mxu0 0.0
    %5200 = vmatpush1.xpose.msra.mxu0 0.0
    %5201 = vmatprep.subr.mxu0 0.0
    %5202 = vmatpush1.xpose.msra.mxu0 0.0
    %5203 = vmatprep.subr.mxu0 0.0
    %5204 = vmatpush1.xpose.msra.mxu0 0.0
    %5205 = vmatprep.subr.mxu0 0.0
    %5206 = vmatpush1.xpose.msra.mxu0 0.0
    %5207 = vmatprep.subr.mxu0 0.0
    %5208 = vmatpush1.xpose.msra.mxu0 0.0
    %5209 = vmatprep.subr.mxu0 0.0
    %5210 = vmatpush1.xpose.msra.mxu0 0.0
    %5211 = vmatprep.subr.mxu0 0.0
    %5212 = vmatpush1.xpose.msra.mxu0 0.0
    %5213 = vmatprep.subr.mxu0 0.0
    %5214 = vmatpush1.xpose.msra.mxu0 0.0
    %5215 = vmatprep.subr.mxu0 0.0
    %5216 = vmatpush1.xpose.msra.mxu0 0.0
    %5217 = vmatprep.subr.mxu0 0.0
    %5218 = vmatpush1.xpose.msra.mxu0 0.0
    %5219 = vmatprep.subr.mxu0 0.0
    %5220 = vmatpush1.xpose.msra.mxu0 0.0
    %5221 = vmatprep.subr.mxu0 0.0
    %5222 = vmatpush1.xpose.msra.mxu0 0.0
    %5223 = vmatprep.subr.mxu0 0.0
    %5224 = vmatpush1.xpose.msra.mxu0 0.0
    %5225 = vmatprep.subr.mxu0 0.0
    %5226 = vmatpush1.xpose.msra.mxu0 0.0
    %5227 = vmatprep.subr.mxu0 0.0
    %5228 = vmatpush1.xpose.msra.mxu0 0.0
    %5229 = vmatprep.subr.mxu0 0.0
    %5230 = vmatpush1.xpose.msra.mxu0 0.0
    %5231 = vmatprep.subr.mxu0 0.0
    %5232 = vmatpush1.xpose.msra.mxu0 0.0
    %5233 = vmatprep.subr.mxu0 0.0
    %5234 = vmatpush1.xpose.msra.mxu0 0.0
    %5235 = vmatprep.subr.mxu0 0.0
    %5236 = vmatpush1.xpose.msra.mxu0 0.0
    %5237 = vmatprep.subr.mxu0 0.0
    %5238 = vmatpush1.xpose.msra.mxu0 0.0
    %5239 = vmatprep.subr.mxu0 0.0
    %5240 = vmatpush1.xpose.msra.mxu0 0.0
    %5241 = vmatprep.subr.mxu0 0.0
    %5242 = vmatpush1.xpose.msra.mxu0 0.0
    %5243 = vmatprep.subr.mxu0 0.0
    %5244 = vmatpush1.xpose.msra.mxu0 0.0
    %5245 = vmatprep.subr.mxu0 0.0
    %5246 = vmatpush1.xpose.msra.mxu0 0.0
    %5247 = vmatprep.subr.mxu0 0.0
    %5248 = vmatpush1.xpose.msra.mxu0 0.0
    %5249 = vmatprep.subr.mxu0 0.0
    %5250 = vmatpush1.xpose.msra.mxu0 0.0
    %5251 = vmatprep.subr.mxu0 0.0
    %5252 = vmatpush1.xpose.msra.mxu0 0.0
    %5253 = vmatprep.subr.mxu0 0.0
    %5254 = vmatpush1.xpose.msra.mxu0 0.0
    %5255 = vmatprep.mubr.f32.mxu0 0.0
    %5256 = vmatmul.mubr.f32.gmra.mrb[0].mxu0 %v5187
    %v5257 = vpop.f32.mrb[0].mxu0
    %v5258 = vadd.f32 0.0, %v5257
    %v5259 = vpop.f32.mrb[0].mxu0
    %5260 = vdwg.mxu0
    %v5261 = vmul.f32 %v5180, 0.25
    %v5262 = vmul.f32 %v5258, 0.25
    %v5263 = vadd.f32 %v5261, %v462
    %v5264 = vadd.f32 %v5262, %v468
    %v5265 = vsel %vm473, %v5263, -inf
    %5266 = vmax.xlane.f32.xlu0 %v5265
    %v5267 = vpop.xlane.xlu0 %5266
    %v5268 = vsel %vm473, %v5264, -inf
    %5269 = vmax.xlane.f32.xlu0 %v5268
    %v5270 = vpop.xlane.xlu0 %5269
    %v5271 = vsub.f32 %v5263, %v5267
    %v5272 = vsub.f32 %v5264, %v5270
    %v5273 = vmul.f32 %v5271, 1.442695
    %v5274 = vpow.pop %v5273
    %v5275 = vmul.f32 %v5272, 1.442695
    %v5276 = vpow.pop %v5275
    %v5277 = vsel %vm473, %v5274, 0.0
    %5278 = vadd.xlane.f32.xlu0 %v5277
    %v5279 = vpop.xlane.xlu0 %5278
    %v5280 = vsel %vm473, %v5276, 0.0
    %5281 = vadd.xlane.f32.xlu0 %v5280
    %v5282 = vpop.xlane.xlu0 %5281
    %v5283 = vrcp.pop %v5279
    %v5284 = vmul.f32 %v5274, %v5283
    %v5285 = vrcp.pop %v5282
    %v5286 = vmul.f32 %v5276, %v5285
    %5287 = vrot.lane.b32.xlu0 %v4101, 80
    %v5288 = vpop.permute.xlu0 %5287
    %v5291 = vsel %vm473, %v5284, 0
    %5293 = vmatprep.subr.mxu0 0.0
    %5294 = vmatpush1.msra.mxu0 %v5288
    %5295 = vmatprep.subr.mxu0 0.0
    %5296 = vmatpush1.msra.mxu0 0.0
    %5297 = vmatprep.subr.mxu0 0.0
    %5298 = vmatpush1.msra.mxu0 0.0
    %5299 = vmatprep.subr.mxu0 0.0
    %5300 = vmatpush1.msra.mxu0 0.0
    %5301 = vmatprep.subr.mxu0 0.0
    %5302 = vmatpush1.msra.mxu0 0.0
    %5303 = vmatprep.subr.mxu0 0.0
    %5304 = vmatpush1.msra.mxu0 0.0
    %5305 = vmatprep.subr.mxu0 0.0
    %5306 = vmatpush1.msra.mxu0 0.0
    %5307 = vmatprep.subr.mxu0 0.0
    %5308 = vmatpush1.msra.mxu0 0.0
    %5309 = vmatprep.subr.mxu0 0.0
    %5310 = vmatpush1.msra.mxu0 0.0
    %5311 = vmatprep.subr.mxu0 0.0
    %5312 = vmatpush1.msra.mxu0 0.0
    %5313 = vmatprep.subr.mxu0 0.0
    %5314 = vmatpush1.msra.mxu0 0.0
    %5315 = vmatprep.subr.mxu0 0.0
    %5316 = vmatpush1.msra.mxu0 0.0
    %5317 = vmatprep.subr.mxu0 0.0
    %5318 = vmatpush1.msra.mxu0 0.0
    %5319 = vmatprep.subr.mxu0 0.0
    %5320 = vmatpush1.msra.mxu0 0.0
    %5321 = vmatprep.subr.mxu0 0.0
    %5322 = vmatpush1.msra.mxu0 0.0
    %5323 = vmatprep.subr.mxu0 0.0
    %5324 = vmatpush1.msra.mxu0 0.0
    %5325 = vmatprep.subr.mxu0 0.0
    %5326 = vmatpush1.msra.mxu0 0.0
    %5327 = vmatprep.subr.mxu0 0.0
    %5328 = vmatpush1.msra.mxu0 0.0
    %5329 = vmatprep.subr.mxu0 0.0
    %5330 = vmatpush1.msra.mxu0 0.0
    %5331 = vmatprep.subr.mxu0 0.0
    %5332 = vmatpush1.msra.mxu0 0.0
    %5333 = vmatprep.subr.mxu0 0.0
    %5334 = vmatpush1.msra.mxu0 0.0
    %5335 = vmatprep.subr.mxu0 0.0
    %5336 = vmatpush1.msra.mxu0 0.0
    %5337 = vmatprep.subr.mxu0 0.0
    %5338 = vmatpush1.msra.mxu0 0.0
    %5339 = vmatprep.subr.mxu0 0.0
    %5340 = vmatpush1.msra.mxu0 0.0
    %5341 = vmatprep.subr.mxu0 0.0
    %5342 = vmatpush1.msra.mxu0 0.0
    %5343 = vmatprep.subr.mxu0 0.0
    %5344 = vmatpush1.msra.mxu0 0.0
    %5345 = vmatprep.subr.mxu0 0.0
    %5346 = vmatpush1.msra.mxu0 0.0
    %5347 = vmatprep.subr.mxu0 0.0
    %5348 = vmatpush1.msra.mxu0 0.0
    %5349 = vmatprep.subr.mxu0 0.0
    %5350 = vmatpush1.msra.mxu0 0.0
    %5351 = vmatprep.subr.mxu0 0.0
    %5352 = vmatpush1.msra.mxu0 0.0
    %5353 = vmatprep.subr.mxu0 0.0
    %5354 = vmatpush1.msra.mxu0 0.0
    %5355 = vmatprep.subr.mxu0 0.0
    %5356 = vmatpush1.msra.mxu0 0.0
    %5357 = vmatprep.mubr.f32.mxu0 0.0
    %5358 = vmatmul.mubr.f32.gmra.mrb[0].mxu0 %v5291
    %v5359 = vpop.f32.mrb[0].mxu0
    %v5360 = vadd.f32 0.0, %v5359
    %v5361 = vpop.f32.mrb[0].mxu0
    %5362 = vdwg.mxu0
    %5363 = vrot.lane.b32.xlu0 %v4107, 80
    %v5364 = vpop.permute.xlu0 %5363
    %v5367 = vsel %vm473, %v5286, 0
    %5369 = vmatprep.subr.mxu0 0.0
    %5370 = vmatpush1.msra.mxu0 %v5364
    %5371 = vmatprep.subr.mxu0 0.0
    %5372 = vmatpush1.msra.mxu0 0.0
    %5373 = vmatprep.subr.mxu0 0.0
    %5374 = vmatpush1.msra.mxu0 0.0
    %5375 = vmatprep.subr.mxu0 0.0
    %5376 = vmatpush1.msra.mxu0 0.0
    %5377 = vmatprep.subr.mxu0 0.0
    %5378 = vmatpush1.msra.mxu0 0.0
    %5379 = vmatprep.subr.mxu0 0.0
    %5380 = vmatpush1.msra.mxu0 0.0
    %5381 = vmatprep.subr.mxu0 0.0
    %5382 = vmatpush1.msra.mxu0 0.0
    %5383 = vmatprep.subr.mxu0 0.0
    %5384 = vmatpush1.msra.mxu0 0.0
    %5385 = vmatprep.subr.mxu0 0.0
    %5386 = vmatpush1.msra.mxu0 0.0
    %5387 = vmatprep.subr.mxu0 0.0
    %5388 = vmatpush1.msra.mxu0 0.0
    %5389 = vmatprep.subr.mxu0 0.0
    %5390 = vmatpush1.msra.mxu0 0.0
    %5391 = vmatprep.subr.mxu0 0.0
    %5392 = vmatpush1.msra.mxu0 0.0
    %5393 = vmatprep.subr.mxu0 0.0
    %5394 = vmatpush1.msra.mxu0 0.0
    %5395 = vmatprep.subr.mxu0 0.0
    %5396 = vmatpush1.msra.mxu0 0.0
    %5397 = vmatprep.subr.mxu0 0.0
    %5398 = vmatpush1.msra.mxu0 0.0
    %5399 = vmatprep.subr.mxu0 0.0
    %5400 = vmatpush1.msra.mxu0 0.0
    %5401 = vmatprep.subr.mxu0 0.0
    %5402 = vmatpush1.msra.mxu0 0.0
    %5403 = vmatprep.subr.mxu0 0.0
    %5404 = vmatpush1.msra.mxu0 0.0
    %5405 = vmatprep.subr.mxu0 0.0
    %5406 = vmatpush1.msra.mxu0 0.0
    %5407 = vmatprep.subr.mxu0 0.0
    %5408 = vmatpush1.msra.mxu0 0.0
    %5409 = vmatprep.subr.mxu0 0.0
    %5410 = vmatpush1.msra.mxu0 0.0
    %5411 = vmatprep.subr.mxu0 0.0
    %5412 = vmatpush1.msra.mxu0 0.0
    %5413 = vmatprep.subr.mxu0 0.0
    %5414 = vmatpush1.msra.mxu0 0.0
    %5415 = vmatprep.subr.mxu0 0.0
    %5416 = vmatpush1.msra.mxu0 0.0
    %5417 = vmatprep.subr.mxu0 0.0
    %5418 = vmatpush1.msra.mxu0 0.0
    %5419 = vmatprep.subr.mxu0 0.0
    %5420 = vmatpush1.msra.mxu0 0.0
    %5421 = vmatprep.subr.mxu0 0.0
    %5422 = vmatpush1.msra.mxu0 0.0
    %5423 = vmatprep.subr.mxu0 0.0
    %5424 = vmatpush1.msra.mxu0 0.0
    %5425 = vmatprep.subr.mxu0 0.0
    %5426 = vmatpush1.msra.mxu0 0.0
    %5427 = vmatprep.subr.mxu0 0.0
    %5428 = vmatpush1.msra.mxu0 0.0
    %5429 = vmatprep.subr.mxu0 0.0
    %5430 = vmatpush1.msra.mxu0 0.0
    %5431 = vmatprep.subr.mxu0 0.0
    %5432 = vmatpush1.msra.mxu0 0.0
    %5433 = vmatprep.mubr.f32.mxu0 0.0
    %5434 = vmatmul.mubr.f32.gmra.mrb[0].mxu0 %v5367
    %v5435 = vpop.f32.mrb[0].mxu0
    %v5436 = vadd.f32 0.0, %v5435
    %v5437 = vpop.f32.mrb[0].mxu0
    %5438 = vdwg.mxu0
    %5441 = vrot.lane.b32.xlu0 %v4691, 16
    %v5442 = vpop.permute.xlu0 %5441
    %5443 = vrot.lane.b32.xlu0 %v4768, 16
    %v5444 = vpop.permute.xlu0 %5443
    %5449 = vrot.lane.b32.xlu0 %v5026, 32
    %v5450 = vpop.permute.xlu0 %5449
    %5451 = vrot.lane.b32.xlu0 %v5102, 32
    %v5452 = vpop.permute.xlu0 %5451
    %5457 = vrot.lane.b32.xlu0 %v5360, 48
    %v5458 = vpop.permute.xlu0 %5457
    %5459 = vrot.lane.b32.xlu0 %v5436, 48
    %v5460 = vpop.permute.xlu0 %5459
    %v5463 = vsel %vm280, %v4359, %v5442
    %v5464 = vsel %vm280, %v4432, %v5444
    %v5465 = vsel %vm1672, %v5463, %v5450
    %v5466 = vsel %vm1672, %v5464, %v5452
    %v5467 = vsel %vm1675, %v5465, %v5458
    %v5468 = vsel %vm1675, %v5466, %v5460
    %s5469 = scalar_lea.vmem %s5, 128
    %v5470 = vld [vmem:[%s5469] sm:$0xff]
    %v5471 = vld [vmem:[%s5469 + $0x8] sm:$0xff]
    %v5472 = vld [vmem:[%s5469 + $0x10] sm:$0xff]
    %v5473 = vld [vmem:[%s5469 + $0x18] sm:$0xff]
    %v5474 = vld [vmem:[%s5469 + $0x20] sm:$0xff]
    %v5475 = vld [vmem:[%s5469 + $0x28] sm:$0xff]
    %v5476 = vld [vmem:[%s5469 + $0x30] sm:$0xff]
    %v5477 = vld [vmem:[%s5469 + $0x38] sm:$0xff]
    %s5478 = scalar_lea.vmem %s6, 2
    %v5479 = vld [vmem:[%s5478] sm:$0x1]
    %v5481 = vlaneseq
    %v5482 = vshrl.u32 %v5481, 7
    %v5483 = vsub.s32 0, %v5482
    %v5484 = vrot.slane %v5479, %v5483
    %v5487 = vsel %vm193, %v5467, 0
    %v5490 = vsel %vm193, %v5468, 0
    %5492 = vmatprep.subr.mxu0 0.0
    %5493 = vmatpush1.msra.mxu0 %v5470
    %5494 = vmatprep.subr.mxu0 0.0
    %5495 = vmatpush1.msra.mxu0 %v5471
    %5496 = vmatprep.subr.mxu0 0.0
    %5497 = vmatpush1.msra.mxu0 %v5472
    %5498 = vmatprep.subr.mxu0 0.0
    %5499 = vmatpush1.msra.mxu0 %v5473
    %5500 = vmatprep.subr.mxu0 0.0
    %5501 = vmatpush1.msra.mxu0 %v5474
    %5502 = vmatprep.subr.mxu0 0.0
    %5503 = vmatpush1.msra.mxu0 %v5475
    %5504 = vmatprep.subr.mxu0 0.0
    %5505 = vmatpush1.msra.mxu0 %v5476
    %5506 = vmatprep.subr.mxu0 0.0
    %5507 = vmatpush1.msra.mxu0 %v5477
    %5508 = vmatprep.subr.mxu0 0.0
    %5509 = vmatpush1.msra.mxu0 0.0
    %5510 = vmatprep.subr.mxu0 0.0
    %5511 = vmatpush1.msra.mxu0 0.0
    %5512 = vmatprep.subr.mxu0 0.0
    %5513 = vmatpush1.msra.mxu0 0.0
    %5514 = vmatprep.subr.mxu0 0.0
    %5515 = vmatpush1.msra.mxu0 0.0
    %5516 = vmatprep.subr.mxu0 0.0
    %5517 = vmatpush1.msra.mxu0 0.0
    %5518 = vmatprep.subr.mxu0 0.0
    %5519 = vmatpush1.msra.mxu0 0.0
    %5520 = vmatprep.subr.mxu0 0.0
    %5521 = vmatpush1.msra.mxu0 0.0
    %5522 = vmatprep.subr.mxu0 0.0
    %5523 = vmatpush1.msra.mxu0 0.0
    %5524 = vmatprep.subr.mxu0 0.0
    %5525 = vmatpush1.msra.mxu0 0.0
    %5526 = vmatprep.subr.mxu0 0.0
    %5527 = vmatpush1.msra.mxu0 0.0
    %5528 = vmatprep.subr.mxu0 0.0
    %5529 = vmatpush1.msra.mxu0 0.0
    %5530 = vmatprep.subr.mxu0 0.0
    %5531 = vmatpush1.msra.mxu0 0.0
    %5532 = vmatprep.subr.mxu0 0.0
    %5533 = vmatpush1.msra.mxu0 0.0
    %5534 = vmatprep.subr.mxu0 0.0
    %5535 = vmatpush1.msra.mxu0 0.0
    %5536 = vmatprep.subr.mxu0 0.0
    %5537 = vmatpush1.msra.mxu0 0.0
    %5538 = vmatprep.subr.mxu0 0.0
    %5539 = vmatpush1.msra.mxu0 0.0
    %5540 = vmatprep.subr.mxu0 0.0
    %5541 = vmatpush1.msra.mxu0 0.0
    %5542 = vmatprep.subr.mxu0 0.0
    %5543 = vmatpush1.msra.mxu0 0.0
    %5544 = vmatprep.subr.mxu0 0.0
    %5545 = vmatpush1.msra.mxu0 0.0
    %5546 = vmatprep.subr.mxu0 0.0
    %5547 = vmatpush1.msra.mxu0 0.0
    %5548 = vmatprep.subr.mxu0 0.0
    %5549 = vmatpush1.msra.mxu0 0.0
    %5550 = vmatprep.subr.mxu0 0.0
    %5551 = vmatpush1.msra.mxu0 0.0
    %5552 = vmatprep.subr.mxu0 0.0
    %5553 = vmatpush1.msra.mxu0 0.0
    %5554 = vmatprep.subr.mxu0 0.0
    %5555 = vmatpush1.msra.mxu0 0.0
    %5556 = vmatprep.mubr.f32.mxu0 0.0
    %5557 = vmatmul.mubr.f32.gmra.mrb[0].mxu0 %v5487
    %v5558 = vpop.f32.mrb[0].mxu0
    %v5559 = vadd.f32 %v5484, %v5558
    %v5560 = vpop.f32.mrb[0].mxu0
    %5561 = vmatprep.mubr.f32.mxu0 0.0
    %5562 = vmatmul.mubr.f32.gmra.mrb[0].mxu0 %v5490
    %v5563 = vpop.f32.mrb[0].mxu0
    %v5564 = vadd.f32 %v5484, %v5563
    %v5565 = vpop.f32.mrb[0].mxu0
    %5566 = vdwg.mxu0
    %v5567 = vadd.f32 %v3994, %v5559
    %v5568 = vadd.f32 %v3995, %v5564
    %s5569 = scalar_lea.vmem %s7, 2
    %v5570 = vld [vmem:[%s5569] sm:$0x1]
    %s5571 = scalar_lea.vmem %s8, 2
    %v5572 = vld [vmem:[%s5571] sm:$0x1]
    %v5573 = vsel %vm193, %v5567, 0.0
    %5574 = vadd.xlane.f32.xlu0 %v5573
    %v5575 = vpop.xlane.xlu0 %5574
    %v5576 = vsel %vm193, %v5568, 0.0
    %5577 = vadd.xlane.f32.xlu0 %v5576
    %v5578 = vpop.xlane.xlu0 %5577
    %v5579 = vmul.f32 %v5575, %v1784
    %v5580 = vmul.f32 %v5578, %v1784
    %v5581 = vsub.f32 %v5567, %v5579
    %v5582 = vsub.f32 %v5568, %v5580
    %v5583 = vmul.f32 %v5581, %v5581
    %v5584 = vmul.f32 %v5582, %v5582
    %v5585 = vsel %vm193, %v5583, 0.0
    %5586 = vadd.xlane.f32.xlu0 %v5585
    %v5587 = vpop.xlane.xlu0 %5586
    %v5588 = vsel %vm193, %v5584, 0.0
    %5589 = vadd.xlane.f32.xlu0 %v5588
    %v5590 = vpop.xlane.xlu0 %5589
    %v5591 = vmul.f32 %v5587, %v1784
    %v5592 = vmul.f32 %v5590, %v1784
    %v5593 = vadd.f32 %v5591, 1e-05
    %v5594 = vadd.f32 %v5592, 1e-05
    %v5595 = vrsqrt.pop %v5593
    %v5596 = vrsqrt.pop %v5594
    %v5597 = vmul.f32 %v5581, %v5595
    %v5598 = vmul.f32 %v5582, %v5596
    %v5600 = vlaneseq
    %v5601 = vshrl.u32 %v5600, 7
    %v5602 = vsub.s32 0, %v5601
    %v5603 = vrot.slane %v5570, %v5602
    %v5605 = vmul.f32 %v5597, %v5603
    %v5606 = vmul.f32 %v5598, %v5603
    %v5608 = vlaneseq
    %v5609 = vshrl.u32 %v5608, 7
    %v5610 = vsub.s32 0, %v5609
    %v5611 = vrot.slane %v5572, %v5610
    %v5613 = vadd.f32 %v5605, %v5611
    %v5614 = vadd.f32 %v5606, %v5611
    %s5615 = scalar_lea.vmem %s11, 256
    %v5616 = vld [vmem:[%s5615] sm:$0xff]
    %v5617 = vld [vmem:[%s5615 + $0x8] sm:$0xff]
    %v5618 = vld [vmem:[%s5615 + $0x10] sm:$0xff]
    %v5619 = vld [vmem:[%s5615 + $0x18] sm:$0xff]
    %v5620 = vld [vmem:[%s5615 + $0x20] sm:$0xff]
    %v5621 = vld [vmem:[%s5615 + $0x28] sm:$0xff]
    %v5622 = vld [vmem:[%s5615 + $0x30] sm:$0xff]
    %v5623 = vld [vmem:[%s5615 + $0x38] sm:$0xff]
    %v5624 = vld [vmem:[%s5615 + $0x40] sm:$0xff]
    %v5625 = vld [vmem:[%s5615 + $0x48] sm:$0xff]
    %v5626 = vld [vmem:[%s5615 + $0x50] sm:$0xff]
    %v5627 = vld [vmem:[%s5615 + $0x58] sm:$0xff]
    %v5628 = vld [vmem:[%s5615 + $0x60] sm:$0xff]
    %v5629 = vld [vmem:[%s5615 + $0x68] sm:$0xff]
    %v5630 = vld [vmem:[%s5615 + $0x70] sm:$0xff]
    %v5631 = vld [vmem:[%s5615 + $0x78] sm:$0xff]
    %s5632 = scalar_lea.vmem %s12, 4
    %v5633 = vld [vmem:[%s5632] sm:$0x3]
    %v5635 = vlaneseq
    %v5636 = vshrl.u32 %v5635, 7
    %v5637 = vsub.s32 0, %v5636
    %v5638 = vrot.slane %v5633, %v5637
    %v5639 = vlaneseq
    %v5640 = vshrl.u32 %v5639, 7
    %v5641 = vsub.s32 1, %v5640
    %v5642 = vrot.slane %v5633, %v5641
    %v5646 = vsel %vm193, %v5613, 0
    %v5649 = vsel %vm193, %v5614, 0
    %5651 = vmatprep.subr.mxu0 %v5617
    %5652 = vmatpush1.msra.mxu0 %v5616
    %5653 = vmatprep.subr.mxu0 %v5619
    %5654 = vmatpush1.msra.mxu0 %v5618
    %5655 = vmatprep.subr.mxu0 %v5621
    %5656 = vmatpush1.msra.mxu0 %v5620
    %5657 = vmatprep.subr.mxu0 %v5623
    %5658 = vmatpush1.msra.mxu0 %v5622
    %5659 = vmatprep.subr.mxu0 %v5625
    %5660 = vmatpush1.msra.mxu0 %v5624
    %5661 = vmatprep.subr.mxu0 %v5627
    %5662 = vmatpush1.msra.mxu0 %v5626
    %5663 = vmatprep.subr.mxu0 %v5629
    %5664 = vmatpush1.msra.mxu0 %v5628
    %5665 = vmatprep.subr.mxu0 %v5631
    %5666 = vmatpush1.msra.mxu0 %v5630
    %5667 = vmatprep.subr.mxu0 0.0
    %5668 = vmatpush1.msra.mxu0 0.0
    %5669 = vmatprep.subr.mxu0 0.0
    %5670 = vmatpush1.msra.mxu0 0.0
    %5671 = vmatprep.subr.mxu0 0.0
    %5672 = vmatpush1.msra.mxu0 0.0
    %5673 = vmatprep.subr.mxu0 0.0
    %5674 = vmatpush1.msra.mxu0 0.0
    %5675 = vmatprep.subr.mxu0 0.0
    %5676 = vmatpush1.msra.mxu0 0.0
    %5677 = vmatprep.subr.mxu0 0.0
    %5678 = vmatpush1.msra.mxu0 0.0
    %5679 = vmatprep.subr.mxu0 0.0
    %5680 = vmatpush1.msra.mxu0 0.0
    %5681 = vmatprep.subr.mxu0 0.0
    %5682 = vmatpush1.msra.mxu0 0.0
    %5683 = vmatprep.subr.mxu0 0.0
    %5684 = vmatpush1.msra.mxu0 0.0
    %5685 = vmatprep.subr.mxu0 0.0
    %5686 = vmatpush1.msra.mxu0 0.0
    %5687 = vmatprep.subr.mxu0 0.0
    %5688 = vmatpush1.msra.mxu0 0.0
    %5689 = vmatprep.subr.mxu0 0.0
    %5690 = vmatpush1.msra.mxu0 0.0
    %5691 = vmatprep.subr.mxu0 0.0
    %5692 = vmatpush1.msra.mxu0 0.0
    %5693 = vmatprep.subr.mxu0 0.0
    %5694 = vmatpush1.msra.mxu0 0.0
    %5695 = vmatprep.subr.mxu0 0.0
    %5696 = vmatpush1.msra.mxu0 0.0
    %5697 = vmatprep.subr.mxu0 0.0
    %5698 = vmatpush1.msra.mxu0 0.0
    %5699 = vmatprep.subr.mxu0 0.0
    %5700 = vmatpush1.msra.mxu0 0.0
    %5701 = vmatprep.subr.mxu0 0.0
    %5702 = vmatpush1.msra.mxu0 0.0
    %5703 = vmatprep.subr.mxu0 0.0
    %5704 = vmatpush1.msra.mxu0 0.0
    %5705 = vmatprep.subr.mxu0 0.0
    %5706 = vmatpush1.msra.mxu0 0.0
    %5707 = vmatprep.subr.mxu0 0.0
    %5708 = vmatpush1.msra.mxu0 0.0
    %5709 = vmatprep.subr.mxu0 0.0
    %5710 = vmatpush1.msra.mxu0 0.0
    %5711 = vmatprep.subr.mxu0 0.0
    %5712 = vmatpush1.msra.mxu0 0.0
    %5713 = vmatprep.subr.mxu0 0.0
    %5714 = vmatpush1.msra.mxu0 0.0
    %5715 = vmatprep.mubr.f32.mxu0 0.0
    %5716 = vmatmul.mubr.f32.gmra.mrb[0].mxu0 %v5646
    %v5717 = vpop.f32.mrb[0].mxu0
    %v5718 = vadd.f32 %v5638, %v5717
    %v5719 = vpop.f32.mrb[0].mxu0
    %v5720 = vadd.f32 %v5642, %v5719
    %5721 = vmatprep.mubr.f32.mxu0 0.0
    %5722 = vmatmul.mubr.f32.gmra.mrb[0].mxu0 %v5649
    %v5723 = vpop.f32.mrb[0].mxu0
    %v5724 = vadd.f32 %v5638, %v5723
    %v5725 = vpop.f32.mrb[0].mxu0
    %v5726 = vadd.f32 %v5642, %v5725
    %5727 = vdwg.mxu0
    %v5728 = vmax.f32 %v5718, 0.0
    %v5729 = vmax.f32 %v5720, 0.0
    %v5730 = vmax.f32 %v5724, 0.0
    %v5731 = vmax.f32 %v5726, 0.0
    %s5732 = scalar_lea.vmem %s13, 512
    %v5733 = vld [vmem:[%s5732] sm:$0xff]
    %v5734 = vld [vmem:[%s5732 + $0x8] sm:$0xff]
    %v5735 = vld [vmem:[%s5732 + $0x10] sm:$0xff]
    %v5736 = vld [vmem:[%s5732 + $0x18] sm:$0xff]
    %v5737 = vld [vmem:[%s5732 + $0x20] sm:$0xff]
    %v5738 = vld [vmem:[%s5732 + $0x28] sm:$0xff]
    %v5739 = vld [vmem:[%s5732 + $0x30] sm:$0xff]
    %v5740 = vld [vmem:[%s5732 + $0x38] sm:$0xff]
    %v5741 = vld [vmem:[%s5732 + $0x40] sm:$0xff]
    %v5742 = vld [vmem:[%s5732 + $0x48] sm:$0xff]
    %v5743 = vld [vmem:[%s5732 + $0x50] sm:$0xff]
    %v5744 = vld [vmem:[%s5732 + $0x58] sm:$0xff]
    %v5745 = vld [vmem:[%s5732 + $0x60] sm:$0xff]
    %v5746 = vld [vmem:[%s5732 + $0x68] sm:$0xff]
    %v5747 = vld [vmem:[%s5732 + $0x70] sm:$0xff]
    %v5748 = vld [vmem:[%s5732 + $0x78] sm:$0xff]
    %v5749 = vld [vmem:[%s5732 + $0x80] sm:$0xff]
    %v5750 = vld [vmem:[%s5732 + $0x88] sm:$0xff]
    %v5751 = vld [vmem:[%s5732 + $0x90] sm:$0xff]
    %v5752 = vld [vmem:[%s5732 + $0x98] sm:$0xff]
    %v5753 = vld [vmem:[%s5732 + $0xa0] sm:$0xff]
    %v5754 = vld [vmem:[%s5732 + $0xa8] sm:$0xff]
    %v5755 = vld [vmem:[%s5732 + $0xb0] sm:$0xff]
    %v5756 = vld [vmem:[%s5732 + $0xb8] sm:$0xff]
    %v5757 = vld [vmem:[%s5732 + $0xc0] sm:$0xff]
    %v5758 = vld [vmem:[%s5732 + $0xc8] sm:$0xff]
    %v5759 = vld [vmem:[%s5732 + $0xd0] sm:$0xff]
    %v5760 = vld [vmem:[%s5732 + $0xd8] sm:$0xff]
    %v5761 = vld [vmem:[%s5732 + $0xe0] sm:$0xff]
    %v5762 = vld [vmem:[%s5732 + $0xe8] sm:$0xff]
    %v5763 = vld [vmem:[%s5732 + $0xf0] sm:$0xff]
    %v5764 = vld [vmem:[%s5732 + $0xf8] sm:$0xff]
    %s5765 = scalar_lea.vmem %s14, 2
    %v5766 = vld [vmem:[%s5765] sm:$0x1]
    %v5768 = vlaneseq
    %v5769 = vshrl.u32 %v5768, 7
    %v5770 = vsub.s32 0, %v5769
    %v5771 = vrot.slane %v5766, %v5770
    %5773 = vmatprep.subr.mxu0 0.0
    %5774 = vmatpush1.msra.mxu0 %v5733
    %5775 = vmatprep.subr.mxu0 0.0
    %5776 = vmatpush1.msra.mxu0 %v5734
    %5777 = vmatprep.subr.mxu0 0.0
    %5778 = vmatpush1.msra.mxu0 %v5735
    %5779 = vmatprep.subr.mxu0 0.0
    %5780 = vmatpush1.msra.mxu0 %v5736
    %5781 = vmatprep.subr.mxu0 0.0
    %5782 = vmatpush1.msra.mxu0 %v5737
    %5783 = vmatprep.subr.mxu0 0.0
    %5784 = vmatpush1.msra.mxu0 %v5738
    %5785 = vmatprep.subr.mxu0 0.0
    %5786 = vmatpush1.msra.mxu0 %v5739
    %5787 = vmatprep.subr.mxu0 0.0
    %5788 = vmatpush1.msra.mxu0 %v5740
    %5789 = vmatprep.subr.mxu0 0.0
    %5790 = vmatpush1.msra.mxu0 %v5741
    %5791 = vmatprep.subr.mxu0 0.0
    %5792 = vmatpush1.msra.mxu0 %v5742
    %5793 = vmatprep.subr.mxu0 0.0
    %5794 = vmatpush1.msra.mxu0 %v5743
    %5795 = vmatprep.subr.mxu0 0.0
    %5796 = vmatpush1.msra.mxu0 %v5744
    %5797 = vmatprep.subr.mxu0 0.0
    %5798 = vmatpush1.msra.mxu0 %v5745
    %5799 = vmatprep.subr.mxu0 0.0
    %5800 = vmatpush1.msra.mxu0 %v5746
    %5801 = vmatprep.subr.mxu0 0.0
    %5802 = vmatpush1.msra.mxu0 %v5747
    %5803 = vmatprep.subr.mxu0 0.0
    %5804 = vmatpush1.msra.mxu0 %v5748
    %5805 = vmatprep.subr.mxu0 0.0
    %5806 = vmatpush1.msra.mxu0 %v5749
    %5807 = vmatprep.subr.mxu0 0.0
    %5808 = vmatpush1.msra.mxu0 %v5750
    %5809 = vmatprep.subr.mxu0 0.0
    %5810 = vmatpush1.msra.mxu0 %v5751
    %5811 = vmatprep.subr.mxu0 0.0
    %5812 = vmatpush1.msra.mxu0 %v5752
    %5813 = vmatprep.subr.mxu0 0.0
    %5814 = vmatpush1.msra.mxu0 %v5753
    %5815 = vmatprep.subr.mxu0 0.0
    %5816 = vmatpush1.msra.mxu0 %v5754
    %5817 = vmatprep.subr.mxu0 0.0
    %5818 = vmatpush1.msra.mxu0 %v5755
    %5819 = vmatprep.subr.mxu0 0.0
    %5820 = vmatpush1.msra.mxu0 %v5756
    %5821 = vmatprep.subr.mxu0 0.0
    %5822 = vmatpush1.msra.mxu0 %v5757
    %5823 = vmatprep.subr.mxu0 0.0
    %5824 = vmatpush1.msra.mxu0 %v5758
    %5825 = vmatprep.subr.mxu0 0.0
    %5826 = vmatpush1.msra.mxu0 %v5759
    %5827 = vmatprep.subr.mxu0 0.0
    %5828 = vmatpush1.msra.mxu0 %v5760
    %5829 = vmatprep.subr.mxu0 0.0
    %5830 = vmatpush1.msra.mxu0 %v5761
    %5831 = vmatprep.subr.mxu0 0.0
    %5832 = vmatpush1.msra.mxu0 %v5762
    %5833 = vmatprep.subr.mxu0 0.0
    %5834 = vmatpush1.msra.mxu0 %v5763
    %5835 = vmatprep.subr.mxu0 0.0
    %5836 = vmatpush1.msra.mxu0 %v5764
    %5837 = vmatprep.mubr.f32.mxu0 %v5729
    %5838 = vmatmul.mubr.f32.gmra.mrb[0].mxu0 %v5728
    %v5839 = vpop.f32.mrb[0].mxu0
    %v5840 = vadd.f32 %v5771, %v5839
    %v5841 = vpop.f32.mrb[0].mxu0
    %5842 = vmatprep.mubr.f32.mxu0 %v5731
    %5843 = vmatmul.mubr.f32.gmra.mrb[0].mxu0 %v5730
    %v5844 = vpop.f32.mrb[0].mxu0
    %v5845 = vadd.f32 %v5771, %v5844
    %v5846 = vpop.f32.mrb[0].mxu0
    %5847 = vdwg.mxu0
    %v5848 = vadd.f32 %v5613, %v5840
    %v5849 = vadd.f32 %v5614, %v5845
    %s5850 = scalar_lea.vmem %s9, 2
    %v5851 = vld [vmem:[%s5850] sm:$0x1]
    %s5852 = scalar_lea.vmem %s10, 2
    %v5853 = vld [vmem:[%s5852] sm:$0x1]
    %v5854 = vsel %vm193, %v5848, 0.0
    %5855 = vadd.xlane.f32.xlu0 %v5854
    %v5856 = vpop.xlane.xlu0 %5855
    %v5857 = vsel %vm193, %v5849, 0.0
    %5858 = vadd.xlane.f32.xlu0 %v5857
    %v5859 = vpop.xlane.xlu0 %5858
    %v5860 = vmul.f32 %v5856, %v1784
    %v5861 = vmul.f32 %v5859, %v1784
    %v5862 = vsub.f32 %v5848, %v5860
    %v5863 = vsub.f32 %v5849, %v5861
    %v5864 = vmul.f32 %v5862, %v5862
    %v5865 = vmul.f32 %v5863, %v5863
    %v5866 = vsel %vm193, %v5864, 0.0
    %5867 = vadd.xlane.f32.xlu0 %v5866
    %v5868 = vpop.xlane.xlu0 %5867
    %v5869 = vsel %vm193, %v5865, 0.0
    %5870 = vadd.xlane.f32.xlu0 %v5869
    %v5871 = vpop.xlane.xlu0 %5870
    %v5872 = vmul.f32 %v5868, %v1784
    %v5873 = vmul.f32 %v5871, %v1784
    %v5874 = vadd.f32 %v5872, 1e-05
    %v5875 = vadd.f32 %v5873, 1e-05
    %v5876 = vrsqrt.pop %v5874
    %v5877 = vrsqrt.pop %v5875
    %v5878 = vmul.f32 %v5862, %v5876
    %v5879 = vmul.f32 %v5863, %v5877
    %v5881 = vlaneseq
    %v5882 = vshrl.u32 %v5881, 7
    %v5883 = vsub.s32 0, %v5882
    %v5884 = vrot.slane %v5851, %v5883
    %v5886 = vmul.f32 %v5878, %v5884
    %v5887 = vmul.f32 %v5879, %v5884
    %v5889 = vlaneseq
    %v5890 = vshrl.u32 %v5889, 7
    %v5891 = vsub.s32 0, %v5890
    %v5892 = vrot.slane %v5853, %v5891
    %v5894 = vadd.f32 %v5886, %v5892
    %v5895 = vadd.f32 %v5887, %v5892
    %s5896 = scalar_lea.vmem %s3, 384
    %v5897 = vld [vmem:[%s5896] sm:$0xff]
    %v5898 = vld [vmem:[%s5896 + $0x8] sm:$0xff]
    %v5899 = vld [vmem:[%s5896 + $0x10] sm:$0xff]
    %v5900 = vld [vmem:[%s5896 + $0x18] sm:$0xff]
    %v5901 = vld [vmem:[%s5896 + $0x20] sm:$0xff]
    %v5902 = vld [vmem:[%s5896 + $0x28] sm:$0xff]
    %v5903 = vld [vmem:[%s5896 + $0x30] sm:$0xff]
    %v5904 = vld [vmem:[%s5896 + $0x38] sm:$0xff]
    %v5905 = vld [vmem:[%s5896 + $0x40] sm:$0xff]
    %v5906 = vld [vmem:[%s5896 + $0x48] sm:$0xff]
    %v5907 = vld [vmem:[%s5896 + $0x50] sm:$0xff]
    %v5908 = vld [vmem:[%s5896 + $0x58] sm:$0xff]
    %v5909 = vld [vmem:[%s5896 + $0x60] sm:$0xff]
    %v5910 = vld [vmem:[%s5896 + $0x68] sm:$0xff]
    %v5911 = vld [vmem:[%s5896 + $0x70] sm:$0xff]
    %v5912 = vld [vmem:[%s5896 + $0x78] sm:$0xff]
    %s5913 = scalar_lea.vmem %s4, 6
    %v5914 = vld [vmem:[%s5913] sm:$0x3]
    %v5916 = vlaneseq
    %v5917 = vshrl.u32 %v5916, 7
    %v5918 = vsub.s32 0, %v5917
    %v5919 = vrot.slane %v5914, %v5918
    %v5920 = vlaneseq
    %v5921 = vshrl.u32 %v5920, 7
    %v5922 = vsub.s32 1, %v5921
    %v5923 = vrot.slane %v5914, %v5922
    %v5927 = vsel %vm193, %v5894, 0
    %v5930 = vsel %vm193, %v5895, 0
    %5932 = vmatprep.subr.mxu0 %v5898
    %5933 = vmatpush1.msra.mxu0 %v5897
    %5934 = vmatprep.subr.mxu0 %v5900
    %5935 = vmatpush1.msra.mxu0 %v5899
    %5936 = vmatprep.subr.mxu0 %v5902
    %5937 = vmatpush1.msra.mxu0 %v5901
    %5938 = vmatprep.subr.mxu0 %v5904
    %5939 = vmatpush1.msra.mxu0 %v5903
    %5940 = vmatprep.subr.mxu0 %v5906
    %5941 = vmatpush1.msra.mxu0 %v5905
    %5942 = vmatprep.subr.mxu0 %v5908
    %5943 = vmatpush1.msra.mxu0 %v5907
    %5944 = vmatprep.subr.mxu0 %v5910
    %5945 = vmatpush1.msra.mxu0 %v5909
    %5946 = vmatprep.subr.mxu0 %v5912
    %5947 = vmatpush1.msra.mxu0 %v5911
    %5948 = vmatprep.subr.mxu0 0.0
    %5949 = vmatpush1.msra.mxu0 0.0
    %5950 = vmatprep.subr.mxu0 0.0
    %5951 = vmatpush1.msra.mxu0 0.0
    %5952 = vmatprep.subr.mxu0 0.0
    %5953 = vmatpush1.msra.mxu0 0.0
    %5954 = vmatprep.subr.mxu0 0.0
    %5955 = vmatpush1.msra.mxu0 0.0
    %5956 = vmatprep.subr.mxu0 0.0
    %5957 = vmatpush1.msra.mxu0 0.0
    %5958 = vmatprep.subr.mxu0 0.0
    %5959 = vmatpush1.msra.mxu0 0.0
    %5960 = vmatprep.subr.mxu0 0.0
    %5961 = vmatpush1.msra.mxu0 0.0
    %5962 = vmatprep.subr.mxu0 0.0
    %5963 = vmatpush1.msra.mxu0 0.0
    %5964 = vmatprep.subr.mxu0 0.0
    %5965 = vmatpush1.msra.mxu0 0.0
    %5966 = vmatprep.subr.mxu0 0.0
    %5967 = vmatpush1.msra.mxu0 0.0
    %5968 = vmatprep.subr.mxu0 0.0
    %5969 = vmatpush1.msra.mxu0 0.0
    %5970 = vmatprep.subr.mxu0 0.0
    %5971 = vmatpush1.msra.mxu0 0.0
    %5972 = vmatprep.subr.mxu0 0.0
    %5973 = vmatpush1.msra.mxu0 0.0
    %5974 = vmatprep.subr.mxu0 0.0
    %5975 = vmatpush1.msra.mxu0 0.0
    %5976 = vmatprep.subr.mxu0 0.0
    %5977 = vmatpush1.msra.mxu0 0.0
    %5978 = vmatprep.subr.mxu0 0.0
    %5979 = vmatpush1.msra.mxu0 0.0
    %5980 = vmatprep.subr.mxu0 0.0
    %5981 = vmatpush1.msra.mxu0 0.0
    %5982 = vmatprep.subr.mxu0 0.0
    %5983 = vmatpush1.msra.mxu0 0.0
    %5984 = vmatprep.subr.mxu0 0.0
    %5985 = vmatpush1.msra.mxu0 0.0
    %5986 = vmatprep.subr.mxu0 0.0
    %5987 = vmatpush1.msra.mxu0 0.0
    %5988 = vmatprep.subr.mxu0 0.0
    %5989 = vmatpush1.msra.mxu0 0.0
    %5990 = vmatprep.subr.mxu0 0.0
    %5991 = vmatpush1.msra.mxu0 0.0
    %5992 = vmatprep.subr.mxu0 0.0
    %5993 = vmatpush1.msra.mxu0 0.0
    %5994 = vmatprep.subr.mxu0 0.0
    %5995 = vmatpush1.msra.mxu0 0.0
    %5996 = vmatprep.mubr.f32.mxu0 0.0
    %5997 = vmatmul.mubr.f32.gmra.mrb[0].mxu0 %v5927
    %v5998 = vpop.f32.mrb[0].mxu0
    %v5999 = vadd.f32 %v5919, %v5998
    %v6000 = vpop.f32.mrb[0].mxu0
    %v6001 = vadd.f32 %v5923, %v6000
    %6002 = vmatprep.mubr.f32.mxu0 0.0
    %6003 = vmatmul.mubr.f32.gmra.mrb[0].mxu0 %v5930
    %v6004 = vpop.f32.mrb[0].mxu0
    %v6005 = vadd.f32 %v5919, %v6004
    %v6006 = vpop.f32.mrb[0].mxu0
    %v6007 = vadd.f32 %v5923, %v6006
    %6008 = vdwg.mxu0
    %6010 = vrot.lane.b32.xlu0 %v5999, 64
    %v6011 = vpop.permute.xlu0 %6010
    %v6012 = vsel %vm280, %v5999, 0
    %v6014 = vsel %vm280, %v6011, 0
    %6016 = vmatprep.subr.mxu0 0.0
    %6017 = vmatpush1.xpose.msra.mxu0 %v6014
    %6018 = vmatprep.subr.mxu0 0.0
    %6019 = vmatpush1.xpose.msra.mxu0 0.0
    %6020 = vmatprep.subr.mxu0 0.0
    %6021 = vmatpush1.xpose.msra.mxu0 0.0
    %6022 = vmatprep.subr.mxu0 0.0
    %6023 = vmatpush1.xpose.msra.mxu0 0.0
    %6024 = vmatprep.subr.mxu0 0.0
    %6025 = vmatpush1.xpose.msra.mxu0 0.0
    %6026 = vmatprep.subr.mxu0 0.0
    %6027 = vmatpush1.xpose.msra.mxu0 0.0
    %6028 = vmatprep.subr.mxu0 0.0
    %6029 = vmatpush1.xpose.msra.mxu0 0.0
    %6030 = vmatprep.subr.mxu0 0.0
    %6031 = vmatpush1.xpose.msra.mxu0 0.0
    %6032 = vmatprep.subr.mxu0 0.0
    %6033 = vmatpush1.xpose.msra.mxu0 0.0
    %6034 = vmatprep.subr.mxu0 0.0
    %6035 = vmatpush1.xpose.msra.mxu0 0.0
    %6036 = vmatprep.subr.mxu0 0.0
    %6037 = vmatpush1.xpose.msra.mxu0 0.0
    %6038 = vmatprep.subr.mxu0 0.0
    %6039 = vmatpush1.xpose.msra.mxu0 0.0
    %6040 = vmatprep.subr.mxu0 0.0
    %6041 = vmatpush1.xpose.msra.mxu0 0.0
    %6042 = vmatprep.subr.mxu0 0.0
    %6043 = vmatpush1.xpose.msra.mxu0 0.0
    %6044 = vmatprep.subr.mxu0 0.0
    %6045 = vmatpush1.xpose.msra.mxu0 0.0
    %6046 = vmatprep.subr.mxu0 0.0
    %6047 = vmatpush1.xpose.msra.mxu0 0.0
    %6048 = vmatprep.subr.mxu0 0.0
    %6049 = vmatpush1.xpose.msra.mxu0 0.0
    %6050 = vmatprep.subr.mxu0 0.0
    %6051 = vmatpush1.xpose.msra.mxu0 0.0
    %6052 = vmatprep.subr.mxu0 0.0
    %6053 = vmatpush1.xpose.msra.mxu0 0.0
    %6054 = vmatprep.subr.mxu0 0.0
    %6055 = vmatpush1.xpose.msra.mxu0 0.0
    %6056 = vmatprep.subr.mxu0 0.0
    %6057 = vmatpush1.xpose.msra.mxu0 0.0
    %6058 = vmatprep.subr.mxu0 0.0
    %6059 = vmatpush1.xpose.msra.mxu0 0.0
    %6060 = vmatprep.subr.mxu0 0.0
    %6061 = vmatpush1.xpose.msra.mxu0 0.0
    %6062 = vmatprep.subr.mxu0 0.0
    %6063 = vmatpush1.xpose.msra.mxu0 0.0
    %6064 = vmatprep.subr.mxu0 0.0
    %6065 = vmatpush1.xpose.msra.mxu0 0.0
    %6066 = vmatprep.subr.mxu0 0.0
    %6067 = vmatpush1.xpose.msra.mxu0 0.0
    %6068 = vmatprep.subr.mxu0 0.0
    %6069 = vmatpush1.xpose.msra.mxu0 0.0
    %6070 = vmatprep.subr.mxu0 0.0
    %6071 = vmatpush1.xpose.msra.mxu0 0.0
    %6072 = vmatprep.subr.mxu0 0.0
    %6073 = vmatpush1.xpose.msra.mxu0 0.0
    %6074 = vmatprep.subr.mxu0 0.0
    %6075 = vmatpush1.xpose.msra.mxu0 0.0
    %6076 = vmatprep.subr.mxu0 0.0
    %6077 = vmatpush1.xpose.msra.mxu0 0.0
    %6078 = vmatprep.subr.mxu0 0.0
    %6079 = vmatpush1.xpose.msra.mxu0 0.0
    %6080 = vmatprep.mubr.f32.mxu0 0.0
    %6081 = vmatmul.mubr.f32.gmra.mrb[0].mxu0 %v6012
    %v6082 = vpop.f32.mrb[0].mxu0
    %v6083 = vadd.f32 0.0, %v6082
    %v6084 = vpop.f32.mrb[0].mxu0
    %6085 = vdwg.mxu0
    %6087 = vrot.lane.b32.xlu0 %v6005, 64
    %v6088 = vpop.permute.xlu0 %6087
    %v6089 = vsel %vm280, %v6005, 0
    %v6091 = vsel %vm280, %v6088, 0
    %6093 = vmatprep.subr.mxu0 0.0
    %6094 = vmatpush1.xpose.msra.mxu0 %v6091
    %6095 = vmatprep.subr.mxu0 0.0
    %6096 = vmatpush1.xpose.msra.mxu0 0.0
    %6097 = vmatprep.subr.mxu0 0.0
    %6098 = vmatpush1.xpose.msra.mxu0 0.0
    %6099 = vmatprep.subr.mxu0 0.0
    %6100 = vmatpush1.xpose.msra.mxu0 0.0
    %6101 = vmatprep.subr.mxu0 0.0
    %6102 = vmatpush1.xpose.msra.mxu0 0.0
    %6103 = vmatprep.subr.mxu0 0.0
    %6104 = vmatpush1.xpose.msra.mxu0 0.0
    %6105 = vmatprep.subr.mxu0 0.0
    %6106 = vmatpush1.xpose.msra.mxu0 0.0
    %6107 = vmatprep.subr.mxu0 0.0
    %6108 = vmatpush1.xpose.msra.mxu0 0.0
    %6109 = vmatprep.subr.mxu0 0.0
    %6110 = vmatpush1.xpose.msra.mxu0 0.0
    %6111 = vmatprep.subr.mxu0 0.0
    %6112 = vmatpush1.xpose.msra.mxu0 0.0
    %6113 = vmatprep.subr.mxu0 0.0
    %6114 = vmatpush1.xpose.msra.mxu0 0.0
    %6115 = vmatprep.subr.mxu0 0.0
    %6116 = vmatpush1.xpose.msra.mxu0 0.0
    %6117 = vmatprep.subr.mxu0 0.0
    %6118 = vmatpush1.xpose.msra.mxu0 0.0
    %6119 = vmatprep.subr.mxu0 0.0
    %6120 = vmatpush1.xpose.msra.mxu0 0.0
    %6121 = vmatprep.subr.mxu0 0.0
    %6122 = vmatpush1.xpose.msra.mxu0 0.0
    %6123 = vmatprep.subr.mxu0 0.0
    %6124 = vmatpush1.xpose.msra.mxu0 0.0
    %6125 = vmatprep.subr.mxu0 0.0
    %6126 = vmatpush1.xpose.msra.mxu0 0.0
    %6127 = vmatprep.subr.mxu0 0.0
    %6128 = vmatpush1.xpose.msra.mxu0 0.0
    %6129 = vmatprep.subr.mxu0 0.0
    %6130 = vmatpush1.xpose.msra.mxu0 0.0
    %6131 = vmatprep.subr.mxu0 0.0
    %6132 = vmatpush1.xpose.msra.mxu0 0.0
    %6133 = vmatprep.subr.mxu0 0.0
    %6134 = vmatpush1.xpose.msra.mxu0 0.0
    %6135 = vmatprep.subr.mxu0 0.0
    %6136 = vmatpush1.xpose.msra.mxu0 0.0
    %6137 = vmatprep.subr.mxu0 0.0
    %6138 = vmatpush1.xpose.msra.mxu0 0.0
    %6139 = vmatprep.subr.mxu0 0.0
    %6140 = vmatpush1.xpose.msra.mxu0 0.0
    %6141 = vmatprep.subr.mxu0 0.0
    %6142 = vmatpush1.xpose.msra.mxu0 0.0
    %6143 = vmatprep.subr.mxu0 0.0
    %6144 = vmatpush1.xpose.msra.mxu0 0.0
    %6145 = vmatprep.subr.mxu0 0.0
    %6146 = vmatpush1.xpose.msra.mxu0 0.0
    %6147 = vmatprep.subr.mxu0 0.0
    %6148 = vmatpush1.xpose.msra.mxu0 0.0
    %6149 = vmatprep.subr.mxu0 0.0
    %6150 = vmatpush1.xpose.msra.mxu0 0.0
    %6151 = vmatprep.subr.mxu0 0.0
    %6152 = vmatpush1.xpose.msra.mxu0 0.0
    %6153 = vmatprep.subr.mxu0 0.0
    %6154 = vmatpush1.xpose.msra.mxu0 0.0
    %6155 = vmatprep.subr.mxu0 0.0
    %6156 = vmatpush1.xpose.msra.mxu0 0.0
    %6157 = vmatprep.mubr.f32.mxu0 0.0
    %6158 = vmatmul.mubr.f32.gmra.mrb[0].mxu0 %v6089
    %v6159 = vpop.f32.mrb[0].mxu0
    %v6160 = vadd.f32 0.0, %v6159
    %v6161 = vpop.f32.mrb[0].mxu0
    %6162 = vdwg.mxu0
    %v6163 = vmul.f32 %v6083, 0.25
    %v6164 = vmul.f32 %v6160, 0.25
    %v6165 = vadd.f32 %v6163, %v462
    %v6166 = vadd.f32 %v6164, %v468
    %v6167 = vsel %vm473, %v6165, -inf
    %6168 = vmax.xlane.f32.xlu0 %v6167
    %v6169 = vpop.xlane.xlu0 %6168
    %v6170 = vsel %vm473, %v6166, -inf
    %6171 = vmax.xlane.f32.xlu0 %v6170
    %v6172 = vpop.xlane.xlu0 %6171
    %v6173 = vsub.f32 %v6165, %v6169
    %v6174 = vsub.f32 %v6166, %v6172
    %v6175 = vmul.f32 %v6173, 1.442695
    %v6176 = vpow.pop %v6175
    %v6177 = vmul.f32 %v6174, 1.442695
    %v6178 = vpow.pop %v6177
    %v6179 = vsel %vm473, %v6176, 0.0
    %6180 = vadd.xlane.f32.xlu0 %v6179
    %v6181 = vpop.xlane.xlu0 %6180
    %v6182 = vsel %vm473, %v6178, 0.0
    %6183 = vadd.xlane.f32.xlu0 %v6182
    %v6184 = vpop.xlane.xlu0 %6183
    %v6185 = vrcp.pop %v6181
    %v6186 = vmul.f32 %v6176, %v6185
    %v6187 = vrcp.pop %v6184
    %v6188 = vmul.f32 %v6178, %v6187
    %v6190 = vsel %vm473, %v6186, 0
    %6192 = vmatprep.subr.mxu0 0.0
    %6193 = vmatpush1.msra.mxu0 %v6001
    %6194 = vmatprep.subr.mxu0 0.0
    %6195 = vmatpush1.msra.mxu0 0.0
    %6196 = vmatprep.subr.mxu0 0.0
    %6197 = vmatpush1.msra.mxu0 0.0
    %6198 = vmatprep.subr.mxu0 0.0
    %6199 = vmatpush1.msra.mxu0 0.0
    %6200 = vmatprep.subr.mxu0 0.0
    %6201 = vmatpush1.msra.mxu0 0.0
    %6202 = vmatprep.subr.mxu0 0.0
    %6203 = vmatpush1.msra.mxu0 0.0
    %6204 = vmatprep.subr.mxu0 0.0
    %6205 = vmatpush1.msra.mxu0 0.0
    %6206 = vmatprep.subr.mxu0 0.0
    %6207 = vmatpush1.msra.mxu0 0.0
    %6208 = vmatprep.subr.mxu0 0.0
    %6209 = vmatpush1.msra.mxu0 0.0
    %6210 = vmatprep.subr.mxu0 0.0
    %6211 = vmatpush1.msra.mxu0 0.0
    %6212 = vmatprep.subr.mxu0 0.0
    %6213 = vmatpush1.msra.mxu0 0.0
    %6214 = vmatprep.subr.mxu0 0.0
    %6215 = vmatpush1.msra.mxu0 0.0
    %6216 = vmatprep.subr.mxu0 0.0
    %6217 = vmatpush1.msra.mxu0 0.0
    %6218 = vmatprep.subr.mxu0 0.0
    %6219 = vmatpush1.msra.mxu0 0.0
    %6220 = vmatprep.subr.mxu0 0.0
    %6221 = vmatpush1.msra.mxu0 0.0
    %6222 = vmatprep.subr.mxu0 0.0
    %6223 = vmatpush1.msra.mxu0 0.0
    %6224 = vmatprep.subr.mxu0 0.0
    %6225 = vmatpush1.msra.mxu0 0.0
    %6226 = vmatprep.subr.mxu0 0.0
    %6227 = vmatpush1.msra.mxu0 0.0
    %6228 = vmatprep.subr.mxu0 0.0
    %6229 = vmatpush1.msra.mxu0 0.0
    %6230 = vmatprep.subr.mxu0 0.0
    %6231 = vmatpush1.msra.mxu0 0.0
    %6232 = vmatprep.subr.mxu0 0.0
    %6233 = vmatpush1.msra.mxu0 0.0
    %6234 = vmatprep.subr.mxu0 0.0
    %6235 = vmatpush1.msra.mxu0 0.0
    %6236 = vmatprep.subr.mxu0 0.0
    %6237 = vmatpush1.msra.mxu0 0.0
    %6238 = vmatprep.subr.mxu0 0.0
    %6239 = vmatpush1.msra.mxu0 0.0
    %6240 = vmatprep.subr.mxu0 0.0
    %6241 = vmatpush1.msra.mxu0 0.0
    %6242 = vmatprep.subr.mxu0 0.0
    %6243 = vmatpush1.msra.mxu0 0.0
    %6244 = vmatprep.subr.mxu0 0.0
    %6245 = vmatpush1.msra.mxu0 0.0
    %6246 = vmatprep.subr.mxu0 0.0
    %6247 = vmatpush1.msra.mxu0 0.0
    %6248 = vmatprep.subr.mxu0 0.0
    %6249 = vmatpush1.msra.mxu0 0.0
    %6250 = vmatprep.subr.mxu0 0.0
    %6251 = vmatpush1.msra.mxu0 0.0
    %6252 = vmatprep.subr.mxu0 0.0
    %6253 = vmatpush1.msra.mxu0 0.0
    %6254 = vmatprep.subr.mxu0 0.0
    %6255 = vmatpush1.msra.mxu0 0.0
    %6256 = vmatprep.mubr.f32.mxu0 0.0
    %6257 = vmatmul.mubr.f32.gmra.mrb[0].mxu0 %v6190
    %v6258 = vpop.f32.mrb[0].mxu0
    %v6259 = vadd.f32 0.0, %v6258
    %v6260 = vpop.f32.mrb[0].mxu0
    %6261 = vdwg.mxu0
    %v6263 = vsel %vm473, %v6188, 0
    %6265 = vmatprep.subr.mxu0 0.0
    %6266 = vmatpush1.msra.mxu0 %v6007
    %6267 = vmatprep.subr.mxu0 0.0
    %6268 = vmatpush1.msra.mxu0 0.0
    %6269 = vmatprep.subr.mxu0 0.0
    %6270 = vmatpush1.msra.mxu0 0.0
    %6271 = vmatprep.subr.mxu0 0.0
    %6272 = vmatpush1.msra.mxu0 0.0
    %6273 = vmatprep.subr.mxu0 0.0
    %6274 = vmatpush1.msra.mxu0 0.0
    %6275 = vmatprep.subr.mxu0 0.0
    %6276 = vmatpush1.msra.mxu0 0.0
    %6277 = vmatprep.subr.mxu0 0.0
    %6278 = vmatpush1.msra.mxu0 0.0
    %6279 = vmatprep.subr.mxu0 0.0
    %6280 = vmatpush1.msra.mxu0 0.0
    %6281 = vmatprep.subr.mxu0 0.0
    %6282 = vmatpush1.msra.mxu0 0.0
    %6283 = vmatprep.subr.mxu0 0.0
    %6284 = vmatpush1.msra.mxu0 0.0
    %6285 = vmatprep.subr.mxu0 0.0
    %6286 = vmatpush1.msra.mxu0 0.0
    %6287 = vmatprep.subr.mxu0 0.0
    %6288 = vmatpush1.msra.mxu0 0.0
    %6289 = vmatprep.subr.mxu0 0.0
    %6290 = vmatpush1.msra.mxu0 0.0
    %6291 = vmatprep.subr.mxu0 0.0
    %6292 = vmatpush1.msra.mxu0 0.0
    %6293 = vmatprep.subr.mxu0 0.0
    %6294 = vmatpush1.msra.mxu0 0.0
    %6295 = vmatprep.subr.mxu0 0.0
    %6296 = vmatpush1.msra.mxu0 0.0
    %6297 = vmatprep.subr.mxu0 0.0
    %6298 = vmatpush1.msra.mxu0 0.0
    %6299 = vmatprep.subr.mxu0 0.0
    %6300 = vmatpush1.msra.mxu0 0.0
    %6301 = vmatprep.subr.mxu0 0.0
    %6302 = vmatpush1.msra.mxu0 0.0
    %6303 = vmatprep.subr.mxu0 0.0
    %6304 = vmatpush1.msra.mxu0 0.0
    %6305 = vmatprep.subr.mxu0 0.0
    %6306 = vmatpush1.msra.mxu0 0.0
    %6307 = vmatprep.subr.mxu0 0.0
    %6308 = vmatpush1.msra.mxu0 0.0
    %6309 = vmatprep.subr.mxu0 0.0
    %6310 = vmatpush1.msra.mxu0 0.0
    %6311 = vmatprep.subr.mxu0 0.0
    %6312 = vmatpush1.msra.mxu0 0.0
    %6313 = vmatprep.subr.mxu0 0.0
    %6314 = vmatpush1.msra.mxu0 0.0
    %6315 = vmatprep.subr.mxu0 0.0
    %6316 = vmatpush1.msra.mxu0 0.0
    %6317 = vmatprep.subr.mxu0 0.0
    %6318 = vmatpush1.msra.mxu0 0.0
    %6319 = vmatprep.subr.mxu0 0.0
    %6320 = vmatpush1.msra.mxu0 0.0
    %6321 = vmatprep.subr.mxu0 0.0
    %6322 = vmatpush1.msra.mxu0 0.0
    %6323 = vmatprep.subr.mxu0 0.0
    %6324 = vmatpush1.msra.mxu0 0.0
    %6325 = vmatprep.subr.mxu0 0.0
    %6326 = vmatpush1.msra.mxu0 0.0
    %6327 = vmatprep.subr.mxu0 0.0
    %6328 = vmatpush1.msra.mxu0 0.0
    %6329 = vmatprep.mubr.f32.mxu0 0.0
    %6330 = vmatmul.mubr.f32.gmra.mrb[0].mxu0 %v6263
    %v6331 = vpop.f32.mrb[0].mxu0
    %v6332 = vadd.f32 0.0, %v6331
    %v6333 = vpop.f32.mrb[0].mxu0
    %6334 = vdwg.mxu0
    %6335 = vrot.lane.b32.xlu0 %v5999, 112
    %v6336 = vpop.permute.xlu0 %6335
    %6337 = vrot.lane.b32.xlu0 %v5999, 48
    %v6338 = vpop.permute.xlu0 %6337
    %v6339 = vsel %vm280, %v6336, 0
    %v6341 = vsel %vm280, %v6338, 0
    %6343 = vmatprep.subr.mxu0 0.0
    %6344 = vmatpush1.xpose.msra.mxu0 %v6341
    %6345 = vmatprep.subr.mxu0 0.0
    %6346 = vmatpush1.xpose.msra.mxu0 0.0
    %6347 = vmatprep.subr.mxu0 0.0
    %6348 = vmatpush1.xpose.msra.mxu0 0.0
    %6349 = vmatprep.subr.mxu0 0.0
    %6350 = vmatpush1.xpose.msra.mxu0 0.0
    %6351 = vmatprep.subr.mxu0 0.0
    %6352 = vmatpush1.xpose.msra.mxu0 0.0
    %6353 = vmatprep.subr.mxu0 0.0
    %6354 = vmatpush1.xpose.msra.mxu0 0.0
    %6355 = vmatprep.subr.mxu0 0.0
    %6356 = vmatpush1.xpose.msra.mxu0 0.0
    %6357 = vmatprep.subr.mxu0 0.0
    %6358 = vmatpush1.xpose.msra.mxu0 0.0
    %6359 = vmatprep.subr.mxu0 0.0
    %6360 = vmatpush1.xpose.msra.mxu0 0.0
    %6361 = vmatprep.subr.mxu0 0.0
    %6362 = vmatpush1.xpose.msra.mxu0 0.0
    %6363 = vmatprep.subr.mxu0 0.0
    %6364 = vmatpush1.xpose.msra.mxu0 0.0
    %6365 = vmatprep.subr.mxu0 0.0
    %6366 = vmatpush1.xpose.msra.mxu0 0.0
    %6367 = vmatprep.subr.mxu0 0.0
    %6368 = vmatpush1.xpose.msra.mxu0 0.0
    %6369 = vmatprep.subr.mxu0 0.0
    %6370 = vmatpush1.xpose.msra.mxu0 0.0
    %6371 = vmatprep.subr.mxu0 0.0
    %6372 = vmatpush1.xpose.msra.mxu0 0.0
    %6373 = vmatprep.subr.mxu0 0.0
    %6374 = vmatpush1.xpose.msra.mxu0 0.0
    %6375 = vmatprep.subr.mxu0 0.0
    %6376 = vmatpush1.xpose.msra.mxu0 0.0
    %6377 = vmatprep.subr.mxu0 0.0
    %6378 = vmatpush1.xpose.msra.mxu0 0.0
    %6379 = vmatprep.subr.mxu0 0.0
    %6380 = vmatpush1.xpose.msra.mxu0 0.0
    %6381 = vmatprep.subr.mxu0 0.0
    %6382 = vmatpush1.xpose.msra.mxu0 0.0
    %6383 = vmatprep.subr.mxu0 0.0
    %6384 = vmatpush1.xpose.msra.mxu0 0.0
    %6385 = vmatprep.subr.mxu0 0.0
    %6386 = vmatpush1.xpose.msra.mxu0 0.0
    %6387 = vmatprep.subr.mxu0 0.0
    %6388 = vmatpush1.xpose.msra.mxu0 0.0
    %6389 = vmatprep.subr.mxu0 0.0
    %6390 = vmatpush1.xpose.msra.mxu0 0.0
    %6391 = vmatprep.subr.mxu0 0.0
    %6392 = vmatpush1.xpose.msra.mxu0 0.0
    %6393 = vmatprep.subr.mxu0 0.0
    %6394 = vmatpush1.xpose.msra.mxu0 0.0
    %6395 = vmatprep.subr.mxu0 0.0
    %6396 = vmatpush1.xpose.msra.mxu0 0.0
    %6397 = vmatprep.subr.mxu0 0.0
    %6398 = vmatpush1.xpose.msra.mxu0 0.0
    %6399 = vmatprep.subr.mxu0 0.0
    %6400 = vmatpush1.xpose.msra.mxu0 0.0
    %6401 = vmatprep.subr.mxu0 0.0
    %6402 = vmatpush1.xpose.msra.mxu0 0.0
    %6403 = vmatprep.subr.mxu0 0.0
    %6404 = vmatpush1.xpose.msra.mxu0 0.0
    %6405 = vmatprep.subr.mxu0 0.0
    %6406 = vmatpush1.xpose.msra.mxu0 0.0
    %6407 = vmatprep.mubr.f32.mxu0 0.0
    %6408 = vmatmul.mubr.f32.gmra.mrb[0].mxu0 %v6339
    %v6409 = vpop.f32.mrb[0].mxu0
    %v6410 = vadd.f32 0.0, %v6409
    %v6411 = vpop.f32.mrb[0].mxu0
    %6412 = vdwg.mxu0
    %6413 = vrot.lane.b32.xlu0 %v6005, 112
    %v6414 = vpop.permute.xlu0 %6413
    %6415 = vrot.lane.b32.xlu0 %v6005, 48
    %v6416 = vpop.permute.xlu0 %6415
    %v6417 = vsel %vm280, %v6414, 0
    %v6419 = vsel %vm280, %v6416, 0
    %6421 = vmatprep.subr.mxu0 0.0
    %6422 = vmatpush1.xpose.msra.mxu0 %v6419
    %6423 = vmatprep.subr.mxu0 0.0
    %6424 = vmatpush1.xpose.msra.mxu0 0.0
    %6425 = vmatprep.subr.mxu0 0.0
    %6426 = vmatpush1.xpose.msra.mxu0 0.0
    %6427 = vmatprep.subr.mxu0 0.0
    %6428 = vmatpush1.xpose.msra.mxu0 0.0
    %6429 = vmatprep.subr.mxu0 0.0
    %6430 = vmatpush1.xpose.msra.mxu0 0.0
    %6431 = vmatprep.subr.mxu0 0.0
    %6432 = vmatpush1.xpose.msra.mxu0 0.0
    %6433 = vmatprep.subr.mxu0 0.0
    %6434 = vmatpush1.xpose.msra.mxu0 0.0
    %6435 = vmatprep.subr.mxu0 0.0
    %6436 = vmatpush1.xpose.msra.mxu0 0.0
    %6437 = vmatprep.subr.mxu0 0.0
    %6438 = vmatpush1.xpose.msra.mxu0 0.0
    %6439 = vmatprep.subr.mxu0 0.0
    %6440 = vmatpush1.xpose.msra.mxu0 0.0
    %6441 = vmatprep.subr.mxu0 0.0
    %6442 = vmatpush1.xpose.msra.mxu0 0.0
    %6443 = vmatprep.subr.mxu0 0.0
    %6444 = vmatpush1.xpose.msra.mxu0 0.0
    %6445 = vmatprep.subr.mxu0 0.0
    %6446 = vmatpush1.xpose.msra.mxu0 0.0
    %6447 = vmatprep.subr.mxu0 0.0
    %6448 = vmatpush1.xpose.msra.mxu0 0.0
    %6449 = vmatprep.subr.mxu0 0.0
    %6450 = vmatpush1.xpose.msra.mxu0 0.0
    %6451 = vmatprep.subr.mxu0 0.0
    %6452 = vmatpush1.xpose.msra.mxu0 0.0
    %6453 = vmatprep.subr.mxu0 0.0
    %6454 = vmatpush1.xpose.msra.mxu0 0.0
    %6455 = vmatprep.subr.mxu0 0.0
    %6456 = vmatpush1.xpose.msra.mxu0 0.0
    %6457 = vmatprep.subr.mxu0 0.0
    %6458 = vmatpush1.xpose.msra.mxu0 0.0
    %6459 = vmatprep.subr.mxu0 0.0
    %6460 = vmatpush1.xpose.msra.mxu0 0.0
    %6461 = vmatprep.subr.mxu0 0.0
    %6462 = vmatpush1.xpose.msra.mxu0 0.0
    %6463 = vmatprep.subr.mxu0 0.0
    %6464 = vmatpush1.xpose.msra.mxu0 0.0
    %6465 = vmatprep.subr.mxu0 0.0
    %6466 = vmatpush1.xpose.msra.mxu0 0.0
    %6467 = vmatprep.subr.mxu0 0.0
    %6468 = vmatpush1.xpose.msra.mxu0 0.0
    %6469 = vmatprep.subr.mxu0 0.0
    %6470 = vmatpush1.xpose.msra.mxu0 0.0
    %6471 = vmatprep.subr.mxu0 0.0
    %6472 = vmatpush1.xpose.msra.mxu0 0.0
    %6473 = vmatprep.subr.mxu0 0.0
    %6474 = vmatpush1.xpose.msra.mxu0 0.0
    %6475 = vmatprep.subr.mxu0 0.0
    %6476 = vmatpush1.xpose.msra.mxu0 0.0
    %6477 = vmatprep.subr.mxu0 0.0
    %6478 = vmatpush1.xpose.msra.mxu0 0.0
    %6479 = vmatprep.subr.mxu0 0.0
    %6480 = vmatpush1.xpose.msra.mxu0 0.0
    %6481 = vmatprep.subr.mxu0 0.0
    %6482 = vmatpush1.xpose.msra.mxu0 0.0
    %6483 = vmatprep.subr.mxu0 0.0
    %6484 = vmatpush1.xpose.msra.mxu0 0.0
    %6485 = vmatprep.mubr.f32.mxu0 0.0
    %6486 = vmatmul.mubr.f32.gmra.mrb[0].mxu0 %v6417
    %v6487 = vpop.f32.mrb[0].mxu0
    %v6488 = vadd.f32 0.0, %v6487
    %v6489 = vpop.f32.mrb[0].mxu0
    %6490 = vdwg.mxu0
    %v6491 = vmul.f32 %v6410, 0.25
    %v6492 = vmul.f32 %v6488, 0.25
    %v6493 = vadd.f32 %v6491, %v462
    %v6494 = vadd.f32 %v6492, %v468
    %v6495 = vsel %vm473, %v6493, -inf
    %6496 = vmax.xlane.f32.xlu0 %v6495
    %v6497 = vpop.xlane.xlu0 %6496
    %v6498 = vsel %vm473, %v6494, -inf
    %6499 = vmax.xlane.f32.xlu0 %v6498
    %v6500 = vpop.xlane.xlu0 %6499
    %v6501 = vsub.f32 %v6493, %v6497
    %v6502 = vsub.f32 %v6494, %v6500
    %v6503 = vmul.f32 %v6501, 1.442695
    %v6504 = vpow.pop %v6503
    %v6505 = vmul.f32 %v6502, 1.442695
    %v6506 = vpow.pop %v6505
    %v6507 = vsel %vm473, %v6504, 0.0
    %6508 = vadd.xlane.f32.xlu0 %v6507
    %v6509 = vpop.xlane.xlu0 %6508
    %v6510 = vsel %vm473, %v6506, 0.0
    %6511 = vadd.xlane.f32.xlu0 %v6510
    %v6512 = vpop.xlane.xlu0 %6511
    %v6513 = vrcp.pop %v6509
    %v6514 = vmul.f32 %v6504, %v6513
    %v6515 = vrcp.pop %v6512
    %v6516 = vmul.f32 %v6506, %v6515
    %6518 = vrot.lane.b32.xlu0 %v6001, 112
    %v6519 = vpop.permute.xlu0 %6518
    %v6522 = vsel %vm473, %v6514, 0
    %6524 = vmatprep.subr.mxu0 0.0
    %6525 = vmatpush1.msra.mxu0 %v6519
    %6526 = vmatprep.subr.mxu0 0.0
    %6527 = vmatpush1.msra.mxu0 0.0
    %6528 = vmatprep.subr.mxu0 0.0
    %6529 = vmatpush1.msra.mxu0 0.0
    %6530 = vmatprep.subr.mxu0 0.0
    %6531 = vmatpush1.msra.mxu0 0.0
    %6532 = vmatprep.subr.mxu0 0.0
    %6533 = vmatpush1.msra.mxu0 0.0
    %6534 = vmatprep.subr.mxu0 0.0
    %6535 = vmatpush1.msra.mxu0 0.0
    %6536 = vmatprep.subr.mxu0 0.0
    %6537 = vmatpush1.msra.mxu0 0.0
    %6538 = vmatprep.subr.mxu0 0.0
    %6539 = vmatpush1.msra.mxu0 0.0
    %6540 = vmatprep.subr.mxu0 0.0
    %6541 = vmatpush1.msra.mxu0 0.0
    %6542 = vmatprep.subr.mxu0 0.0
    %6543 = vmatpush1.msra.mxu0 0.0
    %6544 = vmatprep.subr.mxu0 0.0
    %6545 = vmatpush1.msra.mxu0 0.0
    %6546 = vmatprep.subr.mxu0 0.0
    %6547 = vmatpush1.msra.mxu0 0.0
    %6548 = vmatprep.subr.mxu0 0.0
    %6549 = vmatpush1.msra.mxu0 0.0
    %6550 = vmatprep.subr.mxu0 0.0
    %6551 = vmatpush1.msra.mxu0 0.0
    %6552 = vmatprep.subr.mxu0 0.0
    %6553 = vmatpush1.msra.mxu0 0.0
    %6554 = vmatprep.subr.mxu0 0.0
    %6555 = vmatpush1.msra.mxu0 0.0
    %6556 = vmatprep.subr.mxu0 0.0
    %6557 = vmatpush1.msra.mxu0 0.0
    %6558 = vmatprep.subr.mxu0 0.0
    %6559 = vmatpush1.msra.mxu0 0.0
    %6560 = vmatprep.subr.mxu0 0.0
    %6561 = vmatpush1.msra.mxu0 0.0
    %6562 = vmatprep.subr.mxu0 0.0
    %6563 = vmatpush1.msra.mxu0 0.0
    %6564 = vmatprep.subr.mxu0 0.0
    %6565 = vmatpush1.msra.mxu0 0.0
    %6566 = vmatprep.subr.mxu0 0.0
    %6567 = vmatpush1.msra.mxu0 0.0
    %6568 = vmatprep.subr.mxu0 0.0
    %6569 = vmatpush1.msra.mxu0 0.0
    %6570 = vmatprep.subr.mxu0 0.0
    %6571 = vmatpush1.msra.mxu0 0.0
    %6572 = vmatprep.subr.mxu0 0.0
    %6573 = vmatpush1.msra.mxu0 0.0
    %6574 = vmatprep.subr.mxu0 0.0
    %6575 = vmatpush1.msra.mxu0 0.0
    %6576 = vmatprep.subr.mxu0 0.0
    %6577 = vmatpush1.msra.mxu0 0.0
    %6578 = vmatprep.subr.mxu0 0.0
    %6579 = vmatpush1.msra.mxu0 0.0
    %6580 = vmatprep.subr.mxu0 0.0
    %6581 = vmatpush1.msra.mxu0 0.0
    %6582 = vmatprep.subr.mxu0 0.0
    %6583 = vmatpush1.msra.mxu0 0.0
    %6584 = vmatprep.subr.mxu0 0.0
    %6585 = vmatpush1.msra.mxu0 0.0
    %6586 = vmatprep.subr.mxu0 0.0
    %6587 = vmatpush1.msra.mxu0 0.0
    %6588 = vmatprep.mubr.f32.mxu0 0.0
    %6589 = vmatmul.mubr.f32.gmra.mrb[0].mxu0 %v6522
    %v6590 = vpop.f32.mrb[0].mxu0
    %v6591 = vadd.f32 0.0, %v6590
    %v6592 = vpop.f32.mrb[0].mxu0
    %6593 = vdwg.mxu0
    %6595 = vrot.lane.b32.xlu0 %v6007, 112
    %v6596 = vpop.permute.xlu0 %6595
    %v6599 = vsel %vm473, %v6516, 0
    %6601 = vmatprep.subr.mxu0 0.0
    %6602 = vmatpush1.msra.mxu0 %v6596
    %6603 = vmatprep.subr.mxu0 0.0
    %6604 = vmatpush1.msra.mxu0 0.0
    %6605 = vmatprep.subr.mxu0 0.0
    %6606 = vmatpush1.msra.mxu0 0.0
    %6607 = vmatprep.subr.mxu0 0.0
    %6608 = vmatpush1.msra.mxu0 0.0
    %6609 = vmatprep.subr.mxu0 0.0
    %6610 = vmatpush1.msra.mxu0 0.0
    %6611 = vmatprep.subr.mxu0 0.0
    %6612 = vmatpush1.msra.mxu0 0.0
    %6613 = vmatprep.subr.mxu0 0.0
    %6614 = vmatpush1.msra.mxu0 0.0
    %6615 = vmatprep.subr.mxu0 0.0
    %6616 = vmatpush1.msra.mxu0 0.0
    %6617 = vmatprep.subr.mxu0 0.0
    %6618 = vmatpush1.msra.mxu0 0.0
    %6619 = vmatprep.subr.mxu0 0.0
    %6620 = vmatpush1.msra.mxu0 0.0
    %6621 = vmatprep.subr.mxu0 0.0
    %6622 = vmatpush1.msra.mxu0 0.0
    %6623 = vmatprep.subr.mxu0 0.0
    %6624 = vmatpush1.msra.mxu0 0.0
    %6625 = vmatprep.subr.mxu0 0.0
    %6626 = vmatpush1.msra.mxu0 0.0
    %6627 = vmatprep.subr.mxu0 0.0
    %6628 = vmatpush1.msra.mxu0 0.0
    %6629 = vmatprep.subr.mxu0 0.0
    %6630 = vmatpush1.msra.mxu0 0.0
    %6631 = vmatprep.subr.mxu0 0.0
    %6632 = vmatpush1.msra.mxu0 0.0
    %6633 = vmatprep.subr.mxu0 0.0
    %6634 = vmatpush1.msra.mxu0 0.0
    %6635 = vmatprep.subr.mxu0 0.0
    %6636 = vmatpush1.msra.mxu0 0.0
    %6637 = vmatprep.subr.mxu0 0.0
    %6638 = vmatpush1.msra.mxu0 0.0
    %6639 = vmatprep.subr.mxu0 0.0
    %6640 = vmatpush1.msra.mxu0 0.0
    %6641 = vmatprep.subr.mxu0 0.0
    %6642 = vmatpush1.msra.mxu0 0.0
    %6643 = vmatprep.subr.mxu0 0.0
    %6644 = vmatpush1.msra.mxu0 0.0
    %6645 = vmatprep.subr.mxu0 0.0
    %6646 = vmatpush1.msra.mxu0 0.0
    %6647 = vmatprep.subr.mxu0 0.0
    %6648 = vmatpush1.msra.mxu0 0.0
    %6649 = vmatprep.subr.mxu0 0.0
    %6650 = vmatpush1.msra.mxu0 0.0
    %6651 = vmatprep.subr.mxu0 0.0
    %6652 = vmatpush1.msra.mxu0 0.0
    %6653 = vmatprep.subr.mxu0 0.0
    %6654 = vmatpush1.msra.mxu0 0.0
    %6655 = vmatprep.subr.mxu0 0.0
    %6656 = vmatpush1.msra.mxu0 0.0
    %6657 = vmatprep.subr.mxu0 0.0
    %6658 = vmatpush1.msra.mxu0 0.0
    %6659 = vmatprep.subr.mxu0 0.0
    %6660 = vmatpush1.msra.mxu0 0.0
    %6661 = vmatprep.subr.mxu0 0.0
    %6662 = vmatpush1.msra.mxu0 0.0
    %6663 = vmatprep.subr.mxu0 0.0
    %6664 = vmatpush1.msra.mxu0 0.0
    %6665 = vmatprep.mubr.f32.mxu0 0.0
    %6666 = vmatmul.mubr.f32.gmra.mrb[0].mxu0 %v6599
    %v6667 = vpop.f32.mrb[0].mxu0
    %v6668 = vadd.f32 0.0, %v6667
    %v6669 = vpop.f32.mrb[0].mxu0
    %6670 = vdwg.mxu0
    %6671 = vrot.lane.b32.xlu0 %v5999, 96
    %v6672 = vpop.permute.xlu0 %6671
    %6673 = vrot.lane.b32.xlu0 %v5999, 32
    %v6674 = vpop.permute.xlu0 %6673
    %v6675 = vsel %vm280, %v6672, 0
    %v6677 = vsel %vm280, %v6674, 0
    %6679 = vmatprep.subr.mxu0 0.0
    %6680 = vmatpush1.xpose.msra.mxu0 %v6677
    %6681 = vmatprep.subr.mxu0 0.0
    %6682 = vmatpush1.xpose.msra.mxu0 0.0
    %6683 = vmatprep.subr.mxu0 0.0
    %6684 = vmatpush1.xpose.msra.mxu0 0.0
    %6685 = vmatprep.subr.mxu0 0.0
    %6686 = vmatpush1.xpose.msra.mxu0 0.0
    %6687 = vmatprep.subr.mxu0 0.0
    %6688 = vmatpush1.xpose.msra.mxu0 0.0
    %6689 = vmatprep.subr.mxu0 0.0
    %6690 = vmatpush1.xpose.msra.mxu0 0.0
    %6691 = vmatprep.subr.mxu0 0.0
    %6692 = vmatpush1.xpose.msra.mxu0 0.0
    %6693 = vmatprep.subr.mxu0 0.0
    %6694 = vmatpush1.xpose.msra.mxu0 0.0
    %6695 = vmatprep.subr.mxu0 0.0
    %6696 = vmatpush1.xpose.msra.mxu0 0.0
    %6697 = vmatprep.subr.mxu0 0.0
    %6698 = vmatpush1.xpose.msra.mxu0 0.0
    %6699 = vmatprep.subr.mxu0 0.0
    %6700 = vmatpush1.xpose.msra.mxu0 0.0
    %6701 = vmatprep.subr.mxu0 0.0
    %6702 = vmatpush1.xpose.msra.mxu0 0.0
    %6703 = vmatprep.subr.mxu0 0.0
    %6704 = vmatpush1.xpose.msra.mxu0 0.0
    %6705 = vmatprep.subr.mxu0 0.0
    %6706 = vmatpush1.xpose.msra.mxu0 0.0
    %6707 = vmatprep.subr.mxu0 0.0
    %6708 = vmatpush1.xpose.msra.mxu0 0.0
    %6709 = vmatprep.subr.mxu0 0.0
    %6710 = vmatpush1.xpose.msra.mxu0 0.0
    %6711 = vmatprep.subr.mxu0 0.0
    %6712 = vmatpush1.xpose.msra.mxu0 0.0
    %6713 = vmatprep.subr.mxu0 0.0
    %6714 = vmatpush1.xpose.msra.mxu0 0.0
    %6715 = vmatprep.subr.mxu0 0.0
    %6716 = vmatpush1.xpose.msra.mxu0 0.0
    %6717 = vmatprep.subr.mxu0 0.0
    %6718 = vmatpush1.xpose.msra.mxu0 0.0
    %6719 = vmatprep.subr.mxu0 0.0
    %6720 = vmatpush1.xpose.msra.mxu0 0.0
    %6721 = vmatprep.subr.mxu0 0.0
    %6722 = vmatpush1.xpose.msra.mxu0 0.0
    %6723 = vmatprep.subr.mxu0 0.0
    %6724 = vmatpush1.xpose.msra.mxu0 0.0
    %6725 = vmatprep.subr.mxu0 0.0
    %6726 = vmatpush1.xpose.msra.mxu0 0.0
    %6727 = vmatprep.subr.mxu0 0.0
    %6728 = vmatpush1.xpose.msra.mxu0 0.0
    %6729 = vmatprep.subr.mxu0 0.0
    %6730 = vmatpush1.xpose.msra.mxu0 0.0
    %6731 = vmatprep.subr.mxu0 0.0
    %6732 = vmatpush1.xpose.msra.mxu0 0.0
    %6733 = vmatprep.subr.mxu0 0.0
    %6734 = vmatpush1.xpose.msra.mxu0 0.0
    %6735 = vmatprep.subr.mxu0 0.0
    %6736 = vmatpush1.xpose.msra.mxu0 0.0
    %6737 = vmatprep.subr.mxu0 0.0
    %6738 = vmatpush1.xpose.msra.mxu0 0.0
    %6739 = vmatprep.subr.mxu0 0.0
    %6740 = vmatpush1.xpose.msra.mxu0 0.0
    %6741 = vmatprep.subr.mxu0 0.0
    %6742 = vmatpush1.xpose.msra.mxu0 0.0
    %6743 = vmatprep.mubr.f32.mxu0 0.0
    %6744 = vmatmul.mubr.f32.gmra.mrb[0].mxu0 %v6675
    %v6745 = vpop.f32.mrb[0].mxu0
    %v6746 = vadd.f32 0.0, %v6745
    %v6747 = vpop.f32.mrb[0].mxu0
    %6748 = vdwg.mxu0
    %6749 = vrot.lane.b32.xlu0 %v6005, 96
    %v6750 = vpop.permute.xlu0 %6749
    %6751 = vrot.lane.b32.xlu0 %v6005, 32
    %v6752 = vpop.permute.xlu0 %6751
    %v6753 = vsel %vm280, %v6750, 0
    %v6755 = vsel %vm280, %v6752, 0
    %6757 = vmatprep.subr.mxu0 0.0
    %6758 = vmatpush1.xpose.msra.mxu0 %v6755
    %6759 = vmatprep.subr.mxu0 0.0
    %6760 = vmatpush1.xpose.msra.mxu0 0.0
    %6761 = vmatprep.subr.mxu0 0.0
    %6762 = vmatpush1.xpose.msra.mxu0 0.0
    %6763 = vmatprep.subr.mxu0 0.0
    %6764 = vmatpush1.xpose.msra.mxu0 0.0
    %6765 = vmatprep.subr.mxu0 0.0
    %6766 = vmatpush1.xpose.msra.mxu0 0.0
    %6767 = vmatprep.subr.mxu0 0.0
    %6768 = vmatpush1.xpose.msra.mxu0 0.0
    %6769 = vmatprep.subr.mxu0 0.0
    %6770 = vmatpush1.xpose.msra.mxu0 0.0
    %6771 = vmatprep.subr.mxu0 0.0
    %6772 = vmatpush1.xpose.msra.mxu0 0.0
    %6773 = vmatprep.subr.mxu0 0.0
    %6774 = vmatpush1.xpose.msra.mxu0 0.0
    %6775 = vmatprep.subr.mxu0 0.0
    %6776 = vmatpush1.xpose.msra.mxu0 0.0
    %6777 = vmatprep.subr.mxu0 0.0
    %6778 = vmatpush1.xpose.msra.mxu0 0.0
    %6779 = vmatprep.subr.mxu0 0.0
    %6780 = vmatpush1.xpose.msra.mxu0 0.0
    %6781 = vmatprep.subr.mxu0 0.0
    %6782 = vmatpush1.xpose.msra.mxu0 0.0
    %6783 = vmatprep.subr.mxu0 0.0
    %6784 = vmatpush1.xpose.msra.mxu0 0.0
    %6785 = vmatprep.subr.mxu0 0.0
    %6786 = vmatpush1.xpose.msra.mxu0 0.0
    %6787 = vmatprep.subr.mxu0 0.0
    %6788 = vmatpush1.xpose.msra.mxu0 0.0
    %6789 = vmatprep.subr.mxu0 0.0
    %6790 = vmatpush1.xpose.msra.mxu0 0.0
    %6791 = vmatprep.subr.mxu0 0.0
    %6792 = vmatpush1.xpose.msra.mxu0 0.0
    %6793 = vmatprep.subr.mxu0 0.0
    %6794 = vmatpush1.xpose.msra.mxu0 0.0
    %6795 = vmatprep.subr.mxu0 0.0
    %6796 = vmatpush1.xpose.msra.mxu0 0.0
    %6797 = vmatprep.subr.mxu0 0.0
    %6798 = vmatpush1.xpose.msra.mxu0 0.0
    %6799 = vmatprep.subr.mxu0 0.0
    %6800 = vmatpush1.xpose.msra.mxu0 0.0
    %6801 = vmatprep.subr.mxu0 0.0
    %6802 = vmatpush1.xpose.msra.mxu0 0.0
    %6803 = vmatprep.subr.mxu0 0.0
    %6804 = vmatpush1.xpose.msra.mxu0 0.0
    %6805 = vmatprep.subr.mxu0 0.0
    %6806 = vmatpush1.xpose.msra.mxu0 0.0
    %6807 = vmatprep.subr.mxu0 0.0
    %6808 = vmatpush1.xpose.msra.mxu0 0.0
    %6809 = vmatprep.subr.mxu0 0.0
    %6810 = vmatpush1.xpose.msra.mxu0 0.0
    %6811 = vmatprep.subr.mxu0 0.0
    %6812 = vmatpush1.xpose.msra.mxu0 0.0
    %6813 = vmatprep.subr.mxu0 0.0
    %6814 = vmatpush1.xpose.msra.mxu0 0.0
    %6815 = vmatprep.subr.mxu0 0.0
    %6816 = vmatpush1.xpose.msra.mxu0 0.0
    %6817 = vmatprep.subr.mxu0 0.0
    %6818 = vmatpush1.xpose.msra.mxu0 0.0
    %6819 = vmatprep.subr.mxu0 0.0
    %6820 = vmatpush1.xpose.msra.mxu0 0.0
    %6821 = vmatprep.mubr.f32.mxu0 0.0
    %6822 = vmatmul.mubr.f32.gmra.mrb[0].mxu0 %v6753
    %v6823 = vpop.f32.mrb[0].mxu0
    %v6824 = vadd.f32 0.0, %v6823
    %v6825 = vpop.f32.mrb[0].mxu0
    %6826 = vdwg.mxu0
    %v6827 = vmul.f32 %v6746, 0.25
    %v6828 = vmul.f32 %v6824, 0.25
    %v6829 = vadd.f32 %v6827, %v462
    %v6830 = vadd.f32 %v6828, %v468
    %v6831 = vsel %vm473, %v6829, -inf
    %6832 = vmax.xlane.f32.xlu0 %v6831
    %v6833 = vpop.xlane.xlu0 %6832
    %v6834 = vsel %vm473, %v6830, -inf
    %6835 = vmax.xlane.f32.xlu0 %v6834
    %v6836 = vpop.xlane.xlu0 %6835
    %v6837 = vsub.f32 %v6829, %v6833
    %v6838 = vsub.f32 %v6830, %v6836
    %v6839 = vmul.f32 %v6837, 1.442695
    %v6840 = vpow.pop %v6839
    %v6841 = vmul.f32 %v6838, 1.442695
    %v6842 = vpow.pop %v6841
    %v6843 = vsel %vm473, %v6840, 0.0
    %6844 = vadd.xlane.f32.xlu0 %v6843
    %v6845 = vpop.xlane.xlu0 %6844
    %v6846 = vsel %vm473, %v6842, 0.0
    %6847 = vadd.xlane.f32.xlu0 %v6846
    %v6848 = vpop.xlane.xlu0 %6847
    %v6849 = vrcp.pop %v6845
    %v6850 = vmul.f32 %v6840, %v6849
    %v6851 = vrcp.pop %v6848
    %v6852 = vmul.f32 %v6842, %v6851
    %6853 = vrot.lane.b32.xlu0 %v6001, 96
    %v6854 = vpop.permute.xlu0 %6853
    %v6857 = vsel %vm473, %v6850, 0
    %6859 = vmatprep.subr.mxu0 0.0
    %6860 = vmatpush1.msra.mxu0 %v6854
    %6861 = vmatprep.subr.mxu0 0.0
    %6862 = vmatpush1.msra.mxu0 0.0
    %6863 = vmatprep.subr.mxu0 0.0
    %6864 = vmatpush1.msra.mxu0 0.0
    %6865 = vmatprep.subr.mxu0 0.0
    %6866 = vmatpush1.msra.mxu0 0.0
    %6867 = vmatprep.subr.mxu0 0.0
    %6868 = vmatpush1.msra.mxu0 0.0
    %6869 = vmatprep.subr.mxu0 0.0
    %6870 = vmatpush1.msra.mxu0 0.0
    %6871 = vmatprep.subr.mxu0 0.0
    %6872 = vmatpush1.msra.mxu0 0.0
    %6873 = vmatprep.subr.mxu0 0.0
    %6874 = vmatpush1.msra.mxu0 0.0
    %6875 = vmatprep.subr.mxu0 0.0
    %6876 = vmatpush1.msra.mxu0 0.0
    %6877 = vmatprep.subr.mxu0 0.0
    %6878 = vmatpush1.msra.mxu0 0.0
    %6879 = vmatprep.subr.mxu0 0.0
    %6880 = vmatpush1.msra.mxu0 0.0
    %6881 = vmatprep.subr.mxu0 0.0
    %6882 = vmatpush1.msra.mxu0 0.0
    %6883 = vmatprep.subr.mxu0 0.0
    %6884 = vmatpush1.msra.mxu0 0.0
    %6885 = vmatprep.subr.mxu0 0.0
    %6886 = vmatpush1.msra.mxu0 0.0
    %6887 = vmatprep.subr.mxu0 0.0
    %6888 = vmatpush1.msra.mxu0 0.0
    %6889 = vmatprep.subr.mxu0 0.0
    %6890 = vmatpush1.msra.mxu0 0.0
    %6891 = vmatprep.subr.mxu0 0.0
    %6892 = vmatpush1.msra.mxu0 0.0
    %6893 = vmatprep.subr.mxu0 0.0
    %6894 = vmatpush1.msra.mxu0 0.0
    %6895 = vmatprep.subr.mxu0 0.0
    %6896 = vmatpush1.msra.mxu0 0.0
    %6897 = vmatprep.subr.mxu0 0.0
    %6898 = vmatpush1.msra.mxu0 0.0
    %6899 = vmatprep.subr.mxu0 0.0
    %6900 = vmatpush1.msra.mxu0 0.0
    %6901 = vmatprep.subr.mxu0 0.0
    %6902 = vmatpush1.msra.mxu0 0.0
    %6903 = vmatprep.subr.mxu0 0.0
    %6904 = vmatpush1.msra.mxu0 0.0
    %6905 = vmatprep.subr.mxu0 0.0
    %6906 = vmatpush1.msra.mxu0 0.0
    %6907 = vmatprep.subr.mxu0 0.0
    %6908 = vmatpush1.msra.mxu0 0.0
    %6909 = vmatprep.subr.mxu0 0.0
    %6910 = vmatpush1.msra.mxu0 0.0
    %6911 = vmatprep.subr.mxu0 0.0
    %6912 = vmatpush1.msra.mxu0 0.0
    %6913 = vmatprep.subr.mxu0 0.0
    %6914 = vmatpush1.msra.mxu0 0.0
    %6915 = vmatprep.subr.mxu0 0.0
    %6916 = vmatpush1.msra.mxu0 0.0
    %6917 = vmatprep.subr.mxu0 0.0
    %6918 = vmatpush1.msra.mxu0 0.0
    %6919 = vmatprep.subr.mxu0 0.0
    %6920 = vmatpush1.msra.mxu0 0.0
    %6921 = vmatprep.subr.mxu0 0.0
    %6922 = vmatpush1.msra.mxu0 0.0
    %6923 = vmatprep.mubr.f32.mxu0 0.0
    %6924 = vmatmul.mubr.f32.gmra.mrb[0].mxu0 %v6857
    %v6925 = vpop.f32.mrb[0].mxu0
    %v6926 = vadd.f32 0.0, %v6925
    %v6927 = vpop.f32.mrb[0].mxu0
    %6928 = vdwg.mxu0
    %6929 = vrot.lane.b32.xlu0 %v6007, 96
    %v6930 = vpop.permute.xlu0 %6929
    %v6933 = vsel %vm473, %v6852, 0
    %6935 = vmatprep.subr.mxu0 0.0
    %6936 = vmatpush1.msra.mxu0 %v6930
    %6937 = vmatprep.subr.mxu0 0.0
    %6938 = vmatpush1.msra.mxu0 0.0
    %6939 = vmatprep.subr.mxu0 0.0
    %6940 = vmatpush1.msra.mxu0 0.0
    %6941 = vmatprep.subr.mxu0 0.0
    %6942 = vmatpush1.msra.mxu0 0.0
    %6943 = vmatprep.subr.mxu0 0.0
    %6944 = vmatpush1.msra.mxu0 0.0
    %6945 = vmatprep.subr.mxu0 0.0
    %6946 = vmatpush1.msra.mxu0 0.0
    %6947 = vmatprep.subr.mxu0 0.0
    %6948 = vmatpush1.msra.mxu0 0.0
    %6949 = vmatprep.subr.mxu0 0.0
    %6950 = vmatpush1.msra.mxu0 0.0
    %6951 = vmatprep.subr.mxu0 0.0
    %6952 = vmatpush1.msra.mxu0 0.0
    %6953 = vmatprep.subr.mxu0 0.0
    %6954 = vmatpush1.msra.mxu0 0.0
    %6955 = vmatprep.subr.mxu0 0.0
    %6956 = vmatpush1.msra.mxu0 0.0
    %6957 = vmatprep.subr.mxu0 0.0
    %6958 = vmatpush1.msra.mxu0 0.0
    %6959 = vmatprep.subr.mxu0 0.0
    %6960 = vmatpush1.msra.mxu0 0.0
    %6961 = vmatprep.subr.mxu0 0.0
    %6962 = vmatpush1.msra.mxu0 0.0
    %6963 = vmatprep.subr.mxu0 0.0
    %6964 = vmatpush1.msra.mxu0 0.0
    %6965 = vmatprep.subr.mxu0 0.0
    %6966 = vmatpush1.msra.mxu0 0.0
    %6967 = vmatprep.subr.mxu0 0.0
    %6968 = vmatpush1.msra.mxu0 0.0
    %6969 = vmatprep.subr.mxu0 0.0
    %6970 = vmatpush1.msra.mxu0 0.0
    %6971 = vmatprep.subr.mxu0 0.0
    %6972 = vmatpush1.msra.mxu0 0.0
    %6973 = vmatprep.subr.mxu0 0.0
    %6974 = vmatpush1.msra.mxu0 0.0
    %6975 = vmatprep.subr.mxu0 0.0
    %6976 = vmatpush1.msra.mxu0 0.0
    %6977 = vmatprep.subr.mxu0 0.0
    %6978 = vmatpush1.msra.mxu0 0.0
    %6979 = vmatprep.subr.mxu0 0.0
    %6980 = vmatpush1.msra.mxu0 0.0
    %6981 = vmatprep.subr.mxu0 0.0
    %6982 = vmatpush1.msra.mxu0 0.0
    %6983 = vmatprep.subr.mxu0 0.0
    %6984 = vmatpush1.msra.mxu0 0.0
    %6985 = vmatprep.subr.mxu0 0.0
    %6986 = vmatpush1.msra.mxu0 0.0
    %6987 = vmatprep.subr.mxu0 0.0
    %6988 = vmatpush1.msra.mxu0 0.0
    %6989 = vmatprep.subr.mxu0 0.0
    %6990 = vmatpush1.msra.mxu0 0.0
    %6991 = vmatprep.subr.mxu0 0.0
    %6992 = vmatpush1.msra.mxu0 0.0
    %6993 = vmatprep.subr.mxu0 0.0
    %6994 = vmatpush1.msra.mxu0 0.0
    %6995 = vmatprep.subr.mxu0 0.0
    %6996 = vmatpush1.msra.mxu0 0.0
    %6997 = vmatprep.subr.mxu0 0.0
    %6998 = vmatpush1.msra.mxu0 0.0
    %6999 = vmatprep.mubr.f32.mxu0 0.0
    %7000 = vmatmul.mubr.f32.gmra.mrb[0].mxu0 %v6933
    %v7001 = vpop.f32.mrb[0].mxu0
    %v7002 = vadd.f32 0.0, %v7001
    %v7003 = vpop.f32.mrb[0].mxu0
    %7004 = vdwg.mxu0
    %7005 = vrot.lane.b32.xlu0 %v5999, 80
    %v7006 = vpop.permute.xlu0 %7005
    %7007 = vrot.lane.b32.xlu0 %v5999, 16
    %v7008 = vpop.permute.xlu0 %7007
    %v7009 = vsel %vm280, %v7006, 0
    %v7011 = vsel %vm280, %v7008, 0
    %7013 = vmatprep.subr.mxu0 0.0
    %7014 = vmatpush1.xpose.msra.mxu0 %v7011
    %7015 = vmatprep.subr.mxu0 0.0
    %7016 = vmatpush1.xpose.msra.mxu0 0.0
    %7017 = vmatprep.subr.mxu0 0.0
    %7018 = vmatpush1.xpose.msra.mxu0 0.0
    %7019 = vmatprep.subr.mxu0 0.0
    %7020 = vmatpush1.xpose.msra.mxu0 0.0
    %7021 = vmatprep.subr.mxu0 0.0
    %7022 = vmatpush1.xpose.msra.mxu0 0.0
    %7023 = vmatprep.subr.mxu0 0.0
    %7024 = vmatpush1.xpose.msra.mxu0 0.0
    %7025 = vmatprep.subr.mxu0 0.0
    %7026 = vmatpush1.xpose.msra.mxu0 0.0
    %7027 = vmatprep.subr.mxu0 0.0
    %7028 = vmatpush1.xpose.msra.mxu0 0.0
    %7029 = vmatprep.subr.mxu0 0.0
    %7030 = vmatpush1.xpose.msra.mxu0 0.0
    %7031 = vmatprep.subr.mxu0 0.0
    %7032 = vmatpush1.xpose.msra.mxu0 0.0
    %7033 = vmatprep.subr.mxu0 0.0
    %7034 = vmatpush1.xpose.msra.mxu0 0.0
    %7035 = vmatprep.subr.mxu0 0.0
    %7036 = vmatpush1.xpose.msra.mxu0 0.0
    %7037 = vmatprep.subr.mxu0 0.0
    %7038 = vmatpush1.xpose.msra.mxu0 0.0
    %7039 = vmatprep.subr.mxu0 0.0
    %7040 = vmatpush1.xpose.msra.mxu0 0.0
    %7041 = vmatprep.subr.mxu0 0.0
    %7042 = vmatpush1.xpose.msra.mxu0 0.0
    %7043 = vmatprep.subr.mxu0 0.0
    %7044 = vmatpush1.xpose.msra.mxu0 0.0
    %7045 = vmatprep.subr.mxu0 0.0
    %7046 = vmatpush1.xpose.msra.mxu0 0.0
    %7047 = vmatprep.subr.mxu0 0.0
    %7048 = vmatpush1.xpose.msra.mxu0 0.0
    %7049 = vmatprep.subr.mxu0 0.0
    %7050 = vmatpush1.xpose.msra.mxu0 0.0
    %7051 = vmatprep.subr.mxu0 0.0
    %7052 = vmatpush1.xpose.msra.mxu0 0.0
    %7053 = vmatprep.subr.mxu0 0.0
    %7054 = vmatpush1.xpose.msra.mxu0 0.0
    %7055 = vmatprep.subr.mxu0 0.0
    %7056 = vmatpush1.xpose.msra.mxu0 0.0
    %7057 = vmatprep.subr.mxu0 0.0
    %7058 = vmatpush1.xpose.msra.mxu0 0.0
    %7059 = vmatprep.subr.mxu0 0.0
    %7060 = vmatpush1.xpose.msra.mxu0 0.0
    %7061 = vmatprep.subr.mxu0 0.0
    %7062 = vmatpush1.xpose.msra.mxu0 0.0
    %7063 = vmatprep.subr.mxu0 0.0
    %7064 = vmatpush1.xpose.msra.mxu0 0.0
    %7065 = vmatprep.subr.mxu0 0.0
    %7066 = vmatpush1.xpose.msra.mxu0 0.0
    %7067 = vmatprep.subr.mxu0 0.0
    %7068 = vmatpush1.xpose.msra.mxu0 0.0
    %7069 = vmatprep.subr.mxu0 0.0
    %7070 = vmatpush1.xpose.msra.mxu0 0.0
    %7071 = vmatprep.subr.mxu0 0.0
    %7072 = vmatpush1.xpose.msra.mxu0 0.0
    %7073 = vmatprep.subr.mxu0 0.0
    %7074 = vmatpush1.xpose.msra.mxu0 0.0
    %7075 = vmatprep.subr.mxu0 0.0
    %7076 = vmatpush1.xpose.msra.mxu0 0.0
    %7077 = vmatprep.mubr.f32.mxu0 0.0
    %7078 = vmatmul.mubr.f32.gmra.mrb[0].mxu0 %v7009
    %v7079 = vpop.f32.mrb[0].mxu0
    %v7080 = vadd.f32 0.0, %v7079
    %v7081 = vpop.f32.mrb[0].mxu0
    %7082 = vdwg.mxu0
    %7083 = vrot.lane.b32.xlu0 %v6005, 80
    %v7084 = vpop.permute.xlu0 %7083
    %7085 = vrot.lane.b32.xlu0 %v6005, 16
    %v7086 = vpop.permute.xlu0 %7085
    %v7087 = vsel %vm280, %v7084, 0
    %v7089 = vsel %vm280, %v7086, 0
    %7091 = vmatprep.subr.mxu0 0.0
    %7092 = vmatpush1.xpose.msra.mxu0 %v7089
    %7093 = vmatprep.subr.mxu0 0.0
    %7094 = vmatpush1.xpose.msra.mxu0 0.0
    %7095 = vmatprep.subr.mxu0 0.0
    %7096 = vmatpush1.xpose.msra.mxu0 0.0
    %7097 = vmatprep.subr.mxu0 0.0
    %7098 = vmatpush1.xpose.msra.mxu0 0.0
    %7099 = vmatprep.subr.mxu0 0.0
    %7100 = vmatpush1.xpose.msra.mxu0 0.0
    %7101 = vmatprep.subr.mxu0 0.0
    %7102 = vmatpush1.xpose.msra.mxu0 0.0
    %7103 = vmatprep.subr.mxu0 0.0
    %7104 = vmatpush1.xpose.msra.mxu0 0.0
    %7105 = vmatprep.subr.mxu0 0.0
    %7106 = vmatpush1.xpose.msra.mxu0 0.0
    %7107 = vmatprep.subr.mxu0 0.0
    %7108 = vmatpush1.xpose.msra.mxu0 0.0
    %7109 = vmatprep.subr.mxu0 0.0
    %7110 = vmatpush1.xpose.msra.mxu0 0.0
    %7111 = vmatprep.subr.mxu0 0.0
    %7112 = vmatpush1.xpose.msra.mxu0 0.0
    %7113 = vmatprep.subr.mxu0 0.0
    %7114 = vmatpush1.xpose.msra.mxu0 0.0
    %7115 = vmatprep.subr.mxu0 0.0
    %7116 = vmatpush1.xpose.msra.mxu0 0.0
    %7117 = vmatprep.subr.mxu0 0.0
    %7118 = vmatpush1.xpose.msra.mxu0 0.0
    %7119 = vmatprep.subr.mxu0 0.0
    %7120 = vmatpush1.xpose.msra.mxu0 0.0
    %7121 = vmatprep.subr.mxu0 0.0
    %7122 = vmatpush1.xpose.msra.mxu0 0.0
    %7123 = vmatprep.subr.mxu0 0.0
    %7124 = vmatpush1.xpose.msra.mxu0 0.0
    %7125 = vmatprep.subr.mxu0 0.0
    %7126 = vmatpush1.xpose.msra.mxu0 0.0
    %7127 = vmatprep.subr.mxu0 0.0
    %7128 = vmatpush1.xpose.msra.mxu0 0.0
    %7129 = vmatprep.subr.mxu0 0.0
    %7130 = vmatpush1.xpose.msra.mxu0 0.0
    %7131 = vmatprep.subr.mxu0 0.0
    %7132 = vmatpush1.xpose.msra.mxu0 0.0
    %7133 = vmatprep.subr.mxu0 0.0
    %7134 = vmatpush1.xpose.msra.mxu0 0.0
    %7135 = vmatprep.subr.mxu0 0.0
    %7136 = vmatpush1.xpose.msra.mxu0 0.0
    %7137 = vmatprep.subr.mxu0 0.0
    %7138 = vmatpush1.xpose.msra.mxu0 0.0
    %7139 = vmatprep.subr.mxu0 0.0
    %7140 = vmatpush1.xpose.msra.mxu0 0.0
    %7141 = vmatprep.subr.mxu0 0.0
    %7142 = vmatpush1.xpose.msra.mxu0 0.0
    %7143 = vmatprep.subr.mxu0 0.0
    %7144 = vmatpush1.xpose.msra.mxu0 0.0
    %7145 = vmatprep.subr.mxu0 0.0
    %7146 = vmatpush1.xpose.msra.mxu0 0.0
    %7147 = vmatprep.subr.mxu0 0.0
    %7148 = vmatpush1.xpose.msra.mxu0 0.0
    %7149 = vmatprep.subr.mxu0 0.0
    %7150 = vmatpush1.xpose.msra.mxu0 0.0
    %7151 = vmatprep.subr.mxu0 0.0
    %7152 = vmatpush1.xpose.msra.mxu0 0.0
    %7153 = vmatprep.subr.mxu0 0.0
    %7154 = vmatpush1.xpose.msra.mxu0 0.0
    %7155 = vmatprep.mubr.f32.mxu0 0.0
    %7156 = vmatmul.mubr.f32.gmra.mrb[0].mxu0 %v7087
    %v7157 = vpop.f32.mrb[0].mxu0
    %v7158 = vadd.f32 0.0, %v7157
    %v7159 = vpop.f32.mrb[0].mxu0
    %7160 = vdwg.mxu0
    %v7161 = vmul.f32 %v7080, 0.25
    %v7162 = vmul.f32 %v7158, 0.25
    %v7163 = vadd.f32 %v7161, %v462
    %v7164 = vadd.f32 %v7162, %v468
    %v7165 = vsel %vm473, %v7163, -inf
    %7166 = vmax.xlane.f32.xlu0 %v7165
    %v7167 = vpop.xlane.xlu0 %7166
    %v7168 = vsel %vm473, %v7164, -inf
    %7169 = vmax.xlane.f32.xlu0 %v7168
    %v7170 = vpop.xlane.xlu0 %7169
    %v7171 = vsub.f32 %v7163, %v7167
    %v7172 = vsub.f32 %v7164, %v7170
    %v7173 = vmul.f32 %v7171, 1.442695
    %v7174 = vpow.pop %v7173
    %v7175 = vmul.f32 %v7172, 1.442695
    %v7176 = vpow.pop %v7175
    %v7177 = vsel %vm473, %v7174, 0.0
    %7178 = vadd.xlane.f32.xlu0 %v7177
    %v7179 = vpop.xlane.xlu0 %7178
    %v7180 = vsel %vm473, %v7176, 0.0
    %7181 = vadd.xlane.f32.xlu0 %v7180
    %v7182 = vpop.xlane.xlu0 %7181
    %v7183 = vrcp.pop %v7179
    %v7184 = vmul.f32 %v7174, %v7183
    %v7185 = vrcp.pop %v7182
    %v7186 = vmul.f32 %v7176, %v7185
    %7187 = vrot.lane.b32.xlu0 %v6001, 80
    %v7188 = vpop.permute.xlu0 %7187
    %v7191 = vsel %vm473, %v7184, 0
    %7193 = vmatprep.subr.mxu0 0.0
    %7194 = vmatpush1.msra.mxu0 %v7188
    %7195 = vmatprep.subr.mxu0 0.0
    %7196 = vmatpush1.msra.mxu0 0.0
    %7197 = vmatprep.subr.mxu0 0.0
    %7198 = vmatpush1.msra.mxu0 0.0
    %7199 = vmatprep.subr.mxu0 0.0
    %7200 = vmatpush1.msra.mxu0 0.0
    %7201 = vmatprep.subr.mxu0 0.0
    %7202 = vmatpush1.msra.mxu0 0.0
    %7203 = vmatprep.subr.mxu0 0.0
    %7204 = vmatpush1.msra.mxu0 0.0
    %7205 = vmatprep.subr.mxu0 0.0
    %7206 = vmatpush1.msra.mxu0 0.0
    %7207 = vmatprep.subr.mxu0 0.0
    %7208 = vmatpush1.msra.mxu0 0.0
    %7209 = vmatprep.subr.mxu0 0.0
    %7210 = vmatpush1.msra.mxu0 0.0
    %7211 = vmatprep.subr.mxu0 0.0
    %7212 = vmatpush1.msra.mxu0 0.0
    %7213 = vmatprep.subr.mxu0 0.0
    %7214 = vmatpush1.msra.mxu0 0.0
    %7215 = vmatprep.subr.mxu0 0.0
    %7216 = vmatpush1.msra.mxu0 0.0
    %7217 = vmatprep.subr.mxu0 0.0
    %7218 = vmatpush1.msra.mxu0 0.0
    %7219 = vmatprep.subr.mxu0 0.0
    %7220 = vmatpush1.msra.mxu0 0.0
    %7221 = vmatprep.subr.mxu0 0.0
    %7222 = vmatpush1.msra.mxu0 0.0
    %7223 = vmatprep.subr.mxu0 0.0
    %7224 = vmatpush1.msra.mxu0 0.0
    %7225 = vmatprep.subr.mxu0 0.0
    %7226 = vmatpush1.msra.mxu0 0.0
    %7227 = vmatprep.subr.mxu0 0.0
    %7228 = vmatpush1.msra.mxu0 0.0
    %7229 = vmatprep.subr.mxu0 0.0
    %7230 = vmatpush1.msra.mxu0 0.0
    %7231 = vmatprep.subr.mxu0 0.0
    %7232 = vmatpush1.msra.mxu0 0.0
    %7233 = vmatprep.subr.mxu0 0.0
    %7234 = vmatpush1.msra.mxu0 0.0
    %7235 = vmatprep.subr.mxu0 0.0
    %7236 = vmatpush1.msra.mxu0 0.0
    %7237 = vmatprep.subr.mxu0 0.0
    %7238 = vmatpush1.msra.mxu0 0.0
    %7239 = vmatprep.subr.mxu0 0.0
    %7240 = vmatpush1.msra.mxu0 0.0
    %7241 = vmatprep.subr.mxu0 0.0
    %7242 = vmatpush1.msra.mxu0 0.0
    %7243 = vmatprep.subr.mxu0 0.0
    %7244 = vmatpush1.msra.mxu0 0.0
    %7245 = vmatprep.subr.mxu0 0.0
    %7246 = vmatpush1.msra.mxu0 0.0
    %7247 = vmatprep.subr.mxu0 0.0
    %7248 = vmatpush1.msra.mxu0 0.0
    %7249 = vmatprep.subr.mxu0 0.0
    %7250 = vmatpush1.msra.mxu0 0.0
    %7251 = vmatprep.subr.mxu0 0.0
    %7252 = vmatpush1.msra.mxu0 0.0
    %7253 = vmatprep.subr.mxu0 0.0
    %7254 = vmatpush1.msra.mxu0 0.0
    %7255 = vmatprep.subr.mxu0 0.0
    %7256 = vmatpush1.msra.mxu0 0.0
    %7257 = vmatprep.mubr.f32.mxu0 0.0
    %7258 = vmatmul.mubr.f32.gmra.mrb[0].mxu0 %v7191
    %v7259 = vpop.f32.mrb[0].mxu0
    %v7260 = vadd.f32 0.0, %v7259
    %v7261 = vpop.f32.mrb[0].mxu0
    %7262 = vdwg.mxu0
    %7263 = vrot.lane.b32.xlu0 %v6007, 80
    %v7264 = vpop.permute.xlu0 %7263
    %v7267 = vsel %vm473, %v7186, 0
    %7269 = vmatprep.subr.mxu0 0.0
    %7270 = vmatpush1.msra.mxu0 %v7264
    %7271 = vmatprep.subr.mxu0 0.0
    %7272 = vmatpush1.msra.mxu0 0.0
    %7273 = vmatprep.subr.mxu0 0.0
    %7274 = vmatpush1.msra.mxu0 0.0
    %7275 = vmatprep.subr.mxu0 0.0
    %7276 = vmatpush1.msra.mxu0 0.0
    %7277 = vmatprep.subr.mxu0 0.0
    %7278 = vmatpush1.msra.mxu0 0.0
    %7279 = vmatprep.subr.mxu0 0.0
    %7280 = vmatpush1.msra.mxu0 0.0
    %7281 = vmatprep.subr.mxu0 0.0
    %7282 = vmatpush1.msra.mxu0 0.0
    %7283 = vmatprep.subr.mxu0 0.0
    %7284 = vmatpush1.msra.mxu0 0.0
    %7285 = vmatprep.subr.mxu0 0.0
    %7286 = vmatpush1.msra.mxu0 0.0
    %7287 = vmatprep.subr.mxu0 0.0
    %7288 = vmatpush1.msra.mxu0 0.0
    %7289 = vmatprep.subr.mxu0 0.0
    %7290 = vmatpush1.msra.mxu0 0.0
    %7291 = vmatprep.subr.mxu0 0.0
    %7292 = vmatpush1.msra.mxu0 0.0
    %7293 = vmatprep.subr.mxu0 0.0
    %7294 = vmatpush1.msra.mxu0 0.0
    %7295 = vmatprep.subr.mxu0 0.0
    %7296 = vmatpush1.msra.mxu0 0.0
    %7297 = vmatprep.subr.mxu0 0.0
    %7298 = vmatpush1.msra.mxu0 0.0
    %7299 = vmatprep.subr.mxu0 0.0
    %7300 = vmatpush1.msra.mxu0 0.0
    %7301 = vmatprep.subr.mxu0 0.0
    %7302 = vmatpush1.msra.mxu0 0.0
    %7303 = vmatprep.subr.mxu0 0.0
    %7304 = vmatpush1.msra.mxu0 0.0
    %7305 = vmatprep.subr.mxu0 0.0
    %7306 = vmatpush1.msra.mxu0 0.0
    %7307 = vmatprep.subr.mxu0 0.0
    %7308 = vmatpush1.msra.mxu0 0.0
    %7309 = vmatprep.subr.mxu0 0.0
    %7310 = vmatpush1.msra.mxu0 0.0
    %7311 = vmatprep.subr.mxu0 0.0
    %7312 = vmatpush1.msra.mxu0 0.0
    %7313 = vmatprep.subr.mxu0 0.0
    %7314 = vmatpush1.msra.mxu0 0.0
    %7315 = vmatprep.subr.mxu0 0.0
    %7316 = vmatpush1.msra.mxu0 0.0
    %7317 = vmatprep.subr.mxu0 0.0
    %7318 = vmatpush1.msra.mxu0 0.0
    %7319 = vmatprep.subr.mxu0 0.0
    %7320 = vmatpush1.msra.mxu0 0.0
    %7321 = vmatprep.subr.mxu0 0.0
    %7322 = vmatpush1.msra.mxu0 0.0
    %7323 = vmatprep.subr.mxu0 0.0
    %7324 = vmatpush1.msra.mxu0 0.0
    %7325 = vmatprep.subr.mxu0 0.0
    %7326 = vmatpush1.msra.mxu0 0.0
    %7327 = vmatprep.subr.mxu0 0.0
    %7328 = vmatpush1.msra.mxu0 0.0
    %7329 = vmatprep.subr.mxu0 0.0
    %7330 = vmatpush1.msra.mxu0 0.0
    %7331 = vmatprep.subr.mxu0 0.0
    %7332 = vmatpush1.msra.mxu0 0.0
    %7333 = vmatprep.mubr.f32.mxu0 0.0
    %7334 = vmatmul.mubr.f32.gmra.mrb[0].mxu0 %v7267
    %v7335 = vpop.f32.mrb[0].mxu0
    %v7336 = vadd.f32 0.0, %v7335
    %v7337 = vpop.f32.mrb[0].mxu0
    %7338 = vdwg.mxu0
    %7341 = vrot.lane.b32.xlu0 %v6591, 16
    %v7342 = vpop.permute.xlu0 %7341
    %7343 = vrot.lane.b32.xlu0 %v6668, 16
    %v7344 = vpop.permute.xlu0 %7343
    %7349 = vrot.lane.b32.xlu0 %v6926, 32
    %v7350 = vpop.permute.xlu0 %7349
    %7351 = vrot.lane.b32.xlu0 %v7002, 32
    %v7352 = vpop.permute.xlu0 %7351
    %7357 = vrot.lane.b32.xlu0 %v7260, 48
    %v7358 = vpop.permute.xlu0 %7357
    %7359 = vrot.lane.b32.xlu0 %v7336, 48
    %v7360 = vpop.permute.xlu0 %7359
    %v7363 = vsel %vm280, %v6259, %v7342
    %v7364 = vsel %vm280, %v6332, %v7344
    %v7365 = vsel %vm1672, %v7363, %v7350
    %v7366 = vsel %vm1672, %v7364, %v7352
    %v7367 = vsel %vm1675, %v7365, %v7358
    %v7368 = vsel %vm1675, %v7366, %v7360
    %s7369 = scalar_lea.vmem %s5, 192
    %v7370 = vld [vmem:[%s7369] sm:$0xff]
    %v7371 = vld [vmem:[%s7369 + $0x8] sm:$0xff]
    %v7372 = vld [vmem:[%s7369 + $0x10] sm:$0xff]
    %v7373 = vld [vmem:[%s7369 + $0x18] sm:$0xff]
    %v7374 = vld [vmem:[%s7369 + $0x20] sm:$0xff]
    %v7375 = vld [vmem:[%s7369 + $0x28] sm:$0xff]
    %v7376 = vld [vmem:[%s7369 + $0x30] sm:$0xff]
    %v7377 = vld [vmem:[%s7369 + $0x38] sm:$0xff]
    %s7378 = scalar_lea.vmem %s6, 3
    %v7379 = vld [vmem:[%s7378] sm:$0x1]
    %v7381 = vlaneseq
    %v7382 = vshrl.u32 %v7381, 7
    %v7383 = vsub.s32 0, %v7382
    %v7384 = vrot.slane %v7379, %v7383
    %v7387 = vsel %vm193, %v7367, 0
    %v7390 = vsel %vm193, %v7368, 0
    %7392 = vmatprep.subr.mxu0 0.0
    %7393 = vmatpush1.msra.mxu0 %v7370
    %7394 = vmatprep.subr.mxu0 0.0
    %7395 = vmatpush1.msra.mxu0 %v7371
    %7396 = vmatprep.subr.mxu0 0.0
    %7397 = vmatpush1.msra.mxu0 %v7372
    %7398 = vmatprep.subr.mxu0 0.0
    %7399 = vmatpush1.msra.mxu0 %v7373
    %7400 = vmatprep.subr.mxu0 0.0
    %7401 = vmatpush1.msra.mxu0 %v7374
    %7402 = vmatprep.subr.mxu0 0.0
    %7403 = vmatpush1.msra.mxu0 %v7375
    %7404 = vmatprep.subr.mxu0 0.0
    %7405 = vmatpush1.msra.mxu0 %v7376
    %7406 = vmatprep.subr.mxu0 0.0
    %7407 = vmatpush1.msra.mxu0 %v7377
    %7408 = vmatprep.subr.mxu0 0.0
    %7409 = vmatpush1.msra.mxu0 0.0
    %7410 = vmatprep.subr.mxu0 0.0
    %7411 = vmatpush1.msra.mxu0 0.0
    %7412 = vmatprep.subr.mxu0 0.0
    %7413 = vmatpush1.msra.mxu0 0.0
    %7414 = vmatprep.subr.mxu0 0.0
    %7415 = vmatpush1.msra.mxu0 0.0
    %7416 = vmatprep.subr.mxu0 0.0
    %7417 = vmatpush1.msra.mxu0 0.0
    %7418 = vmatprep.subr.mxu0 0.0
    %7419 = vmatpush1.msra.mxu0 0.0
    %7420 = vmatprep.subr.mxu0 0.0
    %7421 = vmatpush1.msra.mxu0 0.0
    %7422 = vmatprep.subr.mxu0 0.0
    %7423 = vmatpush1.msra.mxu0 0.0
    %7424 = vmatprep.subr.mxu0 0.0
    %7425 = vmatpush1.msra.mxu0 0.0
    %7426 = vmatprep.subr.mxu0 0.0
    %7427 = vmatpush1.msra.mxu0 0.0
    %7428 = vmatprep.subr.mxu0 0.0
    %7429 = vmatpush1.msra.mxu0 0.0
    %7430 = vmatprep.subr.mxu0 0.0
    %7431 = vmatpush1.msra.mxu0 0.0
    %7432 = vmatprep.subr.mxu0 0.0
    %7433 = vmatpush1.msra.mxu0 0.0
    %7434 = vmatprep.subr.mxu0 0.0
    %7435 = vmatpush1.msra.mxu0 0.0
    %7436 = vmatprep.subr.mxu0 0.0
    %7437 = vmatpush1.msra.mxu0 0.0
    %7438 = vmatprep.subr.mxu0 0.0
    %7439 = vmatpush1.msra.mxu0 0.0
    %7440 = vmatprep.subr.mxu0 0.0
    %7441 = vmatpush1.msra.mxu0 0.0
    %7442 = vmatprep.subr.mxu0 0.0
    %7443 = vmatpush1.msra.mxu0 0.0
    %7444 = vmatprep.subr.mxu0 0.0
    %7445 = vmatpush1.msra.mxu0 0.0
    %7446 = vmatprep.subr.mxu0 0.0
    %7447 = vmatpush1.msra.mxu0 0.0
    %7448 = vmatprep.subr.mxu0 0.0
    %7449 = vmatpush1.msra.mxu0 0.0
    %7450 = vmatprep.subr.mxu0 0.0
    %7451 = vmatpush1.msra.mxu0 0.0
    %7452 = vmatprep.subr.mxu0 0.0
    %7453 = vmatpush1.msra.mxu0 0.0
    %7454 = vmatprep.subr.mxu0 0.0
    %7455 = vmatpush1.msra.mxu0 0.0
    %7456 = vmatprep.mubr.f32.mxu0 0.0
    %7457 = vmatmul.mubr.f32.gmra.mrb[0].mxu0 %v7387
    %v7458 = vpop.f32.mrb[0].mxu0
    %v7459 = vadd.f32 %v7384, %v7458
    %v7460 = vpop.f32.mrb[0].mxu0
    %7461 = vmatprep.mubr.f32.mxu0 0.0
    %7462 = vmatmul.mubr.f32.gmra.mrb[0].mxu0 %v7390
    %v7463 = vpop.f32.mrb[0].mxu0
    %v7464 = vadd.f32 %v7384, %v7463
    %v7465 = vpop.f32.mrb[0].mxu0
    %7466 = vdwg.mxu0
    %v7467 = vadd.f32 %v5894, %v7459
    %v7468 = vadd.f32 %v5895, %v7464
    %s7469 = scalar_lea.vmem %s7, 3
    %v7470 = vld [vmem:[%s7469] sm:$0x1]
    %s7471 = scalar_lea.vmem %s8, 3
    %v7472 = vld [vmem:[%s7471] sm:$0x1]
    %v7473 = vsel %vm193, %v7467, 0.0
    %7474 = vadd.xlane.f32.xlu0 %v7473
    %v7475 = vpop.xlane.xlu0 %7474
    %v7476 = vsel %vm193, %v7468, 0.0
    %7477 = vadd.xlane.f32.xlu0 %v7476
    %v7478 = vpop.xlane.xlu0 %7477
    %v7479 = vmul.f32 %v7475, %v1784
    %v7480 = vmul.f32 %v7478, %v1784
    %v7481 = vsub.f32 %v7467, %v7479
    %v7482 = vsub.f32 %v7468, %v7480
    %v7483 = vmul.f32 %v7481, %v7481
    %v7484 = vmul.f32 %v7482, %v7482
    %v7485 = vsel %vm193, %v7483, 0.0
    %7486 = vadd.xlane.f32.xlu0 %v7485
    %v7487 = vpop.xlane.xlu0 %7486
    %v7488 = vsel %vm193, %v7484, 0.0
    %7489 = vadd.xlane.f32.xlu0 %v7488
    %v7490 = vpop.xlane.xlu0 %7489
    %v7491 = vmul.f32 %v7487, %v1784
    %v7492 = vmul.f32 %v7490, %v1784
    %v7493 = vadd.f32 %v7491, 1e-05
    %v7494 = vadd.f32 %v7492, 1e-05
    %v7495 = vrsqrt.pop %v7493
    %v7496 = vrsqrt.pop %v7494
    %v7497 = vmul.f32 %v7481, %v7495
    %v7498 = vmul.f32 %v7482, %v7496
    %v7500 = vlaneseq
    %v7501 = vshrl.u32 %v7500, 7
    %v7502 = vsub.s32 0, %v7501
    %v7503 = vrot.slane %v7470, %v7502
    %v7505 = vmul.f32 %v7497, %v7503
    %v7506 = vmul.f32 %v7498, %v7503
    %v7508 = vlaneseq
    %v7509 = vshrl.u32 %v7508, 7
    %v7510 = vsub.s32 0, %v7509
    %v7511 = vrot.slane %v7472, %v7510
    %v7513 = vadd.f32 %v7505, %v7511
    %v7514 = vadd.f32 %v7506, %v7511
    %s7515 = scalar_lea.vmem %s11, 384
    %v7516 = vld [vmem:[%s7515] sm:$0xff]
    %v7517 = vld [vmem:[%s7515 + $0x8] sm:$0xff]
    %v7518 = vld [vmem:[%s7515 + $0x10] sm:$0xff]
    %v7519 = vld [vmem:[%s7515 + $0x18] sm:$0xff]
    %v7520 = vld [vmem:[%s7515 + $0x20] sm:$0xff]
    %v7521 = vld [vmem:[%s7515 + $0x28] sm:$0xff]
    %v7522 = vld [vmem:[%s7515 + $0x30] sm:$0xff]
    %v7523 = vld [vmem:[%s7515 + $0x38] sm:$0xff]
    %v7524 = vld [vmem:[%s7515 + $0x40] sm:$0xff]
    %v7525 = vld [vmem:[%s7515 + $0x48] sm:$0xff]
    %v7526 = vld [vmem:[%s7515 + $0x50] sm:$0xff]
    %v7527 = vld [vmem:[%s7515 + $0x58] sm:$0xff]
    %v7528 = vld [vmem:[%s7515 + $0x60] sm:$0xff]
    %v7529 = vld [vmem:[%s7515 + $0x68] sm:$0xff]
    %v7530 = vld [vmem:[%s7515 + $0x70] sm:$0xff]
    %v7531 = vld [vmem:[%s7515 + $0x78] sm:$0xff]
    %s7532 = scalar_lea.vmem %s12, 6
    %v7533 = vld [vmem:[%s7532] sm:$0x3]
    %v7535 = vlaneseq
    %v7536 = vshrl.u32 %v7535, 7
    %v7537 = vsub.s32 0, %v7536
    %v7538 = vrot.slane %v7533, %v7537
    %v7539 = vlaneseq
    %v7540 = vshrl.u32 %v7539, 7
    %v7541 = vsub.s32 1, %v7540
    %v7542 = vrot.slane %v7533, %v7541
    %v7546 = vsel %vm193, %v7513, 0
    %v7549 = vsel %vm193, %v7514, 0
    %7551 = vmatprep.subr.mxu0 %v7517
    %7552 = vmatpush1.msra.mxu0 %v7516
    %7553 = vmatprep.subr.mxu0 %v7519
    %7554 = vmatpush1.msra.mxu0 %v7518
    %7555 = vmatprep.subr.mxu0 %v7521
    %7556 = vmatpush1.msra.mxu0 %v7520
    %7557 = vmatprep.subr.mxu0 %v7523
    %7558 = vmatpush1.msra.mxu0 %v7522
    %7559 = vmatprep.subr.mxu0 %v7525
    %7560 = vmatpush1.msra.mxu0 %v7524
    %7561 = vmatprep.subr.mxu0 %v7527
    %7562 = vmatpush1.msra.mxu0 %v7526
    %7563 = vmatprep.subr.mxu0 %v7529
    %7564 = vmatpush1.msra.mxu0 %v7528
    %7565 = vmatprep.subr.mxu0 %v7531
    %7566 = vmatpush1.msra.mxu0 %v7530
    %7567 = vmatprep.subr.mxu0 0.0
    %7568 = vmatpush1.msra.mxu0 0.0
    %7569 = vmatprep.subr.mxu0 0.0
    %7570 = vmatpush1.msra.mxu0 0.0
    %7571 = vmatprep.subr.mxu0 0.0
    %7572 = vmatpush1.msra.mxu0 0.0
    %7573 = vmatprep.subr.mxu0 0.0
    %7574 = vmatpush1.msra.mxu0 0.0
    %7575 = vmatprep.subr.mxu0 0.0
    %7576 = vmatpush1.msra.mxu0 0.0
    %7577 = vmatprep.subr.mxu0 0.0
    %7578 = vmatpush1.msra.mxu0 0.0
    %7579 = vmatprep.subr.mxu0 0.0
    %7580 = vmatpush1.msra.mxu0 0.0
    %7581 = vmatprep.subr.mxu0 0.0
    %7582 = vmatpush1.msra.mxu0 0.0
    %7583 = vmatprep.subr.mxu0 0.0
    %7584 = vmatpush1.msra.mxu0 0.0
    %7585 = vmatprep.subr.mxu0 0.0
    %7586 = vmatpush1.msra.mxu0 0.0
    %7587 = vmatprep.subr.mxu0 0.0
    %7588 = vmatpush1.msra.mxu0 0.0
    %7589 = vmatprep.subr.mxu0 0.0
    %7590 = vmatpush1.msra.mxu0 0.0
    %7591 = vmatprep.subr.mxu0 0.0
    %7592 = vmatpush1.msra.mxu0 0.0
    %7593 = vmatprep.subr.mxu0 0.0
    %7594 = vmatpush1.msra.mxu0 0.0
    %7595 = vmatprep.subr.mxu0 0.0
    %7596 = vmatpush1.msra.mxu0 0.0
    %7597 = vmatprep.subr.mxu0 0.0
    %7598 = vmatpush1.msra.mxu0 0.0
    %7599 = vmatprep.subr.mxu0 0.0
    %7600 = vmatpush1.msra.mxu0 0.0
    %7601 = vmatprep.subr.mxu0 0.0
    %7602 = vmatpush1.msra.mxu0 0.0
    %7603 = vmatprep.subr.mxu0 0.0
    %7604 = vmatpush1.msra.mxu0 0.0
    %7605 = vmatprep.subr.mxu0 0.0
    %7606 = vmatpush1.msra.mxu0 0.0
    %7607 = vmatprep.subr.mxu0 0.0
    %7608 = vmatpush1.msra.mxu0 0.0
    %7609 = vmatprep.subr.mxu0 0.0
    %7610 = vmatpush1.msra.mxu0 0.0
    %7611 = vmatprep.subr.mxu0 0.0
    %7612 = vmatpush1.msra.mxu0 0.0
    %7613 = vmatprep.subr.mxu0 0.0
    %7614 = vmatpush1.msra.mxu0 0.0
    %7615 = vmatprep.mubr.f32.mxu0 0.0
    %7616 = vmatmul.mubr.f32.gmra.mrb[0].mxu0 %v7546
    %v7617 = vpop.f32.mrb[0].mxu0
    %v7618 = vadd.f32 %v7538, %v7617
    %v7619 = vpop.f32.mrb[0].mxu0
    %v7620 = vadd.f32 %v7542, %v7619
    %7621 = vmatprep.mubr.f32.mxu0 0.0
    %7622 = vmatmul.mubr.f32.gmra.mrb[0].mxu0 %v7549
    %v7623 = vpop.f32.mrb[0].mxu0
    %v7624 = vadd.f32 %v7538, %v7623
    %v7625 = vpop.f32.mrb[0].mxu0
    %v7626 = vadd.f32 %v7542, %v7625
    %7627 = vdwg.mxu0
    %v7628 = vmax.f32 %v7618, 0.0
    %v7629 = vmax.f32 %v7620, 0.0
    %v7630 = vmax.f32 %v7624, 0.0
    %v7631 = vmax.f32 %v7626, 0.0
    %s7632 = scalar_lea.vmem %s13, 768
    %v7633 = vld [vmem:[%s7632] sm:$0xff]
    %v7634 = vld [vmem:[%s7632 + $0x8] sm:$0xff]
    %v7635 = vld [vmem:[%s7632 + $0x10] sm:$0xff]
    %v7636 = vld [vmem:[%s7632 + $0x18] sm:$0xff]
    %v7637 = vld [vmem:[%s7632 + $0x20] sm:$0xff]
    %v7638 = vld [vmem:[%s7632 + $0x28] sm:$0xff]
    %v7639 = vld [vmem:[%s7632 + $0x30] sm:$0xff]
    %v7640 = vld [vmem:[%s7632 + $0x38] sm:$0xff]
    %v7641 = vld [vmem:[%s7632 + $0x40] sm:$0xff]
    %v7642 = vld [vmem:[%s7632 + $0x48] sm:$0xff]
    %v7643 = vld [vmem:[%s7632 + $0x50] sm:$0xff]
    %v7644 = vld [vmem:[%s7632 + $0x58] sm:$0xff]
    %v7645 = vld [vmem:[%s7632 + $0x60] sm:$0xff]
    %v7646 = vld [vmem:[%s7632 + $0x68] sm:$0xff]
    %v7647 = vld [vmem:[%s7632 + $0x70] sm:$0xff]
    %v7648 = vld [vmem:[%s7632 + $0x78] sm:$0xff]
    %v7649 = vld [vmem:[%s7632 + $0x80] sm:$0xff]
    %v7650 = vld [vmem:[%s7632 + $0x88] sm:$0xff]
    %v7651 = vld [vmem:[%s7632 + $0x90] sm:$0xff]
    %v7652 = vld [vmem:[%s7632 + $0x98] sm:$0xff]
    %v7653 = vld [vmem:[%s7632 + $0xa0] sm:$0xff]
    %v7654 = vld [vmem:[%s7632 + $0xa8] sm:$0xff]
    %v7655 = vld [vmem:[%s7632 + $0xb0] sm:$0xff]
    %v7656 = vld [vmem:[%s7632 + $0xb8] sm:$0xff]
    %v7657 = vld [vmem:[%s7632 + $0xc0] sm:$0xff]
    %v7658 = vld [vmem:[%s7632 + $0xc8] sm:$0xff]
    %v7659 = vld [vmem:[%s7632 + $0xd0] sm:$0xff]
    %v7660 = vld [vmem:[%s7632 + $0xd8] sm:$0xff]
    %v7661 = vld [vmem:[%s7632 + $0xe0] sm:$0xff]
    %v7662 = vld [vmem:[%s7632 + $0xe8] sm:$0xff]
    %v7663 = vld [vmem:[%s7632 + $0xf0] sm:$0xff]
    %v7664 = vld [vmem:[%s7632 + $0xf8] sm:$0xff]
    %s7665 = scalar_lea.vmem %s14, 3
    %v7666 = vld [vmem:[%s7665] sm:$0x1]
    %v7668 = vlaneseq
    %v7669 = vshrl.u32 %v7668, 7
    %v7670 = vsub.s32 0, %v7669
    %v7671 = vrot.slane %v7666, %v7670
    %7673 = vmatprep.subr.mxu0 0.0
    %7674 = vmatpush1.msra.mxu0 %v7633
    %7675 = vmatprep.subr.mxu0 0.0
    %7676 = vmatpush1.msra.mxu0 %v7634
    %7677 = vmatprep.subr.mxu0 0.0
    %7678 = vmatpush1.msra.mxu0 %v7635
    %7679 = vmatprep.subr.mxu0 0.0
    %7680 = vmatpush1.msra.mxu0 %v7636
    %7681 = vmatprep.subr.mxu0 0.0
    %7682 = vmatpush1.msra.mxu0 %v7637
    %7683 = vmatprep.subr.mxu0 0.0
    %7684 = vmatpush1.msra.mxu0 %v7638
    %7685 = vmatprep.subr.mxu0 0.0
    %7686 = vmatpush1.msra.mxu0 %v7639
    %7687 = vmatprep.subr.mxu0 0.0
    %7688 = vmatpush1.msra.mxu0 %v7640
    %7689 = vmatprep.subr.mxu0 0.0
    %7690 = vmatpush1.msra.mxu0 %v7641
    %7691 = vmatprep.subr.mxu0 0.0
    %7692 = vmatpush1.msra.mxu0 %v7642
    %7693 = vmatprep.subr.mxu0 0.0
    %7694 = vmatpush1.msra.mxu0 %v7643
    %7695 = vmatprep.subr.mxu0 0.0
    %7696 = vmatpush1.msra.mxu0 %v7644
    %7697 = vmatprep.subr.mxu0 0.0
    %7698 = vmatpush1.msra.mxu0 %v7645
    %7699 = vmatprep.subr.mxu0 0.0
    %7700 = vmatpush1.msra.mxu0 %v7646
    %7701 = vmatprep.subr.mxu0 0.0
    %7702 = vmatpush1.msra.mxu0 %v7647
    %7703 = vmatprep.subr.mxu0 0.0
    %7704 = vmatpush1.msra.mxu0 %v7648
    %7705 = vmatprep.subr.mxu0 0.0
    %7706 = vmatpush1.msra.mxu0 %v7649
    %7707 = vmatprep.subr.mxu0 0.0
    %7708 = vmatpush1.msra.mxu0 %v7650
    %7709 = vmatprep.subr.mxu0 0.0
    %7710 = vmatpush1.msra.mxu0 %v7651
    %7711 = vmatprep.subr.mxu0 0.0
    %7712 = vmatpush1.msra.mxu0 %v7652
    %7713 = vmatprep.subr.mxu0 0.0
    %7714 = vmatpush1.msra.mxu0 %v7653
    %7715 = vmatprep.subr.mxu0 0.0
    %7716 = vmatpush1.msra.mxu0 %v7654
    %7717 = vmatprep.subr.mxu0 0.0
    %7718 = vmatpush1.msra.mxu0 %v7655
    %7719 = vmatprep.subr.mxu0 0.0
    %7720 = vmatpush1.msra.mxu0 %v7656
    %7721 = vmatprep.subr.mxu0 0.0
    %7722 = vmatpush1.msra.mxu0 %v7657
    %7723 = vmatprep.subr.mxu0 0.0
    %7724 = vmatpush1.msra.mxu0 %v7658
    %7725 = vmatprep.subr.mxu0 0.0
    %7726 = vmatpush1.msra.mxu0 %v7659
    %7727 = vmatprep.subr.mxu0 0.0
    %7728 = vmatpush1.msra.mxu0 %v7660
    %7729 = vmatprep.subr.mxu0 0.0
    %7730 = vmatpush1.msra.mxu0 %v7661
    %7731 = vmatprep.subr.mxu0 0.0
    %7732 = vmatpush1.msra.mxu0 %v7662
    %7733 = vmatprep.subr.mxu0 0.0
    %7734 = vmatpush1.msra.mxu0 %v7663
    %7735 = vmatprep.subr.mxu0 0.0
    %7736 = vmatpush1.msra.mxu0 %v7664
    %7737 = vmatprep.mubr.f32.mxu0 %v7629
    %7738 = vmatmul.mubr.f32.gmra.mrb[0].mxu0 %v7628
    %v7739 = vpop.f32.mrb[0].mxu0
    %v7740 = vadd.f32 %v7671, %v7739
    %v7741 = vpop.f32.mrb[0].mxu0
    %7742 = vmatprep.mubr.f32.mxu0 %v7631
    %7743 = vmatmul.mubr.f32.gmra.mrb[0].mxu0 %v7630
    %v7744 = vpop.f32.mrb[0].mxu0
    %v7745 = vadd.f32 %v7671, %v7744
    %v7746 = vpop.f32.mrb[0].mxu0
    %7747 = vdwg.mxu0
    %v7748 = vadd.f32 %v7513, %v7740
    %v7749 = vadd.f32 %v7514, %v7745
    %s7750 = scalar_lea.vmem %s9, 3
    %v7751 = vld [vmem:[%s7750] sm:$0x1]
    %s7752 = scalar_lea.vmem %s10, 3
    %v7753 = vld [vmem:[%s7752] sm:$0x1]
    %v7754 = vsel %vm193, %v7748, 0.0
    %7755 = vadd.xlane.f32.xlu0 %v7754
    %v7756 = vpop.xlane.xlu0 %7755
    %v7757 = vsel %vm193, %v7749, 0.0
    %7758 = vadd.xlane.f32.xlu0 %v7757
    %v7759 = vpop.xlane.xlu0 %7758
    %v7760 = vmul.f32 %v7756, %v1784
    %v7761 = vmul.f32 %v7759, %v1784
    %v7762 = vsub.f32 %v7748, %v7760
    %v7763 = vsub.f32 %v7749, %v7761
    %v7764 = vmul.f32 %v7762, %v7762
    %v7765 = vmul.f32 %v7763, %v7763
    %v7766 = vsel %vm193, %v7764, 0.0
    %7767 = vadd.xlane.f32.xlu0 %v7766
    %v7768 = vpop.xlane.xlu0 %7767
    %v7769 = vsel %vm193, %v7765, 0.0
    %7770 = vadd.xlane.f32.xlu0 %v7769
    %v7771 = vpop.xlane.xlu0 %7770
    %v7772 = vmul.f32 %v7768, %v1784
    %v7773 = vmul.f32 %v7771, %v1784
    %v7774 = vadd.f32 %v7772, 1e-05
    %v7775 = vadd.f32 %v7773, 1e-05
    %v7776 = vrsqrt.pop %v7774
    %v7777 = vrsqrt.pop %v7775
    %v7778 = vmul.f32 %v7762, %v7776
    %v7779 = vmul.f32 %v7763, %v7777
    %v7781 = vlaneseq
    %v7782 = vshrl.u32 %v7781, 7
    %v7783 = vsub.s32 0, %v7782
    %v7784 = vrot.slane %v7751, %v7783
    %v7786 = vmul.f32 %v7778, %v7784
    %v7787 = vmul.f32 %v7779, %v7784
    %v7789 = vlaneseq
    %v7790 = vshrl.u32 %v7789, 7
    %v7791 = vsub.s32 0, %v7790
    %v7792 = vrot.slane %v7753, %v7791
    %v7794 = vadd.f32 %v7786, %v7792
    %v7795 = vadd.f32 %v7787, %v7792
    %v7796 = vsel %vm193, %v7794, 0.0
    %v7797 = vrot.slane %v7796, 4
    %v7798 = vadd.f32 %v7796, %v7797
    %v7799 = vrot.slane %v7798, 2
    %v7800 = vadd.f32 %v7798, %v7799
    %v7801 = vrot.slane %v7800, 1
    %v7802 = vadd.f32 %v7800, %v7801
    %v7803 = vsel %vm193, %v7795, 0.0
    %v7804 = vrot.slane %v7803, 4
    %v7805 = vadd.f32 %v7803, %v7804
    %v7806 = vrot.slane %v7805, 2
    %v7807 = vadd.f32 %v7805, %v7806
    %v7808 = vrot.slane %v7807, 1
    %v7809 = vadd.f32 %v7807, %v7808
    %v7810 = vrcp.pop 8.0
    %v7811 = vmul.f32 %v7802, %v7810
    %v7812 = vmul.f32 %v7809, %v7810
    %v7815 = vsel %vm450, %v7812, %v7811
    %vm7817 = vcmask 517120
    %v7818 = vsel %vm7817, %v7815, -inf
    %7819 = vmax.xlane.f32.xlu0 %v7818
    %v7820 = vpop.xlane.xlu0 %7819
    %v7822 = vrot.slane %v7820, 1
    %v7825 = vsub.f32 %v7811, %v7820
    %v7826 = vsub.f32 %v7812, %v7822
    %v7827 = vmul.f32 %v7825, 1.442695
    %v7828 = vpow.pop %v7827
    %v7829 = vmul.f32 %v7826, 1.442695
    %v7830 = vpow.pop %v7829
    %v7833 = vrot.slane %v7830, 7
    %v7834 = vsel %vm450, %v7833, %v7828
    %v7836 = vsel %vm7817, %v7834, 0.0
    %7837 = vadd.xlane.f32.xlu0 %v7836
    %v7838 = vpop.xlane.xlu0 %7837
    %v7840 = vrot.slane %v7838, 1
    %v7843 = vrcp.pop %v7838
    %v7844 = vmul.f32 %v7828, %v7843
    %v7845 = vrcp.pop %v7840
    %v7846 = vmul.f32 %v7830, %v7845
    %v7849 = vrot.slane %v7846, 7
    %v7850 = vsel %vm450, %v7849, %v7844
    %7852 = vst.msk [vmem:[#allocation2] sm:$0x3] %vm7817, %v7850
    // Predicated region
    $region62: #{transformer_cls_forward.1} parent=1 // pred_check
      _
    $region63: #{transformer_cls_forward.1} parent=1 // pred_check_branch
      %7854 = sbr.rel (0) target = $region65
    $region64: #{transformer_cls_forward.1} parent=1 // pred_region
      %s7856 = ssub.s32 32, 32
      %7857 = vsyncadd [#allocation3], %s7856
      %s7859 = sshll.u32 [#allocation2], 4
      %s7860 = int_to_ptr.vmem [resolvable:$true] %s7859
      %7862 = dma.vmem_to_hbm [thread:$0]  %s7860, 32, %s15, [#allocation3]
    $region65: #{transformer_cls_forward.1} parent=1 // pred_fallthru
      _
    // Predicated region
    $region66: #{transformer_cls_forward.1} parent=1 // pred_check
      _
    $region67: #{transformer_cls_forward.1} parent=1 // pred_check_branch
      %7864 = sbr.rel (0) target = $region69
    $region68: #{transformer_cls_forward.1} parent=1 // pred_region
      %7865 = dma.done [#allocation3], 32
    $region69: #{transformer_cls_forward.1} parent=1 // pred_fallthru
      _
    %7866 = vsyncpa [#allocation3], 1

</llo_original>
